<compile_context>
chip_gen: v7x
topology: tpu7x:2x2x1
jax: 0.10.0
libtpu: 0.0.40
codegen_flags: <defaults>
</compile_context>

<pallas_src>
import jax
import jax.numpy as jnp
from jax.experimental import pallas as pl
from jax.experimental.pallas import tpu as pltpu


def _round_up(x, m):
    return (x + m - 1) // m * m


def init_params(key, k=3):
    """Synthetic (out, in) parameters, BatchNorm folded in eval mode."""
    sizes = [(k, 64), (64, 128), (128, 1024), (1024, 512), (512, 256), (256, k * k)]
    keys = jax.random.split(key, 6 * len(sizes))
    params = []
    for i, (cin, cout) in enumerate(sizes):
        kw, kb, kg, kbeta, km, kv = keys[6 * i:6 * i + 6]
        w = 0.1 * jax.random.normal(kw, (cout, cin), jnp.float32)   # (out, in)
        b = 0.1 * jax.random.normal(kb, (cout,), jnp.float32)
        if i < 5:  # layers 1..5 have BatchNorm; fc3 does not.
            gamma = 1.0 + 0.1 * jax.random.normal(kg, (cout,), jnp.float32)
            beta = 0.1 * jax.random.normal(kbeta, (cout,), jnp.float32)
            mean = 0.05 * jax.random.normal(km, (cout,), jnp.float32)
            var = 1.0 + 0.1 * jax.random.uniform(kv, (cout,), jnp.float32)
            scale = gamma / jnp.sqrt(var + 1e-5)
            w = w * scale[:, None]
            b = b * scale + (beta - mean * scale)
        params.append((w, b))
    return params


def tnet_forward(x_ncw, params, k=3, b_tile=8, n_chunk=256):
    """x_ncw: (bs, k, N) float32 — PyTorch Conv1d NCW layout. Returns (bs, k, k)."""
    bs, kk, n = x_ncw.shape
    assert kk == k

    # ---- tile-size selection -------------------------------------------------
    b_tile = max(1, min(b_tile, bs))
    if bs >= 2:
        # Guarantee >= 2 batch tiles so the 'parallel' axis can use both
        # TensorCores on v7x (harmless elsewhere).
        b_tile = min(b_tile, max(1, bs // 2))
    n_chunk = min(n_chunk, _round_up(n, 128))
    n_chunk = _round_up(n_chunk, 128)
    bs_pad = _round_up(bs, b_tile)
    n_pad = _round_up(n, n_chunk)
    nb = bs_pad // b_tile
    nchunks = n_pad // n_chunk
    ragged = (n % n_chunk) != 0          # only then is the last chunk masked

    kp = _round_up(k, 8)                 # pad tiny channel-in axis of conv1 to 8
    c3 = params[2][0].shape[0]           # 1024
    kk2 = k * k
    w_cols = b_tile * n_chunk            # W: fused (batch, points) rows per chunk

    # ---- input: NCW -> channels-last (bs, N, kp), zero-padded ----------------
    # x is tiny (k channels); this transpose+pad is one cheap fused XLA op.
    x_nwc = jnp.transpose(x_ncw, (0, 2, 1)).astype(jnp.float32)
    x_p = jnp.zeros((bs_pad, n_pad, kp), jnp.float32).at[:bs, :n, :k].set(x_nwc)

    # ---- weights: transposed to (cin, cout); bf16 for MXU layers --------------
    (w1, b1), (w2, b2), (w3, b3), (w4, b4), (w5, b5), (w6, b6) = params
    w1t = jnp.zeros((kp, w1.shape[0]), jnp.float32).at[:k, :].set(
        w1.T.astype(jnp.float32))                      # conv1 stays f32
    weight_args = [
        w1t, b1.reshape(1, -1).astype(jnp.float32),
        w2.T.astype(jnp.bfloat16), b2.reshape(1, -1).astype(jnp.float32),
        w3.T.astype(jnp.bfloat16), b3.reshape(1, -1).astype(jnp.float32),
        w4.T.astype(jnp.bfloat16), b4.reshape(1, -1).astype(jnp.float32),
        w5.T.astype(jnp.bfloat16), b5.reshape(1, -1).astype(jnp.float32),
        w6.T.astype(jnp.bfloat16), b6.reshape(1, -1).astype(jnp.float32),
        jnp.eye(k, dtype=jnp.float32).reshape(1, kk2),
    ]

    def kernel(x_ref,
               w1_ref, b1_ref, w2_ref, b2_ref, w3_ref, b3_ref,
               w4_ref, b4_ref, w5_ref, b5_ref, w6_ref, b6_ref,
               eye_ref, out_ref, acc_ref):
        ci = pl.program_id(1)
        last = pl.num_programs(1) - 1

        @pl.when(ci == 0)
        def _init():
            acc_ref[...] = jnp.full((b_tile, c3), -jnp.inf, jnp.float32)

        # Fused wide slab: (b_tile, n_chunk, kp) -> (W, kp). Splitting/merging
        # the major axis at a multiple of 8 is layout-preserving.
        xw = x_ref[...].reshape(w_cols, kp)                       # (W, kp) f32

        # conv1 (K = kp, tiny) in f32; conv2/conv3 on the MXU in bf16/f32-acc.
        h1 = jnp.dot(xw, w1_ref[...], preferred_element_type=jnp.float32)
        h1 = jnp.maximum(h1 + b1_ref[...], 0.0).astype(jnp.bfloat16)   # (W, 64)
        h2 = jnp.dot(h1, w2_ref[...], preferred_element_type=jnp.float32)
        h2 = jnp.maximum(h2 + b2_ref[...], 0.0).astype(jnp.bfloat16)   # (W, 128)
        # conv3 RAW output: bias + ReLU deferred past the max (monotone).
        z3 = jnp.dot(h2, w3_ref[...], preferred_element_type=jnp.float32)
        z3 = z3.reshape(b_tile, n_chunk, c3)                      # free split

        def fold(z):
            # One (b_tile, 1024) read-modify-write per chunk; the reduce over
            # axis=1 is sublane-direction (VALU folds + a few XLU steps).
            acc_ref[...] = jnp.maximum(acc_ref[...], jnp.max(z, axis=1))

        if ragged:
            @pl.when(ci < last)
            def _interior():
                fold(z3)                                          # no mask cost

            @pl.when(ci == last)
            def _tail():
                # Padded points are zero in x but produce nonzero z3 through
                # the conv1/conv2 biases -> must be excluded before the max.
                j = jax.lax.broadcasted_iota(jnp.int32, (1, n_chunk, 1), 1)
                valid = (ci * n_chunk + j) < n
                fold(jnp.where(valid, z3, -jnp.inf))
        else:
            fold(z3)

        # FC head once per batch tile, on the pooled (b_tile, 1024) matrix.
        @pl.when(ci == last)
        def _head():
            pooled = jnp.maximum(acc_ref[...] + b3_ref[...], 0.0)   # deferred bn3/relu
            pooled = pooled.astype(jnp.bfloat16)                    # (b_tile, 1024)
            f = jnp.dot(pooled, w4_ref[...], preferred_element_type=jnp.float32)
            f = jnp.maximum(f + b4_ref[...], 0.0).astype(jnp.bfloat16)   # (b_tile, 512)
            f = jnp.dot(f, w5_ref[...], preferred_element_type=jnp.float32)
            f = jnp.maximum(f + b5_ref[...], 0.0).astype(jnp.bfloat16)   # (b_tile, 256)
            m = jnp.dot(f, w6_ref[...], preferred_element_type=jnp.float32)
            out_ref[0] = m + b6_ref[...] + eye_ref[...]                  # (b_tile, k*k)

    in_specs = [pl.BlockSpec((b_tile, n_chunk, kp), lambda bi, ci: (bi, ci, 0))]
    for arr in weight_args:
        # Full-array, constant-index blocks: weights/biases stay VMEM-resident.
        in_specs.append(pl.BlockSpec(arr.shape, lambda bi, ci: (0, 0)))

    out = pl.pallas_call(
        kernel,
        out_shape=jax.ShapeDtypeStruct((nb, b_tile, kk2), jnp.float32),
        grid_spec=pltpu.PrefetchScalarGridSpec(
            num_scalar_prefetch=0,
            grid=(nb, nchunks),
            in_specs=in_specs,
            out_specs=pl.BlockSpec((1, b_tile, kk2), lambda bi, ci: (bi, 0, 0)),
            scratch_shapes=[pltpu.VMEM((b_tile, c3), jnp.float32)],
        ),
        compiler_params=pltpu.CompilerParams(
            dimension_semantics=("parallel", "arbitrary"),
            vmem_limit_bytes=48 * 1024 * 1024,   # fits v7x (64 MiB) and v5e/v6e
        ),
    )(x_p, *weight_args)

    out = out.reshape(bs_pad, kk2)[:bs]
    return out.reshape(bs, k, k)


def tnet_reference(x_ncw, params, k=3):
    """Pure-JAX reference (f32 activations; same bf16-rounded matmul weights)."""
    h = x_ncw.astype(jnp.float32)                              # (bs, k, N)
    for i in range(3):
        w, b = params[i]
        wf = w if i == 0 else w.astype(jnp.bfloat16).astype(jnp.float32)
        h = jnp.maximum(jnp.einsum('oc,bcn->bon', wf, h) + b[None, :, None], 0.0)
    f = jnp.max(h, axis=-1)                                    # (bs, 1024)
    for i in range(3, 6):
        w, b = params[i]
        wf = w.astype(jnp.bfloat16).astype(jnp.float32)
        f = f @ wf.T + b[None, :]
        if i < 5:
            f = jnp.maximum(f, 0.0)
    return f.reshape(-1, k, k) + jnp.eye(k, dtype=jnp.float32)[None]


if __name__ == "__main__":
    key = jax.random.PRNGKey(0)
    k = 3
    bs, n_points = 4, 300                      # ragged last chunk + 2 batch tiles
    kx, kparam = jax.random.split(key)
    x = jax.random.normal(kx, (bs, k, n_points), jnp.float32)   # PyTorch NCW layout

    params = init_params(kparam, k=k)
    out = tnet_forward(x, params, k=k)         # defaults -> b_tile=2, n_chunk=256
    jax.block_until_ready(out)
    assert out.shape == (bs, k, k)

    ref = tnet_reference(x, params, k=k)
    assert jnp.allclose(out, ref, rtol=5e-2, atol=5e-2), float(jnp.max(jnp.abs(out - ref)))
    print("KERNEL_OK")
</pallas_src>

<mosaic_0001>
module attributes {stable_mosaic.version = 11 : i64} {
  func.func @kernel(%arg0: i32, %arg1: i32, %arg2: memref<2x256x8xf32, #tpu.memory_space<vmem>>, %arg3: memref<8x64xf32, #tpu.memory_space<vmem>>, %arg4: memref<1x64xf32, #tpu.memory_space<vmem>>, %arg5: memref<64x128xbf16, #tpu.memory_space<vmem>>, %arg6: memref<1x128xf32, #tpu.memory_space<vmem>>, %arg7: memref<128x1024xbf16, #tpu.memory_space<vmem>>, %arg8: memref<1x1024xf32, #tpu.memory_space<vmem>>, %arg9: memref<1024x512xbf16, #tpu.memory_space<vmem>>, %arg10: memref<1x512xf32, #tpu.memory_space<vmem>>, %arg11: memref<512x256xbf16, #tpu.memory_space<vmem>>, %arg12: memref<1x256xf32, #tpu.memory_space<vmem>>, %arg13: memref<256x9xbf16, #tpu.memory_space<vmem>>, %arg14: memref<1x9xf32, #tpu.memory_space<vmem>>, %arg15: memref<1x9xf32, #tpu.memory_space<vmem>>, %arg16: memref<1x2x9xf32, #tpu.memory_space<vmem>>, %arg17: memref<2x1024xf32, #tpu.memory_space<vmem>>) attributes {dimension_semantics = [#tpu.dimension_semantics<parallel>, #tpu.dimension_semantics<arbitrary>], iteration_bounds = array<i64: 2, 2>, scalar_prefetch = 0 : i64, scratch_operands = 1 : i64, tpu.core_type = #tpu.core_type<tc>, window_params = [{transform_indices = @transform_0, window_bounds = array<i64: 2, 256, 8>}, {pipeline_mode = #tpu.pipeline_mode<synchronous>, transform_indices = @transform_1, window_bounds = array<i64: 8, 64>}, {pipeline_mode = #tpu.pipeline_mode<synchronous>, transform_indices = @transform_2, window_bounds = array<i64: 1, 64>}, {pipeline_mode = #tpu.pipeline_mode<synchronous>, transform_indices = @transform_3, window_bounds = array<i64: 64, 128>}, {pipeline_mode = #tpu.pipeline_mode<synchronous>, transform_indices = @transform_4, window_bounds = array<i64: 1, 128>}, {pipeline_mode = #tpu.pipeline_mode<synchronous>, transform_indices = @transform_5, window_bounds = array<i64: 128, 1024>}, {pipeline_mode = #tpu.pipeline_mode<synchronous>, transform_indices = @transform_6, window_bounds = array<i64: 1, 1024>}, {pipeline_mode = #tpu.pipeline_mode<synchronous>, transform_indices = @transform_7, window_bounds = array<i64: 1024, 512>}, {pipeline_mode = #tpu.pipeline_mode<synchronous>, transform_indices = @transform_8, window_bounds = array<i64: 1, 512>}, {pipeline_mode = #tpu.pipeline_mode<synchronous>, transform_indices = @transform_9, window_bounds = array<i64: 512, 256>}, {pipeline_mode = #tpu.pipeline_mode<synchronous>, transform_indices = @transform_10, window_bounds = array<i64: 1, 256>}, {pipeline_mode = #tpu.pipeline_mode<synchronous>, transform_indices = @transform_11, window_bounds = array<i64: 256, 9>}, {pipeline_mode = #tpu.pipeline_mode<synchronous>, transform_indices = @transform_12, window_bounds = array<i64: 1, 9>}, {pipeline_mode = #tpu.pipeline_mode<synchronous>, transform_indices = @transform_13, window_bounds = array<i64: 1, 9>}, {transform_indices = @transform_14, window_bounds = array<i64: 1, 2, 9>}]} {
    %c0_i32 = arith.constant 0 : i32
    %0 = arith.cmpi eq, %arg1, %c0_i32 : i32
    %1 = arith.extui %0 : i1 to i32
    %c0_i32_0 = arith.constant 0 : i32
    %2 = arith.cmpi ne, %1, %c0_i32_0 : i32
    scf.if %2 {
      %cst_22 = arith.constant 0xFF800000 : f32
      %33 = vector.broadcast %cst_22 : f32 to vector<2x1024xf32>
      %c0_23 = arith.constant 0 : index
      %c0_24 = arith.constant 0 : index
      %34 = vector.load %arg17[%c0_23, %c0_24] : memref<2x1024xf32, #tpu.memory_space<vmem>>, vector<2x1024xf32>
      tpu.vector_store %arg17[%c0_23, %c0_24], %33 {strides = array<i32>} : memref<2x1024xf32, #tpu.memory_space<vmem>>, vector<2x1024xf32>,
    } else {
    }
    %c0 = arith.constant 0 : index
    %c0_1 = arith.constant 0 : index
    %c0_2 = arith.constant 0 : index
    %3 = vector.load %arg2[%c0, %c0_1, %c0_2] : memref<2x256x8xf32, #tpu.memory_space<vmem>>, vector<2x256x8xf32>
    %4 = vector.shape_cast %3 : vector<2x256x8xf32> to vector<512x8xf32>
    %c0_3 = arith.constant 0 : index
    %c0_4 = arith.constant 0 : index
    %5 = vector.load %arg3[%c0_3, %c0_4] : memref<8x64xf32, #tpu.memory_space<vmem>>, vector<8x64xf32>
    %cst = arith.constant dense<0.000000e+00> : vector<512x64xf32>
    %6 = tpu.matmul %4, %5, %cst {dimension_numbers = #tpu.dot_dimension_numbers<[1], [0], [0], [1], [0, 0, 1, 1], [], []>} : vector<512x8xf32>, vector<8x64xf32>, vector<512x64xf32> -> vector<512x64xf32>
    %c0_5 = arith.constant 0 : index
    %c0_6 = arith.constant 0 : index
    %7 = vector.load %arg4[%c0_5, %c0_6] : memref<1x64xf32, #tpu.memory_space<vmem>>, vector<1x64xf32>
    %8 = vector.broadcast %7 : vector<1x64xf32> to vector<512x64xf32>
    %9 = arith.addf %6, %8 : vector<512x64xf32>
    %cst_7 = arith.constant 0.000000e+00 : f32
    %10 = vector.broadcast %cst_7 : f32 to vector<512x64xf32>
    %11 = arith.maximumf %9, %10 : vector<512x64xf32>
    %12 = arith.truncf %11 : vector<512x64xf32> to vector<512x64xbf16>
    %c0_8 = arith.constant 0 : index
    %c0_9 = arith.constant 0 : index
    %13 = vector.load %arg5[%c0_8, %c0_9] : memref<64x128xbf16, #tpu.memory_space<vmem>>, vector<64x128xbf16>
    %cst_10 = arith.constant dense<0.000000e+00> : vector<512x128xf32>
    %14 = tpu.matmul %12, %13, %cst_10 {dimension_numbers = #tpu.dot_dimension_numbers<[1], [0], [0], [1], [0, 0, 1, 1], [], []>} : vector<512x64xbf16>, vector<64x128xbf16>, vector<512x128xf32> -> vector<512x128xf32>
    %c0_11 = arith.constant 0 : index
    %c0_12 = arith.constant 0 : index
    %15 = vector.load %arg6[%c0_11, %c0_12] : memref<1x128xf32, #tpu.memory_space<vmem>>, vector<1x128xf32>
    %16 = vector.broadcast %15 : vector<1x128xf32> to vector<512x128xf32>
    %17 = arith.addf %14, %16 : vector<512x128xf32>
    %cst_13 = arith.constant 0.000000e+00 : f32
    %18 = vector.broadcast %cst_13 : f32 to vector<512x128xf32>
    %19 = arith.maximumf %17, %18 : vector<512x128xf32>
    %20 = arith.truncf %19 : vector<512x128xf32> to vector<512x128xbf16>
    %c0_14 = arith.constant 0 : index
    %c0_15 = arith.constant 0 : index
    %21 = vector.load %arg7[%c0_14, %c0_15] : memref<128x1024xbf16, #tpu.memory_space<vmem>>, vector<128x1024xbf16>
    %cst_16 = arith.constant dense<0.000000e+00> : vector<512x1024xf32>
    %22 = tpu.matmul %20, %21, %cst_16 {dimension_numbers = #tpu.dot_dimension_numbers<[1], [0], [0], [1], [0, 0, 1, 1], [], []>} : vector<512x128xbf16>, vector<128x1024xbf16>, vector<512x1024xf32> -> vector<512x1024xf32>
    %23 = vector.shape_cast %22 : vector<512x1024xf32> to vector<2x256x1024xf32>
    %c1_i32 = arith.constant 1 : i32
    %24 = arith.cmpi slt, %arg1, %c1_i32 : i32
    %25 = arith.extui %24 : i1 to i32
    %c0_i32_17 = arith.constant 0 : i32
    %26 = arith.cmpi ne, %25, %c0_i32_17 : i32
    scf.if %26 {
      %c0_22 = arith.constant 0 : index
      %c0_23 = arith.constant 0 : index
      %33 = vector.load %arg17[%c0_22, %c0_23] : memref<2x1024xf32, #tpu.memory_space<vmem>>, vector<2x1024xf32>
      %cst_24 = arith.constant dense<0xFF800000> : vector<2x1024xf32>
      %34 = vector.multi_reduction <maximumf>, %23, %cst_24 [1] : vector<2x256x1024xf32> to vector<2x1024xf32>
      %35 = arith.maximumf %33, %34 : vector<2x1024xf32>
      %c0_25 = arith.constant 0 : index
      %c0_26 = arith.constant 0 : index
      %36 = vector.load %arg17[%c0_25, %c0_26] : memref<2x1024xf32, #tpu.memory_space<vmem>>, vector<2x1024xf32>
      tpu.vector_store %arg17[%c0_25, %c0_26], %35 {strides = array<i32>} : memref<2x1024xf32, #tpu.memory_space<vmem>>, vector<2x1024xf32>,
    } else {
    }
    %c1_i32_18 = arith.constant 1 : i32
    %27 = arith.cmpi eq, %arg1, %c1_i32_18 : i32
    %28 = arith.extui %27 : i1 to i32
    %c0_i32_19 = arith.constant 0 : i32
    %29 = arith.cmpi ne, %28, %c0_i32_19 : i32
    scf.if %29 {
      %33 = tpu.iota {dimensions = array<i32: 1>} : vector<1x256x1xi32>
      %c256_i32 = arith.constant 256 : i32
      %34 = arith.muli %arg1, %c256_i32 : i32
      %35 = vector.broadcast %34 : i32 to vector<1x256x1xi32>
      %36 = arith.addi %35, %33 : vector<1x256x1xi32>
      %c300_i32 = arith.constant 300 : i32
      %37 = vector.broadcast %c300_i32 : i32 to vector<1x256x1xi32>
      %38 = arith.cmpi slt, %36, %37 : vector<1x256x1xi32>
      %cst_22 = arith.constant 0xFF800000 : f32
      %39 = vector.shape_cast %38 : vector<1x256x1xi1> to vector<1x256x1xi1>
      %40 = vector.broadcast %39 : vector<1x256x1xi1> to vector<2x256x1024xi1>
      %41 = vector.broadcast %cst_22 : f32 to vector<2x256x1024xf32>
      %42 = arith.select %40, %23, %41 : vector<2x256x1024xi1>, vector<2x256x1024xf32>
      %c0_23 = arith.constant 0 : index
      %c0_24 = arith.constant 0 : index
      %43 = vector.load %arg17[%c0_23, %c0_24] : memref<2x1024xf32, #tpu.memory_space<vmem>>, vector<2x1024xf32>
      %cst_25 = arith.constant dense<0xFF800000> : vector<2x1024xf32>
      %44 = vector.multi_reduction <maximumf>, %42, %cst_25 [1] : vector<2x256x1024xf32> to vector<2x1024xf32>
      %45 = arith.maximumf %43, %44 : vector<2x1024xf32>
      %c0_26 = arith.constant 0 : index
      %c0_27 = arith.constant 0 : index
      %46 = vector.load %arg17[%c0_26, %c0_27] : memref<2x1024xf32, #tpu.memory_space<vmem>>, vector<2x1024xf32>
      tpu.vector_store %arg17[%c0_26, %c0_27], %45 {strides = array<i32>} : memref<2x1024xf32, #tpu.memory_space<vmem>>, vector<2x1024xf32>,
    } else {
    }
    %c1_i32_20 = arith.constant 1 : i32
    %30 = arith.cmpi eq, %arg1, %c1_i32_20 : i32
    %31 = arith.extui %30 : i1 to i32
    %c0_i32_21 = arith.constant 0 : i32
    %32 = arith.cmpi ne, %31, %c0_i32_21 : i32
    scf.if %32 {
      %c0_22 = arith.constant 0 : index
      %c0_23 = arith.constant 0 : index
      %33 = vector.load %arg17[%c0_22, %c0_23] : memref<2x1024xf32, #tpu.memory_space<vmem>>, vector<2x1024xf32>
      %c0_24 = arith.constant 0 : index
      %c0_25 = arith.constant 0 : index
      %34 = vector.load %arg8[%c0_24, %c0_25] : memref<1x1024xf32, #tpu.memory_space<vmem>>, vector<1x1024xf32>
      %35 = vector.broadcast %34 : vector<1x1024xf32> to vector<2x1024xf32>
      %36 = arith.addf %33, %35 : vector<2x1024xf32>
      %cst_26 = arith.constant 0.000000e+00 : f32
      %37 = vector.broadcast %cst_26 : f32 to vector<2x1024xf32>
      %38 = arith.maximumf %36, %37 : vector<2x1024xf32>
      %39 = arith.truncf %38 : vector<2x1024xf32> to vector<2x1024xbf16>
      %c0_27 = arith.constant 0 : index
      %c0_28 = arith.constant 0 : index
      %40 = vector.load %arg9[%c0_27, %c0_28] : memref<1024x512xbf16, #tpu.memory_space<vmem>>, vector<1024x512xbf16>
      %cst_29 = arith.constant dense<0.000000e+00> : vector<2x512xf32>
      %41 = tpu.matmul %39, %40, %cst_29 {dimension_numbers = #tpu.dot_dimension_numbers<[1], [0], [0], [1], [0, 0, 1, 1], [], []>} : vector<2x1024xbf16>, vector<1024x512xbf16>, vector<2x512xf32> -> vector<2x512xf32>
      %c0_30 = arith.constant 0 : index
      %c0_31 = arith.constant 0 : index
      %42 = vector.load %arg10[%c0_30, %c0_31] : memref<1x512xf32, #tpu.memory_space<vmem>>, vector<1x512xf32>
      %43 = vector.broadcast %42 : vector<1x512xf32> to vector<2x512xf32>
      %44 = arith.addf %41, %43 : vector<2x512xf32>
      %cst_32 = arith.constant 0.000000e+00 : f32
      %45 = vector.broadcast %cst_32 : f32 to vector<2x512xf32>
      %46 = arith.maximumf %44, %45 : vector<2x512xf32>
      %47 = arith.truncf %46 : vector<2x512xf32> to vector<2x512xbf16>
      %c0_33 = arith.constant 0 : index
      %c0_34 = arith.constant 0 : index
      %48 = vector.load %arg11[%c0_33, %c0_34] : memref<512x256xbf16, #tpu.memory_space<vmem>>, vector<512x256xbf16>
      %cst_35 = arith.constant dense<0.000000e+00> : vector<2x256xf32>
      %49 = tpu.matmul %47, %48, %cst_35 {dimension_numbers = #tpu.dot_dimension_numbers<[1], [0], [0], [1], [0, 0, 1, 1], [], []>} : vector<2x512xbf16>, vector<512x256xbf16>, vector<2x256xf32> -> vector<2x256xf32>
      %c0_36 = arith.constant 0 : index
      %c0_37 = arith.constant 0 : index
      %50 = vector.load %arg12[%c0_36, %c0_37] : memref<1x256xf32, #tpu.memory_space<vmem>>, vector<1x256xf32>
      %51 = vector.broadcast %50 : vector<1x256xf32> to vector<2x256xf32>
      %52 = arith.addf %49, %51 : vector<2x256xf32>
      %cst_38 = arith.constant 0.000000e+00 : f32
      %53 = vector.broadcast %cst_38 : f32 to vector<2x256xf32>
      %54 = arith.maximumf %52, %53 : vector<2x256xf32>
      %55 = arith.truncf %54 : vector<2x256xf32> to vector<2x256xbf16>
      %c0_39 = arith.constant 0 : index
      %c0_40 = arith.constant 0 : index
      %56 = vector.load %arg13[%c0_39, %c0_40] : memref<256x9xbf16, #tpu.memory_space<vmem>>, vector<256x9xbf16>
      %cst_41 = arith.constant dense<0.000000e+00> : vector<2x9xf32>
      %57 = tpu.matmul %55, %56, %cst_41 {dimension_numbers = #tpu.dot_dimension_numbers<[1], [0], [0], [1], [0, 0, 1, 1], [], []>} : vector<2x256xbf16>, vector<256x9xbf16>, vector<2x9xf32> -> vector<2x9xf32>
      %c0_42 = arith.constant 0 : index
      %c0_43 = arith.constant 0 : index
      %58 = vector.load %arg14[%c0_42, %c0_43] : memref<1x9xf32, #tpu.memory_space<vmem>>, vector<1x9xf32>
      %59 = vector.broadcast %58 : vector<1x9xf32> to vector<2x9xf32>
      %60 = arith.addf %57, %59 : vector<2x9xf32>
      %c0_44 = arith.constant 0 : index
      %c0_45 = arith.constant 0 : index
      %61 = vector.load %arg15[%c0_44, %c0_45] : memref<1x9xf32, #tpu.memory_space<vmem>>, vector<1x9xf32>
      %62 = vector.broadcast %61 : vector<1x9xf32> to vector<2x9xf32>
      %63 = arith.addf %60, %62 : vector<2x9xf32>
      %c0_46 = arith.constant 0 : index
      %c0_47 = arith.constant 0 : index
      %c0_48 = arith.constant 0 : index
      %64 = vector.load %arg16[%c0_46, %c0_47, %c0_48] : memref<1x2x9xf32, #tpu.memory_space<vmem>>, vector<1x2x9xf32>
      %65 = vector.shape_cast %64 : vector<1x2x9xf32> to vector<2x9xf32>
      %66 = vector.shape_cast %63 : vector<2x9xf32> to vector<1x2x9xf32>
      tpu.vector_store %arg16[%c0_46, %c0_47, %c0_48], %66 {strides = array<i32>} : memref<1x2x9xf32, #tpu.memory_space<vmem>>, vector<1x2x9xf32>,
    } else {
    }
    return
  }
  func.func @transform_0(%arg0: i32, %arg1: i32) -> (i32, i32, i32) {
    %c0_i32 = arith.constant 0 : i32
    %c0_i32_0 = arith.constant 0 : i32
    return %arg0, %arg1, %c0_i32 : i32, i32, i32
  }
  func.func @transform_1(%arg0: i32, %arg1: i32) -> (i32, i32) {
    %c0_i32 = arith.constant 0 : i32
    %c0_i32_0 = arith.constant 0 : i32
    %c0_i32_1 = arith.constant 0 : i32
    return %c0_i32, %c0_i32_0 : i32, i32
  }
  func.func @transform_2(%arg0: i32, %arg1: i32) -> (i32, i32) {
    %c0_i32 = arith.constant 0 : i32
    %c0_i32_0 = arith.constant 0 : i32
    %c0_i32_1 = arith.constant 0 : i32
    return %c0_i32, %c0_i32_0 : i32, i32
  }
  func.func @transform_3(%arg0: i32, %arg1: i32) -> (i32, i32) {
    %c0_i32 = arith.constant 0 : i32
    %c0_i32_0 = arith.constant 0 : i32
    %c0_i32_1 = arith.constant 0 : i32
    return %c0_i32, %c0_i32_0 : i32, i32
  }
  func.func @transform_4(%arg0: i32, %arg1: i32) -> (i32, i32) {
    %c0_i32 = arith.constant 0 : i32
    %c0_i32_0 = arith.constant 0 : i32
    %c0_i32_1 = arith.constant 0 : i32
    return %c0_i32, %c0_i32_0 : i32, i32
  }
  func.func @transform_5(%arg0: i32, %arg1: i32) -> (i32, i32) {
    %c0_i32 = arith.constant 0 : i32
    %c0_i32_0 = arith.constant 0 : i32
    %c0_i32_1 = arith.constant 0 : i32
    return %c0_i32, %c0_i32_0 : i32, i32
  }
  func.func @transform_6(%arg0: i32, %arg1: i32) -> (i32, i32) {
    %c0_i32 = arith.constant 0 : i32
    %c0_i32_0 = arith.constant 0 : i32
    %c0_i32_1 = arith.constant 0 : i32
    return %c0_i32, %c0_i32_0 : i32, i32
  }
  func.func @transform_7(%arg0: i32, %arg1: i32) -> (i32, i32) {
    %c0_i32 = arith.constant 0 : i32
    %c0_i32_0 = arith.constant 0 : i32
    %c0_i32_1 = arith.constant 0 : i32
    return %c0_i32, %c0_i32_0 : i32, i32
  }
  func.func @transform_8(%arg0: i32, %arg1: i32) -> (i32, i32) {
    %c0_i32 = arith.constant 0 : i32
    %c0_i32_0 = arith.constant 0 : i32
    %c0_i32_1 = arith.constant 0 : i32
    return %c0_i32, %c0_i32_0 : i32, i32
  }
  func.func @transform_9(%arg0: i32, %arg1: i32) -> (i32, i32) {
    %c0_i32 = arith.constant 0 : i32
    %c0_i32_0 = arith.constant 0 : i32
    %c0_i32_1 = arith.constant 0 : i32
    return %c0_i32, %c0_i32_0 : i32, i32
  }
  func.func @transform_10(%arg0: i32, %arg1: i32) -> (i32, i32) {
    %c0_i32 = arith.constant 0 : i32
    %c0_i32_0 = arith.constant 0 : i32
    %c0_i32_1 = arith.constant 0 : i32
    return %c0_i32, %c0_i32_0 : i32, i32
  }
  func.func @transform_11(%arg0: i32, %arg1: i32) -> (i32, i32) {
    %c0_i32 = arith.constant 0 : i32
    %c0_i32_0 = arith.constant 0 : i32
    %c0_i32_1 = arith.constant 0 : i32
    return %c0_i32, %c0_i32_0 : i32, i32
  }
  func.func @transform_12(%arg0: i32, %arg1: i32) -> (i32, i32) {
    %c0_i32 = arith.constant 0 : i32
    %c0_i32_0 = arith.constant 0 : i32
    %c0_i32_1 = arith.constant 0 : i32
    return %c0_i32, %c0_i32_0 : i32, i32
  }
  func.func @transform_13(%arg0: i32, %arg1: i32) -> (i32, i32) {
    %c0_i32 = arith.constant 0 : i32
    %c0_i32_0 = arith.constant 0 : i32
    %c0_i32_1 = arith.constant 0 : i32
    return %c0_i32, %c0_i32_0 : i32, i32
  }
  func.func @transform_14(%arg0: i32, %arg1: i32) -> (i32, i32, i32) {
    %c0_i32 = arith.constant 0 : i32
    %c0_i32_0 = arith.constant 0 : i32
    %c0_i32_1 = arith.constant 0 : i32
    return %arg0, %c0_i32, %c0_i32_0 : i32, i32, i32
  }
}

</mosaic_0001>

<llo_original>
// kernel: tpu_custom_call.1
$region0: #{tpu_custom_call.1}
  #allocation0 [shape = 'u32[]', space=smem, size = 0x4, offset = 0x4, fixed_abs, tag = 'smem constant byte address 0x4 - core index']
  #allocation1 [shape = 'u32[144,128]{1,0:T(1,128)}', space=vmem, size = 0x12000, scoped, tag = 'internal scratch']
  #allocation2 [shape = 'f32[2,1024]{1,0:T(2,128)}', space=vmem, size = 0x2000, scoped, tag = 'scratch operand']
  %s0 = inlined_call_operand.vmem [shape: f32[4,512,8], index: 0, kind: input, shape index: {}]
  %s1 = inlined_call_operand.vmem [shape: f32[8,64], index: 1, kind: input, shape index: {}]
  %s2 = inlined_call_operand.vmem [shape: f32[1,64], index: 2, kind: input, shape index: {}]
  %s3 = inlined_call_operand.vmem [shape: bf16[64,128], index: 3, kind: input, shape index: {}]
  %s4 = inlined_call_operand.vmem [shape: f32[1,128], index: 4, kind: input, shape index: {}]
  %s5 = inlined_call_operand.hbm [shape: bf16[128,1024], index: 5, kind: input, shape index: {}]
  %s6 = inlined_call_operand.vmem [shape: f32[1,1024], index: 6, kind: input, shape index: {}]
  %s7 = inlined_call_operand.vmem [shape: bf16[1024,512], index: 7, kind: input, shape index: {}]
  %s8 = inlined_call_operand.vmem [shape: f32[1,512], index: 8, kind: input, shape index: {}]
  %s9 = inlined_call_operand.hbm [shape: bf16[512,256], index: 9, kind: input, shape index: {}]
  %s10 = inlined_call_operand.vmem [shape: f32[1,256], index: 10, kind: input, shape index: {}]
  %s11 = inlined_call_operand.vmem [shape: bf16[256,9], index: 11, kind: input, shape index: {}]
  %s12 = inlined_call_operand.vmem [shape: f32[1,9], index: 12, kind: input, shape index: {}]
  %s13 = inlined_call_operand.vmem [shape: f32[1,9], index: 13, kind: input, shape index: {}]
  %s14 = inlined_call_operand.hbm [shape: f32[2,2,9], index: 14, kind: output, shape index: {}]
  %s15 = sld [smem:[#allocation0]]
  $region147: #{tpu_custom_call.1} parent=0
    _
  %s17 = ssub.s32 1, %s15
  %s18 = scalar_select 0, %s17, %s15
  $region1: #{tpu_custom_call.1} parent=0
    #allocation3 [shape = 'u8[524288]{0}', space=vmem, size = 0x80000, scoped, tag = 'input window, operand 0']
    #allocation4 [shape = 'u8[262144]{0}', space=vmem, size = 0x40000, scoped, tag = 'input window, operand 5, single buffered']
    #allocation5 [shape = 's32[2]{0}', space=sflag, size = 0x8, scoped, tag = 'scoped memory for tpu_custom_call.1']
    #allocation6 [shape = 's32[2]{0}', space=sflag, size = 0x8, scoped, tag = 'scoped memory for tpu_custom_call.1']
    #allocation7 [shape = 'u8[262144]{0}', space=vmem, size = 0x40000, scoped, tag = 'input window, operand 9, single buffered']
    #allocation8 [shape = 's32[1]{0}', space=sflag, size = 0x4, scoped, tag = 'scoped memory for tpu_custom_call.1']
    #allocation9 [shape = 'u8[2048]{0}', space=vmem, size = 0x800, scoped, tag = 'output window, operand 0']
    %19 = vsyncpa [#allocation5], 0
    %20 = vsyncpa [#allocation8], 0
    %21 = vsyncpa [#allocation6], 0
    %s22 = scalar_lea.sflag [#allocation6], 1
    %23 = vsyncpa %s22, 0
    loop: start=0, step=1, limit=6
    $region2: #{tpu_custom_call.1} parent=1 // loop_pre_header
      _
    $region3: #{tpu_custom_call.1} parent=1 // loop_header
      %s25 = sphi 0, %s29
      %p26 = scmp.ge.s32.totalorder %s25, 6
      %s32 = sphi 0, %s44
      %s33 = sphi 0, %s40
      %s34 = sphi 0, %s32
      %s35 = sphi 0, %s33
      %s36 = sphi 0, %s34
      %s37 = sphi 0, %s35
      %s49 = sphi 0, %s51
      %s52 = sphi 0, %s49
      %s53 = sphi 0, %s52
      %s69 = sphi 0, %s53
      %s73 = sphi 0, %s73
      %s75 = sphi 0, %s73
      %s76 = sphi 0, %s75
      %s90 = sphi 0, %s76
      %s94 = sphi 0, %s94
      %s96 = sphi 0, %s94
      %s97 = sphi 0, %s96
      %s111 = sphi 0, %s97
      %s115 = sphi 0, %s115
      %s117 = sphi 0, %s115
      %s118 = sphi 0, %s117
      %s132 = sphi 0, %s118
      %s136 = sphi 0, %s136
      %s138 = sphi 0, %s136
      %s139 = sphi 0, %s138
      %s153 = sphi 0, %s139
      %s157 = sphi 0, %s157
      %s159 = sphi 0, %s157
      %s160 = sphi 0, %s159
      %s174 = sphi 0, %s160
      %s178 = sphi 0, %s178
      %s180 = sphi 0, %s178
      %s181 = sphi 0, %s180
      %s195 = sphi 0, %s181
      %s199 = sphi 0, %s199
      %s201 = sphi 0, %s199
      %s202 = sphi 0, %s201
      %s216 = sphi 0, %s202
      %s220 = sphi 0, %s220
      %s222 = sphi 0, %s220
      %s223 = sphi 0, %s222
      %s237 = sphi 0, %s223
      %s241 = sphi 0, %s241
      %s243 = sphi 0, %s241
      %s244 = sphi 0, %s243
      %s258 = sphi 0, %s244
      %s262 = sphi 0, %s262
      %s264 = sphi 0, %s262
      %s265 = sphi 0, %s264
      %s279 = sphi 0, %s265
      %s283 = sphi 0, %s283
      %s285 = sphi 0, %s283
      %s286 = sphi 0, %s285
      %s300 = sphi 0, %s286
      %s304 = sphi 0, %s304
      %s306 = sphi 0, %s304
      %s307 = sphi 0, %s306
      %s321 = sphi 0, %s307
      %s325 = sphi 0, %s325
      %s327 = sphi 0, %s325
      %s328 = sphi 0, %s327
      %s342 = sphi 0, %s328
      %s348 = sphi 0, %s350
      %s351 = sphi 0, %s348
      %s352 = sphi 0, %s351
      %s368 = sphi 0, %s352
    $region4: #{tpu_custom_call.1} parent=1 // loop_header_branch
      %28 = sbr.rel (%p26) target = $region8
    $region5: #{tpu_custom_call.1} parent=1 // loop_body
      %s30 = ssub.s32 %s25, 1
      %s31 = ssub.s32 %s25, 2
      %s38 = sadd.s32 1, %s33
      %p39 = scmp.ge.s32.totalorder %s38, 2
      %s40 = scalar_select %p39, 0, %s38
      %s41 = sadd.s32 1, %s32
      %s42 = scalar_select %p39, %s41, %s32
      %p43 = scmp.ge.s32.totalorder %s42, 2
      %s44 = scalar_select %p43, 0, %s42
      %s45 = ssub.s32 %s32, %s44
      %s46 = ssub.s32 %s33, %s40
      %s47 = sor.u32 %s45, %s46
      %p48 = scmp.eq.s32.totalorder %s47, 0
      %s50 = sadd.s32 %s49, 1
      %s51 = scalar_select %p48, %s49, %s50
      %p54 = pneg %p48
      %p55 = scmp.eq.s32.totalorder %s25, 3
      %p56 = por %p54, %p55
      %p57 = scmp.ne.s32.totalorder %s49, %s52
      %p58 = scmp.eq.s32.totalorder %s25, 0
      %p59 = por %p57, %p58
      %p60 = scmp.ne.s32.totalorder %s49, %s52
      %p61 = scmp.eq.s32.totalorder %s30, 3
      %p62 = por %p60, %p61
      %p63 = scmp.ne.s32.totalorder %s52, %s53
      %p64 = scmp.eq.s32.totalorder %s30, 0
      %p65 = por %p63, %p64
      %p66 = scmp.ne.s32.totalorder %s52, %s53
      %p67 = scmp.eq.s32.totalorder %s31, 3
      %p68 = por %p66, %p67
      %p70 = scmp.ne.s32.totalorder %s53, %s69
      %p71 = scmp.eq.s32.totalorder %s31, 0
      %p72 = por %p70, %p71
      %s74 = sadd.s32 %s73, 1
      %p77 = scmp.eq.s32.totalorder %s25, 3
      %p78 = scmp.ne.s32.totalorder %s73, %s75
      %p79 = scmp.eq.s32.totalorder %s25, 0
      %p80 = por %p78, %p79
      %p81 = scmp.ne.s32.totalorder %s73, %s75
      %p82 = scmp.eq.s32.totalorder %s30, 3
      %p83 = por %p81, %p82
      %p84 = scmp.ne.s32.totalorder %s75, %s76
      %p85 = scmp.eq.s32.totalorder %s30, 0
      %p86 = por %p84, %p85
      %p87 = scmp.ne.s32.totalorder %s75, %s76
      %p88 = scmp.eq.s32.totalorder %s31, 3
      %p89 = por %p87, %p88
      %p91 = scmp.ne.s32.totalorder %s76, %s90
      %p92 = scmp.eq.s32.totalorder %s31, 0
      %p93 = por %p91, %p92
      %s95 = sadd.s32 %s94, 1
      %p98 = scmp.eq.s32.totalorder %s25, 3
      %p99 = scmp.ne.s32.totalorder %s94, %s96
      %p100 = scmp.eq.s32.totalorder %s25, 0
      %p101 = por %p99, %p100
      %p102 = scmp.ne.s32.totalorder %s94, %s96
      %p103 = scmp.eq.s32.totalorder %s30, 3
      %p104 = por %p102, %p103
      %p105 = scmp.ne.s32.totalorder %s96, %s97
      %p106 = scmp.eq.s32.totalorder %s30, 0
      %p107 = por %p105, %p106
      %p108 = scmp.ne.s32.totalorder %s96, %s97
      %p109 = scmp.eq.s32.totalorder %s31, 3
      %p110 = por %p108, %p109
      %p112 = scmp.ne.s32.totalorder %s97, %s111
      %p113 = scmp.eq.s32.totalorder %s31, 0
      %p114 = por %p112, %p113
      %s116 = sadd.s32 %s115, 1
      %p119 = scmp.eq.s32.totalorder %s25, 3
      %p120 = scmp.ne.s32.totalorder %s115, %s117
      %p121 = scmp.eq.s32.totalorder %s25, 0
      %p122 = por %p120, %p121
      %p123 = scmp.ne.s32.totalorder %s115, %s117
      %p124 = scmp.eq.s32.totalorder %s30, 3
      %p125 = por %p123, %p124
      %p126 = scmp.ne.s32.totalorder %s117, %s118
      %p127 = scmp.eq.s32.totalorder %s30, 0
      %p128 = por %p126, %p127
      %p129 = scmp.ne.s32.totalorder %s117, %s118
      %p130 = scmp.eq.s32.totalorder %s31, 3
      %p131 = por %p129, %p130
      %p133 = scmp.ne.s32.totalorder %s118, %s132
      %p134 = scmp.eq.s32.totalorder %s31, 0
      %p135 = por %p133, %p134
      %s137 = sadd.s32 %s136, 1
      %p140 = scmp.eq.s32.totalorder %s25, 3
      %p141 = scmp.ne.s32.totalorder %s136, %s138
      %p142 = scmp.eq.s32.totalorder %s25, 0
      %p143 = por %p141, %p142
      %p144 = scmp.ne.s32.totalorder %s136, %s138
      %p145 = scmp.eq.s32.totalorder %s30, 3
      %p146 = por %p144, %p145
      %p147 = scmp.ne.s32.totalorder %s138, %s139
      %p148 = scmp.eq.s32.totalorder %s30, 0
      %p149 = por %p147, %p148
      %p150 = scmp.ne.s32.totalorder %s138, %s139
      %p151 = scmp.eq.s32.totalorder %s31, 3
      %p152 = por %p150, %p151
      %p154 = scmp.ne.s32.totalorder %s139, %s153
      %p155 = scmp.eq.s32.totalorder %s31, 0
      %p156 = por %p154, %p155
      %s158 = sadd.s32 %s157, 1
      %p161 = scmp.eq.s32.totalorder %s25, 3
      %p162 = scmp.ne.s32.totalorder %s157, %s159
      %p163 = scmp.eq.s32.totalorder %s25, 0
      %p164 = por %p162, %p163
      %p165 = scmp.ne.s32.totalorder %s157, %s159
      %p166 = scmp.eq.s32.totalorder %s30, 3
      %p167 = por %p165, %p166
      %p168 = scmp.ne.s32.totalorder %s159, %s160
      %p169 = scmp.eq.s32.totalorder %s30, 0
      %p170 = por %p168, %p169
      %p171 = scmp.ne.s32.totalorder %s159, %s160
      %p172 = scmp.eq.s32.totalorder %s31, 3
      %p173 = por %p171, %p172
      %p175 = scmp.ne.s32.totalorder %s160, %s174
      %p176 = scmp.eq.s32.totalorder %s31, 0
      %p177 = por %p175, %p176
      %s179 = sadd.s32 %s178, 1
      %p182 = scmp.eq.s32.totalorder %s25, 3
      %p183 = scmp.ne.s32.totalorder %s178, %s180
      %p184 = scmp.eq.s32.totalorder %s25, 0
      %p185 = por %p183, %p184
      %p186 = scmp.ne.s32.totalorder %s178, %s180
      %p187 = scmp.eq.s32.totalorder %s30, 3
      %p188 = por %p186, %p187
      %p189 = scmp.ne.s32.totalorder %s180, %s181
      %p190 = scmp.eq.s32.totalorder %s30, 0
      %p191 = por %p189, %p190
      %p192 = scmp.ne.s32.totalorder %s180, %s181
      %p193 = scmp.eq.s32.totalorder %s31, 3
      %p194 = por %p192, %p193
      %p196 = scmp.ne.s32.totalorder %s181, %s195
      %p197 = scmp.eq.s32.totalorder %s31, 0
      %p198 = por %p196, %p197
      %s200 = sadd.s32 %s199, 1
      %p203 = scmp.eq.s32.totalorder %s25, 3
      %p204 = scmp.ne.s32.totalorder %s199, %s201
      %p205 = scmp.eq.s32.totalorder %s25, 0
      %p206 = por %p204, %p205
      %p207 = scmp.ne.s32.totalorder %s199, %s201
      %p208 = scmp.eq.s32.totalorder %s30, 3
      %p209 = por %p207, %p208
      %p210 = scmp.ne.s32.totalorder %s201, %s202
      %p211 = scmp.eq.s32.totalorder %s30, 0
      %p212 = por %p210, %p211
      %p213 = scmp.ne.s32.totalorder %s201, %s202
      %p214 = scmp.eq.s32.totalorder %s31, 3
      %p215 = por %p213, %p214
      %p217 = scmp.ne.s32.totalorder %s202, %s216
      %p218 = scmp.eq.s32.totalorder %s31, 0
      %p219 = por %p217, %p218
      %s221 = sadd.s32 %s220, 1
      %p224 = scmp.eq.s32.totalorder %s25, 3
      %p225 = scmp.ne.s32.totalorder %s220, %s222
      %p226 = scmp.eq.s32.totalorder %s25, 0
      %p227 = por %p225, %p226
      %p228 = scmp.ne.s32.totalorder %s220, %s222
      %p229 = scmp.eq.s32.totalorder %s30, 3
      %p230 = por %p228, %p229
      %p231 = scmp.ne.s32.totalorder %s222, %s223
      %p232 = scmp.eq.s32.totalorder %s30, 0
      %p233 = por %p231, %p232
      %p234 = scmp.ne.s32.totalorder %s222, %s223
      %p235 = scmp.eq.s32.totalorder %s31, 3
      %p236 = por %p234, %p235
      %p238 = scmp.ne.s32.totalorder %s223, %s237
      %p239 = scmp.eq.s32.totalorder %s31, 0
      %p240 = por %p238, %p239
      %s242 = sadd.s32 %s241, 1
      %p245 = scmp.eq.s32.totalorder %s25, 3
      %p246 = scmp.ne.s32.totalorder %s241, %s243
      %p247 = scmp.eq.s32.totalorder %s25, 0
      %p248 = por %p246, %p247
      %p249 = scmp.ne.s32.totalorder %s241, %s243
      %p250 = scmp.eq.s32.totalorder %s30, 3
      %p251 = por %p249, %p250
      %p252 = scmp.ne.s32.totalorder %s243, %s244
      %p253 = scmp.eq.s32.totalorder %s30, 0
      %p254 = por %p252, %p253
      %p255 = scmp.ne.s32.totalorder %s243, %s244
      %p256 = scmp.eq.s32.totalorder %s31, 3
      %p257 = por %p255, %p256
      %p259 = scmp.ne.s32.totalorder %s244, %s258
      %p260 = scmp.eq.s32.totalorder %s31, 0
      %p261 = por %p259, %p260
      %s263 = sadd.s32 %s262, 1
      %p266 = scmp.eq.s32.totalorder %s25, 3
      %p267 = scmp.ne.s32.totalorder %s262, %s264
      %p268 = scmp.eq.s32.totalorder %s25, 0
      %p269 = por %p267, %p268
      %p270 = scmp.ne.s32.totalorder %s262, %s264
      %p271 = scmp.eq.s32.totalorder %s30, 3
      %p272 = por %p270, %p271
      %p273 = scmp.ne.s32.totalorder %s264, %s265
      %p274 = scmp.eq.s32.totalorder %s30, 0
      %p275 = por %p273, %p274
      %p276 = scmp.ne.s32.totalorder %s264, %s265
      %p277 = scmp.eq.s32.totalorder %s31, 3
      %p278 = por %p276, %p277
      %p280 = scmp.ne.s32.totalorder %s265, %s279
      %p281 = scmp.eq.s32.totalorder %s31, 0
      %p282 = por %p280, %p281
      %s284 = sadd.s32 %s283, 1
      %p287 = scmp.eq.s32.totalorder %s25, 3
      %p288 = scmp.ne.s32.totalorder %s283, %s285
      %p289 = scmp.eq.s32.totalorder %s25, 0
      %p290 = por %p288, %p289
      %p291 = scmp.ne.s32.totalorder %s283, %s285
      %p292 = scmp.eq.s32.totalorder %s30, 3
      %p293 = por %p291, %p292
      %p294 = scmp.ne.s32.totalorder %s285, %s286
      %p295 = scmp.eq.s32.totalorder %s30, 0
      %p296 = por %p294, %p295
      %p297 = scmp.ne.s32.totalorder %s285, %s286
      %p298 = scmp.eq.s32.totalorder %s31, 3
      %p299 = por %p297, %p298
      %p301 = scmp.ne.s32.totalorder %s286, %s300
      %p302 = scmp.eq.s32.totalorder %s31, 0
      %p303 = por %p301, %p302
      %s305 = sadd.s32 %s304, 1
      %p308 = scmp.eq.s32.totalorder %s25, 3
      %p309 = scmp.ne.s32.totalorder %s304, %s306
      %p310 = scmp.eq.s32.totalorder %s25, 0
      %p311 = por %p309, %p310
      %p312 = scmp.ne.s32.totalorder %s304, %s306
      %p313 = scmp.eq.s32.totalorder %s30, 3
      %p314 = por %p312, %p313
      %p315 = scmp.ne.s32.totalorder %s306, %s307
      %p316 = scmp.eq.s32.totalorder %s30, 0
      %p317 = por %p315, %p316
      %p318 = scmp.ne.s32.totalorder %s306, %s307
      %p319 = scmp.eq.s32.totalorder %s31, 3
      %p320 = por %p318, %p319
      %p322 = scmp.ne.s32.totalorder %s307, %s321
      %p323 = scmp.eq.s32.totalorder %s31, 0
      %p324 = por %p322, %p323
      %s326 = sadd.s32 %s325, 1
      %p329 = scmp.eq.s32.totalorder %s25, 3
      %p330 = scmp.ne.s32.totalorder %s325, %s327
      %p331 = scmp.eq.s32.totalorder %s25, 0
      %p332 = por %p330, %p331
      %p333 = scmp.ne.s32.totalorder %s325, %s327
      %p334 = scmp.eq.s32.totalorder %s30, 3
      %p335 = por %p333, %p334
      %p336 = scmp.ne.s32.totalorder %s327, %s328
      %p337 = scmp.eq.s32.totalorder %s30, 0
      %p338 = por %p336, %p337
      %p339 = scmp.ne.s32.totalorder %s327, %s328
      %p340 = scmp.eq.s32.totalorder %s31, 3
      %p341 = por %p339, %p340
      %p343 = scmp.ne.s32.totalorder %s328, %s342
      %p344 = scmp.eq.s32.totalorder %s31, 0
      %p345 = por %p343, %p344
      %s346 = ssub.s32 %s32, %s44
      %p347 = scmp.eq.s32.totalorder %s346, 0
      %s349 = sadd.s32 %s348, 1
      %s350 = scalar_select %p347, %s348, %s349
      %p353 = pneg %p347
      %p354 = scmp.eq.s32.totalorder %s25, 3
      %p355 = por %p353, %p354
      %p356 = scmp.ne.s32.totalorder %s348, %s351
      %p357 = scmp.eq.s32.totalorder %s25, 0
      %p358 = por %p356, %p357
      %p359 = scmp.ne.s32.totalorder %s348, %s351
      %p360 = scmp.eq.s32.totalorder %s30, 3
      %p361 = por %p359, %p360
      %p362 = scmp.ne.s32.totalorder %s351, %s352
      %p363 = scmp.eq.s32.totalorder %s30, 0
      %p364 = por %p362, %p363
      %p365 = scmp.ne.s32.totalorder %s351, %s352
      %p366 = scmp.eq.s32.totalorder %s31, 3
      %p367 = por %p365, %p366
      %p369 = scmp.ne.s32.totalorder %s352, %s368
      %p370 = scmp.eq.s32.totalorder %s31, 0
      %p371 = por %p369, %p370
      %p372 = scmp.le.s32.totalorder 1, %s25
      %p373 = scmp.lt.s32.totalorder %s25, 5
      %p374 = pnand %p372, %p373
      %p375 = pneg %p374
      // Predicated region
      $region9: #{tpu_custom_call.1} parent=5 // pred_check
        _
      $region10: #{tpu_custom_call.1} parent=5 // pred_check_branch
        %377 = sbr.rel (%p374) target = $region12
      $region11: #{tpu_custom_call.1} parent=5 // pred_region
        %s378 = ssub.s32 %s25, 1
        // Predicated region
        $region13: #{tpu_custom_call.1} parent=11 // pred_check
          %p379 = pneg %p86
        $region14: #{tpu_custom_call.1} parent=11 // pred_check_branch
          %381 = sbr.rel (%p379) target = $region16
        $region15: #{tpu_custom_call.1} parent=11 // pred_region
          _
        $region16: #{tpu_custom_call.1} parent=11 // pred_fallthru
          _
        // Predicated region
        $region17: #{tpu_custom_call.1} parent=11 // pred_check
          %p382 = pneg %p107
        $region18: #{tpu_custom_call.1} parent=11 // pred_check_branch
          %384 = sbr.rel (%p382) target = $region20
        $region19: #{tpu_custom_call.1} parent=11 // pred_region
          _
        $region20: #{tpu_custom_call.1} parent=11 // pred_fallthru
          _
        // Predicated region
        $region21: #{tpu_custom_call.1} parent=11 // pred_check
          %p385 = pneg %p128
        $region22: #{tpu_custom_call.1} parent=11 // pred_check_branch
          %387 = sbr.rel (%p385) target = $region24
        $region23: #{tpu_custom_call.1} parent=11 // pred_region
          _
        $region24: #{tpu_custom_call.1} parent=11 // pred_fallthru
          _
        // Predicated region
        $region25: #{tpu_custom_call.1} parent=11 // pred_check
          %p388 = pneg %p149
        $region26: #{tpu_custom_call.1} parent=11 // pred_check_branch
          %390 = sbr.rel (%p388) target = $region28
        $region27: #{tpu_custom_call.1} parent=11 // pred_region
          _
        $region28: #{tpu_custom_call.1} parent=11 // pred_fallthru
          _
        // Predicated region
        $region29: #{tpu_custom_call.1} parent=11 // pred_check
          %p391 = pneg %p170
        $region30: #{tpu_custom_call.1} parent=11 // pred_check_branch
          %393 = sbr.rel (%p391) target = $region32
        $region31: #{tpu_custom_call.1} parent=11 // pred_region
          %s395 = ssub.s32 8192, 8192
          %396 = vsyncadd [#allocation5], %s395
          %s397 = sshll.u32 [#allocation4], 4
          %s398 = int_to_ptr.vmem [resolvable:$true] %s397
          %403 = dma.hbm_to_vmem [thread:$0]  %s5, 8192, %s398, [#allocation5], 512, 512, 32
        $region32: #{tpu_custom_call.1} parent=11 // pred_fallthru
          _
        // Predicated region
        $region33: #{tpu_custom_call.1} parent=11 // pred_check
          %p404 = pneg %p191
        $region34: #{tpu_custom_call.1} parent=11 // pred_check_branch
          %406 = sbr.rel (%p404) target = $region36
        $region35: #{tpu_custom_call.1} parent=11 // pred_region
          _
        $region36: #{tpu_custom_call.1} parent=11 // pred_fallthru
          _
        // Predicated region
        $region37: #{tpu_custom_call.1} parent=11 // pred_check
          %p407 = pneg %p212
        $region38: #{tpu_custom_call.1} parent=11 // pred_check_branch
          %409 = sbr.rel (%p407) target = $region40
        $region39: #{tpu_custom_call.1} parent=11 // pred_region
          _
        $region40: #{tpu_custom_call.1} parent=11 // pred_fallthru
          _
        // Predicated region
        $region41: #{tpu_custom_call.1} parent=11 // pred_check
          %p410 = pneg %p233
        $region42: #{tpu_custom_call.1} parent=11 // pred_check_branch
          %412 = sbr.rel (%p410) target = $region44
        $region43: #{tpu_custom_call.1} parent=11 // pred_region
          _
        $region44: #{tpu_custom_call.1} parent=11 // pred_fallthru
          _
        // Predicated region
        $region45: #{tpu_custom_call.1} parent=11 // pred_check
          %p413 = pneg %p254
        $region46: #{tpu_custom_call.1} parent=11 // pred_check_branch
          %415 = sbr.rel (%p413) target = $region48
        $region47: #{tpu_custom_call.1} parent=11 // pred_region
          %s417 = ssub.s32 8192, 8192
          %418 = vsyncadd [#allocation8], %s417
          %s419 = sshll.u32 [#allocation7], 4
          %s420 = int_to_ptr.vmem [resolvable:$true] %s419
          %425 = dma.hbm_to_vmem [thread:$0]  %s9, 8192, %s420, [#allocation8], 128, 128, 8
        $region48: #{tpu_custom_call.1} parent=11 // pred_fallthru
          _
        // Predicated region
        $region49: #{tpu_custom_call.1} parent=11 // pred_check
          %p426 = pneg %p275
        $region50: #{tpu_custom_call.1} parent=11 // pred_check_branch
          %428 = sbr.rel (%p426) target = $region52
        $region51: #{tpu_custom_call.1} parent=11 // pred_region
          _
        $region52: #{tpu_custom_call.1} parent=11 // pred_fallthru
          _
        // Predicated region
        $region53: #{tpu_custom_call.1} parent=11 // pred_check
          %p429 = pneg %p296
        $region54: #{tpu_custom_call.1} parent=11 // pred_check_branch
          %431 = sbr.rel (%p429) target = $region56
        $region55: #{tpu_custom_call.1} parent=11 // pred_region
          _
        $region56: #{tpu_custom_call.1} parent=11 // pred_fallthru
          _
        // Predicated region
        $region57: #{tpu_custom_call.1} parent=11 // pred_check
          %p432 = pneg %p317
        $region58: #{tpu_custom_call.1} parent=11 // pred_check_branch
          %434 = sbr.rel (%p432) target = $region60
        $region59: #{tpu_custom_call.1} parent=11 // pred_region
          _
        $region60: #{tpu_custom_call.1} parent=11 // pred_fallthru
          _
        // Predicated region
        $region61: #{tpu_custom_call.1} parent=11 // pred_check
          %p435 = pneg %p338
        $region62: #{tpu_custom_call.1} parent=11 // pred_check_branch
          %437 = sbr.rel (%p435) target = $region64
        $region63: #{tpu_custom_call.1} parent=11 // pred_region
          _
        $region64: #{tpu_custom_call.1} parent=11 // pred_fallthru
          _
      $region12: #{tpu_custom_call.1} parent=5 // pred_fallthru
        _
      %p438 = scmp.lt.s32.totalorder %s25, 4
      // Predicated region
      $region65: #{tpu_custom_call.1} parent=5 // pred_check
        %p439 = pneg %p438
      $region66: #{tpu_custom_call.1} parent=5 // pred_check_branch
        %441 = sbr.rel (%p439) target = $region68
      $region67: #{tpu_custom_call.1} parent=5 // pred_region
        // Predicated region
        $region69: #{tpu_custom_call.1} parent=67 // pred_check
          %p442 = pneg %p59
        $region70: #{tpu_custom_call.1} parent=67 // pred_check_branch
          %444 = sbr.rel (%p442) target = $region72
        $region71: #{tpu_custom_call.1} parent=67 // pred_region
          %s445 = sand.u32 %s49, 1
          %s446 = sand.u32 %s49, 1
          %s447 = smul.addr %s446, 512
          %s448 = scalar_lea.vmem [#allocation3], %s447
          %s449 = smul.u32 2, %s32
          %s450 = smul.u32 32, %s33
          %s451 = smul.addr %s449, 64
          %s452 = sadd.s32 %s450, %s451
          %s453 = smul.addr %s452, 8
          %s454 = scalar_lea.vmem %s0, %s453
          // Predicated region
          $region73: #{tpu_custom_call.1} parent=71 // pred_check
            _
          $region74: #{tpu_custom_call.1} parent=71 // pred_check_branch
            %456 = sbr.rel (0) target = $region76
          $region75: #{tpu_custom_call.1} parent=71 // pred_region
            // Predicated region
            $region77: #{tpu_custom_call.1} parent=75 // pred_check
              _
            $region78: #{tpu_custom_call.1} parent=75 // pred_check_branch
              %458 = sbr.rel (0) target = $region80
            $region79: #{tpu_custom_call.1} parent=75 // pred_region
              // Predicated region
              $region92: #{tpu_custom_call.1} parent=79 // pred_check
                _
              $region93: #{tpu_custom_call.1} parent=79 // pred_check_branch
                %599 = sbr.rel (0) target = $region95
              $region94: #{tpu_custom_call.1} parent=79 // pred_region
                loop: start=0, step=1, limit=1
                $region96: #{tpu_custom_call.1} parent=94 // loop_pre_header
                  _
                $region97: #{tpu_custom_call.1} parent=94 // loop_header
                  %s601 = sphi 0, %s605
                  %p602 = scmp.ge.s32.totalorder %s601, 1
                  %s606 = sphi %s454, %s454
                  %s607 = sphi %s448, %s448
                $region98: #{tpu_custom_call.1} parent=94 // loop_header_branch
                  %604 = sbr.rel (%p602) target = $region102
                $region99: #{tpu_custom_call.1} parent=94 // loop_body
                  %v608 = vld [vmem:[%s606] sm:$0xff]
                  %609 = vst [vmem:[%s607] sm:$0xff] %v608
                  %v610 = vld [vmem:[%s606 + $0x8] sm:$0xff]
                  %611 = vst [vmem:[%s607 + $0x8] sm:$0xff] %v610
                  %v612 = vld [vmem:[%s606 + $0x10] sm:$0xff]
                  %613 = vst [vmem:[%s607 + $0x10] sm:$0xff] %v612
                  %v614 = vld [vmem:[%s606 + $0x18] sm:$0xff]
                  %615 = vst [vmem:[%s607 + $0x18] sm:$0xff] %v614
                  %v616 = vld [vmem:[%s606 + $0x20] sm:$0xff]
                  %617 = vst [vmem:[%s607 + $0x20] sm:$0xff] %v616
                  %v618 = vld [vmem:[%s606 + $0x28] sm:$0xff]
                  %619 = vst [vmem:[%s607 + $0x28] sm:$0xff] %v618
                  %v620 = vld [vmem:[%s606 + $0x30] sm:$0xff]
                  %621 = vst [vmem:[%s607 + $0x30] sm:$0xff] %v620
                  %v622 = vld [vmem:[%s606 + $0x38] sm:$0xff]
                  %623 = vst [vmem:[%s607 + $0x38] sm:$0xff] %v622
                  %v624 = vld [vmem:[%s606 + $0x40] sm:$0xff]
                  %625 = vst [vmem:[%s607 + $0x40] sm:$0xff] %v624
                  %v626 = vld [vmem:[%s606 + $0x48] sm:$0xff]
                  %627 = vst [vmem:[%s607 + $0x48] sm:$0xff] %v626
                  %v628 = vld [vmem:[%s606 + $0x50] sm:$0xff]
                  %629 = vst [vmem:[%s607 + $0x50] sm:$0xff] %v628
                  %v630 = vld [vmem:[%s606 + $0x58] sm:$0xff]
                  %631 = vst [vmem:[%s607 + $0x58] sm:$0xff] %v630
                  %v632 = vld [vmem:[%s606 + $0x60] sm:$0xff]
                  %633 = vst [vmem:[%s607 + $0x60] sm:$0xff] %v632
                  %v634 = vld [vmem:[%s606 + $0x68] sm:$0xff]
                  %635 = vst [vmem:[%s607 + $0x68] sm:$0xff] %v634
                  %v636 = vld [vmem:[%s606 + $0x70] sm:$0xff]
                  %637 = vst [vmem:[%s607 + $0x70] sm:$0xff] %v636
                  %v638 = vld [vmem:[%s606 + $0x78] sm:$0xff]
                  %639 = vst [vmem:[%s607 + $0x78] sm:$0xff] %v638
                  %v640 = vld [vmem:[%s606 + $0x80] sm:$0xff]
                  %641 = vst [vmem:[%s607 + $0x80] sm:$0xff] %v640
                  %v642 = vld [vmem:[%s606 + $0x88] sm:$0xff]
                  %643 = vst [vmem:[%s607 + $0x88] sm:$0xff] %v642
                  %v644 = vld [vmem:[%s606 + $0x90] sm:$0xff]
                  %645 = vst [vmem:[%s607 + $0x90] sm:$0xff] %v644
                  %v646 = vld [vmem:[%s606 + $0x98] sm:$0xff]
                  %647 = vst [vmem:[%s607 + $0x98] sm:$0xff] %v646
                  %v648 = vld [vmem:[%s606 + $0xa0] sm:$0xff]
                  %649 = vst [vmem:[%s607 + $0xa0] sm:$0xff] %v648
                  %v650 = vld [vmem:[%s606 + $0xa8] sm:$0xff]
                  %651 = vst [vmem:[%s607 + $0xa8] sm:$0xff] %v650
                  %v652 = vld [vmem:[%s606 + $0xb0] sm:$0xff]
                  %653 = vst [vmem:[%s607 + $0xb0] sm:$0xff] %v652
                  %v654 = vld [vmem:[%s606 + $0xb8] sm:$0xff]
                  %655 = vst [vmem:[%s607 + $0xb8] sm:$0xff] %v654
                  %v656 = vld [vmem:[%s606 + $0xc0] sm:$0xff]
                  %657 = vst [vmem:[%s607 + $0xc0] sm:$0xff] %v656
                  %v658 = vld [vmem:[%s606 + $0xc8] sm:$0xff]
                  %659 = vst [vmem:[%s607 + $0xc8] sm:$0xff] %v658
                  %v660 = vld [vmem:[%s606 + $0xd0] sm:$0xff]
                  %661 = vst [vmem:[%s607 + $0xd0] sm:$0xff] %v660
                  %v662 = vld [vmem:[%s606 + $0xd8] sm:$0xff]
                  %663 = vst [vmem:[%s607 + $0xd8] sm:$0xff] %v662
                  %v664 = vld [vmem:[%s606 + $0xe0] sm:$0xff]
                  %665 = vst [vmem:[%s607 + $0xe0] sm:$0xff] %v664
                  %v666 = vld [vmem:[%s606 + $0xe8] sm:$0xff]
                  %667 = vst [vmem:[%s607 + $0xe8] sm:$0xff] %v666
                  %v668 = vld [vmem:[%s606 + $0xf0] sm:$0xff]
                  %669 = vst [vmem:[%s607 + $0xf0] sm:$0xff] %v668
                  %v670 = vld [vmem:[%s606 + $0xf8] sm:$0xff]
                  %671 = vst [vmem:[%s607 + $0xf8] sm:$0xff] %v670
                  %v672 = vld [vmem:[%s606 + $0x200] sm:$0xff]
                  %673 = vst [vmem:[%s607 + $0x100] sm:$0xff] %v672
                  %v674 = vld [vmem:[%s606 + $0x208] sm:$0xff]
                  %675 = vst [vmem:[%s607 + $0x108] sm:$0xff] %v674
                  %v676 = vld [vmem:[%s606 + $0x210] sm:$0xff]
                  %677 = vst [vmem:[%s607 + $0x110] sm:$0xff] %v676
                  %v678 = vld [vmem:[%s606 + $0x218] sm:$0xff]
                  %679 = vst [vmem:[%s607 + $0x118] sm:$0xff] %v678
                  %v680 = vld [vmem:[%s606 + $0x220] sm:$0xff]
                  %681 = vst [vmem:[%s607 + $0x120] sm:$0xff] %v680
                  %v682 = vld [vmem:[%s606 + $0x228] sm:$0xff]
                  %683 = vst [vmem:[%s607 + $0x128] sm:$0xff] %v682
                  %v684 = vld [vmem:[%s606 + $0x230] sm:$0xff]
                  %685 = vst [vmem:[%s607 + $0x130] sm:$0xff] %v684
                  %v686 = vld [vmem:[%s606 + $0x238] sm:$0xff]
                  %687 = vst [vmem:[%s607 + $0x138] sm:$0xff] %v686
                  %v688 = vld [vmem:[%s606 + $0x240] sm:$0xff]
                  %689 = vst [vmem:[%s607 + $0x140] sm:$0xff] %v688
                  %v690 = vld [vmem:[%s606 + $0x248] sm:$0xff]
                  %691 = vst [vmem:[%s607 + $0x148] sm:$0xff] %v690
                  %v692 = vld [vmem:[%s606 + $0x250] sm:$0xff]
                  %693 = vst [vmem:[%s607 + $0x150] sm:$0xff] %v692
                  %v694 = vld [vmem:[%s606 + $0x258] sm:$0xff]
                  %695 = vst [vmem:[%s607 + $0x158] sm:$0xff] %v694
                  %v696 = vld [vmem:[%s606 + $0x260] sm:$0xff]
                  %697 = vst [vmem:[%s607 + $0x160] sm:$0xff] %v696
                  %v698 = vld [vmem:[%s606 + $0x268] sm:$0xff]
                  %699 = vst [vmem:[%s607 + $0x168] sm:$0xff] %v698
                  %v700 = vld [vmem:[%s606 + $0x270] sm:$0xff]
                  %701 = vst [vmem:[%s607 + $0x170] sm:$0xff] %v700
                  %v702 = vld [vmem:[%s606 + $0x278] sm:$0xff]
                  %703 = vst [vmem:[%s607 + $0x178] sm:$0xff] %v702
                  %v704 = vld [vmem:[%s606 + $0x280] sm:$0xff]
                  %705 = vst [vmem:[%s607 + $0x180] sm:$0xff] %v704
                  %v706 = vld [vmem:[%s606 + $0x288] sm:$0xff]
                  %707 = vst [vmem:[%s607 + $0x188] sm:$0xff] %v706
                  %v708 = vld [vmem:[%s606 + $0x290] sm:$0xff]
                  %709 = vst [vmem:[%s607 + $0x190] sm:$0xff] %v708
                  %v710 = vld [vmem:[%s606 + $0x298] sm:$0xff]
                  %711 = vst [vmem:[%s607 + $0x198] sm:$0xff] %v710
                  %v712 = vld [vmem:[%s606 + $0x2a0] sm:$0xff]
                  %713 = vst [vmem:[%s607 + $0x1a0] sm:$0xff] %v712
                  %v714 = vld [vmem:[%s606 + $0x2a8] sm:$0xff]
                  %715 = vst [vmem:[%s607 + $0x1a8] sm:$0xff] %v714
                  %v716 = vld [vmem:[%s606 + $0x2b0] sm:$0xff]
                  %717 = vst [vmem:[%s607 + $0x1b0] sm:$0xff] %v716
                  %v718 = vld [vmem:[%s606 + $0x2b8] sm:$0xff]
                  %719 = vst [vmem:[%s607 + $0x1b8] sm:$0xff] %v718
                  %v720 = vld [vmem:[%s606 + $0x2c0] sm:$0xff]
                  %721 = vst [vmem:[%s607 + $0x1c0] sm:$0xff] %v720
                  %v722 = vld [vmem:[%s606 + $0x2c8] sm:$0xff]
                  %723 = vst [vmem:[%s607 + $0x1c8] sm:$0xff] %v722
                  %v724 = vld [vmem:[%s606 + $0x2d0] sm:$0xff]
                  %725 = vst [vmem:[%s607 + $0x1d0] sm:$0xff] %v724
                  %v726 = vld [vmem:[%s606 + $0x2d8] sm:$0xff]
                  %727 = vst [vmem:[%s607 + $0x1d8] sm:$0xff] %v726
                  %v728 = vld [vmem:[%s606 + $0x2e0] sm:$0xff]
                  %729 = vst [vmem:[%s607 + $0x1e0] sm:$0xff] %v728
                  %v730 = vld [vmem:[%s606 + $0x2e8] sm:$0xff]
                  %731 = vst [vmem:[%s607 + $0x1e8] sm:$0xff] %v730
                  %v732 = vld [vmem:[%s606 + $0x2f0] sm:$0xff]
                  %733 = vst [vmem:[%s607 + $0x1f0] sm:$0xff] %v732
                  %v734 = vld [vmem:[%s606 + $0x2f8] sm:$0xff]
                  %735 = vst [vmem:[%s607 + $0x1f8] sm:$0xff] %v734
                $region100: #{tpu_custom_call.1} parent=94 // loop_footer
                  %s605 = sadd.s32 1, %s601
                $region101: #{tpu_custom_call.1} parent=94 // loop_footer_branch
                  %600 = sbr.rel target = $region97
                $region102: #{tpu_custom_call.1} parent=94 // loop_exit
                  _
              $region95: #{tpu_custom_call.1} parent=79 // pred_fallthru
                _
              // Predicated region
              $region103: #{tpu_custom_call.1} parent=79 // pred_check
                _
              $region104: #{tpu_custom_call.1} parent=79 // pred_check_branch
                %737 = sbr.rel target = $region106
              $region105: #{tpu_custom_call.1} parent=79 // pred_region
                _
              $region106: #{tpu_custom_call.1} parent=79 // pred_fallthru
                _
            $region80: #{tpu_custom_call.1} parent=75 // pred_fallthru
              _
            // Predicated region
            $region81: #{tpu_custom_call.1} parent=75 // pred_check
              _
            $region82: #{tpu_custom_call.1} parent=75 // pred_check_branch
              %460 = sbr.rel target = $region84
            $region83: #{tpu_custom_call.1} parent=75 // pred_region
              loop: start=0, step=1, limit=1
              $region85: #{tpu_custom_call.1} parent=83 // loop_pre_header
                _
              $region86: #{tpu_custom_call.1} parent=83 // loop_header
                %s463 = sphi 0, %s467
                %p464 = scmp.ge.s32.totalorder %s463, 1
                %s468 = sphi %s454, %s454
                %s469 = sphi %s448, %s448
              $region87: #{tpu_custom_call.1} parent=83 // loop_header_branch
                %466 = sbr.rel (%p464) target = $region91
              $region88: #{tpu_custom_call.1} parent=83 // loop_body
                %v470 = vld [vmem:[%s468] sm:$0xff]
                %471 = vst [vmem:[%s469] sm:$0xff] %v470
                %v472 = vld [vmem:[%s468 + $0x8] sm:$0xff]
                %473 = vst [vmem:[%s469 + $0x8] sm:$0xff] %v472
                %v474 = vld [vmem:[%s468 + $0x10] sm:$0xff]
                %475 = vst [vmem:[%s469 + $0x10] sm:$0xff] %v474
                %v476 = vld [vmem:[%s468 + $0x18] sm:$0xff]
                %477 = vst [vmem:[%s469 + $0x18] sm:$0xff] %v476
                %v478 = vld [vmem:[%s468 + $0x20] sm:$0xff]
                %479 = vst [vmem:[%s469 + $0x20] sm:$0xff] %v478
                %v480 = vld [vmem:[%s468 + $0x28] sm:$0xff]
                %481 = vst [vmem:[%s469 + $0x28] sm:$0xff] %v480
                %v482 = vld [vmem:[%s468 + $0x30] sm:$0xff]
                %483 = vst [vmem:[%s469 + $0x30] sm:$0xff] %v482
                %v484 = vld [vmem:[%s468 + $0x38] sm:$0xff]
                %485 = vst [vmem:[%s469 + $0x38] sm:$0xff] %v484
                %v486 = vld [vmem:[%s468 + $0x40] sm:$0xff]
                %487 = vst [vmem:[%s469 + $0x40] sm:$0xff] %v486
                %v488 = vld [vmem:[%s468 + $0x48] sm:$0xff]
                %489 = vst [vmem:[%s469 + $0x48] sm:$0xff] %v488
                %v490 = vld [vmem:[%s468 + $0x50] sm:$0xff]
                %491 = vst [vmem:[%s469 + $0x50] sm:$0xff] %v490
                %v492 = vld [vmem:[%s468 + $0x58] sm:$0xff]
                %493 = vst [vmem:[%s469 + $0x58] sm:$0xff] %v492
                %v494 = vld [vmem:[%s468 + $0x60] sm:$0xff]
                %495 = vst [vmem:[%s469 + $0x60] sm:$0xff] %v494
                %v496 = vld [vmem:[%s468 + $0x68] sm:$0xff]
                %497 = vst [vmem:[%s469 + $0x68] sm:$0xff] %v496
                %v498 = vld [vmem:[%s468 + $0x70] sm:$0xff]
                %499 = vst [vmem:[%s469 + $0x70] sm:$0xff] %v498
                %v500 = vld [vmem:[%s468 + $0x78] sm:$0xff]
                %501 = vst [vmem:[%s469 + $0x78] sm:$0xff] %v500
                %v502 = vld [vmem:[%s468 + $0x80] sm:$0xff]
                %503 = vst [vmem:[%s469 + $0x80] sm:$0xff] %v502
                %v504 = vld [vmem:[%s468 + $0x88] sm:$0xff]
                %505 = vst [vmem:[%s469 + $0x88] sm:$0xff] %v504
                %v506 = vld [vmem:[%s468 + $0x90] sm:$0xff]
                %507 = vst [vmem:[%s469 + $0x90] sm:$0xff] %v506
                %v508 = vld [vmem:[%s468 + $0x98] sm:$0xff]
                %509 = vst [vmem:[%s469 + $0x98] sm:$0xff] %v508
                %v510 = vld [vmem:[%s468 + $0xa0] sm:$0xff]
                %511 = vst [vmem:[%s469 + $0xa0] sm:$0xff] %v510
                %v512 = vld [vmem:[%s468 + $0xa8] sm:$0xff]
                %513 = vst [vmem:[%s469 + $0xa8] sm:$0xff] %v512
                %v514 = vld [vmem:[%s468 + $0xb0] sm:$0xff]
                %515 = vst [vmem:[%s469 + $0xb0] sm:$0xff] %v514
                %v516 = vld [vmem:[%s468 + $0xb8] sm:$0xff]
                %517 = vst [vmem:[%s469 + $0xb8] sm:$0xff] %v516
                %v518 = vld [vmem:[%s468 + $0xc0] sm:$0xff]
                %519 = vst [vmem:[%s469 + $0xc0] sm:$0xff] %v518
                %v520 = vld [vmem:[%s468 + $0xc8] sm:$0xff]
                %521 = vst [vmem:[%s469 + $0xc8] sm:$0xff] %v520
                %v522 = vld [vmem:[%s468 + $0xd0] sm:$0xff]
                %523 = vst [vmem:[%s469 + $0xd0] sm:$0xff] %v522
                %v524 = vld [vmem:[%s468 + $0xd8] sm:$0xff]
                %525 = vst [vmem:[%s469 + $0xd8] sm:$0xff] %v524
                %v526 = vld [vmem:[%s468 + $0xe0] sm:$0xff]
                %527 = vst [vmem:[%s469 + $0xe0] sm:$0xff] %v526
                %v528 = vld [vmem:[%s468 + $0xe8] sm:$0xff]
                %529 = vst [vmem:[%s469 + $0xe8] sm:$0xff] %v528
                %v530 = vld [vmem:[%s468 + $0xf0] sm:$0xff]
                %531 = vst [vmem:[%s469 + $0xf0] sm:$0xff] %v530
                %v532 = vld [vmem:[%s468 + $0xf8] sm:$0xff]
                %533 = vst [vmem:[%s469 + $0xf8] sm:$0xff] %v532
                %v534 = vld [vmem:[%s468 + $0x200] sm:$0xff]
                %535 = vst [vmem:[%s469 + $0x100] sm:$0xff] %v534
                %v536 = vld [vmem:[%s468 + $0x208] sm:$0xff]
                %537 = vst [vmem:[%s469 + $0x108] sm:$0xff] %v536
                %v538 = vld [vmem:[%s468 + $0x210] sm:$0xff]
                %539 = vst [vmem:[%s469 + $0x110] sm:$0xff] %v538
                %v540 = vld [vmem:[%s468 + $0x218] sm:$0xff]
                %541 = vst [vmem:[%s469 + $0x118] sm:$0xff] %v540
                %v542 = vld [vmem:[%s468 + $0x220] sm:$0xff]
                %543 = vst [vmem:[%s469 + $0x120] sm:$0xff] %v542
                %v544 = vld [vmem:[%s468 + $0x228] sm:$0xff]
                %545 = vst [vmem:[%s469 + $0x128] sm:$0xff] %v544
                %v546 = vld [vmem:[%s468 + $0x230] sm:$0xff]
                %547 = vst [vmem:[%s469 + $0x130] sm:$0xff] %v546
                %v548 = vld [vmem:[%s468 + $0x238] sm:$0xff]
                %549 = vst [vmem:[%s469 + $0x138] sm:$0xff] %v548
                %v550 = vld [vmem:[%s468 + $0x240] sm:$0xff]
                %551 = vst [vmem:[%s469 + $0x140] sm:$0xff] %v550
                %v552 = vld [vmem:[%s468 + $0x248] sm:$0xff]
                %553 = vst [vmem:[%s469 + $0x148] sm:$0xff] %v552
                %v554 = vld [vmem:[%s468 + $0x250] sm:$0xff]
                %555 = vst [vmem:[%s469 + $0x150] sm:$0xff] %v554
                %v556 = vld [vmem:[%s468 + $0x258] sm:$0xff]
                %557 = vst [vmem:[%s469 + $0x158] sm:$0xff] %v556
                %v558 = vld [vmem:[%s468 + $0x260] sm:$0xff]
                %559 = vst [vmem:[%s469 + $0x160] sm:$0xff] %v558
                %v560 = vld [vmem:[%s468 + $0x268] sm:$0xff]
                %561 = vst [vmem:[%s469 + $0x168] sm:$0xff] %v560
                %v562 = vld [vmem:[%s468 + $0x270] sm:$0xff]
                %563 = vst [vmem:[%s469 + $0x170] sm:$0xff] %v562
                %v564 = vld [vmem:[%s468 + $0x278] sm:$0xff]
                %565 = vst [vmem:[%s469 + $0x178] sm:$0xff] %v564
                %v566 = vld [vmem:[%s468 + $0x280] sm:$0xff]
                %567 = vst [vmem:[%s469 + $0x180] sm:$0xff] %v566
                %v568 = vld [vmem:[%s468 + $0x288] sm:$0xff]
                %569 = vst [vmem:[%s469 + $0x188] sm:$0xff] %v568
                %v570 = vld [vmem:[%s468 + $0x290] sm:$0xff]
                %571 = vst [vmem:[%s469 + $0x190] sm:$0xff] %v570
                %v572 = vld [vmem:[%s468 + $0x298] sm:$0xff]
                %573 = vst [vmem:[%s469 + $0x198] sm:$0xff] %v572
                %v574 = vld [vmem:[%s468 + $0x2a0] sm:$0xff]
                %575 = vst [vmem:[%s469 + $0x1a0] sm:$0xff] %v574
                %v576 = vld [vmem:[%s468 + $0x2a8] sm:$0xff]
                %577 = vst [vmem:[%s469 + $0x1a8] sm:$0xff] %v576
                %v578 = vld [vmem:[%s468 + $0x2b0] sm:$0xff]
                %579 = vst [vmem:[%s469 + $0x1b0] sm:$0xff] %v578
                %v580 = vld [vmem:[%s468 + $0x2b8] sm:$0xff]
                %581 = vst [vmem:[%s469 + $0x1b8] sm:$0xff] %v580
                %v582 = vld [vmem:[%s468 + $0x2c0] sm:$0xff]
                %583 = vst [vmem:[%s469 + $0x1c0] sm:$0xff] %v582
                %v584 = vld [vmem:[%s468 + $0x2c8] sm:$0xff]
                %585 = vst [vmem:[%s469 + $0x1c8] sm:$0xff] %v584
                %v586 = vld [vmem:[%s468 + $0x2d0] sm:$0xff]
                %587 = vst [vmem:[%s469 + $0x1d0] sm:$0xff] %v586
                %v588 = vld [vmem:[%s468 + $0x2d8] sm:$0xff]
                %589 = vst [vmem:[%s469 + $0x1d8] sm:$0xff] %v588
                %v590 = vld [vmem:[%s468 + $0x2e0] sm:$0xff]
                %591 = vst [vmem:[%s469 + $0x1e0] sm:$0xff] %v590
                %v592 = vld [vmem:[%s468 + $0x2e8] sm:$0xff]
                %593 = vst [vmem:[%s469 + $0x1e8] sm:$0xff] %v592
                %v594 = vld [vmem:[%s468 + $0x2f0] sm:$0xff]
                %595 = vst [vmem:[%s469 + $0x1f0] sm:$0xff] %v594
                %v596 = vld [vmem:[%s468 + $0x2f8] sm:$0xff]
                %597 = vst [vmem:[%s469 + $0x1f8] sm:$0xff] %v596
              $region89: #{tpu_custom_call.1} parent=83 // loop_footer
                %s467 = sadd.s32 1, %s463
              $region90: #{tpu_custom_call.1} parent=83 // loop_footer_branch
                %462 = sbr.rel target = $region86
              $region91: #{tpu_custom_call.1} parent=83 // loop_exit
                _
            $region84: #{tpu_custom_call.1} parent=75 // pred_fallthru
              _
          $region76: #{tpu_custom_call.1} parent=71 // pred_fallthru
            _
          %738 = vnop
        $region72: #{tpu_custom_call.1} parent=67 // pred_fallthru
          _
      $region68: #{tpu_custom_call.1} parent=5 // pred_fallthru
        _
      %p739 = scmp.le.s32.totalorder 1, %s25
      %p740 = scmp.lt.s32.totalorder %s25, 5
      %p741 = pnand %p739, %p740
      %p742 = pneg %p741
      // Predicated region
      $region107: #{tpu_custom_call.1} parent=5 // pred_check
        _
      $region108: #{tpu_custom_call.1} parent=5 // pred_check_branch
        %744 = sbr.rel (%p741) target = $region110
      $region109: #{tpu_custom_call.1} parent=5 // pred_region
        %s745 = ssub.s32 %s25, 1
        %s746 = sand.u32 %s52, 1
        %s747 = sand.u32 %s52, 1
        %s748 = smul.addr %s747, 512
        %s749 = scalar_lea.vmem [#allocation3], %s748
        // Predicated region
        $region111: #{tpu_custom_call.1} parent=109 // pred_check
          %p750 = pneg %p65
        $region112: #{tpu_custom_call.1} parent=109 // pred_check_branch
          %752 = sbr.rel (%p750) target = $region114
        $region113: #{tpu_custom_call.1} parent=109 // pred_region
          _
        $region114: #{tpu_custom_call.1} parent=109 // pred_fallthru
          _
        // Predicated region
        $region115: #{tpu_custom_call.1} parent=109 // pred_check
          %p753 = pneg %p170
        $region116: #{tpu_custom_call.1} parent=109 // pred_check_branch
          %755 = sbr.rel (%p753) target = $region118
        $region117: #{tpu_custom_call.1} parent=109 // pred_region
          %756 = dma.done [#allocation5], 8192
        $region118: #{tpu_custom_call.1} parent=109 // pred_fallthru
          _
        // Predicated region
        $region119: #{tpu_custom_call.1} parent=109 // pred_check
          %p757 = pneg %p254
        $region120: #{tpu_custom_call.1} parent=109 // pred_check_branch
          %759 = sbr.rel (%p757) target = $region122
        $region121: #{tpu_custom_call.1} parent=109 // pred_region
          %760 = dma.done [#allocation8], 8192
        $region122: #{tpu_custom_call.1} parent=109 // pred_fallthru
          _
        %s761 = sand.u32 %s52, 1
        %s762 = sand.u32 %s52, 1
        %s763 = smul.addr %s762, 512
        %s764 = scalar_lea.vmem [#allocation3], %s763
        %p765 = pneg %p65
        %p766 = pneg %p62
        %p767 = pneg %p86
        %p768 = pneg %p83
        %p769 = pneg %p107
        %p770 = pneg %p104
        %p771 = pneg %p128
        %p772 = pneg %p125
        %p773 = pneg %p149
        %p774 = pneg %p146
        %p775 = pneg %p170
        %p776 = pneg %p167
        %p777 = pneg %p191
        %p778 = pneg %p188
        %p779 = pneg %p212
        %p780 = pneg %p209
        %p781 = pneg %p233
        %p782 = pneg %p230
        %p783 = pneg %p254
        %p784 = pneg %p251
        %p785 = pneg %p275
        %p786 = pneg %p272
        %p787 = pneg %p296
        %p788 = pneg %p293
        %p789 = pneg %p317
        %p790 = pneg %p314
        %p791 = pneg %p338
        %p792 = pneg %p335
        %p793 = pneg %p364
        %p794 = pneg %p361
        %s795 = sand.u32 %s351, 1
        %s796 = scalar_lea.sflag [#allocation6], %s795
        %s797 = sand.u32 %s351, 1
        %s798 = smul.addr %s797, 2
        %s799 = scalar_lea.vmem [#allocation9], %s798
        %s800 = smul.u32 2, %s34
        %s801 = smul.u32 32, %s35
        %p803 = scmp.eq.s32.totalorder %s35, 0
        // Predicated region
        $region123: #{tpu_custom_call.1} parent=109 // pred_check
          %p804 = pneg %p803
        $region124: #{tpu_custom_call.1} parent=109 // pred_check_branch
          %806 = sbr.rel (%p804) target = $region126
        $region125: #{tpu_custom_call.1} parent=109 // pred_region
          %807 = vst [vmem:[#allocation2] sm:$0xff] -inf
          %808 = vst [vmem:[#allocation2 + $0x8] sm:$0xff] -inf
        $region126: #{tpu_custom_call.1} parent=109 // pred_fallthru
          _
        %v809 = vld [vmem:[%s749] sm:$0xff]
        %v810 = vld [vmem:[%s749 + $0x8] sm:$0xff]
        %v811 = vld [vmem:[%s749 + $0x10] sm:$0xff]
        %v812 = vld [vmem:[%s749 + $0x18] sm:$0xff]
        %v813 = vld [vmem:[%s749 + $0x20] sm:$0xff]
        %v814 = vld [vmem:[%s749 + $0x28] sm:$0xff]
        %v815 = vld [vmem:[%s749 + $0x30] sm:$0xff]
        %v816 = vld [vmem:[%s749 + $0x38] sm:$0xff]
        %v817 = vld [vmem:[%s749 + $0x40] sm:$0xff]
        %v818 = vld [vmem:[%s749 + $0x48] sm:$0xff]
        %v819 = vld [vmem:[%s749 + $0x50] sm:$0xff]
        %v820 = vld [vmem:[%s749 + $0x58] sm:$0xff]
        %v821 = vld [vmem:[%s749 + $0x60] sm:$0xff]
        %v822 = vld [vmem:[%s749 + $0x68] sm:$0xff]
        %v823 = vld [vmem:[%s749 + $0x70] sm:$0xff]
        %v824 = vld [vmem:[%s749 + $0x78] sm:$0xff]
        %v825 = vld [vmem:[%s749 + $0x80] sm:$0xff]
        %v826 = vld [vmem:[%s749 + $0x88] sm:$0xff]
        %v827 = vld [vmem:[%s749 + $0x90] sm:$0xff]
        %v828 = vld [vmem:[%s749 + $0x98] sm:$0xff]
        %v829 = vld [vmem:[%s749 + $0xa0] sm:$0xff]
        %v830 = vld [vmem:[%s749 + $0xa8] sm:$0xff]
        %v831 = vld [vmem:[%s749 + $0xb0] sm:$0xff]
        %v832 = vld [vmem:[%s749 + $0xb8] sm:$0xff]
        %v833 = vld [vmem:[%s749 + $0xc0] sm:$0xff]
        %v834 = vld [vmem:[%s749 + $0xc8] sm:$0xff]
        %v835 = vld [vmem:[%s749 + $0xd0] sm:$0xff]
        %v836 = vld [vmem:[%s749 + $0xd8] sm:$0xff]
        %v837 = vld [vmem:[%s749 + $0xe0] sm:$0xff]
        %v838 = vld [vmem:[%s749 + $0xe8] sm:$0xff]
        %v839 = vld [vmem:[%s749 + $0xf0] sm:$0xff]
        %v840 = vld [vmem:[%s749 + $0xf8] sm:$0xff]
        %v841 = vld [vmem:[%s749 + $0x100] sm:$0xff]
        %v842 = vld [vmem:[%s749 + $0x108] sm:$0xff]
        %v843 = vld [vmem:[%s749 + $0x110] sm:$0xff]
        %v844 = vld [vmem:[%s749 + $0x118] sm:$0xff]
        %v845 = vld [vmem:[%s749 + $0x120] sm:$0xff]
        %v846 = vld [vmem:[%s749 + $0x128] sm:$0xff]
        %v847 = vld [vmem:[%s749 + $0x130] sm:$0xff]
        %v848 = vld [vmem:[%s749 + $0x138] sm:$0xff]
        %v849 = vld [vmem:[%s749 + $0x140] sm:$0xff]
        %v850 = vld [vmem:[%s749 + $0x148] sm:$0xff]
        %v851 = vld [vmem:[%s749 + $0x150] sm:$0xff]
        %v852 = vld [vmem:[%s749 + $0x158] sm:$0xff]
        %v853 = vld [vmem:[%s749 + $0x160] sm:$0xff]
        %v854 = vld [vmem:[%s749 + $0x168] sm:$0xff]
        %v855 = vld [vmem:[%s749 + $0x170] sm:$0xff]
        %v856 = vld [vmem:[%s749 + $0x178] sm:$0xff]
        %v857 = vld [vmem:[%s749 + $0x180] sm:$0xff]
        %v858 = vld [vmem:[%s749 + $0x188] sm:$0xff]
        %v859 = vld [vmem:[%s749 + $0x190] sm:$0xff]
        %v860 = vld [vmem:[%s749 + $0x198] sm:$0xff]
        %v861 = vld [vmem:[%s749 + $0x1a0] sm:$0xff]
        %v862 = vld [vmem:[%s749 + $0x1a8] sm:$0xff]
        %v863 = vld [vmem:[%s749 + $0x1b0] sm:$0xff]
        %v864 = vld [vmem:[%s749 + $0x1b8] sm:$0xff]
        %v865 = vld [vmem:[%s749 + $0x1c0] sm:$0xff]
        %v866 = vld [vmem:[%s749 + $0x1c8] sm:$0xff]
        %v867 = vld [vmem:[%s749 + $0x1d0] sm:$0xff]
        %v868 = vld [vmem:[%s749 + $0x1d8] sm:$0xff]
        %v869 = vld [vmem:[%s749 + $0x1e0] sm:$0xff]
        %v870 = vld [vmem:[%s749 + $0x1e8] sm:$0xff]
        %v871 = vld [vmem:[%s749 + $0x1f0] sm:$0xff]
        %v872 = vld [vmem:[%s749 + $0x1f8] sm:$0xff]
        %v873 = vld [vmem:[%s1] sm:$0xff]
        %v874 = vld [vmem:[%s2] sm:$0x1]
        %v876 = vlaneseq
        %v877 = vshrl.u32 %v876, 7
        %v878 = vsub.s32 0, %v877
        %v879 = vrot.slane %v874, %v878
        %vm881 = vcmask 64512
        %v883 = vsel %vm881, %v809, 0
        %v886 = vsel %vm881, %v810, 0
        %v889 = vsel %vm881, %v811, 0
        %v892 = vsel %vm881, %v812, 0
        %v895 = vsel %vm881, %v813, 0
        %v898 = vsel %vm881, %v814, 0
        %v901 = vsel %vm881, %v815, 0
        %v904 = vsel %vm881, %v816, 0
        %v907 = vsel %vm881, %v817, 0
        %v910 = vsel %vm881, %v818, 0
        %v913 = vsel %vm881, %v819, 0
        %v916 = vsel %vm881, %v820, 0
        %v919 = vsel %vm881, %v821, 0
        %v922 = vsel %vm881, %v822, 0
        %v925 = vsel %vm881, %v823, 0
        %v928 = vsel %vm881, %v824, 0
        %v931 = vsel %vm881, %v825, 0
        %v934 = vsel %vm881, %v826, 0
        %v937 = vsel %vm881, %v827, 0
        %v940 = vsel %vm881, %v828, 0
        %v943 = vsel %vm881, %v829, 0
        %v946 = vsel %vm881, %v830, 0
        %v949 = vsel %vm881, %v831, 0
        %v952 = vsel %vm881, %v832, 0
        %v955 = vsel %vm881, %v833, 0
        %v958 = vsel %vm881, %v834, 0
        %v961 = vsel %vm881, %v835, 0
        %v964 = vsel %vm881, %v836, 0
        %v967 = vsel %vm881, %v837, 0
        %v970 = vsel %vm881, %v838, 0
        %v973 = vsel %vm881, %v839, 0
        %v976 = vsel %vm881, %v840, 0
        %v979 = vsel %vm881, %v841, 0
        %v982 = vsel %vm881, %v842, 0
        %v985 = vsel %vm881, %v843, 0
        %v988 = vsel %vm881, %v844, 0
        %v991 = vsel %vm881, %v845, 0
        %v994 = vsel %vm881, %v846, 0
        %v997 = vsel %vm881, %v847, 0
        %v1000 = vsel %vm881, %v848, 0
        %v1003 = vsel %vm881, %v849, 0
        %v1006 = vsel %vm881, %v850, 0
        %v1009 = vsel %vm881, %v851, 0
        %v1012 = vsel %vm881, %v852, 0
        %v1015 = vsel %vm881, %v853, 0
        %v1018 = vsel %vm881, %v854, 0
        %v1021 = vsel %vm881, %v855, 0
        %v1024 = vsel %vm881, %v856, 0
        %v1027 = vsel %vm881, %v857, 0
        %v1030 = vsel %vm881, %v858, 0
        %v1033 = vsel %vm881, %v859, 0
        %v1036 = vsel %vm881, %v860, 0
        %v1039 = vsel %vm881, %v861, 0
        %v1042 = vsel %vm881, %v862, 0
        %v1045 = vsel %vm881, %v863, 0
        %v1048 = vsel %vm881, %v864, 0
        %v1051 = vsel %vm881, %v865, 0
        %v1054 = vsel %vm881, %v866, 0
        %v1057 = vsel %vm881, %v867, 0
        %v1060 = vsel %vm881, %v868, 0
        %v1063 = vsel %vm881, %v869, 0
        %v1066 = vsel %vm881, %v870, 0
        %v1069 = vsel %vm881, %v871, 0
        %v1072 = vsel %vm881, %v872, 0
        %1074 = vmatprep.subr.mxu0 0.0
        %1075 = vmatpush1.msra.mxu0 %v873
        %1076 = vmatprep.subr.mxu0 0.0
        %1077 = vmatpush1.msra.mxu0 0.0
        %1078 = vmatprep.subr.mxu0 0.0
        %1079 = vmatpush1.msra.mxu0 0.0
        %1080 = vmatprep.subr.mxu0 0.0
        %1081 = vmatpush1.msra.mxu0 0.0
        %1082 = vmatprep.subr.mxu0 0.0
        %1083 = vmatpush1.msra.mxu0 0.0
        %1084 = vmatprep.subr.mxu0 0.0
        %1085 = vmatpush1.msra.mxu0 0.0
        %1086 = vmatprep.subr.mxu0 0.0
        %1087 = vmatpush1.msra.mxu0 0.0
        %1088 = vmatprep.subr.mxu0 0.0
        %1089 = vmatpush1.msra.mxu0 0.0
        %1090 = vmatprep.subr.mxu0 0.0
        %1091 = vmatpush1.msra.mxu0 0.0
        %1092 = vmatprep.subr.mxu0 0.0
        %1093 = vmatpush1.msra.mxu0 0.0
        %1094 = vmatprep.subr.mxu0 0.0
        %1095 = vmatpush1.msra.mxu0 0.0
        %1096 = vmatprep.subr.mxu0 0.0
        %1097 = vmatpush1.msra.mxu0 0.0
        %1098 = vmatprep.subr.mxu0 0.0
        %1099 = vmatpush1.msra.mxu0 0.0
        %1100 = vmatprep.subr.mxu0 0.0
        %1101 = vmatpush1.msra.mxu0 0.0
        %1102 = vmatprep.subr.mxu0 0.0
        %1103 = vmatpush1.msra.mxu0 0.0
        %1104 = vmatprep.subr.mxu0 0.0
        %1105 = vmatpush1.msra.mxu0 0.0
        %1106 = vmatprep.subr.mxu0 0.0
        %1107 = vmatpush1.msra.mxu0 0.0
        %1108 = vmatprep.subr.mxu0 0.0
        %1109 = vmatpush1.msra.mxu0 0.0
        %1110 = vmatprep.subr.mxu0 0.0
        %1111 = vmatpush1.msra.mxu0 0.0
        %1112 = vmatprep.subr.mxu0 0.0
        %1113 = vmatpush1.msra.mxu0 0.0
        %1114 = vmatprep.subr.mxu0 0.0
        %1115 = vmatpush1.msra.mxu0 0.0
        %1116 = vmatprep.subr.mxu0 0.0
        %1117 = vmatpush1.msra.mxu0 0.0
        %1118 = vmatprep.subr.mxu0 0.0
        %1119 = vmatpush1.msra.mxu0 0.0
        %1120 = vmatprep.subr.mxu0 0.0
        %1121 = vmatpush1.msra.mxu0 0.0
        %1122 = vmatprep.subr.mxu0 0.0
        %1123 = vmatpush1.msra.mxu0 0.0
        %1124 = vmatprep.subr.mxu0 0.0
        %1125 = vmatpush1.msra.mxu0 0.0
        %1126 = vmatprep.subr.mxu0 0.0
        %1127 = vmatpush1.msra.mxu0 0.0
        %1128 = vmatprep.subr.mxu0 0.0
        %1129 = vmatpush1.msra.mxu0 0.0
        %1130 = vmatprep.subr.mxu0 0.0
        %1131 = vmatpush1.msra.mxu0 0.0
        %1132 = vmatprep.subr.mxu0 0.0
        %1133 = vmatpush1.msra.mxu0 0.0
        %1134 = vmatprep.subr.mxu0 0.0
        %1135 = vmatpush1.msra.mxu0 0.0
        %1136 = vmatprep.subr.mxu0 0.0
        %1137 = vmatpush1.msra.mxu0 0.0
        %1138 = vmatprep.mubr.f32.mxu0 0.0
        %1139 = vmatmul.mubr.f32.gmra.mrb[0].mxu0 %v883
        %v1140 = vpop.f32.mrb[0].mxu0
        %v1141 = vadd.f32 %v879, %v1140
        %v1142 = vpop.f32.mrb[0].mxu0
        %1143 = vmatprep.mubr.f32.mxu0 0.0
        %1144 = vmatmul.mubr.f32.gmra.mrb[0].mxu0 %v886
        %v1145 = vpop.f32.mrb[0].mxu0
        %v1146 = vadd.f32 %v879, %v1145
        %v1147 = vpop.f32.mrb[0].mxu0
        %1148 = vmatprep.mubr.f32.mxu0 0.0
        %1149 = vmatmul.mubr.f32.gmra.mrb[0].mxu0 %v889
        %v1150 = vpop.f32.mrb[0].mxu0
        %v1151 = vadd.f32 %v879, %v1150
        %v1152 = vpop.f32.mrb[0].mxu0
        %1153 = vmatprep.mubr.f32.mxu0 0.0
        %1154 = vmatmul.mubr.f32.gmra.mrb[0].mxu0 %v892
        %v1155 = vpop.f32.mrb[0].mxu0
        %v1156 = vadd.f32 %v879, %v1155
        %v1157 = vpop.f32.mrb[0].mxu0
        %1158 = vmatprep.mubr.f32.mxu0 0.0
        %1159 = vmatmul.mubr.f32.gmra.mrb[0].mxu0 %v895
        %v1160 = vpop.f32.mrb[0].mxu0
        %v1161 = vadd.f32 %v879, %v1160
        %v1162 = vpop.f32.mrb[0].mxu0
        %1163 = vmatprep.mubr.f32.mxu0 0.0
        %1164 = vmatmul.mubr.f32.gmra.mrb[0].mxu0 %v898
        %v1165 = vpop.f32.mrb[0].mxu0
        %v1166 = vadd.f32 %v879, %v1165
        %v1167 = vpop.f32.mrb[0].mxu0
        %1168 = vmatprep.mubr.f32.mxu0 0.0
        %1169 = vmatmul.mubr.f32.gmra.mrb[0].mxu0 %v901
        %v1170 = vpop.f32.mrb[0].mxu0
        %v1171 = vadd.f32 %v879, %v1170
        %v1172 = vpop.f32.mrb[0].mxu0
        %1173 = vmatprep.mubr.f32.mxu0 0.0
        %1174 = vmatmul.mubr.f32.gmra.mrb[0].mxu0 %v904
        %v1175 = vpop.f32.mrb[0].mxu0
        %v1176 = vadd.f32 %v879, %v1175
        %v1177 = vpop.f32.mrb[0].mxu0
        %1178 = vmatprep.mubr.f32.mxu0 0.0
        %1179 = vmatmul.mubr.f32.gmra.mrb[0].mxu0 %v907
        %v1180 = vpop.f32.mrb[0].mxu0
        %v1181 = vadd.f32 %v879, %v1180
        %v1182 = vpop.f32.mrb[0].mxu0
        %1183 = vmatprep.mubr.f32.mxu0 0.0
        %1184 = vmatmul.mubr.f32.gmra.mrb[0].mxu0 %v910
        %v1185 = vpop.f32.mrb[0].mxu0
        %v1186 = vadd.f32 %v879, %v1185
        %v1187 = vpop.f32.mrb[0].mxu0
        %1188 = vmatprep.mubr.f32.mxu0 0.0
        %1189 = vmatmul.mubr.f32.gmra.mrb[0].mxu0 %v913
        %v1190 = vpop.f32.mrb[0].mxu0
        %v1191 = vadd.f32 %v879, %v1190
        %v1192 = vpop.f32.mrb[0].mxu0
        %1193 = vmatprep.mubr.f32.mxu0 0.0
        %1194 = vmatmul.mubr.f32.gmra.mrb[0].mxu0 %v916
        %v1195 = vpop.f32.mrb[0].mxu0
        %v1196 = vadd.f32 %v879, %v1195
        %v1197 = vpop.f32.mrb[0].mxu0
        %1198 = vmatprep.mubr.f32.mxu0 0.0
        %1199 = vmatmul.mubr.f32.gmra.mrb[0].mxu0 %v919
        %v1200 = vpop.f32.mrb[0].mxu0
        %v1201 = vadd.f32 %v879, %v1200
        %v1202 = vpop.f32.mrb[0].mxu0
        %1203 = vmatprep.mubr.f32.mxu0 0.0
        %1204 = vmatmul.mubr.f32.gmra.mrb[0].mxu0 %v922
        %v1205 = vpop.f32.mrb[0].mxu0
        %v1206 = vadd.f32 %v879, %v1205
        %v1207 = vpop.f32.mrb[0].mxu0
        %1208 = vmatprep.mubr.f32.mxu0 0.0
        %1209 = vmatmul.mubr.f32.gmra.mrb[0].mxu0 %v925
        %v1210 = vpop.f32.mrb[0].mxu0
        %v1211 = vadd.f32 %v879, %v1210
        %v1212 = vpop.f32.mrb[0].mxu0
        %1213 = vmatprep.mubr.f32.mxu0 0.0
        %1214 = vmatmul.mubr.f32.gmra.mrb[0].mxu0 %v928
        %v1215 = vpop.f32.mrb[0].mxu0
        %v1216 = vadd.f32 %v879, %v1215
        %v1217 = vpop.f32.mrb[0].mxu0
        %1218 = vmatprep.mubr.f32.mxu0 0.0
        %1219 = vmatmul.mubr.f32.gmra.mrb[0].mxu0 %v931
        %v1220 = vpop.f32.mrb[0].mxu0
        %v1221 = vadd.f32 %v879, %v1220
        %v1222 = vpop.f32.mrb[0].mxu0
        %1223 = vmatprep.mubr.f32.mxu0 0.0
        %1224 = vmatmul.mubr.f32.gmra.mrb[0].mxu0 %v934
        %v1225 = vpop.f32.mrb[0].mxu0
        %v1226 = vadd.f32 %v879, %v1225
        %v1227 = vpop.f32.mrb[0].mxu0
        %1228 = vmatprep.mubr.f32.mxu0 0.0
        %1229 = vmatmul.mubr.f32.gmra.mrb[0].mxu0 %v937
        %v1230 = vpop.f32.mrb[0].mxu0
        %v1231 = vadd.f32 %v879, %v1230
        %v1232 = vpop.f32.mrb[0].mxu0
        %1233 = vmatprep.mubr.f32.mxu0 0.0
        %1234 = vmatmul.mubr.f32.gmra.mrb[0].mxu0 %v940
        %v1235 = vpop.f32.mrb[0].mxu0
        %v1236 = vadd.f32 %v879, %v1235
        %v1237 = vpop.f32.mrb[0].mxu0
        %1238 = vmatprep.mubr.f32.mxu0 0.0
        %1239 = vmatmul.mubr.f32.gmra.mrb[0].mxu0 %v943
        %v1240 = vpop.f32.mrb[0].mxu0
        %v1241 = vadd.f32 %v879, %v1240
        %v1242 = vpop.f32.mrb[0].mxu0
        %1243 = vmatprep.mubr.f32.mxu0 0.0
        %1244 = vmatmul.mubr.f32.gmra.mrb[0].mxu0 %v946
        %v1245 = vpop.f32.mrb[0].mxu0
        %v1246 = vadd.f32 %v879, %v1245
        %v1247 = vpop.f32.mrb[0].mxu0
        %1248 = vmatprep.mubr.f32.mxu0 0.0
        %1249 = vmatmul.mubr.f32.gmra.mrb[0].mxu0 %v949
        %v1250 = vpop.f32.mrb[0].mxu0
        %v1251 = vadd.f32 %v879, %v1250
        %v1252 = vpop.f32.mrb[0].mxu0
        %1253 = vmatprep.mubr.f32.mxu0 0.0
        %1254 = vmatmul.mubr.f32.gmra.mrb[0].mxu0 %v952
        %v1255 = vpop.f32.mrb[0].mxu0
        %v1256 = vadd.f32 %v879, %v1255
        %v1257 = vpop.f32.mrb[0].mxu0
        %1258 = vmatprep.mubr.f32.mxu0 0.0
        %1259 = vmatmul.mubr.f32.gmra.mrb[0].mxu0 %v955
        %v1260 = vpop.f32.mrb[0].mxu0
        %v1261 = vadd.f32 %v879, %v1260
        %v1262 = vpop.f32.mrb[0].mxu0
        %1263 = vmatprep.mubr.f32.mxu0 0.0
        %1264 = vmatmul.mubr.f32.gmra.mrb[0].mxu0 %v958
        %v1265 = vpop.f32.mrb[0].mxu0
        %v1266 = vadd.f32 %v879, %v1265
        %v1267 = vpop.f32.mrb[0].mxu0
        %1268 = vmatprep.mubr.f32.mxu0 0.0
        %1269 = vmatmul.mubr.f32.gmra.mrb[0].mxu0 %v961
        %v1270 = vpop.f32.mrb[0].mxu0
        %v1271 = vadd.f32 %v879, %v1270
        %v1272 = vpop.f32.mrb[0].mxu0
        %1273 = vmatprep.mubr.f32.mxu0 0.0
        %1274 = vmatmul.mubr.f32.gmra.mrb[0].mxu0 %v964
        %v1275 = vpop.f32.mrb[0].mxu0
        %v1276 = vadd.f32 %v879, %v1275
        %v1277 = vpop.f32.mrb[0].mxu0
        %1278 = vmatprep.mubr.f32.mxu0 0.0
        %1279 = vmatmul.mubr.f32.gmra.mrb[0].mxu0 %v967
        %v1280 = vpop.f32.mrb[0].mxu0
        %v1281 = vadd.f32 %v879, %v1280
        %v1282 = vpop.f32.mrb[0].mxu0
        %1283 = vmatprep.mubr.f32.mxu0 0.0
        %1284 = vmatmul.mubr.f32.gmra.mrb[0].mxu0 %v970
        %v1285 = vpop.f32.mrb[0].mxu0
        %v1286 = vadd.f32 %v879, %v1285
        %v1287 = vpop.f32.mrb[0].mxu0
        %1288 = vmatprep.mubr.f32.mxu0 0.0
        %1289 = vmatmul.mubr.f32.gmra.mrb[0].mxu0 %v973
        %v1290 = vpop.f32.mrb[0].mxu0
        %v1291 = vadd.f32 %v879, %v1290
        %v1292 = vpop.f32.mrb[0].mxu0
        %1293 = vmatprep.mubr.f32.mxu0 0.0
        %1294 = vmatmul.mubr.f32.gmra.mrb[0].mxu0 %v976
        %v1295 = vpop.f32.mrb[0].mxu0
        %v1296 = vadd.f32 %v879, %v1295
        %v1297 = vpop.f32.mrb[0].mxu0
        %1298 = vmatprep.mubr.f32.mxu0 0.0
        %1299 = vmatmul.mubr.f32.gmra.mrb[0].mxu0 %v979
        %v1300 = vpop.f32.mrb[0].mxu0
        %v1301 = vadd.f32 %v879, %v1300
        %v1302 = vpop.f32.mrb[0].mxu0
        %1303 = vmatprep.mubr.f32.mxu0 0.0
        %1304 = vmatmul.mubr.f32.gmra.mrb[0].mxu0 %v982
        %v1305 = vpop.f32.mrb[0].mxu0
        %v1306 = vadd.f32 %v879, %v1305
        %v1307 = vpop.f32.mrb[0].mxu0
        %1308 = vmatprep.mubr.f32.mxu0 0.0
        %1309 = vmatmul.mubr.f32.gmra.mrb[0].mxu0 %v985
        %v1310 = vpop.f32.mrb[0].mxu0
        %v1311 = vadd.f32 %v879, %v1310
        %v1312 = vpop.f32.mrb[0].mxu0
        %1313 = vmatprep.mubr.f32.mxu0 0.0
        %1314 = vmatmul.mubr.f32.gmra.mrb[0].mxu0 %v988
        %v1315 = vpop.f32.mrb[0].mxu0
        %v1316 = vadd.f32 %v879, %v1315
        %v1317 = vpop.f32.mrb[0].mxu0
        %1318 = vmatprep.mubr.f32.mxu0 0.0
        %1319 = vmatmul.mubr.f32.gmra.mrb[0].mxu0 %v991
        %v1320 = vpop.f32.mrb[0].mxu0
        %v1321 = vadd.f32 %v879, %v1320
        %v1322 = vpop.f32.mrb[0].mxu0
        %1323 = vmatprep.mubr.f32.mxu0 0.0
        %1324 = vmatmul.mubr.f32.gmra.mrb[0].mxu0 %v994
        %v1325 = vpop.f32.mrb[0].mxu0
        %v1326 = vadd.f32 %v879, %v1325
        %v1327 = vpop.f32.mrb[0].mxu0
        %1328 = vmatprep.mubr.f32.mxu0 0.0
        %1329 = vmatmul.mubr.f32.gmra.mrb[0].mxu0 %v997
        %v1330 = vpop.f32.mrb[0].mxu0
        %v1331 = vadd.f32 %v879, %v1330
        %v1332 = vpop.f32.mrb[0].mxu0
        %1333 = vmatprep.mubr.f32.mxu0 0.0
        %1334 = vmatmul.mubr.f32.gmra.mrb[0].mxu0 %v1000
        %v1335 = vpop.f32.mrb[0].mxu0
        %v1336 = vadd.f32 %v879, %v1335
        %v1337 = vpop.f32.mrb[0].mxu0
        %1338 = vmatprep.mubr.f32.mxu0 0.0
        %1339 = vmatmul.mubr.f32.gmra.mrb[0].mxu0 %v1003
        %v1340 = vpop.f32.mrb[0].mxu0
        %v1341 = vadd.f32 %v879, %v1340
        %v1342 = vpop.f32.mrb[0].mxu0
        %1343 = vmatprep.mubr.f32.mxu0 0.0
        %1344 = vmatmul.mubr.f32.gmra.mrb[0].mxu0 %v1006
        %v1345 = vpop.f32.mrb[0].mxu0
        %v1346 = vadd.f32 %v879, %v1345
        %v1347 = vpop.f32.mrb[0].mxu0
        %1348 = vmatprep.mubr.f32.mxu0 0.0
        %1349 = vmatmul.mubr.f32.gmra.mrb[0].mxu0 %v1009
        %v1350 = vpop.f32.mrb[0].mxu0
        %v1351 = vadd.f32 %v879, %v1350
        %v1352 = vpop.f32.mrb[0].mxu0
        %1353 = vmatprep.mubr.f32.mxu0 0.0
        %1354 = vmatmul.mubr.f32.gmra.mrb[0].mxu0 %v1012
        %v1355 = vpop.f32.mrb[0].mxu0
        %v1356 = vadd.f32 %v879, %v1355
        %v1357 = vpop.f32.mrb[0].mxu0
        %1358 = vmatprep.mubr.f32.mxu0 0.0
        %1359 = vmatmul.mubr.f32.gmra.mrb[0].mxu0 %v1015
        %v1360 = vpop.f32.mrb[0].mxu0
        %v1361 = vadd.f32 %v879, %v1360
        %v1362 = vpop.f32.mrb[0].mxu0
        %1363 = vmatprep.mubr.f32.mxu0 0.0
        %1364 = vmatmul.mubr.f32.gmra.mrb[0].mxu0 %v1018
        %v1365 = vpop.f32.mrb[0].mxu0
        %v1366 = vadd.f32 %v879, %v1365
        %v1367 = vpop.f32.mrb[0].mxu0
        %1368 = vmatprep.mubr.f32.mxu0 0.0
        %1369 = vmatmul.mubr.f32.gmra.mrb[0].mxu0 %v1021
        %v1370 = vpop.f32.mrb[0].mxu0
        %v1371 = vadd.f32 %v879, %v1370
        %v1372 = vpop.f32.mrb[0].mxu0
        %1373 = vmatprep.mubr.f32.mxu0 0.0
        %1374 = vmatmul.mubr.f32.gmra.mrb[0].mxu0 %v1024
        %v1375 = vpop.f32.mrb[0].mxu0
        %v1376 = vadd.f32 %v879, %v1375
        %v1377 = vpop.f32.mrb[0].mxu0
        %1378 = vmatprep.mubr.f32.mxu0 0.0
        %1379 = vmatmul.mubr.f32.gmra.mrb[0].mxu0 %v1027
        %v1380 = vpop.f32.mrb[0].mxu0
        %v1381 = vadd.f32 %v879, %v1380
        %v1382 = vpop.f32.mrb[0].mxu0
        %1383 = vmatprep.mubr.f32.mxu0 0.0
        %1384 = vmatmul.mubr.f32.gmra.mrb[0].mxu0 %v1030
        %v1385 = vpop.f32.mrb[0].mxu0
        %v1386 = vadd.f32 %v879, %v1385
        %v1387 = vpop.f32.mrb[0].mxu0
        %1388 = vmatprep.mubr.f32.mxu0 0.0
        %1389 = vmatmul.mubr.f32.gmra.mrb[0].mxu0 %v1033
        %v1390 = vpop.f32.mrb[0].mxu0
        %v1391 = vadd.f32 %v879, %v1390
        %v1392 = vpop.f32.mrb[0].mxu0
        %1393 = vmatprep.mubr.f32.mxu0 0.0
        %1394 = vmatmul.mubr.f32.gmra.mrb[0].mxu0 %v1036
        %v1395 = vpop.f32.mrb[0].mxu0
        %v1396 = vadd.f32 %v879, %v1395
        %v1397 = vpop.f32.mrb[0].mxu0
        %1398 = vmatprep.mubr.f32.mxu0 0.0
        %1399 = vmatmul.mubr.f32.gmra.mrb[0].mxu0 %v1039
        %v1400 = vpop.f32.mrb[0].mxu0
        %v1401 = vadd.f32 %v879, %v1400
        %v1402 = vpop.f32.mrb[0].mxu0
        %1403 = vmatprep.mubr.f32.mxu0 0.0
        %1404 = vmatmul.mubr.f32.gmra.mrb[0].mxu0 %v1042
        %v1405 = vpop.f32.mrb[0].mxu0
        %v1406 = vadd.f32 %v879, %v1405
        %v1407 = vpop.f32.mrb[0].mxu0
        %1408 = vmatprep.mubr.f32.mxu0 0.0
        %1409 = vmatmul.mubr.f32.gmra.mrb[0].mxu0 %v1045
        %v1410 = vpop.f32.mrb[0].mxu0
        %v1411 = vadd.f32 %v879, %v1410
        %v1412 = vpop.f32.mrb[0].mxu0
        %1413 = vmatprep.mubr.f32.mxu0 0.0
        %1414 = vmatmul.mubr.f32.gmra.mrb[0].mxu0 %v1048
        %v1415 = vpop.f32.mrb[0].mxu0
        %v1416 = vadd.f32 %v879, %v1415
        %v1417 = vpop.f32.mrb[0].mxu0
        %1418 = vmatprep.mubr.f32.mxu0 0.0
        %1419 = vmatmul.mubr.f32.gmra.mrb[0].mxu0 %v1051
        %v1420 = vpop.f32.mrb[0].mxu0
        %v1421 = vadd.f32 %v879, %v1420
        %v1422 = vpop.f32.mrb[0].mxu0
        %1423 = vmatprep.mubr.f32.mxu0 0.0
        %1424 = vmatmul.mubr.f32.gmra.mrb[0].mxu0 %v1054
        %v1425 = vpop.f32.mrb[0].mxu0
        %v1426 = vadd.f32 %v879, %v1425
        %v1427 = vpop.f32.mrb[0].mxu0
        %1428 = vmatprep.mubr.f32.mxu0 0.0
        %1429 = vmatmul.mubr.f32.gmra.mrb[0].mxu0 %v1057
        %v1430 = vpop.f32.mrb[0].mxu0
        %v1431 = vadd.f32 %v879, %v1430
        %v1432 = vpop.f32.mrb[0].mxu0
        %1433 = vmatprep.mubr.f32.mxu0 0.0
        %1434 = vmatmul.mubr.f32.gmra.mrb[0].mxu0 %v1060
        %v1435 = vpop.f32.mrb[0].mxu0
        %v1436 = vadd.f32 %v879, %v1435
        %v1437 = vpop.f32.mrb[0].mxu0
        %1438 = vmatprep.mubr.f32.mxu0 0.0
        %1439 = vmatmul.mubr.f32.gmra.mrb[0].mxu0 %v1063
        %v1440 = vpop.f32.mrb[0].mxu0
        %v1441 = vadd.f32 %v879, %v1440
        %v1442 = vpop.f32.mrb[0].mxu0
        %1443 = vmatprep.mubr.f32.mxu0 0.0
        %1444 = vmatmul.mubr.f32.gmra.mrb[0].mxu0 %v1066
        %v1445 = vpop.f32.mrb[0].mxu0
        %v1446 = vadd.f32 %v879, %v1445
        %v1447 = vpop.f32.mrb[0].mxu0
        %1448 = vmatprep.mubr.f32.mxu0 0.0
        %1449 = vmatmul.mubr.f32.gmra.mrb[0].mxu0 %v1069
        %v1450 = vpop.f32.mrb[0].mxu0
        %v1451 = vadd.f32 %v879, %v1450
        %v1452 = vpop.f32.mrb[0].mxu0
        %1453 = vmatprep.mubr.f32.mxu0 0.0
        %1454 = vmatmul.mubr.f32.gmra.mrb[0].mxu0 %v1072
        %v1455 = vpop.f32.mrb[0].mxu0
        %v1456 = vadd.f32 %v879, %v1455
        %v1457 = vpop.f32.mrb[0].mxu0
        %1458 = vdwg.mxu0
        %v1459 = vmax.f32 %v1141, 0.0
        %v1460 = vmax.f32 %v1146, 0.0
        %v1461 = vmax.f32 %v1151, 0.0
        %v1462 = vmax.f32 %v1156, 0.0
        %v1463 = vmax.f32 %v1161, 0.0
        %v1464 = vmax.f32 %v1166, 0.0
        %v1465 = vmax.f32 %v1171, 0.0
        %v1466 = vmax.f32 %v1176, 0.0
        %v1467 = vmax.f32 %v1181, 0.0
        %v1468 = vmax.f32 %v1186, 0.0
        %v1469 = vmax.f32 %v1191, 0.0
        %v1470 = vmax.f32 %v1196, 0.0
        %v1471 = vmax.f32 %v1201, 0.0
        %v1472 = vmax.f32 %v1206, 0.0
        %v1473 = vmax.f32 %v1211, 0.0
        %v1474 = vmax.f32 %v1216, 0.0
        %v1475 = vmax.f32 %v1221, 0.0
        %v1476 = vmax.f32 %v1226, 0.0
        %v1477 = vmax.f32 %v1231, 0.0
        %v1478 = vmax.f32 %v1236, 0.0
        %v1479 = vmax.f32 %v1241, 0.0
        %v1480 = vmax.f32 %v1246, 0.0
        %v1481 = vmax.f32 %v1251, 0.0
        %v1482 = vmax.f32 %v1256, 0.0
        %v1483 = vmax.f32 %v1261, 0.0
        %v1484 = vmax.f32 %v1266, 0.0
        %v1485 = vmax.f32 %v1271, 0.0
        %v1486 = vmax.f32 %v1276, 0.0
        %v1487 = vmax.f32 %v1281, 0.0
        %v1488 = vmax.f32 %v1286, 0.0
        %v1489 = vmax.f32 %v1291, 0.0
        %v1490 = vmax.f32 %v1296, 0.0
        %v1491 = vmax.f32 %v1301, 0.0
        %v1492 = vmax.f32 %v1306, 0.0
        %v1493 = vmax.f32 %v1311, 0.0
        %v1494 = vmax.f32 %v1316, 0.0
        %v1495 = vmax.f32 %v1321, 0.0
        %v1496 = vmax.f32 %v1326, 0.0
        %v1497 = vmax.f32 %v1331, 0.0
        %v1498 = vmax.f32 %v1336, 0.0
        %v1499 = vmax.f32 %v1341, 0.0
        %v1500 = vmax.f32 %v1346, 0.0
        %v1501 = vmax.f32 %v1351, 0.0
        %v1502 = vmax.f32 %v1356, 0.0
        %v1503 = vmax.f32 %v1361, 0.0
        %v1504 = vmax.f32 %v1366, 0.0
        %v1505 = vmax.f32 %v1371, 0.0
        %v1506 = vmax.f32 %v1376, 0.0
        %v1507 = vmax.f32 %v1381, 0.0
        %v1508 = vmax.f32 %v1386, 0.0
        %v1509 = vmax.f32 %v1391, 0.0
        %v1510 = vmax.f32 %v1396, 0.0
        %v1511 = vmax.f32 %v1401, 0.0
        %v1512 = vmax.f32 %v1406, 0.0
        %v1513 = vmax.f32 %v1411, 0.0
        %v1514 = vmax.f32 %v1416, 0.0
        %v1515 = vmax.f32 %v1421, 0.0
        %v1516 = vmax.f32 %v1426, 0.0
        %v1517 = vmax.f32 %v1431, 0.0
        %v1518 = vmax.f32 %v1436, 0.0
        %v1519 = vmax.f32 %v1441, 0.0
        %v1520 = vmax.f32 %v1446, 0.0
        %v1521 = vmax.f32 %v1451, 0.0
        %v1522 = vmax.f32 %v1456, 0.0
        %v1523 = vpack.c.bf16 %v1460, %v1459
        %v1524 = vpack.c.bf16 %v1462, %v1461
        %v1525 = vpack.c.bf16 %v1464, %v1463
        %v1526 = vpack.c.bf16 %v1466, %v1465
        %v1527 = vpack.c.bf16 %v1468, %v1467
        %v1528 = vpack.c.bf16 %v1470, %v1469
        %v1529 = vpack.c.bf16 %v1472, %v1471
        %v1530 = vpack.c.bf16 %v1474, %v1473
        %v1531 = vpack.c.bf16 %v1476, %v1475
        %v1532 = vpack.c.bf16 %v1478, %v1477
        %v1533 = vpack.c.bf16 %v1480, %v1479
        %v1534 = vpack.c.bf16 %v1482, %v1481
        %v1535 = vpack.c.bf16 %v1484, %v1483
        %v1536 = vpack.c.bf16 %v1486, %v1485
        %v1537 = vpack.c.bf16 %v1488, %v1487
        %v1538 = vpack.c.bf16 %v1490, %v1489
        %v1539 = vpack.c.bf16 %v1492, %v1491
        %v1540 = vpack.c.bf16 %v1494, %v1493
        %v1541 = vpack.c.bf16 %v1496, %v1495
        %v1542 = vpack.c.bf16 %v1498, %v1497
        %v1543 = vpack.c.bf16 %v1500, %v1499
        %v1544 = vpack.c.bf16 %v1502, %v1501
        %v1545 = vpack.c.bf16 %v1504, %v1503
        %v1546 = vpack.c.bf16 %v1506, %v1505
        %v1547 = vpack.c.bf16 %v1508, %v1507
        %v1548 = vpack.c.bf16 %v1510, %v1509
        %v1549 = vpack.c.bf16 %v1512, %v1511
        %v1550 = vpack.c.bf16 %v1514, %v1513
        %v1551 = vpack.c.bf16 %v1516, %v1515
        %v1552 = vpack.c.bf16 %v1518, %v1517
        %v1553 = vpack.c.bf16 %v1520, %v1519
        %v1554 = vpack.c.bf16 %v1522, %v1521
        %v1555 = vld [vmem:[%s3] sm:$0xf]
        %v1556 = vld [vmem:[%s3 + $0x4] sm:$0xf]
        %v1557 = vld [vmem:[%s3 + $0x8] sm:$0xf]
        %v1558 = vld [vmem:[%s3 + $0xc] sm:$0xf]
        %v1559 = vld [vmem:[%s3 + $0x10] sm:$0xf]
        %v1560 = vld [vmem:[%s3 + $0x14] sm:$0xf]
        %v1561 = vld [vmem:[%s3 + $0x18] sm:$0xf]
        %v1562 = vld [vmem:[%s3 + $0x1c] sm:$0xf]
        %v1563 = vld [vmem:[%s4] sm:$0x1]
        %v1565 = vlaneseq
        %v1566 = vshrl.u32 %v1565, 7
        %v1567 = vsub.s32 0, %v1566
        %v1568 = vrot.slane %v1563, %v1567
        %v1578 = vunpack.c.l.b16 %v1555
        %v1579 = vunpack.c.l.b16 %v1556
        %v1580 = vunpack.c.l.b16 %v1557
        %v1581 = vunpack.c.l.b16 %v1558
        %v1582 = vunpack.c.l.b16 %v1559
        %v1583 = vunpack.c.l.b16 %v1560
        %v1584 = vunpack.c.l.b16 %v1561
        %v1585 = vunpack.c.l.b16 %v1562
        %v1586 = vpack.c.b16 %v1579, %v1578
        %v1587 = vpack.c.b16 %v1581, %v1580
        %v1588 = vpack.c.b16 %v1583, %v1582
        %v1589 = vpack.c.b16 %v1585, %v1584
        %vm1594 = vcmask 523264
        %v1596 = vsel %vm1594, %v1523, 0
        %v1599 = vsel %vm1594, %v1524, 0
        %v1602 = vsel %vm1594, %v1525, 0
        %v1605 = vsel %vm1594, %v1526, 0
        %v1608 = vsel %vm1594, %v1527, 0
        %v1611 = vsel %vm1594, %v1528, 0
        %v1614 = vsel %vm1594, %v1529, 0
        %v1617 = vsel %vm1594, %v1530, 0
        %v1620 = vsel %vm1594, %v1531, 0
        %v1623 = vsel %vm1594, %v1532, 0
        %v1626 = vsel %vm1594, %v1533, 0
        %v1629 = vsel %vm1594, %v1534, 0
        %v1632 = vsel %vm1594, %v1535, 0
        %v1635 = vsel %vm1594, %v1536, 0
        %v1638 = vsel %vm1594, %v1537, 0
        %v1641 = vsel %vm1594, %v1538, 0
        %v1644 = vsel %vm1594, %v1539, 0
        %v1647 = vsel %vm1594, %v1540, 0
        %v1650 = vsel %vm1594, %v1541, 0
        %v1653 = vsel %vm1594, %v1542, 0
        %v1656 = vsel %vm1594, %v1543, 0
        %v1659 = vsel %vm1594, %v1544, 0
        %v1662 = vsel %vm1594, %v1545, 0
        %v1665 = vsel %vm1594, %v1546, 0
        %v1668 = vsel %vm1594, %v1547, 0
        %v1671 = vsel %vm1594, %v1548, 0
        %v1674 = vsel %vm1594, %v1549, 0
        %v1677 = vsel %vm1594, %v1550, 0
        %v1680 = vsel %vm1594, %v1551, 0
        %v1683 = vsel %vm1594, %v1552, 0
        %v1686 = vsel %vm1594, %v1553, 0
        %v1689 = vsel %vm1594, %v1554, 0
        %1691 = vmatprep.subr.bf16.mxu0 0
        %1692 = vmatpush1.bf16.msra.mxu0 %v1586
        %1693 = vmatprep.subr.bf16.mxu0 0
        %1694 = vmatpush1.bf16.msra.mxu0 %v1587
        %1695 = vmatprep.subr.bf16.mxu0 0
        %1696 = vmatpush1.bf16.msra.mxu0 %v1588
        %1697 = vmatprep.subr.bf16.mxu0 0
        %1698 = vmatpush1.bf16.msra.mxu0 %v1589
        %1699 = vmatprep.subr.bf16.mxu0 0
        %1700 = vmatpush1.bf16.msra.mxu0 0
        %1701 = vmatprep.subr.bf16.mxu0 0
        %1702 = vmatpush1.bf16.msra.mxu0 0
        %1703 = vmatprep.subr.bf16.mxu0 0
        %1704 = vmatpush1.bf16.msra.mxu0 0
        %1705 = vmatprep.subr.bf16.mxu0 0
        %1706 = vmatpush1.bf16.msra.mxu0 0
        %1707 = vmatprep.subr.bf16.mxu0 0
        %1708 = vmatpush1.bf16.msra.mxu0 0
        %1709 = vmatprep.subr.bf16.mxu0 0
        %1710 = vmatpush1.bf16.msra.mxu0 0
        %1711 = vmatprep.subr.bf16.mxu0 0
        %1712 = vmatpush1.bf16.msra.mxu0 0
        %1713 = vmatprep.subr.bf16.mxu0 0
        %1714 = vmatpush1.bf16.msra.mxu0 0
        %1715 = vmatprep.subr.bf16.mxu0 0
        %1716 = vmatpush1.bf16.msra.mxu0 0
        %1717 = vmatprep.subr.bf16.mxu0 0
        %1718 = vmatpush1.bf16.msra.mxu0 0
        %1719 = vmatprep.subr.bf16.mxu0 0
        %1720 = vmatpush1.bf16.msra.mxu0 0
        %1721 = vmatprep.subr.bf16.mxu0 0
        %1722 = vmatpush1.bf16.msra.mxu0 0
        %1723 = vmatprep.mubr.bf16.mxu0 0
        %1724 = vmatmul.mubr.bf16.gmra.mrb[0].mxu0 %v1596
        %v1725 = vpop.f32.mrb[0].mxu0
        %v1726 = vadd.f32 %v1568, %v1725
        %v1727 = vpop.f32.mrb[0].mxu0
        %v1728 = vpop.f32.mrb[0].mxu0
        %v1729 = vadd.f32 %v1568, %v1728
        %v1730 = vpop.f32.mrb[0].mxu0
        %1731 = vmatprep.mubr.bf16.mxu0 0
        %1732 = vmatmul.mubr.bf16.gmra.mrb[0].mxu0 %v1599
        %v1733 = vpop.f32.mrb[0].mxu0
        %v1734 = vadd.f32 %v1568, %v1733
        %v1735 = vpop.f32.mrb[0].mxu0
        %v1736 = vpop.f32.mrb[0].mxu0
        %v1737 = vadd.f32 %v1568, %v1736
        %v1738 = vpop.f32.mrb[0].mxu0
        %1739 = vmatprep.mubr.bf16.mxu0 0
        %1740 = vmatmul.mubr.bf16.gmra.mrb[0].mxu0 %v1602
        %v1741 = vpop.f32.mrb[0].mxu0
        %v1742 = vadd.f32 %v1568, %v1741
        %v1743 = vpop.f32.mrb[0].mxu0
        %v1744 = vpop.f32.mrb[0].mxu0
        %v1745 = vadd.f32 %v1568, %v1744
        %v1746 = vpop.f32.mrb[0].mxu0
        %1747 = vmatprep.mubr.bf16.mxu0 0
        %1748 = vmatmul.mubr.bf16.gmra.mrb[0].mxu0 %v1605
        %v1749 = vpop.f32.mrb[0].mxu0
        %v1750 = vadd.f32 %v1568, %v1749
        %v1751 = vpop.f32.mrb[0].mxu0
        %v1752 = vpop.f32.mrb[0].mxu0
        %v1753 = vadd.f32 %v1568, %v1752
        %v1754 = vpop.f32.mrb[0].mxu0
        %1755 = vmatprep.mubr.bf16.mxu0 0
        %1756 = vmatmul.mubr.bf16.gmra.mrb[0].mxu0 %v1608
        %v1757 = vpop.f32.mrb[0].mxu0
        %v1758 = vadd.f32 %v1568, %v1757
        %v1759 = vpop.f32.mrb[0].mxu0
        %v1760 = vpop.f32.mrb[0].mxu0
        %v1761 = vadd.f32 %v1568, %v1760
        %v1762 = vpop.f32.mrb[0].mxu0
        %1763 = vmatprep.mubr.bf16.mxu0 0
        %1764 = vmatmul.mubr.bf16.gmra.mrb[0].mxu0 %v1611
        %v1765 = vpop.f32.mrb[0].mxu0
        %v1766 = vadd.f32 %v1568, %v1765
        %v1767 = vpop.f32.mrb[0].mxu0
        %v1768 = vpop.f32.mrb[0].mxu0
        %v1769 = vadd.f32 %v1568, %v1768
        %v1770 = vpop.f32.mrb[0].mxu0
        %1771 = vmatprep.mubr.bf16.mxu0 0
        %1772 = vmatmul.mubr.bf16.gmra.mrb[0].mxu0 %v1614
        %v1773 = vpop.f32.mrb[0].mxu0
        %v1774 = vadd.f32 %v1568, %v1773
        %v1775 = vpop.f32.mrb[0].mxu0
        %v1776 = vpop.f32.mrb[0].mxu0
        %v1777 = vadd.f32 %v1568, %v1776
        %v1778 = vpop.f32.mrb[0].mxu0
        %1779 = vmatprep.mubr.bf16.mxu0 0
        %1780 = vmatmul.mubr.bf16.gmra.mrb[0].mxu0 %v1617
        %v1781 = vpop.f32.mrb[0].mxu0
        %v1782 = vadd.f32 %v1568, %v1781
        %v1783 = vpop.f32.mrb[0].mxu0
        %v1784 = vpop.f32.mrb[0].mxu0
        %v1785 = vadd.f32 %v1568, %v1784
        %v1786 = vpop.f32.mrb[0].mxu0
        %1787 = vmatprep.mubr.bf16.mxu0 0
        %1788 = vmatmul.mubr.bf16.gmra.mrb[0].mxu0 %v1620
        %v1789 = vpop.f32.mrb[0].mxu0
        %v1790 = vadd.f32 %v1568, %v1789
        %v1791 = vpop.f32.mrb[0].mxu0
        %v1792 = vpop.f32.mrb[0].mxu0
        %v1793 = vadd.f32 %v1568, %v1792
        %v1794 = vpop.f32.mrb[0].mxu0
        %1795 = vmatprep.mubr.bf16.mxu0 0
        %1796 = vmatmul.mubr.bf16.gmra.mrb[0].mxu0 %v1623
        %v1797 = vpop.f32.mrb[0].mxu0
        %v1798 = vadd.f32 %v1568, %v1797
        %v1799 = vpop.f32.mrb[0].mxu0
        %v1800 = vpop.f32.mrb[0].mxu0
        %v1801 = vadd.f32 %v1568, %v1800
        %v1802 = vpop.f32.mrb[0].mxu0
        %1803 = vmatprep.mubr.bf16.mxu0 0
        %1804 = vmatmul.mubr.bf16.gmra.mrb[0].mxu0 %v1626
        %v1805 = vpop.f32.mrb[0].mxu0
        %v1806 = vadd.f32 %v1568, %v1805
        %v1807 = vpop.f32.mrb[0].mxu0
        %v1808 = vpop.f32.mrb[0].mxu0
        %v1809 = vadd.f32 %v1568, %v1808
        %v1810 = vpop.f32.mrb[0].mxu0
        %1811 = vmatprep.mubr.bf16.mxu0 0
        %1812 = vmatmul.mubr.bf16.gmra.mrb[0].mxu0 %v1629
        %v1813 = vpop.f32.mrb[0].mxu0
        %v1814 = vadd.f32 %v1568, %v1813
        %v1815 = vpop.f32.mrb[0].mxu0
        %v1816 = vpop.f32.mrb[0].mxu0
        %v1817 = vadd.f32 %v1568, %v1816
        %v1818 = vpop.f32.mrb[0].mxu0
        %1819 = vmatprep.mubr.bf16.mxu0 0
        %1820 = vmatmul.mubr.bf16.gmra.mrb[0].mxu0 %v1632
        %v1821 = vpop.f32.mrb[0].mxu0
        %v1822 = vadd.f32 %v1568, %v1821
        %v1823 = vpop.f32.mrb[0].mxu0
        %v1824 = vpop.f32.mrb[0].mxu0
        %v1825 = vadd.f32 %v1568, %v1824
        %v1826 = vpop.f32.mrb[0].mxu0
        %1827 = vmatprep.mubr.bf16.mxu0 0
        %1828 = vmatmul.mubr.bf16.gmra.mrb[0].mxu0 %v1635
        %v1829 = vpop.f32.mrb[0].mxu0
        %v1830 = vadd.f32 %v1568, %v1829
        %v1831 = vpop.f32.mrb[0].mxu0
        %v1832 = vpop.f32.mrb[0].mxu0
        %v1833 = vadd.f32 %v1568, %v1832
        %v1834 = vpop.f32.mrb[0].mxu0
        %1835 = vmatprep.mubr.bf16.mxu0 0
        %1836 = vmatmul.mubr.bf16.gmra.mrb[0].mxu0 %v1638
        %v1837 = vpop.f32.mrb[0].mxu0
        %v1838 = vadd.f32 %v1568, %v1837
        %v1839 = vpop.f32.mrb[0].mxu0
        %v1840 = vpop.f32.mrb[0].mxu0
        %v1841 = vadd.f32 %v1568, %v1840
        %v1842 = vpop.f32.mrb[0].mxu0
        %1843 = vmatprep.mubr.bf16.mxu0 0
        %1844 = vmatmul.mubr.bf16.gmra.mrb[0].mxu0 %v1641
        %v1845 = vpop.f32.mrb[0].mxu0
        %v1846 = vadd.f32 %v1568, %v1845
        %v1847 = vpop.f32.mrb[0].mxu0
        %v1848 = vpop.f32.mrb[0].mxu0
        %v1849 = vadd.f32 %v1568, %v1848
        %v1850 = vpop.f32.mrb[0].mxu0
        %1851 = vmatprep.mubr.bf16.mxu0 0
        %1852 = vmatmul.mubr.bf16.gmra.mrb[0].mxu0 %v1644
        %v1853 = vpop.f32.mrb[0].mxu0
        %v1854 = vadd.f32 %v1568, %v1853
        %v1855 = vpop.f32.mrb[0].mxu0
        %v1856 = vpop.f32.mrb[0].mxu0
        %v1857 = vadd.f32 %v1568, %v1856
        %v1858 = vpop.f32.mrb[0].mxu0
        %1859 = vmatprep.mubr.bf16.mxu0 0
        %1860 = vmatmul.mubr.bf16.gmra.mrb[0].mxu0 %v1647
        %v1861 = vpop.f32.mrb[0].mxu0
        %v1862 = vadd.f32 %v1568, %v1861
        %v1863 = vpop.f32.mrb[0].mxu0
        %v1864 = vpop.f32.mrb[0].mxu0
        %v1865 = vadd.f32 %v1568, %v1864
        %v1866 = vpop.f32.mrb[0].mxu0
        %1867 = vmatprep.mubr.bf16.mxu0 0
        %1868 = vmatmul.mubr.bf16.gmra.mrb[0].mxu0 %v1650
        %v1869 = vpop.f32.mrb[0].mxu0
        %v1870 = vadd.f32 %v1568, %v1869
        %v1871 = vpop.f32.mrb[0].mxu0
        %v1872 = vpop.f32.mrb[0].mxu0
        %v1873 = vadd.f32 %v1568, %v1872
        %v1874 = vpop.f32.mrb[0].mxu0
        %1875 = vmatprep.mubr.bf16.mxu0 0
        %1876 = vmatmul.mubr.bf16.gmra.mrb[0].mxu0 %v1653
        %v1877 = vpop.f32.mrb[0].mxu0
        %v1878 = vadd.f32 %v1568, %v1877
        %v1879 = vpop.f32.mrb[0].mxu0
        %v1880 = vpop.f32.mrb[0].mxu0
        %v1881 = vadd.f32 %v1568, %v1880
        %v1882 = vpop.f32.mrb[0].mxu0
        %1883 = vmatprep.mubr.bf16.mxu0 0
        %1884 = vmatmul.mubr.bf16.gmra.mrb[0].mxu0 %v1656
        %v1885 = vpop.f32.mrb[0].mxu0
        %v1886 = vadd.f32 %v1568, %v1885
        %v1887 = vpop.f32.mrb[0].mxu0
        %v1888 = vpop.f32.mrb[0].mxu0
        %v1889 = vadd.f32 %v1568, %v1888
        %v1890 = vpop.f32.mrb[0].mxu0
        %1891 = vmatprep.mubr.bf16.mxu0 0
        %1892 = vmatmul.mubr.bf16.gmra.mrb[0].mxu0 %v1659
        %v1893 = vpop.f32.mrb[0].mxu0
        %v1894 = vadd.f32 %v1568, %v1893
        %v1895 = vpop.f32.mrb[0].mxu0
        %v1896 = vpop.f32.mrb[0].mxu0
        %v1897 = vadd.f32 %v1568, %v1896
        %v1898 = vpop.f32.mrb[0].mxu0
        %1899 = vmatprep.mubr.bf16.mxu0 0
        %1900 = vmatmul.mubr.bf16.gmra.mrb[0].mxu0 %v1662
        %v1901 = vpop.f32.mrb[0].mxu0
        %v1902 = vadd.f32 %v1568, %v1901
        %v1903 = vpop.f32.mrb[0].mxu0
        %v1904 = vpop.f32.mrb[0].mxu0
        %v1905 = vadd.f32 %v1568, %v1904
        %v1906 = vpop.f32.mrb[0].mxu0
        %1907 = vmatprep.mubr.bf16.mxu0 0
        %1908 = vmatmul.mubr.bf16.gmra.mrb[0].mxu0 %v1665
        %v1909 = vpop.f32.mrb[0].mxu0
        %v1910 = vadd.f32 %v1568, %v1909
        %v1911 = vpop.f32.mrb[0].mxu0
        %v1912 = vpop.f32.mrb[0].mxu0
        %v1913 = vadd.f32 %v1568, %v1912
        %v1914 = vpop.f32.mrb[0].mxu0
        %1915 = vmatprep.mubr.bf16.mxu0 0
        %1916 = vmatmul.mubr.bf16.gmra.mrb[0].mxu0 %v1668
        %v1917 = vpop.f32.mrb[0].mxu0
        %v1918 = vadd.f32 %v1568, %v1917
        %v1919 = vpop.f32.mrb[0].mxu0
        %v1920 = vpop.f32.mrb[0].mxu0
        %v1921 = vadd.f32 %v1568, %v1920
        %v1922 = vpop.f32.mrb[0].mxu0
        %1923 = vmatprep.mubr.bf16.mxu0 0
        %1924 = vmatmul.mubr.bf16.gmra.mrb[0].mxu0 %v1671
        %v1925 = vpop.f32.mrb[0].mxu0
        %v1926 = vadd.f32 %v1568, %v1925
        %v1927 = vpop.f32.mrb[0].mxu0
        %v1928 = vpop.f32.mrb[0].mxu0
        %v1929 = vadd.f32 %v1568, %v1928
        %v1930 = vpop.f32.mrb[0].mxu0
        %1931 = vmatprep.mubr.bf16.mxu0 0
        %1932 = vmatmul.mubr.bf16.gmra.mrb[0].mxu0 %v1674
        %v1933 = vpop.f32.mrb[0].mxu0
        %v1934 = vadd.f32 %v1568, %v1933
        %v1935 = vpop.f32.mrb[0].mxu0
        %v1936 = vpop.f32.mrb[0].mxu0
        %v1937 = vadd.f32 %v1568, %v1936
        %v1938 = vpop.f32.mrb[0].mxu0
        %1939 = vmatprep.mubr.bf16.mxu0 0
        %1940 = vmatmul.mubr.bf16.gmra.mrb[0].mxu0 %v1677
        %v1941 = vpop.f32.mrb[0].mxu0
        %v1942 = vadd.f32 %v1568, %v1941
        %v1943 = vpop.f32.mrb[0].mxu0
        %v1944 = vpop.f32.mrb[0].mxu0
        %v1945 = vadd.f32 %v1568, %v1944
        %v1946 = vpop.f32.mrb[0].mxu0
        %1947 = vmatprep.mubr.bf16.mxu0 0
        %1948 = vmatmul.mubr.bf16.gmra.mrb[0].mxu0 %v1680
        %v1949 = vpop.f32.mrb[0].mxu0
        %v1950 = vadd.f32 %v1568, %v1949
        %v1951 = vpop.f32.mrb[0].mxu0
        %v1952 = vpop.f32.mrb[0].mxu0
        %v1953 = vadd.f32 %v1568, %v1952
        %v1954 = vpop.f32.mrb[0].mxu0
        %1955 = vmatprep.mubr.bf16.mxu0 0
        %1956 = vmatmul.mubr.bf16.gmra.mrb[0].mxu0 %v1683
        %v1957 = vpop.f32.mrb[0].mxu0
        %v1958 = vadd.f32 %v1568, %v1957
        %v1959 = vpop.f32.mrb[0].mxu0
        %v1960 = vpop.f32.mrb[0].mxu0
        %v1961 = vadd.f32 %v1568, %v1960
        %v1962 = vpop.f32.mrb[0].mxu0
        %1963 = vmatprep.mubr.bf16.mxu0 0
        %1964 = vmatmul.mubr.bf16.gmra.mrb[0].mxu0 %v1686
        %v1965 = vpop.f32.mrb[0].mxu0
        %v1966 = vadd.f32 %v1568, %v1965
        %v1967 = vpop.f32.mrb[0].mxu0
        %v1968 = vpop.f32.mrb[0].mxu0
        %v1969 = vadd.f32 %v1568, %v1968
        %v1970 = vpop.f32.mrb[0].mxu0
        %1971 = vmatprep.mubr.bf16.mxu0 0
        %1972 = vmatmul.mubr.bf16.gmra.mrb[0].mxu0 %v1689
        %v1973 = vpop.f32.mrb[0].mxu0
        %v1974 = vadd.f32 %v1568, %v1973
        %v1975 = vpop.f32.mrb[0].mxu0
        %v1976 = vpop.f32.mrb[0].mxu0
        %v1977 = vadd.f32 %v1568, %v1976
        %v1978 = vpop.f32.mrb[0].mxu0
        %1979 = vdwg.mxu0
        %v1980 = vmax.f32 %v1726, 0.0
        %v1981 = vmax.f32 %v1729, 0.0
        %v1982 = vmax.f32 %v1734, 0.0
        %v1983 = vmax.f32 %v1737, 0.0
        %v1984 = vmax.f32 %v1742, 0.0
        %v1985 = vmax.f32 %v1745, 0.0
        %v1986 = vmax.f32 %v1750, 0.0
        %v1987 = vmax.f32 %v1753, 0.0
        %v1988 = vmax.f32 %v1758, 0.0
        %v1989 = vmax.f32 %v1761, 0.0
        %v1990 = vmax.f32 %v1766, 0.0
        %v1991 = vmax.f32 %v1769, 0.0
        %v1992 = vmax.f32 %v1774, 0.0
        %v1993 = vmax.f32 %v1777, 0.0
        %v1994 = vmax.f32 %v1782, 0.0
        %v1995 = vmax.f32 %v1785, 0.0
        %v1996 = vmax.f32 %v1790, 0.0
        %v1997 = vmax.f32 %v1793, 0.0
        %v1998 = vmax.f32 %v1798, 0.0
        %v1999 = vmax.f32 %v1801, 0.0
        %v2000 = vmax.f32 %v1806, 0.0
        %v2001 = vmax.f32 %v1809, 0.0
        %v2002 = vmax.f32 %v1814, 0.0
        %v2003 = vmax.f32 %v1817, 0.0
        %v2004 = vmax.f32 %v1822, 0.0
        %v2005 = vmax.f32 %v1825, 0.0
        %v2006 = vmax.f32 %v1830, 0.0
        %v2007 = vmax.f32 %v1833, 0.0
        %v2008 = vmax.f32 %v1838, 0.0
        %v2009 = vmax.f32 %v1841, 0.0
        %v2010 = vmax.f32 %v1846, 0.0
        %v2011 = vmax.f32 %v1849, 0.0
        %v2012 = vmax.f32 %v1854, 0.0
        %v2013 = vmax.f32 %v1857, 0.0
        %v2014 = vmax.f32 %v1862, 0.0
        %v2015 = vmax.f32 %v1865, 0.0
        %v2016 = vmax.f32 %v1870, 0.0
        %v2017 = vmax.f32 %v1873, 0.0
        %v2018 = vmax.f32 %v1878, 0.0
        %v2019 = vmax.f32 %v1881, 0.0
        %v2020 = vmax.f32 %v1886, 0.0
        %v2021 = vmax.f32 %v1889, 0.0
        %v2022 = vmax.f32 %v1894, 0.0
        %v2023 = vmax.f32 %v1897, 0.0
        %v2024 = vmax.f32 %v1902, 0.0
        %v2025 = vmax.f32 %v1905, 0.0
        %v2026 = vmax.f32 %v1910, 0.0
        %v2027 = vmax.f32 %v1913, 0.0
        %v2028 = vmax.f32 %v1918, 0.0
        %v2029 = vmax.f32 %v1921, 0.0
        %v2030 = vmax.f32 %v1926, 0.0
        %v2031 = vmax.f32 %v1929, 0.0
        %v2032 = vmax.f32 %v1934, 0.0
        %v2033 = vmax.f32 %v1937, 0.0
        %v2034 = vmax.f32 %v1942, 0.0
        %v2035 = vmax.f32 %v1945, 0.0
        %v2036 = vmax.f32 %v1950, 0.0
        %v2037 = vmax.f32 %v1953, 0.0
        %v2038 = vmax.f32 %v1958, 0.0
        %v2039 = vmax.f32 %v1961, 0.0
        %v2040 = vmax.f32 %v1966, 0.0
        %v2041 = vmax.f32 %v1969, 0.0
        %v2042 = vmax.f32 %v1974, 0.0
        %v2043 = vmax.f32 %v1977, 0.0
        %v2044 = vpack.c.bf16 %v1981, %v1980
        %v2045 = vpack.c.bf16 %v1983, %v1982
        %v2046 = vpack.c.bf16 %v1985, %v1984
        %v2047 = vpack.c.bf16 %v1987, %v1986
        %v2048 = vpack.c.bf16 %v1989, %v1988
        %v2049 = vpack.c.bf16 %v1991, %v1990
        %v2050 = vpack.c.bf16 %v1993, %v1992
        %v2051 = vpack.c.bf16 %v1995, %v1994
        %v2052 = vpack.c.bf16 %v1997, %v1996
        %v2053 = vpack.c.bf16 %v1999, %v1998
        %v2054 = vpack.c.bf16 %v2001, %v2000
        %v2055 = vpack.c.bf16 %v2003, %v2002
        %v2056 = vpack.c.bf16 %v2005, %v2004
        %v2057 = vpack.c.bf16 %v2007, %v2006
        %v2058 = vpack.c.bf16 %v2009, %v2008
        %v2059 = vpack.c.bf16 %v2011, %v2010
        %v2060 = vpack.c.bf16 %v2013, %v2012
        %v2061 = vpack.c.bf16 %v2015, %v2014
        %v2062 = vpack.c.bf16 %v2017, %v2016
        %v2063 = vpack.c.bf16 %v2019, %v2018
        %v2064 = vpack.c.bf16 %v2021, %v2020
        %v2065 = vpack.c.bf16 %v2023, %v2022
        %v2066 = vpack.c.bf16 %v2025, %v2024
        %v2067 = vpack.c.bf16 %v2027, %v2026
        %v2068 = vpack.c.bf16 %v2029, %v2028
        %v2069 = vpack.c.bf16 %v2031, %v2030
        %v2070 = vpack.c.bf16 %v2033, %v2032
        %v2071 = vpack.c.bf16 %v2035, %v2034
        %v2072 = vpack.c.bf16 %v2037, %v2036
        %v2073 = vpack.c.bf16 %v2039, %v2038
        %v2074 = vpack.c.bf16 %v2041, %v2040
        %v2075 = vpack.c.bf16 %v2043, %v2042
        %v2076 = vld [vmem:[#allocation4] sm:$0xff]
        %v2077 = vld [vmem:[#allocation4 + $0x8] sm:$0xff]
        %v2078 = vld [vmem:[#allocation4 + $0x10] sm:$0xff]
        %v2079 = vld [vmem:[#allocation4 + $0x18] sm:$0xff]
        %v2080 = vld [vmem:[#allocation4 + $0x20] sm:$0xff]
        %v2081 = vld [vmem:[#allocation4 + $0x28] sm:$0xff]
        %v2082 = vld [vmem:[#allocation4 + $0x30] sm:$0xff]
        %v2083 = vld [vmem:[#allocation4 + $0x38] sm:$0xff]
        %v2084 = vld [vmem:[#allocation4 + $0x40] sm:$0xff]
        %v2085 = vld [vmem:[#allocation4 + $0x48] sm:$0xff]
        %v2086 = vld [vmem:[#allocation4 + $0x50] sm:$0xff]
        %v2087 = vld [vmem:[#allocation4 + $0x58] sm:$0xff]
        %v2088 = vld [vmem:[#allocation4 + $0x60] sm:$0xff]
        %v2089 = vld [vmem:[#allocation4 + $0x68] sm:$0xff]
        %v2090 = vld [vmem:[#allocation4 + $0x70] sm:$0xff]
        %v2091 = vld [vmem:[#allocation4 + $0x78] sm:$0xff]
        %v2092 = vld [vmem:[#allocation4 + $0x80] sm:$0xff]
        %v2093 = vld [vmem:[#allocation4 + $0x88] sm:$0xff]
        %v2094 = vld [vmem:[#allocation4 + $0x90] sm:$0xff]
        %v2095 = vld [vmem:[#allocation4 + $0x98] sm:$0xff]
        %v2096 = vld [vmem:[#allocation4 + $0xa0] sm:$0xff]
        %v2097 = vld [vmem:[#allocation4 + $0xa8] sm:$0xff]
        %v2098 = vld [vmem:[#allocation4 + $0xb0] sm:$0xff]
        %v2099 = vld [vmem:[#allocation4 + $0xb8] sm:$0xff]
        %v2100 = vld [vmem:[#allocation4 + $0xc0] sm:$0xff]
        %v2101 = vld [vmem:[#allocation4 + $0xc8] sm:$0xff]
        %v2102 = vld [vmem:[#allocation4 + $0xd0] sm:$0xff]
        %v2103 = vld [vmem:[#allocation4 + $0xd8] sm:$0xff]
        %v2104 = vld [vmem:[#allocation4 + $0xe0] sm:$0xff]
        %v2105 = vld [vmem:[#allocation4 + $0xe8] sm:$0xff]
        %v2106 = vld [vmem:[#allocation4 + $0xf0] sm:$0xff]
        %v2107 = vld [vmem:[#allocation4 + $0xf8] sm:$0xff]
        %v2108 = vld [vmem:[#allocation4 + $0x100] sm:$0xff]
        %v2109 = vld [vmem:[#allocation4 + $0x108] sm:$0xff]
        %v2110 = vld [vmem:[#allocation4 + $0x110] sm:$0xff]
        %v2111 = vld [vmem:[#allocation4 + $0x118] sm:$0xff]
        %v2112 = vld [vmem:[#allocation4 + $0x120] sm:$0xff]
        %v2113 = vld [vmem:[#allocation4 + $0x128] sm:$0xff]
        %v2114 = vld [vmem:[#allocation4 + $0x130] sm:$0xff]
        %v2115 = vld [vmem:[#allocation4 + $0x138] sm:$0xff]
        %v2116 = vld [vmem:[#allocation4 + $0x140] sm:$0xff]
        %v2117 = vld [vmem:[#allocation4 + $0x148] sm:$0xff]
        %v2118 = vld [vmem:[#allocation4 + $0x150] sm:$0xff]
        %v2119 = vld [vmem:[#allocation4 + $0x158] sm:$0xff]
        %v2120 = vld [vmem:[#allocation4 + $0x160] sm:$0xff]
        %v2121 = vld [vmem:[#allocation4 + $0x168] sm:$0xff]
        %v2122 = vld [vmem:[#allocation4 + $0x170] sm:$0xff]
        %v2123 = vld [vmem:[#allocation4 + $0x178] sm:$0xff]
        %v2124 = vld [vmem:[#allocation4 + $0x180] sm:$0xff]
        %v2125 = vld [vmem:[#allocation4 + $0x188] sm:$0xff]
        %v2126 = vld [vmem:[#allocation4 + $0x190] sm:$0xff]
        %v2127 = vld [vmem:[#allocation4 + $0x198] sm:$0xff]
        %v2128 = vld [vmem:[#allocation4 + $0x1a0] sm:$0xff]
        %v2129 = vld [vmem:[#allocation4 + $0x1a8] sm:$0xff]
        %v2130 = vld [vmem:[#allocation4 + $0x1b0] sm:$0xff]
        %v2131 = vld [vmem:[#allocation4 + $0x1b8] sm:$0xff]
        %v2132 = vld [vmem:[#allocation4 + $0x1c0] sm:$0xff]
        %v2133 = vld [vmem:[#allocation4 + $0x1c8] sm:$0xff]
        %v2134 = vld [vmem:[#allocation4 + $0x1d0] sm:$0xff]
        %v2135 = vld [vmem:[#allocation4 + $0x1d8] sm:$0xff]
        %v2136 = vld [vmem:[#allocation4 + $0x1e0] sm:$0xff]
        %v2137 = vld [vmem:[#allocation4 + $0x1e8] sm:$0xff]
        %v2138 = vld [vmem:[#allocation4 + $0x1f0] sm:$0xff]
        %v2139 = vld [vmem:[#allocation4 + $0x1f8] sm:$0xff]
        %v2204 = vunpack.c.l.b16 %v2076
        %v2205 = vunpack.c.h.b16 %v2076
        %v2206 = vunpack.c.l.b16 %v2077
        %v2207 = vunpack.c.h.b16 %v2077
        %v2208 = vunpack.c.l.b16 %v2078
        %v2209 = vunpack.c.h.b16 %v2078
        %v2210 = vunpack.c.l.b16 %v2079
        %v2211 = vunpack.c.h.b16 %v2079
        %v2212 = vunpack.c.l.b16 %v2080
        %v2213 = vunpack.c.h.b16 %v2080
        %v2214 = vunpack.c.l.b16 %v2081
        %v2215 = vunpack.c.h.b16 %v2081
        %v2216 = vunpack.c.l.b16 %v2082
        %v2217 = vunpack.c.h.b16 %v2082
        %v2218 = vunpack.c.l.b16 %v2083
        %v2219 = vunpack.c.h.b16 %v2083
        %v2220 = vunpack.c.l.b16 %v2084
        %v2221 = vunpack.c.h.b16 %v2084
        %v2222 = vunpack.c.l.b16 %v2085
        %v2223 = vunpack.c.h.b16 %v2085
        %v2224 = vunpack.c.l.b16 %v2086
        %v2225 = vunpack.c.h.b16 %v2086
        %v2226 = vunpack.c.l.b16 %v2087
        %v2227 = vunpack.c.h.b16 %v2087
        %v2228 = vunpack.c.l.b16 %v2088
        %v2229 = vunpack.c.h.b16 %v2088
        %v2230 = vunpack.c.l.b16 %v2089
        %v2231 = vunpack.c.h.b16 %v2089
        %v2232 = vunpack.c.l.b16 %v2090
        %v2233 = vunpack.c.h.b16 %v2090
        %v2234 = vunpack.c.l.b16 %v2091
        %v2235 = vunpack.c.h.b16 %v2091
        %v2236 = vunpack.c.l.b16 %v2092
        %v2237 = vunpack.c.h.b16 %v2092
        %v2238 = vunpack.c.l.b16 %v2093
        %v2239 = vunpack.c.h.b16 %v2093
        %v2240 = vunpack.c.l.b16 %v2094
        %v2241 = vunpack.c.h.b16 %v2094
        %v2242 = vunpack.c.l.b16 %v2095
        %v2243 = vunpack.c.h.b16 %v2095
        %v2244 = vunpack.c.l.b16 %v2096
        %v2245 = vunpack.c.h.b16 %v2096
        %v2246 = vunpack.c.l.b16 %v2097
        %v2247 = vunpack.c.h.b16 %v2097
        %v2248 = vunpack.c.l.b16 %v2098
        %v2249 = vunpack.c.h.b16 %v2098
        %v2250 = vunpack.c.l.b16 %v2099
        %v2251 = vunpack.c.h.b16 %v2099
        %v2252 = vunpack.c.l.b16 %v2100
        %v2253 = vunpack.c.h.b16 %v2100
        %v2254 = vunpack.c.l.b16 %v2101
        %v2255 = vunpack.c.h.b16 %v2101
        %v2256 = vunpack.c.l.b16 %v2102
        %v2257 = vunpack.c.h.b16 %v2102
        %v2258 = vunpack.c.l.b16 %v2103
        %v2259 = vunpack.c.h.b16 %v2103
        %v2260 = vunpack.c.l.b16 %v2104
        %v2261 = vunpack.c.h.b16 %v2104
        %v2262 = vunpack.c.l.b16 %v2105
        %v2263 = vunpack.c.h.b16 %v2105
        %v2264 = vunpack.c.l.b16 %v2106
        %v2265 = vunpack.c.h.b16 %v2106
        %v2266 = vunpack.c.l.b16 %v2107
        %v2267 = vunpack.c.h.b16 %v2107
        %v2268 = vunpack.c.l.b16 %v2108
        %v2269 = vunpack.c.h.b16 %v2108
        %v2270 = vunpack.c.l.b16 %v2109
        %v2271 = vunpack.c.h.b16 %v2109
        %v2272 = vunpack.c.l.b16 %v2110
        %v2273 = vunpack.c.h.b16 %v2110
        %v2274 = vunpack.c.l.b16 %v2111
        %v2275 = vunpack.c.h.b16 %v2111
        %v2276 = vunpack.c.l.b16 %v2112
        %v2277 = vunpack.c.h.b16 %v2112
        %v2278 = vunpack.c.l.b16 %v2113
        %v2279 = vunpack.c.h.b16 %v2113
        %v2280 = vunpack.c.l.b16 %v2114
        %v2281 = vunpack.c.h.b16 %v2114
        %v2282 = vunpack.c.l.b16 %v2115
        %v2283 = vunpack.c.h.b16 %v2115
        %v2284 = vunpack.c.l.b16 %v2116
        %v2285 = vunpack.c.h.b16 %v2116
        %v2286 = vunpack.c.l.b16 %v2117
        %v2287 = vunpack.c.h.b16 %v2117
        %v2288 = vunpack.c.l.b16 %v2118
        %v2289 = vunpack.c.h.b16 %v2118
        %v2290 = vunpack.c.l.b16 %v2119
        %v2291 = vunpack.c.h.b16 %v2119
        %v2292 = vunpack.c.l.b16 %v2120
        %v2293 = vunpack.c.h.b16 %v2120
        %v2294 = vunpack.c.l.b16 %v2121
        %v2295 = vunpack.c.h.b16 %v2121
        %v2296 = vunpack.c.l.b16 %v2122
        %v2297 = vunpack.c.h.b16 %v2122
        %v2298 = vunpack.c.l.b16 %v2123
        %v2299 = vunpack.c.h.b16 %v2123
        %v2300 = vunpack.c.l.b16 %v2124
        %v2301 = vunpack.c.h.b16 %v2124
        %v2302 = vunpack.c.l.b16 %v2125
        %v2303 = vunpack.c.h.b16 %v2125
        %v2304 = vunpack.c.l.b16 %v2126
        %v2305 = vunpack.c.h.b16 %v2126
        %v2306 = vunpack.c.l.b16 %v2127
        %v2307 = vunpack.c.h.b16 %v2127
        %v2308 = vunpack.c.l.b16 %v2128
        %v2309 = vunpack.c.h.b16 %v2128
        %v2310 = vunpack.c.l.b16 %v2129
        %v2311 = vunpack.c.h.b16 %v2129
        %v2312 = vunpack.c.l.b16 %v2130
        %v2313 = vunpack.c.h.b16 %v2130
        %v2314 = vunpack.c.l.b16 %v2131
        %v2315 = vunpack.c.h.b16 %v2131
        %v2316 = vunpack.c.l.b16 %v2132
        %v2317 = vunpack.c.h.b16 %v2132
        %v2318 = vunpack.c.l.b16 %v2133
        %v2319 = vunpack.c.h.b16 %v2133
        %v2320 = vunpack.c.l.b16 %v2134
        %v2321 = vunpack.c.h.b16 %v2134
        %v2322 = vunpack.c.l.b16 %v2135
        %v2323 = vunpack.c.h.b16 %v2135
        %v2324 = vunpack.c.l.b16 %v2136
        %v2325 = vunpack.c.h.b16 %v2136
        %v2326 = vunpack.c.l.b16 %v2137
        %v2327 = vunpack.c.h.b16 %v2137
        %v2328 = vunpack.c.l.b16 %v2138
        %v2329 = vunpack.c.h.b16 %v2138
        %v2330 = vunpack.c.l.b16 %v2139
        %v2331 = vunpack.c.h.b16 %v2139
        %v2332 = vpack.c.b16 %v2212, %v2204
        %v2333 = vpack.c.b16 %v2213, %v2205
        %v2334 = vpack.c.b16 %v2214, %v2206
        %v2335 = vpack.c.b16 %v2215, %v2207
        %v2336 = vpack.c.b16 %v2216, %v2208
        %v2337 = vpack.c.b16 %v2217, %v2209
        %v2338 = vpack.c.b16 %v2218, %v2210
        %v2339 = vpack.c.b16 %v2219, %v2211
        %v2340 = vpack.c.b16 %v2228, %v2220
        %v2341 = vpack.c.b16 %v2229, %v2221
        %v2342 = vpack.c.b16 %v2230, %v2222
        %v2343 = vpack.c.b16 %v2231, %v2223
        %v2344 = vpack.c.b16 %v2232, %v2224
        %v2345 = vpack.c.b16 %v2233, %v2225
        %v2346 = vpack.c.b16 %v2234, %v2226
        %v2347 = vpack.c.b16 %v2235, %v2227
        %v2348 = vpack.c.b16 %v2244, %v2236
        %v2349 = vpack.c.b16 %v2245, %v2237
        %v2350 = vpack.c.b16 %v2246, %v2238
        %v2351 = vpack.c.b16 %v2247, %v2239
        %v2352 = vpack.c.b16 %v2248, %v2240
        %v2353 = vpack.c.b16 %v2249, %v2241
        %v2354 = vpack.c.b16 %v2250, %v2242
        %v2355 = vpack.c.b16 %v2251, %v2243
        %v2356 = vpack.c.b16 %v2260, %v2252
        %v2357 = vpack.c.b16 %v2261, %v2253
        %v2358 = vpack.c.b16 %v2262, %v2254
        %v2359 = vpack.c.b16 %v2263, %v2255
        %v2360 = vpack.c.b16 %v2264, %v2256
        %v2361 = vpack.c.b16 %v2265, %v2257
        %v2362 = vpack.c.b16 %v2266, %v2258
        %v2363 = vpack.c.b16 %v2267, %v2259
        %v2364 = vpack.c.b16 %v2276, %v2268
        %v2365 = vpack.c.b16 %v2277, %v2269
        %v2366 = vpack.c.b16 %v2278, %v2270
        %v2367 = vpack.c.b16 %v2279, %v2271
        %v2368 = vpack.c.b16 %v2280, %v2272
        %v2369 = vpack.c.b16 %v2281, %v2273
        %v2370 = vpack.c.b16 %v2282, %v2274
        %v2371 = vpack.c.b16 %v2283, %v2275
        %v2372 = vpack.c.b16 %v2292, %v2284
        %v2373 = vpack.c.b16 %v2293, %v2285
        %v2374 = vpack.c.b16 %v2294, %v2286
        %v2375 = vpack.c.b16 %v2295, %v2287
        %v2376 = vpack.c.b16 %v2296, %v2288
        %v2377 = vpack.c.b16 %v2297, %v2289
        %v2378 = vpack.c.b16 %v2298, %v2290
        %v2379 = vpack.c.b16 %v2299, %v2291
        %v2380 = vpack.c.b16 %v2308, %v2300
        %v2381 = vpack.c.b16 %v2309, %v2301
        %v2382 = vpack.c.b16 %v2310, %v2302
        %v2383 = vpack.c.b16 %v2311, %v2303
        %v2384 = vpack.c.b16 %v2312, %v2304
        %v2385 = vpack.c.b16 %v2313, %v2305
        %v2386 = vpack.c.b16 %v2314, %v2306
        %v2387 = vpack.c.b16 %v2315, %v2307
        %v2388 = vpack.c.b16 %v2324, %v2316
        %v2389 = vpack.c.b16 %v2325, %v2317
        %v2390 = vpack.c.b16 %v2326, %v2318
        %v2391 = vpack.c.b16 %v2327, %v2319
        %v2392 = vpack.c.b16 %v2328, %v2320
        %v2393 = vpack.c.b16 %v2329, %v2321
        %v2394 = vpack.c.b16 %v2330, %v2322
        %v2395 = vpack.c.b16 %v2331, %v2323
        %2460 = vmatprep.subr.bf16.mxu0 %v2333
        %2461 = vmatpush1.bf16.msra.mxu0 %v2332
        %2462 = vmatprep.subr.bf16.mxu0 %v2341
        %2463 = vmatpush1.bf16.msra.mxu0 %v2340
        %2464 = vmatprep.subr.bf16.mxu0 %v2349
        %2465 = vmatpush1.bf16.msra.mxu0 %v2348
        %2466 = vmatprep.subr.bf16.mxu0 %v2357
        %2467 = vmatpush1.bf16.msra.mxu0 %v2356
        %2468 = vmatprep.subr.bf16.mxu0 %v2365
        %2469 = vmatpush1.bf16.msra.mxu0 %v2364
        %2470 = vmatprep.subr.bf16.mxu0 %v2373
        %2471 = vmatpush1.bf16.msra.mxu0 %v2372
        %2472 = vmatprep.subr.bf16.mxu0 %v2381
        %2473 = vmatpush1.bf16.msra.mxu0 %v2380
        %2474 = vmatprep.subr.bf16.mxu0 %v2389
        %2475 = vmatpush1.bf16.msra.mxu0 %v2388
        %2476 = vmatprep.subr.bf16.mxu0 0
        %2477 = vmatpush1.bf16.msra.mxu0 0
        %2478 = vmatprep.subr.bf16.mxu0 0
        %2479 = vmatpush1.bf16.msra.mxu0 0
        %2480 = vmatprep.subr.bf16.mxu0 0
        %2481 = vmatpush1.bf16.msra.mxu0 0
        %2482 = vmatprep.subr.bf16.mxu0 0
        %2483 = vmatpush1.bf16.msra.mxu0 0
        %2484 = vmatprep.subr.bf16.mxu0 0
        %2485 = vmatpush1.bf16.msra.mxu0 0
        %2486 = vmatprep.subr.bf16.mxu0 0
        %2487 = vmatpush1.bf16.msra.mxu0 0
        %2488 = vmatprep.subr.bf16.mxu0 0
        %2489 = vmatpush1.bf16.msra.mxu0 0
        %2490 = vmatprep.subr.bf16.mxu0 0
        %2491 = vmatpush1.bf16.msra.mxu0 0
        %2492 = vmatprep.mubr.bf16.mxu0 0
        %2493 = vmatmul.mubr.bf16.gmra.mrb[0].mxu0 %v2044
        %v2494 = vpop.f32.mrb[0].mxu0
        %v2495 = vadd.f32 0.0, %v2494
        %v2496 = vpop.f32.mrb[0].mxu0
        %v2497 = vadd.f32 0.0, %v2496
        %v2498 = vpop.f32.mrb[0].mxu0
        %v2499 = vadd.f32 0.0, %v2498
        %v2500 = vpop.f32.mrb[0].mxu0
        %v2501 = vadd.f32 0.0, %v2500
        %2502 = vmatprep.mubr.bf16.mxu0 0
        %2503 = vmatmul.mubr.bf16.gmra.mrb[0].mxu0 %v2045
        %v2504 = vpop.f32.mrb[0].mxu0
        %v2505 = vadd.f32 0.0, %v2504
        %v2506 = vpop.f32.mrb[0].mxu0
        %v2507 = vadd.f32 0.0, %v2506
        %v2508 = vpop.f32.mrb[0].mxu0
        %v2509 = vadd.f32 0.0, %v2508
        %v2510 = vpop.f32.mrb[0].mxu0
        %v2511 = vadd.f32 0.0, %v2510
        %2512 = vmatprep.mubr.bf16.mxu0 0
        %2513 = vmatmul.mubr.bf16.gmra.mrb[0].mxu0 %v2046
        %v2514 = vpop.f32.mrb[0].mxu0
        %v2515 = vadd.f32 0.0, %v2514
        %v2516 = vpop.f32.mrb[0].mxu0
        %v2517 = vadd.f32 0.0, %v2516
        %v2518 = vpop.f32.mrb[0].mxu0
        %v2519 = vadd.f32 0.0, %v2518
        %v2520 = vpop.f32.mrb[0].mxu0
        %v2521 = vadd.f32 0.0, %v2520
        %2522 = vmatprep.mubr.bf16.mxu0 0
        %2523 = vmatmul.mubr.bf16.gmra.mrb[0].mxu0 %v2047
        %v2524 = vpop.f32.mrb[0].mxu0
        %v2525 = vadd.f32 0.0, %v2524
        %v2526 = vpop.f32.mrb[0].mxu0
        %v2527 = vadd.f32 0.0, %v2526
        %v2528 = vpop.f32.mrb[0].mxu0
        %v2529 = vadd.f32 0.0, %v2528
        %v2530 = vpop.f32.mrb[0].mxu0
        %v2531 = vadd.f32 0.0, %v2530
        %2532 = vmatprep.mubr.bf16.mxu0 0
        %2533 = vmatmul.mubr.bf16.gmra.mrb[0].mxu0 %v2048
        %v2534 = vpop.f32.mrb[0].mxu0
        %v2535 = vadd.f32 0.0, %v2534
        %v2536 = vpop.f32.mrb[0].mxu0
        %v2537 = vadd.f32 0.0, %v2536
        %v2538 = vpop.f32.mrb[0].mxu0
        %v2539 = vadd.f32 0.0, %v2538
        %v2540 = vpop.f32.mrb[0].mxu0
        %v2541 = vadd.f32 0.0, %v2540
        %2542 = vmatprep.mubr.bf16.mxu0 0
        %2543 = vmatmul.mubr.bf16.gmra.mrb[0].mxu0 %v2049
        %v2544 = vpop.f32.mrb[0].mxu0
        %v2545 = vadd.f32 0.0, %v2544
        %v2546 = vpop.f32.mrb[0].mxu0
        %v2547 = vadd.f32 0.0, %v2546
        %v2548 = vpop.f32.mrb[0].mxu0
        %v2549 = vadd.f32 0.0, %v2548
        %v2550 = vpop.f32.mrb[0].mxu0
        %v2551 = vadd.f32 0.0, %v2550
        %2552 = vmatprep.mubr.bf16.mxu0 0
        %2553 = vmatmul.mubr.bf16.gmra.mrb[0].mxu0 %v2050
        %v2554 = vpop.f32.mrb[0].mxu0
        %v2555 = vadd.f32 0.0, %v2554
        %v2556 = vpop.f32.mrb[0].mxu0
        %v2557 = vadd.f32 0.0, %v2556
        %v2558 = vpop.f32.mrb[0].mxu0
        %v2559 = vadd.f32 0.0, %v2558
        %v2560 = vpop.f32.mrb[0].mxu0
        %v2561 = vadd.f32 0.0, %v2560
        %2562 = vmatprep.mubr.bf16.mxu0 0
        %2563 = vmatmul.mubr.bf16.gmra.mrb[0].mxu0 %v2051
        %v2564 = vpop.f32.mrb[0].mxu0
        %v2565 = vadd.f32 0.0, %v2564
        %v2566 = vpop.f32.mrb[0].mxu0
        %v2567 = vadd.f32 0.0, %v2566
        %v2568 = vpop.f32.mrb[0].mxu0
        %v2569 = vadd.f32 0.0, %v2568
        %v2570 = vpop.f32.mrb[0].mxu0
        %v2571 = vadd.f32 0.0, %v2570
        %2572 = vmatprep.mubr.bf16.mxu0 0
        %2573 = vmatmul.mubr.bf16.gmra.mrb[0].mxu0 %v2052
        %v2574 = vpop.f32.mrb[0].mxu0
        %v2575 = vadd.f32 0.0, %v2574
        %v2576 = vpop.f32.mrb[0].mxu0
        %v2577 = vadd.f32 0.0, %v2576
        %v2578 = vpop.f32.mrb[0].mxu0
        %v2579 = vadd.f32 0.0, %v2578
        %v2580 = vpop.f32.mrb[0].mxu0
        %v2581 = vadd.f32 0.0, %v2580
        %2582 = vmatprep.mubr.bf16.mxu0 0
        %2583 = vmatmul.mubr.bf16.gmra.mrb[0].mxu0 %v2053
        %v2584 = vpop.f32.mrb[0].mxu0
        %v2585 = vadd.f32 0.0, %v2584
        %v2586 = vpop.f32.mrb[0].mxu0
        %v2587 = vadd.f32 0.0, %v2586
        %v2588 = vpop.f32.mrb[0].mxu0
        %v2589 = vadd.f32 0.0, %v2588
        %v2590 = vpop.f32.mrb[0].mxu0
        %v2591 = vadd.f32 0.0, %v2590
        %2592 = vmatprep.mubr.bf16.mxu0 0
        %2593 = vmatmul.mubr.bf16.gmra.mrb[0].mxu0 %v2054
        %v2594 = vpop.f32.mrb[0].mxu0
        %v2595 = vadd.f32 0.0, %v2594
        %v2596 = vpop.f32.mrb[0].mxu0
        %v2597 = vadd.f32 0.0, %v2596
        %v2598 = vpop.f32.mrb[0].mxu0
        %v2599 = vadd.f32 0.0, %v2598
        %v2600 = vpop.f32.mrb[0].mxu0
        %v2601 = vadd.f32 0.0, %v2600
        %2602 = vmatprep.mubr.bf16.mxu0 0
        %2603 = vmatmul.mubr.bf16.gmra.mrb[0].mxu0 %v2055
        %v2604 = vpop.f32.mrb[0].mxu0
        %v2605 = vadd.f32 0.0, %v2604
        %v2606 = vpop.f32.mrb[0].mxu0
        %v2607 = vadd.f32 0.0, %v2606
        %v2608 = vpop.f32.mrb[0].mxu0
        %v2609 = vadd.f32 0.0, %v2608
        %v2610 = vpop.f32.mrb[0].mxu0
        %v2611 = vadd.f32 0.0, %v2610
        %2612 = vmatprep.mubr.bf16.mxu0 0
        %2613 = vmatmul.mubr.bf16.gmra.mrb[0].mxu0 %v2056
        %v2614 = vpop.f32.mrb[0].mxu0
        %v2615 = vadd.f32 0.0, %v2614
        %v2616 = vpop.f32.mrb[0].mxu0
        %v2617 = vadd.f32 0.0, %v2616
        %v2618 = vpop.f32.mrb[0].mxu0
        %v2619 = vadd.f32 0.0, %v2618
        %v2620 = vpop.f32.mrb[0].mxu0
        %v2621 = vadd.f32 0.0, %v2620
        %2622 = vmatprep.mubr.bf16.mxu0 0
        %2623 = vmatmul.mubr.bf16.gmra.mrb[0].mxu0 %v2057
        %v2624 = vpop.f32.mrb[0].mxu0
        %v2625 = vadd.f32 0.0, %v2624
        %v2626 = vpop.f32.mrb[0].mxu0
        %v2627 = vadd.f32 0.0, %v2626
        %v2628 = vpop.f32.mrb[0].mxu0
        %v2629 = vadd.f32 0.0, %v2628
        %v2630 = vpop.f32.mrb[0].mxu0
        %v2631 = vadd.f32 0.0, %v2630
        %2632 = vmatprep.mubr.bf16.mxu0 0
        %2633 = vmatmul.mubr.bf16.gmra.mrb[0].mxu0 %v2058
        %v2634 = vpop.f32.mrb[0].mxu0
        %v2635 = vadd.f32 0.0, %v2634
        %v2636 = vpop.f32.mrb[0].mxu0
        %v2637 = vadd.f32 0.0, %v2636
        %v2638 = vpop.f32.mrb[0].mxu0
        %v2639 = vadd.f32 0.0, %v2638
        %v2640 = vpop.f32.mrb[0].mxu0
        %v2641 = vadd.f32 0.0, %v2640
        %2642 = vmatprep.mubr.bf16.mxu0 0
        %2643 = vmatmul.mubr.bf16.gmra.mrb[0].mxu0 %v2059
        %v2644 = vpop.f32.mrb[0].mxu0
        %v2645 = vadd.f32 0.0, %v2644
        %v2646 = vpop.f32.mrb[0].mxu0
        %v2647 = vadd.f32 0.0, %v2646
        %v2648 = vpop.f32.mrb[0].mxu0
        %v2649 = vadd.f32 0.0, %v2648
        %v2650 = vpop.f32.mrb[0].mxu0
        %v2651 = vadd.f32 0.0, %v2650
        %2652 = vmatprep.mubr.bf16.mxu0 0
        %2653 = vmatmul.mubr.bf16.gmra.mrb[0].mxu0 %v2060
        %v2654 = vpop.f32.mrb[0].mxu0
        %v2655 = vadd.f32 0.0, %v2654
        %v2656 = vpop.f32.mrb[0].mxu0
        %v2657 = vadd.f32 0.0, %v2656
        %v2658 = vpop.f32.mrb[0].mxu0
        %v2659 = vadd.f32 0.0, %v2658
        %v2660 = vpop.f32.mrb[0].mxu0
        %v2661 = vadd.f32 0.0, %v2660
        %2662 = vmatprep.mubr.bf16.mxu0 0
        %2663 = vmatmul.mubr.bf16.gmra.mrb[0].mxu0 %v2061
        %v2664 = vpop.f32.mrb[0].mxu0
        %v2665 = vadd.f32 0.0, %v2664
        %v2666 = vpop.f32.mrb[0].mxu0
        %v2667 = vadd.f32 0.0, %v2666
        %v2668 = vpop.f32.mrb[0].mxu0
        %v2669 = vadd.f32 0.0, %v2668
        %v2670 = vpop.f32.mrb[0].mxu0
        %v2671 = vadd.f32 0.0, %v2670
        %2672 = vmatprep.mubr.bf16.mxu0 0
        %2673 = vmatmul.mubr.bf16.gmra.mrb[0].mxu0 %v2062
        %v2674 = vpop.f32.mrb[0].mxu0
        %v2675 = vadd.f32 0.0, %v2674
        %v2676 = vpop.f32.mrb[0].mxu0
        %v2677 = vadd.f32 0.0, %v2676
        %v2678 = vpop.f32.mrb[0].mxu0
        %v2679 = vadd.f32 0.0, %v2678
        %v2680 = vpop.f32.mrb[0].mxu0
        %v2681 = vadd.f32 0.0, %v2680
        %2682 = vmatprep.mubr.bf16.mxu0 0
        %2683 = vmatmul.mubr.bf16.gmra.mrb[0].mxu0 %v2063
        %v2684 = vpop.f32.mrb[0].mxu0
        %v2685 = vadd.f32 0.0, %v2684
        %v2686 = vpop.f32.mrb[0].mxu0
        %v2687 = vadd.f32 0.0, %v2686
        %v2688 = vpop.f32.mrb[0].mxu0
        %v2689 = vadd.f32 0.0, %v2688
        %v2690 = vpop.f32.mrb[0].mxu0
        %v2691 = vadd.f32 0.0, %v2690
        %2692 = vmatprep.mubr.bf16.mxu0 0
        %2693 = vmatmul.mubr.bf16.gmra.mrb[0].mxu0 %v2064
        %v2694 = vpop.f32.mrb[0].mxu0
        %v2695 = vadd.f32 0.0, %v2694
        %v2696 = vpop.f32.mrb[0].mxu0
        %v2697 = vadd.f32 0.0, %v2696
        %v2698 = vpop.f32.mrb[0].mxu0
        %v2699 = vadd.f32 0.0, %v2698
        %v2700 = vpop.f32.mrb[0].mxu0
        %v2701 = vadd.f32 0.0, %v2700
        %2702 = vmatprep.mubr.bf16.mxu0 0
        %2703 = vmatmul.mubr.bf16.gmra.mrb[0].mxu0 %v2065
        %v2704 = vpop.f32.mrb[0].mxu0
        %v2705 = vadd.f32 0.0, %v2704
        %v2706 = vpop.f32.mrb[0].mxu0
        %v2707 = vadd.f32 0.0, %v2706
        %v2708 = vpop.f32.mrb[0].mxu0
        %v2709 = vadd.f32 0.0, %v2708
        %v2710 = vpop.f32.mrb[0].mxu0
        %v2711 = vadd.f32 0.0, %v2710
        %2712 = vmatprep.mubr.bf16.mxu0 0
        %2713 = vmatmul.mubr.bf16.gmra.mrb[0].mxu0 %v2066
        %v2714 = vpop.f32.mrb[0].mxu0
        %v2715 = vadd.f32 0.0, %v2714
        %v2716 = vpop.f32.mrb[0].mxu0
        %v2717 = vadd.f32 0.0, %v2716
        %v2718 = vpop.f32.mrb[0].mxu0
        %v2719 = vadd.f32 0.0, %v2718
        %v2720 = vpop.f32.mrb[0].mxu0
        %v2721 = vadd.f32 0.0, %v2720
        %2722 = vmatprep.mubr.bf16.mxu0 0
        %2723 = vmatmul.mubr.bf16.gmra.mrb[0].mxu0 %v2067
        %v2724 = vpop.f32.mrb[0].mxu0
        %v2725 = vadd.f32 0.0, %v2724
        %v2726 = vpop.f32.mrb[0].mxu0
        %v2727 = vadd.f32 0.0, %v2726
        %v2728 = vpop.f32.mrb[0].mxu0
        %v2729 = vadd.f32 0.0, %v2728
        %v2730 = vpop.f32.mrb[0].mxu0
        %v2731 = vadd.f32 0.0, %v2730
        %2732 = vmatprep.mubr.bf16.mxu0 0
        %2733 = vmatmul.mubr.bf16.gmra.mrb[0].mxu0 %v2068
        %v2734 = vpop.f32.mrb[0].mxu0
        %v2735 = vadd.f32 0.0, %v2734
        %v2736 = vpop.f32.mrb[0].mxu0
        %v2737 = vadd.f32 0.0, %v2736
        %v2738 = vpop.f32.mrb[0].mxu0
        %v2739 = vadd.f32 0.0, %v2738
        %v2740 = vpop.f32.mrb[0].mxu0
        %v2741 = vadd.f32 0.0, %v2740
        %2742 = vmatprep.mubr.bf16.mxu0 0
        %2743 = vmatmul.mubr.bf16.gmra.mrb[0].mxu0 %v2069
        %v2744 = vpop.f32.mrb[0].mxu0
        %v2745 = vadd.f32 0.0, %v2744
        %v2746 = vpop.f32.mrb[0].mxu0
        %v2747 = vadd.f32 0.0, %v2746
        %v2748 = vpop.f32.mrb[0].mxu0
        %v2749 = vadd.f32 0.0, %v2748
        %v2750 = vpop.f32.mrb[0].mxu0
        %v2751 = vadd.f32 0.0, %v2750
        %2752 = vmatprep.mubr.bf16.mxu0 0
        %2753 = vmatmul.mubr.bf16.gmra.mrb[0].mxu0 %v2070
        %v2754 = vpop.f32.mrb[0].mxu0
        %v2755 = vadd.f32 0.0, %v2754
        %v2756 = vpop.f32.mrb[0].mxu0
        %v2757 = vadd.f32 0.0, %v2756
        %v2758 = vpop.f32.mrb[0].mxu0
        %v2759 = vadd.f32 0.0, %v2758
        %v2760 = vpop.f32.mrb[0].mxu0
        %v2761 = vadd.f32 0.0, %v2760
        %2762 = vmatprep.mubr.bf16.mxu0 0
        %2763 = vmatmul.mubr.bf16.gmra.mrb[0].mxu0 %v2071
        %v2764 = vpop.f32.mrb[0].mxu0
        %v2765 = vadd.f32 0.0, %v2764
        %v2766 = vpop.f32.mrb[0].mxu0
        %v2767 = vadd.f32 0.0, %v2766
        %v2768 = vpop.f32.mrb[0].mxu0
        %v2769 = vadd.f32 0.0, %v2768
        %v2770 = vpop.f32.mrb[0].mxu0
        %v2771 = vadd.f32 0.0, %v2770
        %2772 = vmatprep.mubr.bf16.mxu0 0
        %2773 = vmatmul.mubr.bf16.gmra.mrb[0].mxu0 %v2072
        %v2774 = vpop.f32.mrb[0].mxu0
        %v2775 = vadd.f32 0.0, %v2774
        %v2776 = vpop.f32.mrb[0].mxu0
        %v2777 = vadd.f32 0.0, %v2776
        %v2778 = vpop.f32.mrb[0].mxu0
        %v2779 = vadd.f32 0.0, %v2778
        %v2780 = vpop.f32.mrb[0].mxu0
        %v2781 = vadd.f32 0.0, %v2780
        %2782 = vmatprep.mubr.bf16.mxu0 0
        %2783 = vmatmul.mubr.bf16.gmra.mrb[0].mxu0 %v2073
        %v2784 = vpop.f32.mrb[0].mxu0
        %v2785 = vadd.f32 0.0, %v2784
        %v2786 = vpop.f32.mrb[0].mxu0
        %v2787 = vadd.f32 0.0, %v2786
        %v2788 = vpop.f32.mrb[0].mxu0
        %v2789 = vadd.f32 0.0, %v2788
        %v2790 = vpop.f32.mrb[0].mxu0
        %v2791 = vadd.f32 0.0, %v2790
        %2792 = vmatprep.mubr.bf16.mxu0 0
        %2793 = vmatmul.mubr.bf16.gmra.mrb[0].mxu0 %v2074
        %v2794 = vpop.f32.mrb[0].mxu0
        %v2795 = vadd.f32 0.0, %v2794
        %v2796 = vpop.f32.mrb[0].mxu0
        %v2797 = vadd.f32 0.0, %v2796
        %v2798 = vpop.f32.mrb[0].mxu0
        %v2799 = vadd.f32 0.0, %v2798
        %v2800 = vpop.f32.mrb[0].mxu0
        %v2801 = vadd.f32 0.0, %v2800
        %2802 = vmatprep.mubr.bf16.mxu0 0
        %2803 = vmatmul.mubr.bf16.gmra.mrb[0].mxu0 %v2075
        %v2804 = vpop.f32.mrb[0].mxu0
        %v2805 = vadd.f32 0.0, %v2804
        %v2806 = vpop.f32.mrb[0].mxu0
        %v2807 = vadd.f32 0.0, %v2806
        %v2808 = vpop.f32.mrb[0].mxu0
        %v2809 = vadd.f32 0.0, %v2808
        %v2810 = vpop.f32.mrb[0].mxu0
        %v2811 = vadd.f32 0.0, %v2810
        %2812 = vdwg.mxu0
        %2813 = vmatprep.subr.bf16.mxu0 %v2335
        %2814 = vmatpush1.bf16.msra.mxu0 %v2334
        %2815 = vmatprep.subr.bf16.mxu0 %v2343
        %2816 = vmatpush1.bf16.msra.mxu0 %v2342
        %2817 = vmatprep.subr.bf16.mxu0 %v2351
        %2818 = vmatpush1.bf16.msra.mxu0 %v2350
        %2819 = vmatprep.subr.bf16.mxu0 %v2359
        %2820 = vmatpush1.bf16.msra.mxu0 %v2358
        %2821 = vmatprep.subr.bf16.mxu0 %v2367
        %2822 = vmatpush1.bf16.msra.mxu0 %v2366
        %2823 = vmatprep.subr.bf16.mxu0 %v2375
        %2824 = vmatpush1.bf16.msra.mxu0 %v2374
        %2825 = vmatprep.subr.bf16.mxu0 %v2383
        %2826 = vmatpush1.bf16.msra.mxu0 %v2382
        %2827 = vmatprep.subr.bf16.mxu0 %v2391
        %2828 = vmatpush1.bf16.msra.mxu0 %v2390
        %2829 = vmatprep.subr.bf16.mxu0 0
        %2830 = vmatpush1.bf16.msra.mxu0 0
        %2831 = vmatprep.subr.bf16.mxu0 0
        %2832 = vmatpush1.bf16.msra.mxu0 0
        %2833 = vmatprep.subr.bf16.mxu0 0
        %2834 = vmatpush1.bf16.msra.mxu0 0
        %2835 = vmatprep.subr.bf16.mxu0 0
        %2836 = vmatpush1.bf16.msra.mxu0 0
        %2837 = vmatprep.subr.bf16.mxu0 0
        %2838 = vmatpush1.bf16.msra.mxu0 0
        %2839 = vmatprep.subr.bf16.mxu0 0
        %2840 = vmatpush1.bf16.msra.mxu0 0
        %2841 = vmatprep.subr.bf16.mxu0 0
        %2842 = vmatpush1.bf16.msra.mxu0 0
        %2843 = vmatprep.subr.bf16.mxu0 0
        %2844 = vmatpush1.bf16.msra.mxu0 0
        %2845 = vmatprep.mubr.bf16.mxu0 0
        %2846 = vmatmul.mubr.bf16.gmra.mrb[0].mxu0 %v2044
        %v2847 = vpop.f32.mrb[0].mxu0
        %v2848 = vadd.f32 0.0, %v2847
        %v2849 = vpop.f32.mrb[0].mxu0
        %v2850 = vadd.f32 0.0, %v2849
        %v2851 = vpop.f32.mrb[0].mxu0
        %v2852 = vadd.f32 0.0, %v2851
        %v2853 = vpop.f32.mrb[0].mxu0
        %v2854 = vadd.f32 0.0, %v2853
        %2855 = vmatprep.mubr.bf16.mxu0 0
        %2856 = vmatmul.mubr.bf16.gmra.mrb[0].mxu0 %v2045
        %v2857 = vpop.f32.mrb[0].mxu0
        %v2858 = vadd.f32 0.0, %v2857
        %v2859 = vpop.f32.mrb[0].mxu0
        %v2860 = vadd.f32 0.0, %v2859
        %v2861 = vpop.f32.mrb[0].mxu0
        %v2862 = vadd.f32 0.0, %v2861
        %v2863 = vpop.f32.mrb[0].mxu0
        %v2864 = vadd.f32 0.0, %v2863
        %2865 = vmatprep.mubr.bf16.mxu0 0
        %2866 = vmatmul.mubr.bf16.gmra.mrb[0].mxu0 %v2046
        %v2867 = vpop.f32.mrb[0].mxu0
        %v2868 = vadd.f32 0.0, %v2867
        %v2869 = vpop.f32.mrb[0].mxu0
        %v2870 = vadd.f32 0.0, %v2869
        %v2871 = vpop.f32.mrb[0].mxu0
        %v2872 = vadd.f32 0.0, %v2871
        %v2873 = vpop.f32.mrb[0].mxu0
        %v2874 = vadd.f32 0.0, %v2873
        %2875 = vmatprep.mubr.bf16.mxu0 0
        %2876 = vmatmul.mubr.bf16.gmra.mrb[0].mxu0 %v2047
        %v2877 = vpop.f32.mrb[0].mxu0
        %v2878 = vadd.f32 0.0, %v2877
        %v2879 = vpop.f32.mrb[0].mxu0
        %v2880 = vadd.f32 0.0, %v2879
        %v2881 = vpop.f32.mrb[0].mxu0
        %v2882 = vadd.f32 0.0, %v2881
        %v2883 = vpop.f32.mrb[0].mxu0
        %v2884 = vadd.f32 0.0, %v2883
        %2885 = vmatprep.mubr.bf16.mxu0 0
        %2886 = vmatmul.mubr.bf16.gmra.mrb[0].mxu0 %v2048
        %v2887 = vpop.f32.mrb[0].mxu0
        %v2888 = vadd.f32 0.0, %v2887
        %v2889 = vpop.f32.mrb[0].mxu0
        %v2890 = vadd.f32 0.0, %v2889
        %v2891 = vpop.f32.mrb[0].mxu0
        %v2892 = vadd.f32 0.0, %v2891
        %v2893 = vpop.f32.mrb[0].mxu0
        %v2894 = vadd.f32 0.0, %v2893
        %2895 = vmatprep.mubr.bf16.mxu0 0
        %2896 = vmatmul.mubr.bf16.gmra.mrb[0].mxu0 %v2049
        %v2897 = vpop.f32.mrb[0].mxu0
        %v2898 = vadd.f32 0.0, %v2897
        %v2899 = vpop.f32.mrb[0].mxu0
        %v2900 = vadd.f32 0.0, %v2899
        %v2901 = vpop.f32.mrb[0].mxu0
        %v2902 = vadd.f32 0.0, %v2901
        %v2903 = vpop.f32.mrb[0].mxu0
        %v2904 = vadd.f32 0.0, %v2903
        %2905 = vmatprep.mubr.bf16.mxu0 0
        %2906 = vmatmul.mubr.bf16.gmra.mrb[0].mxu0 %v2050
        %v2907 = vpop.f32.mrb[0].mxu0
        %v2908 = vadd.f32 0.0, %v2907
        %v2909 = vpop.f32.mrb[0].mxu0
        %v2910 = vadd.f32 0.0, %v2909
        %v2911 = vpop.f32.mrb[0].mxu0
        %v2912 = vadd.f32 0.0, %v2911
        %v2913 = vpop.f32.mrb[0].mxu0
        %v2914 = vadd.f32 0.0, %v2913
        %2915 = vmatprep.mubr.bf16.mxu0 0
        %2916 = vmatmul.mubr.bf16.gmra.mrb[0].mxu0 %v2051
        %v2917 = vpop.f32.mrb[0].mxu0
        %v2918 = vadd.f32 0.0, %v2917
        %v2919 = vpop.f32.mrb[0].mxu0
        %v2920 = vadd.f32 0.0, %v2919
        %v2921 = vpop.f32.mrb[0].mxu0
        %v2922 = vadd.f32 0.0, %v2921
        %v2923 = vpop.f32.mrb[0].mxu0
        %v2924 = vadd.f32 0.0, %v2923
        %2925 = vmatprep.mubr.bf16.mxu0 0
        %2926 = vmatmul.mubr.bf16.gmra.mrb[0].mxu0 %v2052
        %v2927 = vpop.f32.mrb[0].mxu0
        %v2928 = vadd.f32 0.0, %v2927
        %v2929 = vpop.f32.mrb[0].mxu0
        %v2930 = vadd.f32 0.0, %v2929
        %v2931 = vpop.f32.mrb[0].mxu0
        %v2932 = vadd.f32 0.0, %v2931
        %v2933 = vpop.f32.mrb[0].mxu0
        %v2934 = vadd.f32 0.0, %v2933
        %2935 = vmatprep.mubr.bf16.mxu0 0
        %2936 = vmatmul.mubr.bf16.gmra.mrb[0].mxu0 %v2053
        %v2937 = vpop.f32.mrb[0].mxu0
        %v2938 = vadd.f32 0.0, %v2937
        %v2939 = vpop.f32.mrb[0].mxu0
        %v2940 = vadd.f32 0.0, %v2939
        %v2941 = vpop.f32.mrb[0].mxu0
        %v2942 = vadd.f32 0.0, %v2941
        %v2943 = vpop.f32.mrb[0].mxu0
        %v2944 = vadd.f32 0.0, %v2943
        %2945 = vmatprep.mubr.bf16.mxu0 0
        %2946 = vmatmul.mubr.bf16.gmra.mrb[0].mxu0 %v2054
        %v2947 = vpop.f32.mrb[0].mxu0
        %v2948 = vadd.f32 0.0, %v2947
        %v2949 = vpop.f32.mrb[0].mxu0
        %v2950 = vadd.f32 0.0, %v2949
        %v2951 = vpop.f32.mrb[0].mxu0
        %v2952 = vadd.f32 0.0, %v2951
        %v2953 = vpop.f32.mrb[0].mxu0
        %v2954 = vadd.f32 0.0, %v2953
        %2955 = vmatprep.mubr.bf16.mxu0 0
        %2956 = vmatmul.mubr.bf16.gmra.mrb[0].mxu0 %v2055
        %v2957 = vpop.f32.mrb[0].mxu0
        %v2958 = vadd.f32 0.0, %v2957
        %v2959 = vpop.f32.mrb[0].mxu0
        %v2960 = vadd.f32 0.0, %v2959
        %v2961 = vpop.f32.mrb[0].mxu0
        %v2962 = vadd.f32 0.0, %v2961
        %v2963 = vpop.f32.mrb[0].mxu0
        %v2964 = vadd.f32 0.0, %v2963
        %2965 = vmatprep.mubr.bf16.mxu0 0
        %2966 = vmatmul.mubr.bf16.gmra.mrb[0].mxu0 %v2056
        %v2967 = vpop.f32.mrb[0].mxu0
        %v2968 = vadd.f32 0.0, %v2967
        %v2969 = vpop.f32.mrb[0].mxu0
        %v2970 = vadd.f32 0.0, %v2969
        %v2971 = vpop.f32.mrb[0].mxu0
        %v2972 = vadd.f32 0.0, %v2971
        %v2973 = vpop.f32.mrb[0].mxu0
        %v2974 = vadd.f32 0.0, %v2973
        %2975 = vmatprep.mubr.bf16.mxu0 0
        %2976 = vmatmul.mubr.bf16.gmra.mrb[0].mxu0 %v2057
        %v2977 = vpop.f32.mrb[0].mxu0
        %v2978 = vadd.f32 0.0, %v2977
        %v2979 = vpop.f32.mrb[0].mxu0
        %v2980 = vadd.f32 0.0, %v2979
        %v2981 = vpop.f32.mrb[0].mxu0
        %v2982 = vadd.f32 0.0, %v2981
        %v2983 = vpop.f32.mrb[0].mxu0
        %v2984 = vadd.f32 0.0, %v2983
        %2985 = vmatprep.mubr.bf16.mxu0 0
        %2986 = vmatmul.mubr.bf16.gmra.mrb[0].mxu0 %v2058
        %v2987 = vpop.f32.mrb[0].mxu0
        %v2988 = vadd.f32 0.0, %v2987
        %v2989 = vpop.f32.mrb[0].mxu0
        %v2990 = vadd.f32 0.0, %v2989
        %v2991 = vpop.f32.mrb[0].mxu0
        %v2992 = vadd.f32 0.0, %v2991
        %v2993 = vpop.f32.mrb[0].mxu0
        %v2994 = vadd.f32 0.0, %v2993
        %2995 = vmatprep.mubr.bf16.mxu0 0
        %2996 = vmatmul.mubr.bf16.gmra.mrb[0].mxu0 %v2059
        %v2997 = vpop.f32.mrb[0].mxu0
        %v2998 = vadd.f32 0.0, %v2997
        %v2999 = vpop.f32.mrb[0].mxu0
        %v3000 = vadd.f32 0.0, %v2999
        %v3001 = vpop.f32.mrb[0].mxu0
        %v3002 = vadd.f32 0.0, %v3001
        %v3003 = vpop.f32.mrb[0].mxu0
        %v3004 = vadd.f32 0.0, %v3003
        %3005 = vmatprep.mubr.bf16.mxu0 0
        %3006 = vmatmul.mubr.bf16.gmra.mrb[0].mxu0 %v2060
        %v3007 = vpop.f32.mrb[0].mxu0
        %v3008 = vadd.f32 0.0, %v3007
        %v3009 = vpop.f32.mrb[0].mxu0
        %v3010 = vadd.f32 0.0, %v3009
        %v3011 = vpop.f32.mrb[0].mxu0
        %v3012 = vadd.f32 0.0, %v3011
        %v3013 = vpop.f32.mrb[0].mxu0
        %v3014 = vadd.f32 0.0, %v3013
        %3015 = vmatprep.mubr.bf16.mxu0 0
        %3016 = vmatmul.mubr.bf16.gmra.mrb[0].mxu0 %v2061
        %v3017 = vpop.f32.mrb[0].mxu0
        %v3018 = vadd.f32 0.0, %v3017
        %v3019 = vpop.f32.mrb[0].mxu0
        %v3020 = vadd.f32 0.0, %v3019
        %v3021 = vpop.f32.mrb[0].mxu0
        %v3022 = vadd.f32 0.0, %v3021
        %v3023 = vpop.f32.mrb[0].mxu0
        %v3024 = vadd.f32 0.0, %v3023
        %3025 = vmatprep.mubr.bf16.mxu0 0
        %3026 = vmatmul.mubr.bf16.gmra.mrb[0].mxu0 %v2062
        %v3027 = vpop.f32.mrb[0].mxu0
        %v3028 = vadd.f32 0.0, %v3027
        %v3029 = vpop.f32.mrb[0].mxu0
        %v3030 = vadd.f32 0.0, %v3029
        %v3031 = vpop.f32.mrb[0].mxu0
        %v3032 = vadd.f32 0.0, %v3031
        %v3033 = vpop.f32.mrb[0].mxu0
        %v3034 = vadd.f32 0.0, %v3033
        %3035 = vmatprep.mubr.bf16.mxu0 0
        %3036 = vmatmul.mubr.bf16.gmra.mrb[0].mxu0 %v2063
        %v3037 = vpop.f32.mrb[0].mxu0
        %v3038 = vadd.f32 0.0, %v3037
        %v3039 = vpop.f32.mrb[0].mxu0
        %v3040 = vadd.f32 0.0, %v3039
        %v3041 = vpop.f32.mrb[0].mxu0
        %v3042 = vadd.f32 0.0, %v3041
        %v3043 = vpop.f32.mrb[0].mxu0
        %v3044 = vadd.f32 0.0, %v3043
        %3045 = vmatprep.mubr.bf16.mxu0 0
        %3046 = vmatmul.mubr.bf16.gmra.mrb[0].mxu0 %v2064
        %v3047 = vpop.f32.mrb[0].mxu0
        %v3048 = vadd.f32 0.0, %v3047
        %v3049 = vpop.f32.mrb[0].mxu0
        %v3050 = vadd.f32 0.0, %v3049
        %v3051 = vpop.f32.mrb[0].mxu0
        %v3052 = vadd.f32 0.0, %v3051
        %v3053 = vpop.f32.mrb[0].mxu0
        %v3054 = vadd.f32 0.0, %v3053
        %3055 = vmatprep.mubr.bf16.mxu0 0
        %3056 = vmatmul.mubr.bf16.gmra.mrb[0].mxu0 %v2065
        %v3057 = vpop.f32.mrb[0].mxu0
        %v3058 = vadd.f32 0.0, %v3057
        %v3059 = vpop.f32.mrb[0].mxu0
        %v3060 = vadd.f32 0.0, %v3059
        %v3061 = vpop.f32.mrb[0].mxu0
        %v3062 = vadd.f32 0.0, %v3061
        %v3063 = vpop.f32.mrb[0].mxu0
        %v3064 = vadd.f32 0.0, %v3063
        %3065 = vmatprep.mubr.bf16.mxu0 0
        %3066 = vmatmul.mubr.bf16.gmra.mrb[0].mxu0 %v2066
        %v3067 = vpop.f32.mrb[0].mxu0
        %v3068 = vadd.f32 0.0, %v3067
        %v3069 = vpop.f32.mrb[0].mxu0
        %v3070 = vadd.f32 0.0, %v3069
        %v3071 = vpop.f32.mrb[0].mxu0
        %v3072 = vadd.f32 0.0, %v3071
        %v3073 = vpop.f32.mrb[0].mxu0
        %v3074 = vadd.f32 0.0, %v3073
        %3075 = vmatprep.mubr.bf16.mxu0 0
        %3076 = vmatmul.mubr.bf16.gmra.mrb[0].mxu0 %v2067
        %v3077 = vpop.f32.mrb[0].mxu0
        %v3078 = vadd.f32 0.0, %v3077
        %v3079 = vpop.f32.mrb[0].mxu0
        %v3080 = vadd.f32 0.0, %v3079
        %v3081 = vpop.f32.mrb[0].mxu0
        %v3082 = vadd.f32 0.0, %v3081
        %v3083 = vpop.f32.mrb[0].mxu0
        %v3084 = vadd.f32 0.0, %v3083
        %3085 = vmatprep.mubr.bf16.mxu0 0
        %3086 = vmatmul.mubr.bf16.gmra.mrb[0].mxu0 %v2068
        %v3087 = vpop.f32.mrb[0].mxu0
        %v3088 = vadd.f32 0.0, %v3087
        %v3089 = vpop.f32.mrb[0].mxu0
        %v3090 = vadd.f32 0.0, %v3089
        %v3091 = vpop.f32.mrb[0].mxu0
        %v3092 = vadd.f32 0.0, %v3091
        %v3093 = vpop.f32.mrb[0].mxu0
        %v3094 = vadd.f32 0.0, %v3093
        %3095 = vmatprep.mubr.bf16.mxu0 0
        %3096 = vmatmul.mubr.bf16.gmra.mrb[0].mxu0 %v2069
        %v3097 = vpop.f32.mrb[0].mxu0
        %v3098 = vadd.f32 0.0, %v3097
        %v3099 = vpop.f32.mrb[0].mxu0
        %v3100 = vadd.f32 0.0, %v3099
        %v3101 = vpop.f32.mrb[0].mxu0
        %v3102 = vadd.f32 0.0, %v3101
        %v3103 = vpop.f32.mrb[0].mxu0
        %v3104 = vadd.f32 0.0, %v3103
        %3105 = vmatprep.mubr.bf16.mxu0 0
        %3106 = vmatmul.mubr.bf16.gmra.mrb[0].mxu0 %v2070
        %v3107 = vpop.f32.mrb[0].mxu0
        %v3108 = vadd.f32 0.0, %v3107
        %v3109 = vpop.f32.mrb[0].mxu0
        %v3110 = vadd.f32 0.0, %v3109
        %v3111 = vpop.f32.mrb[0].mxu0
        %v3112 = vadd.f32 0.0, %v3111
        %v3113 = vpop.f32.mrb[0].mxu0
        %v3114 = vadd.f32 0.0, %v3113
        %3115 = vmatprep.mubr.bf16.mxu0 0
        %3116 = vmatmul.mubr.bf16.gmra.mrb[0].mxu0 %v2071
        %v3117 = vpop.f32.mrb[0].mxu0
        %v3118 = vadd.f32 0.0, %v3117
        %v3119 = vpop.f32.mrb[0].mxu0
        %v3120 = vadd.f32 0.0, %v3119
        %v3121 = vpop.f32.mrb[0].mxu0
        %v3122 = vadd.f32 0.0, %v3121
        %v3123 = vpop.f32.mrb[0].mxu0
        %v3124 = vadd.f32 0.0, %v3123
        %3125 = vmatprep.mubr.bf16.mxu0 0
        %3126 = vmatmul.mubr.bf16.gmra.mrb[0].mxu0 %v2072
        %v3127 = vpop.f32.mrb[0].mxu0
        %v3128 = vadd.f32 0.0, %v3127
        %v3129 = vpop.f32.mrb[0].mxu0
        %v3130 = vadd.f32 0.0, %v3129
        %v3131 = vpop.f32.mrb[0].mxu0
        %v3132 = vadd.f32 0.0, %v3131
        %v3133 = vpop.f32.mrb[0].mxu0
        %v3134 = vadd.f32 0.0, %v3133
        %3135 = vmatprep.mubr.bf16.mxu0 0
        %3136 = vmatmul.mubr.bf16.gmra.mrb[0].mxu0 %v2073
        %v3137 = vpop.f32.mrb[0].mxu0
        %v3138 = vadd.f32 0.0, %v3137
        %v3139 = vpop.f32.mrb[0].mxu0
        %v3140 = vadd.f32 0.0, %v3139
        %v3141 = vpop.f32.mrb[0].mxu0
        %v3142 = vadd.f32 0.0, %v3141
        %v3143 = vpop.f32.mrb[0].mxu0
        %v3144 = vadd.f32 0.0, %v3143
        %3145 = vmatprep.mubr.bf16.mxu0 0
        %3146 = vmatmul.mubr.bf16.gmra.mrb[0].mxu0 %v2074
        %v3147 = vpop.f32.mrb[0].mxu0
        %v3148 = vadd.f32 0.0, %v3147
        %v3149 = vpop.f32.mrb[0].mxu0
        %v3150 = vadd.f32 0.0, %v3149
        %v3151 = vpop.f32.mrb[0].mxu0
        %v3152 = vadd.f32 0.0, %v3151
        %v3153 = vpop.f32.mrb[0].mxu0
        %v3154 = vadd.f32 0.0, %v3153
        %3155 = vmatprep.mubr.bf16.mxu0 0
        %3156 = vmatmul.mubr.bf16.gmra.mrb[0].mxu0 %v2075
        %v3157 = vpop.f32.mrb[0].mxu0
        %v3158 = vadd.f32 0.0, %v3157
        %v3159 = vpop.f32.mrb[0].mxu0
        %v3160 = vadd.f32 0.0, %v3159
        %v3161 = vpop.f32.mrb[0].mxu0
        %v3162 = vadd.f32 0.0, %v3161
        %v3163 = vpop.f32.mrb[0].mxu0
        %v3164 = vadd.f32 0.0, %v3163
        %3165 = vdwg.mxu0
        %3166 = vmatprep.subr.bf16.mxu0 %v2337
        %3167 = vmatpush1.bf16.msra.mxu0 %v2336
        %3168 = vmatprep.subr.bf16.mxu0 %v2345
        %3169 = vmatpush1.bf16.msra.mxu0 %v2344
        %3170 = vmatprep.subr.bf16.mxu0 %v2353
        %3171 = vmatpush1.bf16.msra.mxu0 %v2352
        %3172 = vmatprep.subr.bf16.mxu0 %v2361
        %3173 = vmatpush1.bf16.msra.mxu0 %v2360
        %3174 = vmatprep.subr.bf16.mxu0 %v2369
        %3175 = vmatpush1.bf16.msra.mxu0 %v2368
        %3176 = vmatprep.subr.bf16.mxu0 %v2377
        %3177 = vmatpush1.bf16.msra.mxu0 %v2376
        %3178 = vmatprep.subr.bf16.mxu0 %v2385
        %3179 = vmatpush1.bf16.msra.mxu0 %v2384
        %3180 = vmatprep.subr.bf16.mxu0 %v2393
        %3181 = vmatpush1.bf16.msra.mxu0 %v2392
        %3182 = vmatprep.subr.bf16.mxu0 0
        %3183 = vmatpush1.bf16.msra.mxu0 0
        %3184 = vmatprep.subr.bf16.mxu0 0
        %3185 = vmatpush1.bf16.msra.mxu0 0
        %3186 = vmatprep.subr.bf16.mxu0 0
        %3187 = vmatpush1.bf16.msra.mxu0 0
        %3188 = vmatprep.subr.bf16.mxu0 0
        %3189 = vmatpush1.bf16.msra.mxu0 0
        %3190 = vmatprep.subr.bf16.mxu0 0
        %3191 = vmatpush1.bf16.msra.mxu0 0
        %3192 = vmatprep.subr.bf16.mxu0 0
        %3193 = vmatpush1.bf16.msra.mxu0 0
        %3194 = vmatprep.subr.bf16.mxu0 0
        %3195 = vmatpush1.bf16.msra.mxu0 0
        %3196 = vmatprep.subr.bf16.mxu0 0
        %3197 = vmatpush1.bf16.msra.mxu0 0
        %3198 = vmatprep.mubr.bf16.mxu0 0
        %3199 = vmatmul.mubr.bf16.gmra.mrb[0].mxu0 %v2044
        %v3200 = vpop.f32.mrb[0].mxu0
        %v3201 = vadd.f32 0.0, %v3200
        %v3202 = vpop.f32.mrb[0].mxu0
        %v3203 = vadd.f32 0.0, %v3202
        %v3204 = vpop.f32.mrb[0].mxu0
        %v3205 = vadd.f32 0.0, %v3204
        %v3206 = vpop.f32.mrb[0].mxu0
        %v3207 = vadd.f32 0.0, %v3206
        %3208 = vmatprep.mubr.bf16.mxu0 0
        %3209 = vmatmul.mubr.bf16.gmra.mrb[0].mxu0 %v2045
        %v3210 = vpop.f32.mrb[0].mxu0
        %v3211 = vadd.f32 0.0, %v3210
        %v3212 = vpop.f32.mrb[0].mxu0
        %v3213 = vadd.f32 0.0, %v3212
        %v3214 = vpop.f32.mrb[0].mxu0
        %v3215 = vadd.f32 0.0, %v3214
        %v3216 = vpop.f32.mrb[0].mxu0
        %v3217 = vadd.f32 0.0, %v3216
        %3218 = vmatprep.mubr.bf16.mxu0 0
        %3219 = vmatmul.mubr.bf16.gmra.mrb[0].mxu0 %v2046
        %v3220 = vpop.f32.mrb[0].mxu0
        %v3221 = vadd.f32 0.0, %v3220
        %v3222 = vpop.f32.mrb[0].mxu0
        %v3223 = vadd.f32 0.0, %v3222
        %v3224 = vpop.f32.mrb[0].mxu0
        %v3225 = vadd.f32 0.0, %v3224
        %v3226 = vpop.f32.mrb[0].mxu0
        %v3227 = vadd.f32 0.0, %v3226
        %3228 = vmatprep.mubr.bf16.mxu0 0
        %3229 = vmatmul.mubr.bf16.gmra.mrb[0].mxu0 %v2047
        %v3230 = vpop.f32.mrb[0].mxu0
        %v3231 = vadd.f32 0.0, %v3230
        %v3232 = vpop.f32.mrb[0].mxu0
        %v3233 = vadd.f32 0.0, %v3232
        %v3234 = vpop.f32.mrb[0].mxu0
        %v3235 = vadd.f32 0.0, %v3234
        %v3236 = vpop.f32.mrb[0].mxu0
        %v3237 = vadd.f32 0.0, %v3236
        %3238 = vmatprep.mubr.bf16.mxu0 0
        %3239 = vmatmul.mubr.bf16.gmra.mrb[0].mxu0 %v2048
        %v3240 = vpop.f32.mrb[0].mxu0
        %v3241 = vadd.f32 0.0, %v3240
        %v3242 = vpop.f32.mrb[0].mxu0
        %v3243 = vadd.f32 0.0, %v3242
        %v3244 = vpop.f32.mrb[0].mxu0
        %v3245 = vadd.f32 0.0, %v3244
        %v3246 = vpop.f32.mrb[0].mxu0
        %v3247 = vadd.f32 0.0, %v3246
        %3248 = vmatprep.mubr.bf16.mxu0 0
        %3249 = vmatmul.mubr.bf16.gmra.mrb[0].mxu0 %v2049
        %v3250 = vpop.f32.mrb[0].mxu0
        %v3251 = vadd.f32 0.0, %v3250
        %v3252 = vpop.f32.mrb[0].mxu0
        %v3253 = vadd.f32 0.0, %v3252
        %v3254 = vpop.f32.mrb[0].mxu0
        %v3255 = vadd.f32 0.0, %v3254
        %v3256 = vpop.f32.mrb[0].mxu0
        %v3257 = vadd.f32 0.0, %v3256
        %3258 = vmatprep.mubr.bf16.mxu0 0
        %3259 = vmatmul.mubr.bf16.gmra.mrb[0].mxu0 %v2050
        %v3260 = vpop.f32.mrb[0].mxu0
        %v3261 = vadd.f32 0.0, %v3260
        %v3262 = vpop.f32.mrb[0].mxu0
        %v3263 = vadd.f32 0.0, %v3262
        %v3264 = vpop.f32.mrb[0].mxu0
        %v3265 = vadd.f32 0.0, %v3264
        %v3266 = vpop.f32.mrb[0].mxu0
        %v3267 = vadd.f32 0.0, %v3266
        %3268 = vmatprep.mubr.bf16.mxu0 0
        %3269 = vmatmul.mubr.bf16.gmra.mrb[0].mxu0 %v2051
        %v3270 = vpop.f32.mrb[0].mxu0
        %v3271 = vadd.f32 0.0, %v3270
        %v3272 = vpop.f32.mrb[0].mxu0
        %v3273 = vadd.f32 0.0, %v3272
        %v3274 = vpop.f32.mrb[0].mxu0
        %v3275 = vadd.f32 0.0, %v3274
        %v3276 = vpop.f32.mrb[0].mxu0
        %v3277 = vadd.f32 0.0, %v3276
        %3278 = vmatprep.mubr.bf16.mxu0 0
        %3279 = vmatmul.mubr.bf16.gmra.mrb[0].mxu0 %v2052
        %v3280 = vpop.f32.mrb[0].mxu0
        %v3281 = vadd.f32 0.0, %v3280
        %v3282 = vpop.f32.mrb[0].mxu0
        %v3283 = vadd.f32 0.0, %v3282
        %v3284 = vpop.f32.mrb[0].mxu0
        %v3285 = vadd.f32 0.0, %v3284
        %v3286 = vpop.f32.mrb[0].mxu0
        %v3287 = vadd.f32 0.0, %v3286
        %3288 = vmatprep.mubr.bf16.mxu0 0
        %3289 = vmatmul.mubr.bf16.gmra.mrb[0].mxu0 %v2053
        %v3290 = vpop.f32.mrb[0].mxu0
        %v3291 = vadd.f32 0.0, %v3290
        %v3292 = vpop.f32.mrb[0].mxu0
        %v3293 = vadd.f32 0.0, %v3292
        %v3294 = vpop.f32.mrb[0].mxu0
        %v3295 = vadd.f32 0.0, %v3294
        %v3296 = vpop.f32.mrb[0].mxu0
        %v3297 = vadd.f32 0.0, %v3296
        %3298 = vmatprep.mubr.bf16.mxu0 0
        %3299 = vmatmul.mubr.bf16.gmra.mrb[0].mxu0 %v2054
        %v3300 = vpop.f32.mrb[0].mxu0
        %v3301 = vadd.f32 0.0, %v3300
        %v3302 = vpop.f32.mrb[0].mxu0
        %v3303 = vadd.f32 0.0, %v3302
        %v3304 = vpop.f32.mrb[0].mxu0
        %v3305 = vadd.f32 0.0, %v3304
        %v3306 = vpop.f32.mrb[0].mxu0
        %v3307 = vadd.f32 0.0, %v3306
        %3308 = vmatprep.mubr.bf16.mxu0 0
        %3309 = vmatmul.mubr.bf16.gmra.mrb[0].mxu0 %v2055
        %v3310 = vpop.f32.mrb[0].mxu0
        %v3311 = vadd.f32 0.0, %v3310
        %v3312 = vpop.f32.mrb[0].mxu0
        %v3313 = vadd.f32 0.0, %v3312
        %v3314 = vpop.f32.mrb[0].mxu0
        %v3315 = vadd.f32 0.0, %v3314
        %v3316 = vpop.f32.mrb[0].mxu0
        %v3317 = vadd.f32 0.0, %v3316
        %3318 = vmatprep.mubr.bf16.mxu0 0
        %3319 = vmatmul.mubr.bf16.gmra.mrb[0].mxu0 %v2056
        %v3320 = vpop.f32.mrb[0].mxu0
        %v3321 = vadd.f32 0.0, %v3320
        %v3322 = vpop.f32.mrb[0].mxu0
        %v3323 = vadd.f32 0.0, %v3322
        %v3324 = vpop.f32.mrb[0].mxu0
        %v3325 = vadd.f32 0.0, %v3324
        %v3326 = vpop.f32.mrb[0].mxu0
        %v3327 = vadd.f32 0.0, %v3326
        %3328 = vmatprep.mubr.bf16.mxu0 0
        %3329 = vmatmul.mubr.bf16.gmra.mrb[0].mxu0 %v2057
        %v3330 = vpop.f32.mrb[0].mxu0
        %v3331 = vadd.f32 0.0, %v3330
        %v3332 = vpop.f32.mrb[0].mxu0
        %v3333 = vadd.f32 0.0, %v3332
        %v3334 = vpop.f32.mrb[0].mxu0
        %v3335 = vadd.f32 0.0, %v3334
        %v3336 = vpop.f32.mrb[0].mxu0
        %v3337 = vadd.f32 0.0, %v3336
        %3338 = vmatprep.mubr.bf16.mxu0 0
        %3339 = vmatmul.mubr.bf16.gmra.mrb[0].mxu0 %v2058
        %v3340 = vpop.f32.mrb[0].mxu0
        %v3341 = vadd.f32 0.0, %v3340
        %v3342 = vpop.f32.mrb[0].mxu0
        %v3343 = vadd.f32 0.0, %v3342
        %v3344 = vpop.f32.mrb[0].mxu0
        %v3345 = vadd.f32 0.0, %v3344
        %v3346 = vpop.f32.mrb[0].mxu0
        %v3347 = vadd.f32 0.0, %v3346
        %3348 = vmatprep.mubr.bf16.mxu0 0
        %3349 = vmatmul.mubr.bf16.gmra.mrb[0].mxu0 %v2059
        %v3350 = vpop.f32.mrb[0].mxu0
        %v3351 = vadd.f32 0.0, %v3350
        %v3352 = vpop.f32.mrb[0].mxu0
        %v3353 = vadd.f32 0.0, %v3352
        %v3354 = vpop.f32.mrb[0].mxu0
        %v3355 = vadd.f32 0.0, %v3354
        %v3356 = vpop.f32.mrb[0].mxu0
        %v3357 = vadd.f32 0.0, %v3356
        %3358 = vmatprep.mubr.bf16.mxu0 0
        %3359 = vmatmul.mubr.bf16.gmra.mrb[0].mxu0 %v2060
        %v3360 = vpop.f32.mrb[0].mxu0
        %v3361 = vadd.f32 0.0, %v3360
        %v3362 = vpop.f32.mrb[0].mxu0
        %v3363 = vadd.f32 0.0, %v3362
        %v3364 = vpop.f32.mrb[0].mxu0
        %v3365 = vadd.f32 0.0, %v3364
        %v3366 = vpop.f32.mrb[0].mxu0
        %v3367 = vadd.f32 0.0, %v3366
        %3368 = vmatprep.mubr.bf16.mxu0 0
        %3369 = vmatmul.mubr.bf16.gmra.mrb[0].mxu0 %v2061
        %v3370 = vpop.f32.mrb[0].mxu0
        %v3371 = vadd.f32 0.0, %v3370
        %v3372 = vpop.f32.mrb[0].mxu0
        %v3373 = vadd.f32 0.0, %v3372
        %v3374 = vpop.f32.mrb[0].mxu0
        %v3375 = vadd.f32 0.0, %v3374
        %v3376 = vpop.f32.mrb[0].mxu0
        %v3377 = vadd.f32 0.0, %v3376
        %3378 = vmatprep.mubr.bf16.mxu0 0
        %3379 = vmatmul.mubr.bf16.gmra.mrb[0].mxu0 %v2062
        %v3380 = vpop.f32.mrb[0].mxu0
        %v3381 = vadd.f32 0.0, %v3380
        %v3382 = vpop.f32.mrb[0].mxu0
        %v3383 = vadd.f32 0.0, %v3382
        %v3384 = vpop.f32.mrb[0].mxu0
        %v3385 = vadd.f32 0.0, %v3384
        %v3386 = vpop.f32.mrb[0].mxu0
        %v3387 = vadd.f32 0.0, %v3386
        %3388 = vmatprep.mubr.bf16.mxu0 0
        %3389 = vmatmul.mubr.bf16.gmra.mrb[0].mxu0 %v2063
        %v3390 = vpop.f32.mrb[0].mxu0
        %v3391 = vadd.f32 0.0, %v3390
        %v3392 = vpop.f32.mrb[0].mxu0
        %v3393 = vadd.f32 0.0, %v3392
        %v3394 = vpop.f32.mrb[0].mxu0
        %v3395 = vadd.f32 0.0, %v3394
        %v3396 = vpop.f32.mrb[0].mxu0
        %v3397 = vadd.f32 0.0, %v3396
        %3398 = vmatprep.mubr.bf16.mxu0 0
        %3399 = vmatmul.mubr.bf16.gmra.mrb[0].mxu0 %v2064
        %v3400 = vpop.f32.mrb[0].mxu0
        %v3401 = vadd.f32 0.0, %v3400
        %v3402 = vpop.f32.mrb[0].mxu0
        %v3403 = vadd.f32 0.0, %v3402
        %v3404 = vpop.f32.mrb[0].mxu0
        %v3405 = vadd.f32 0.0, %v3404
        %v3406 = vpop.f32.mrb[0].mxu0
        %v3407 = vadd.f32 0.0, %v3406
        %3408 = vmatprep.mubr.bf16.mxu0 0
        %3409 = vmatmul.mubr.bf16.gmra.mrb[0].mxu0 %v2065
        %v3410 = vpop.f32.mrb[0].mxu0
        %v3411 = vadd.f32 0.0, %v3410
        %v3412 = vpop.f32.mrb[0].mxu0
        %v3413 = vadd.f32 0.0, %v3412
        %v3414 = vpop.f32.mrb[0].mxu0
        %v3415 = vadd.f32 0.0, %v3414
        %v3416 = vpop.f32.mrb[0].mxu0
        %v3417 = vadd.f32 0.0, %v3416
        %3418 = vmatprep.mubr.bf16.mxu0 0
        %3419 = vmatmul.mubr.bf16.gmra.mrb[0].mxu0 %v2066
        %v3420 = vpop.f32.mrb[0].mxu0
        %v3421 = vadd.f32 0.0, %v3420
        %v3422 = vpop.f32.mrb[0].mxu0
        %v3423 = vadd.f32 0.0, %v3422
        %v3424 = vpop.f32.mrb[0].mxu0
        %v3425 = vadd.f32 0.0, %v3424
        %v3426 = vpop.f32.mrb[0].mxu0
        %v3427 = vadd.f32 0.0, %v3426
        %3428 = vmatprep.mubr.bf16.mxu0 0
        %3429 = vmatmul.mubr.bf16.gmra.mrb[0].mxu0 %v2067
        %v3430 = vpop.f32.mrb[0].mxu0
        %v3431 = vadd.f32 0.0, %v3430
        %v3432 = vpop.f32.mrb[0].mxu0
        %v3433 = vadd.f32 0.0, %v3432
        %v3434 = vpop.f32.mrb[0].mxu0
        %v3435 = vadd.f32 0.0, %v3434
        %v3436 = vpop.f32.mrb[0].mxu0
        %v3437 = vadd.f32 0.0, %v3436
        %3438 = vmatprep.mubr.bf16.mxu0 0
        %3439 = vmatmul.mubr.bf16.gmra.mrb[0].mxu0 %v2068
        %v3440 = vpop.f32.mrb[0].mxu0
        %v3441 = vadd.f32 0.0, %v3440
        %v3442 = vpop.f32.mrb[0].mxu0
        %v3443 = vadd.f32 0.0, %v3442
        %v3444 = vpop.f32.mrb[0].mxu0
        %v3445 = vadd.f32 0.0, %v3444
        %v3446 = vpop.f32.mrb[0].mxu0
        %v3447 = vadd.f32 0.0, %v3446
        %3448 = vmatprep.mubr.bf16.mxu0 0
        %3449 = vmatmul.mubr.bf16.gmra.mrb[0].mxu0 %v2069
        %v3450 = vpop.f32.mrb[0].mxu0
        %v3451 = vadd.f32 0.0, %v3450
        %v3452 = vpop.f32.mrb[0].mxu0
        %v3453 = vadd.f32 0.0, %v3452
        %v3454 = vpop.f32.mrb[0].mxu0
        %v3455 = vadd.f32 0.0, %v3454
        %v3456 = vpop.f32.mrb[0].mxu0
        %v3457 = vadd.f32 0.0, %v3456
        %3458 = vmatprep.mubr.bf16.mxu0 0
        %3459 = vmatmul.mubr.bf16.gmra.mrb[0].mxu0 %v2070
        %v3460 = vpop.f32.mrb[0].mxu0
        %v3461 = vadd.f32 0.0, %v3460
        %v3462 = vpop.f32.mrb[0].mxu0
        %v3463 = vadd.f32 0.0, %v3462
        %v3464 = vpop.f32.mrb[0].mxu0
        %v3465 = vadd.f32 0.0, %v3464
        %v3466 = vpop.f32.mrb[0].mxu0
        %v3467 = vadd.f32 0.0, %v3466
        %3468 = vmatprep.mubr.bf16.mxu0 0
        %3469 = vmatmul.mubr.bf16.gmra.mrb[0].mxu0 %v2071
        %v3470 = vpop.f32.mrb[0].mxu0
        %v3471 = vadd.f32 0.0, %v3470
        %v3472 = vpop.f32.mrb[0].mxu0
        %v3473 = vadd.f32 0.0, %v3472
        %v3474 = vpop.f32.mrb[0].mxu0
        %v3475 = vadd.f32 0.0, %v3474
        %v3476 = vpop.f32.mrb[0].mxu0
        %v3477 = vadd.f32 0.0, %v3476
        %3478 = vmatprep.mubr.bf16.mxu0 0
        %3479 = vmatmul.mubr.bf16.gmra.mrb[0].mxu0 %v2072
        %v3480 = vpop.f32.mrb[0].mxu0
        %v3481 = vadd.f32 0.0, %v3480
        %v3482 = vpop.f32.mrb[0].mxu0
        %v3483 = vadd.f32 0.0, %v3482
        %v3484 = vpop.f32.mrb[0].mxu0
        %v3485 = vadd.f32 0.0, %v3484
        %v3486 = vpop.f32.mrb[0].mxu0
        %v3487 = vadd.f32 0.0, %v3486
        %3488 = vmatprep.mubr.bf16.mxu0 0
        %3489 = vmatmul.mubr.bf16.gmra.mrb[0].mxu0 %v2073
        %v3490 = vpop.f32.mrb[0].mxu0
        %v3491 = vadd.f32 0.0, %v3490
        %v3492 = vpop.f32.mrb[0].mxu0
        %v3493 = vadd.f32 0.0, %v3492
        %v3494 = vpop.f32.mrb[0].mxu0
        %v3495 = vadd.f32 0.0, %v3494
        %v3496 = vpop.f32.mrb[0].mxu0
        %v3497 = vadd.f32 0.0, %v3496
        %3498 = vmatprep.mubr.bf16.mxu0 0
        %3499 = vmatmul.mubr.bf16.gmra.mrb[0].mxu0 %v2074
        %v3500 = vpop.f32.mrb[0].mxu0
        %v3501 = vadd.f32 0.0, %v3500
        %v3502 = vpop.f32.mrb[0].mxu0
        %v3503 = vadd.f32 0.0, %v3502
        %v3504 = vpop.f32.mrb[0].mxu0
        %v3505 = vadd.f32 0.0, %v3504
        %v3506 = vpop.f32.mrb[0].mxu0
        %v3507 = vadd.f32 0.0, %v3506
        %3508 = vmatprep.mubr.bf16.mxu0 0
        %3509 = vmatmul.mubr.bf16.gmra.mrb[0].mxu0 %v2075
        %v3510 = vpop.f32.mrb[0].mxu0
        %v3511 = vadd.f32 0.0, %v3510
        %v3512 = vpop.f32.mrb[0].mxu0
        %v3513 = vadd.f32 0.0, %v3512
        %v3514 = vpop.f32.mrb[0].mxu0
        %v3515 = vadd.f32 0.0, %v3514
        %v3516 = vpop.f32.mrb[0].mxu0
        %v3517 = vadd.f32 0.0, %v3516
        %3518 = vdwg.mxu0
        %3519 = vmatprep.subr.bf16.mxu0 %v2339
        %3520 = vmatpush1.bf16.msra.mxu0 %v2338
        %3521 = vmatprep.subr.bf16.mxu0 %v2347
        %3522 = vmatpush1.bf16.msra.mxu0 %v2346
        %3523 = vmatprep.subr.bf16.mxu0 %v2355
        %3524 = vmatpush1.bf16.msra.mxu0 %v2354
        %3525 = vmatprep.subr.bf16.mxu0 %v2363
        %3526 = vmatpush1.bf16.msra.mxu0 %v2362
        %3527 = vmatprep.subr.bf16.mxu0 %v2371
        %3528 = vmatpush1.bf16.msra.mxu0 %v2370
        %3529 = vmatprep.subr.bf16.mxu0 %v2379
        %3530 = vmatpush1.bf16.msra.mxu0 %v2378
        %3531 = vmatprep.subr.bf16.mxu0 %v2387
        %3532 = vmatpush1.bf16.msra.mxu0 %v2386
        %3533 = vmatprep.subr.bf16.mxu0 %v2395
        %3534 = vmatpush1.bf16.msra.mxu0 %v2394
        %3535 = vmatprep.subr.bf16.mxu0 0
        %3536 = vmatpush1.bf16.msra.mxu0 0
        %3537 = vmatprep.subr.bf16.mxu0 0
        %3538 = vmatpush1.bf16.msra.mxu0 0
        %3539 = vmatprep.subr.bf16.mxu0 0
        %3540 = vmatpush1.bf16.msra.mxu0 0
        %3541 = vmatprep.subr.bf16.mxu0 0
        %3542 = vmatpush1.bf16.msra.mxu0 0
        %3543 = vmatprep.subr.bf16.mxu0 0
        %3544 = vmatpush1.bf16.msra.mxu0 0
        %3545 = vmatprep.subr.bf16.mxu0 0
        %3546 = vmatpush1.bf16.msra.mxu0 0
        %3547 = vmatprep.subr.bf16.mxu0 0
        %3548 = vmatpush1.bf16.msra.mxu0 0
        %3549 = vmatprep.subr.bf16.mxu0 0
        %3550 = vmatpush1.bf16.msra.mxu0 0
        %3551 = vmatprep.mubr.bf16.mxu0 0
        %3552 = vmatmul.mubr.bf16.gmra.mrb[0].mxu0 %v2044
        %v3553 = vpop.f32.mrb[0].mxu0
        %v3554 = vadd.f32 0.0, %v3553
        %v3555 = vpop.f32.mrb[0].mxu0
        %v3556 = vadd.f32 0.0, %v3555
        %v3557 = vpop.f32.mrb[0].mxu0
        %v3558 = vadd.f32 0.0, %v3557
        %v3559 = vpop.f32.mrb[0].mxu0
        %v3560 = vadd.f32 0.0, %v3559
        %3561 = vmatprep.mubr.bf16.mxu0 0
        %3562 = vmatmul.mubr.bf16.gmra.mrb[0].mxu0 %v2045
        %v3563 = vpop.f32.mrb[0].mxu0
        %v3564 = vadd.f32 0.0, %v3563
        %v3565 = vpop.f32.mrb[0].mxu0
        %v3566 = vadd.f32 0.0, %v3565
        %v3567 = vpop.f32.mrb[0].mxu0
        %v3568 = vadd.f32 0.0, %v3567
        %v3569 = vpop.f32.mrb[0].mxu0
        %v3570 = vadd.f32 0.0, %v3569
        %3571 = vmatprep.mubr.bf16.mxu0 0
        %3572 = vmatmul.mubr.bf16.gmra.mrb[0].mxu0 %v2046
        %v3573 = vpop.f32.mrb[0].mxu0
        %v3574 = vadd.f32 0.0, %v3573
        %v3575 = vpop.f32.mrb[0].mxu0
        %v3576 = vadd.f32 0.0, %v3575
        %v3577 = vpop.f32.mrb[0].mxu0
        %v3578 = vadd.f32 0.0, %v3577
        %v3579 = vpop.f32.mrb[0].mxu0
        %v3580 = vadd.f32 0.0, %v3579
        %3581 = vmatprep.mubr.bf16.mxu0 0
        %3582 = vmatmul.mubr.bf16.gmra.mrb[0].mxu0 %v2047
        %v3583 = vpop.f32.mrb[0].mxu0
        %v3584 = vadd.f32 0.0, %v3583
        %v3585 = vpop.f32.mrb[0].mxu0
        %v3586 = vadd.f32 0.0, %v3585
        %v3587 = vpop.f32.mrb[0].mxu0
        %v3588 = vadd.f32 0.0, %v3587
        %v3589 = vpop.f32.mrb[0].mxu0
        %v3590 = vadd.f32 0.0, %v3589
        %3591 = vmatprep.mubr.bf16.mxu0 0
        %3592 = vmatmul.mubr.bf16.gmra.mrb[0].mxu0 %v2048
        %v3593 = vpop.f32.mrb[0].mxu0
        %v3594 = vadd.f32 0.0, %v3593
        %v3595 = vpop.f32.mrb[0].mxu0
        %v3596 = vadd.f32 0.0, %v3595
        %v3597 = vpop.f32.mrb[0].mxu0
        %v3598 = vadd.f32 0.0, %v3597
        %v3599 = vpop.f32.mrb[0].mxu0
        %v3600 = vadd.f32 0.0, %v3599
        %3601 = vmatprep.mubr.bf16.mxu0 0
        %3602 = vmatmul.mubr.bf16.gmra.mrb[0].mxu0 %v2049
        %v3603 = vpop.f32.mrb[0].mxu0
        %v3604 = vadd.f32 0.0, %v3603
        %v3605 = vpop.f32.mrb[0].mxu0
        %v3606 = vadd.f32 0.0, %v3605
        %v3607 = vpop.f32.mrb[0].mxu0
        %v3608 = vadd.f32 0.0, %v3607
        %v3609 = vpop.f32.mrb[0].mxu0
        %v3610 = vadd.f32 0.0, %v3609
        %3611 = vmatprep.mubr.bf16.mxu0 0
        %3612 = vmatmul.mubr.bf16.gmra.mrb[0].mxu0 %v2050
        %v3613 = vpop.f32.mrb[0].mxu0
        %v3614 = vadd.f32 0.0, %v3613
        %v3615 = vpop.f32.mrb[0].mxu0
        %v3616 = vadd.f32 0.0, %v3615
        %v3617 = vpop.f32.mrb[0].mxu0
        %v3618 = vadd.f32 0.0, %v3617
        %v3619 = vpop.f32.mrb[0].mxu0
        %v3620 = vadd.f32 0.0, %v3619
        %3621 = vmatprep.mubr.bf16.mxu0 0
        %3622 = vmatmul.mubr.bf16.gmra.mrb[0].mxu0 %v2051
        %v3623 = vpop.f32.mrb[0].mxu0
        %v3624 = vadd.f32 0.0, %v3623
        %v3625 = vpop.f32.mrb[0].mxu0
        %v3626 = vadd.f32 0.0, %v3625
        %v3627 = vpop.f32.mrb[0].mxu0
        %v3628 = vadd.f32 0.0, %v3627
        %v3629 = vpop.f32.mrb[0].mxu0
        %v3630 = vadd.f32 0.0, %v3629
        %3631 = vmatprep.mubr.bf16.mxu0 0
        %3632 = vmatmul.mubr.bf16.gmra.mrb[0].mxu0 %v2052
        %v3633 = vpop.f32.mrb[0].mxu0
        %v3634 = vadd.f32 0.0, %v3633
        %v3635 = vpop.f32.mrb[0].mxu0
        %v3636 = vadd.f32 0.0, %v3635
        %v3637 = vpop.f32.mrb[0].mxu0
        %v3638 = vadd.f32 0.0, %v3637
        %v3639 = vpop.f32.mrb[0].mxu0
        %v3640 = vadd.f32 0.0, %v3639
        %3641 = vmatprep.mubr.bf16.mxu0 0
        %3642 = vmatmul.mubr.bf16.gmra.mrb[0].mxu0 %v2053
        %v3643 = vpop.f32.mrb[0].mxu0
        %v3644 = vadd.f32 0.0, %v3643
        %v3645 = vpop.f32.mrb[0].mxu0
        %v3646 = vadd.f32 0.0, %v3645
        %v3647 = vpop.f32.mrb[0].mxu0
        %v3648 = vadd.f32 0.0, %v3647
        %v3649 = vpop.f32.mrb[0].mxu0
        %v3650 = vadd.f32 0.0, %v3649
        %3651 = vmatprep.mubr.bf16.mxu0 0
        %3652 = vmatmul.mubr.bf16.gmra.mrb[0].mxu0 %v2054
        %v3653 = vpop.f32.mrb[0].mxu0
        %v3654 = vadd.f32 0.0, %v3653
        %v3655 = vpop.f32.mrb[0].mxu0
        %v3656 = vadd.f32 0.0, %v3655
        %v3657 = vpop.f32.mrb[0].mxu0
        %v3658 = vadd.f32 0.0, %v3657
        %v3659 = vpop.f32.mrb[0].mxu0
        %v3660 = vadd.f32 0.0, %v3659
        %3661 = vmatprep.mubr.bf16.mxu0 0
        %3662 = vmatmul.mubr.bf16.gmra.mrb[0].mxu0 %v2055
        %v3663 = vpop.f32.mrb[0].mxu0
        %v3664 = vadd.f32 0.0, %v3663
        %v3665 = vpop.f32.mrb[0].mxu0
        %v3666 = vadd.f32 0.0, %v3665
        %v3667 = vpop.f32.mrb[0].mxu0
        %v3668 = vadd.f32 0.0, %v3667
        %v3669 = vpop.f32.mrb[0].mxu0
        %v3670 = vadd.f32 0.0, %v3669
        %3671 = vmatprep.mubr.bf16.mxu0 0
        %3672 = vmatmul.mubr.bf16.gmra.mrb[0].mxu0 %v2056
        %v3673 = vpop.f32.mrb[0].mxu0
        %v3674 = vadd.f32 0.0, %v3673
        %v3675 = vpop.f32.mrb[0].mxu0
        %v3676 = vadd.f32 0.0, %v3675
        %v3677 = vpop.f32.mrb[0].mxu0
        %v3678 = vadd.f32 0.0, %v3677
        %v3679 = vpop.f32.mrb[0].mxu0
        %v3680 = vadd.f32 0.0, %v3679
        %3681 = vmatprep.mubr.bf16.mxu0 0
        %3682 = vmatmul.mubr.bf16.gmra.mrb[0].mxu0 %v2057
        %v3683 = vpop.f32.mrb[0].mxu0
        %v3684 = vadd.f32 0.0, %v3683
        %v3685 = vpop.f32.mrb[0].mxu0
        %v3686 = vadd.f32 0.0, %v3685
        %v3687 = vpop.f32.mrb[0].mxu0
        %v3688 = vadd.f32 0.0, %v3687
        %v3689 = vpop.f32.mrb[0].mxu0
        %v3690 = vadd.f32 0.0, %v3689
        %3691 = vmatprep.mubr.bf16.mxu0 0
        %3692 = vmatmul.mubr.bf16.gmra.mrb[0].mxu0 %v2058
        %v3693 = vpop.f32.mrb[0].mxu0
        %v3694 = vadd.f32 0.0, %v3693
        %v3695 = vpop.f32.mrb[0].mxu0
        %v3696 = vadd.f32 0.0, %v3695
        %v3697 = vpop.f32.mrb[0].mxu0
        %v3698 = vadd.f32 0.0, %v3697
        %v3699 = vpop.f32.mrb[0].mxu0
        %v3700 = vadd.f32 0.0, %v3699
        %3701 = vmatprep.mubr.bf16.mxu0 0
        %3702 = vmatmul.mubr.bf16.gmra.mrb[0].mxu0 %v2059
        %v3703 = vpop.f32.mrb[0].mxu0
        %v3704 = vadd.f32 0.0, %v3703
        %v3705 = vpop.f32.mrb[0].mxu0
        %v3706 = vadd.f32 0.0, %v3705
        %v3707 = vpop.f32.mrb[0].mxu0
        %v3708 = vadd.f32 0.0, %v3707
        %v3709 = vpop.f32.mrb[0].mxu0
        %v3710 = vadd.f32 0.0, %v3709
        %3711 = vmatprep.mubr.bf16.mxu0 0
        %3712 = vmatmul.mubr.bf16.gmra.mrb[0].mxu0 %v2060
        %v3713 = vpop.f32.mrb[0].mxu0
        %v3714 = vadd.f32 0.0, %v3713
        %v3715 = vpop.f32.mrb[0].mxu0
        %v3716 = vadd.f32 0.0, %v3715
        %v3717 = vpop.f32.mrb[0].mxu0
        %v3718 = vadd.f32 0.0, %v3717
        %v3719 = vpop.f32.mrb[0].mxu0
        %v3720 = vadd.f32 0.0, %v3719
        %3721 = vmatprep.mubr.bf16.mxu0 0
        %3722 = vmatmul.mubr.bf16.gmra.mrb[0].mxu0 %v2061
        %v3723 = vpop.f32.mrb[0].mxu0
        %v3724 = vadd.f32 0.0, %v3723
        %v3725 = vpop.f32.mrb[0].mxu0
        %v3726 = vadd.f32 0.0, %v3725
        %v3727 = vpop.f32.mrb[0].mxu0
        %v3728 = vadd.f32 0.0, %v3727
        %v3729 = vpop.f32.mrb[0].mxu0
        %v3730 = vadd.f32 0.0, %v3729
        %3731 = vmatprep.mubr.bf16.mxu0 0
        %3732 = vmatmul.mubr.bf16.gmra.mrb[0].mxu0 %v2062
        %v3733 = vpop.f32.mrb[0].mxu0
        %v3734 = vadd.f32 0.0, %v3733
        %v3735 = vpop.f32.mrb[0].mxu0
        %v3736 = vadd.f32 0.0, %v3735
        %v3737 = vpop.f32.mrb[0].mxu0
        %v3738 = vadd.f32 0.0, %v3737
        %v3739 = vpop.f32.mrb[0].mxu0
        %v3740 = vadd.f32 0.0, %v3739
        %3741 = vmatprep.mubr.bf16.mxu0 0
        %3742 = vmatmul.mubr.bf16.gmra.mrb[0].mxu0 %v2063
        %v3743 = vpop.f32.mrb[0].mxu0
        %v3744 = vadd.f32 0.0, %v3743
        %v3745 = vpop.f32.mrb[0].mxu0
        %v3746 = vadd.f32 0.0, %v3745
        %v3747 = vpop.f32.mrb[0].mxu0
        %v3748 = vadd.f32 0.0, %v3747
        %v3749 = vpop.f32.mrb[0].mxu0
        %v3750 = vadd.f32 0.0, %v3749
        %3751 = vmatprep.mubr.bf16.mxu0 0
        %3752 = vmatmul.mubr.bf16.gmra.mrb[0].mxu0 %v2064
        %v3753 = vpop.f32.mrb[0].mxu0
        %v3754 = vadd.f32 0.0, %v3753
        %v3755 = vpop.f32.mrb[0].mxu0
        %v3756 = vadd.f32 0.0, %v3755
        %v3757 = vpop.f32.mrb[0].mxu0
        %v3758 = vadd.f32 0.0, %v3757
        %v3759 = vpop.f32.mrb[0].mxu0
        %v3760 = vadd.f32 0.0, %v3759
        %3761 = vmatprep.mubr.bf16.mxu0 0
        %3762 = vmatmul.mubr.bf16.gmra.mrb[0].mxu0 %v2065
        %v3763 = vpop.f32.mrb[0].mxu0
        %v3764 = vadd.f32 0.0, %v3763
        %v3765 = vpop.f32.mrb[0].mxu0
        %v3766 = vadd.f32 0.0, %v3765
        %v3767 = vpop.f32.mrb[0].mxu0
        %v3768 = vadd.f32 0.0, %v3767
        %v3769 = vpop.f32.mrb[0].mxu0
        %v3770 = vadd.f32 0.0, %v3769
        %3771 = vmatprep.mubr.bf16.mxu0 0
        %3772 = vmatmul.mubr.bf16.gmra.mrb[0].mxu0 %v2066
        %v3773 = vpop.f32.mrb[0].mxu0
        %v3774 = vadd.f32 0.0, %v3773
        %v3775 = vpop.f32.mrb[0].mxu0
        %v3776 = vadd.f32 0.0, %v3775
        %v3777 = vpop.f32.mrb[0].mxu0
        %v3778 = vadd.f32 0.0, %v3777
        %v3779 = vpop.f32.mrb[0].mxu0
        %v3780 = vadd.f32 0.0, %v3779
        %3781 = vmatprep.mubr.bf16.mxu0 0
        %3782 = vmatmul.mubr.bf16.gmra.mrb[0].mxu0 %v2067
        %v3783 = vpop.f32.mrb[0].mxu0
        %v3784 = vadd.f32 0.0, %v3783
        %v3785 = vpop.f32.mrb[0].mxu0
        %v3786 = vadd.f32 0.0, %v3785
        %v3787 = vpop.f32.mrb[0].mxu0
        %v3788 = vadd.f32 0.0, %v3787
        %v3789 = vpop.f32.mrb[0].mxu0
        %v3790 = vadd.f32 0.0, %v3789
        %3791 = vmatprep.mubr.bf16.mxu0 0
        %3792 = vmatmul.mubr.bf16.gmra.mrb[0].mxu0 %v2068
        %v3793 = vpop.f32.mrb[0].mxu0
        %v3794 = vadd.f32 0.0, %v3793
        %v3795 = vpop.f32.mrb[0].mxu0
        %v3796 = vadd.f32 0.0, %v3795
        %v3797 = vpop.f32.mrb[0].mxu0
        %v3798 = vadd.f32 0.0, %v3797
        %v3799 = vpop.f32.mrb[0].mxu0
        %v3800 = vadd.f32 0.0, %v3799
        %3801 = vmatprep.mubr.bf16.mxu0 0
        %3802 = vmatmul.mubr.bf16.gmra.mrb[0].mxu0 %v2069
        %v3803 = vpop.f32.mrb[0].mxu0
        %v3804 = vadd.f32 0.0, %v3803
        %v3805 = vpop.f32.mrb[0].mxu0
        %v3806 = vadd.f32 0.0, %v3805
        %v3807 = vpop.f32.mrb[0].mxu0
        %v3808 = vadd.f32 0.0, %v3807
        %v3809 = vpop.f32.mrb[0].mxu0
        %v3810 = vadd.f32 0.0, %v3809
        %3811 = vmatprep.mubr.bf16.mxu0 0
        %3812 = vmatmul.mubr.bf16.gmra.mrb[0].mxu0 %v2070
        %v3813 = vpop.f32.mrb[0].mxu0
        %v3814 = vadd.f32 0.0, %v3813
        %v3815 = vpop.f32.mrb[0].mxu0
        %v3816 = vadd.f32 0.0, %v3815
        %v3817 = vpop.f32.mrb[0].mxu0
        %v3818 = vadd.f32 0.0, %v3817
        %v3819 = vpop.f32.mrb[0].mxu0
        %v3820 = vadd.f32 0.0, %v3819
        %3821 = vmatprep.mubr.bf16.mxu0 0
        %3822 = vmatmul.mubr.bf16.gmra.mrb[0].mxu0 %v2071
        %v3823 = vpop.f32.mrb[0].mxu0
        %v3824 = vadd.f32 0.0, %v3823
        %v3825 = vpop.f32.mrb[0].mxu0
        %v3826 = vadd.f32 0.0, %v3825
        %v3827 = vpop.f32.mrb[0].mxu0
        %v3828 = vadd.f32 0.0, %v3827
        %v3829 = vpop.f32.mrb[0].mxu0
        %v3830 = vadd.f32 0.0, %v3829
        %3831 = vmatprep.mubr.bf16.mxu0 0
        %3832 = vmatmul.mubr.bf16.gmra.mrb[0].mxu0 %v2072
        %v3833 = vpop.f32.mrb[0].mxu0
        %v3834 = vadd.f32 0.0, %v3833
        %v3835 = vpop.f32.mrb[0].mxu0
        %v3836 = vadd.f32 0.0, %v3835
        %v3837 = vpop.f32.mrb[0].mxu0
        %v3838 = vadd.f32 0.0, %v3837
        %v3839 = vpop.f32.mrb[0].mxu0
        %v3840 = vadd.f32 0.0, %v3839
        %3841 = vmatprep.mubr.bf16.mxu0 0
        %3842 = vmatmul.mubr.bf16.gmra.mrb[0].mxu0 %v2073
        %v3843 = vpop.f32.mrb[0].mxu0
        %v3844 = vadd.f32 0.0, %v3843
        %v3845 = vpop.f32.mrb[0].mxu0
        %v3846 = vadd.f32 0.0, %v3845
        %v3847 = vpop.f32.mrb[0].mxu0
        %v3848 = vadd.f32 0.0, %v3847
        %v3849 = vpop.f32.mrb[0].mxu0
        %v3850 = vadd.f32 0.0, %v3849
        %3851 = vmatprep.mubr.bf16.mxu0 0
        %3852 = vmatmul.mubr.bf16.gmra.mrb[0].mxu0 %v2074
        %v3853 = vpop.f32.mrb[0].mxu0
        %v3854 = vadd.f32 0.0, %v3853
        %v3855 = vpop.f32.mrb[0].mxu0
        %v3856 = vadd.f32 0.0, %v3855
        %v3857 = vpop.f32.mrb[0].mxu0
        %v3858 = vadd.f32 0.0, %v3857
        %v3859 = vpop.f32.mrb[0].mxu0
        %v3860 = vadd.f32 0.0, %v3859
        %3861 = vmatprep.mubr.bf16.mxu0 0
        %3862 = vmatmul.mubr.bf16.gmra.mrb[0].mxu0 %v2075
        %v3863 = vpop.f32.mrb[0].mxu0
        %v3864 = vadd.f32 0.0, %v3863
        %v3865 = vpop.f32.mrb[0].mxu0
        %v3866 = vadd.f32 0.0, %v3865
        %v3867 = vpop.f32.mrb[0].mxu0
        %v3868 = vadd.f32 0.0, %v3867
        %v3869 = vpop.f32.mrb[0].mxu0
        %v3870 = vadd.f32 0.0, %v3869
        %3871 = vdwg.mxu0
        %p3872 = scmp.lt.s32.totalorder %s35, 1
        // Predicated region
        $region127: #{tpu_custom_call.1} parent=109 // pred_check
          %p3873 = pneg %p3872
        $region128: #{tpu_custom_call.1} parent=109 // pred_check_branch
          %3875 = sbr.rel (%p3873) target = $region130
        $region129: #{tpu_custom_call.1} parent=109 // pred_region
          %v3876 = vld [vmem:[#allocation2] sm:$0xff]
          %v3877 = vld [vmem:[#allocation2 + $0x8] sm:$0xff]
          %v3878 = vmax.f32 %v2495, %v2499
          %v3879 = vmax.f32 %v3878, %v2505
          %v3880 = vmax.f32 %v3879, %v2509
          %v3881 = vmax.f32 %v3880, %v2515
          %v3882 = vmax.f32 %v3881, %v2519
          %v3883 = vmax.f32 %v3882, %v2525
          %v3884 = vmax.f32 %v3883, %v2529
          %v3885 = vmax.f32 %v3884, %v2535
          %v3886 = vmax.f32 %v3885, %v2539
          %v3887 = vmax.f32 %v3886, %v2545
          %v3888 = vmax.f32 %v3887, %v2549
          %v3889 = vmax.f32 %v3888, %v2555
          %v3890 = vmax.f32 %v3889, %v2559
          %v3891 = vmax.f32 %v3890, %v2565
          %v3892 = vmax.f32 %v3891, %v2569
          %v3893 = vmax.f32 %v3892, %v2575
          %v3894 = vmax.f32 %v3893, %v2579
          %v3895 = vmax.f32 %v3894, %v2585
          %v3896 = vmax.f32 %v3895, %v2589
          %v3897 = vmax.f32 %v3896, %v2595
          %v3898 = vmax.f32 %v3897, %v2599
          %v3899 = vmax.f32 %v3898, %v2605
          %v3900 = vmax.f32 %v3899, %v2609
          %v3901 = vmax.f32 %v3900, %v2615
          %v3902 = vmax.f32 %v3901, %v2619
          %v3903 = vmax.f32 %v3902, %v2625
          %v3904 = vmax.f32 %v3903, %v2629
          %v3905 = vmax.f32 %v3904, %v2635
          %v3906 = vmax.f32 %v3905, %v2639
          %v3907 = vmax.f32 %v3906, %v2645
          %v3908 = vmax.f32 %v3907, %v2649
          %v3909 = vrot.slane %v3908, 4
          %v3910 = vmax.f32 %v3908, %v3909
          %v3911 = vrot.slane %v3910, 2
          %v3912 = vmax.f32 %v3910, %v3911
          %v3913 = vrot.slane %v3912, 1
          %v3914 = vmax.f32 %v3912, %v3913
          %v3915 = vmax.f32 %v2497, %v2501
          %v3916 = vmax.f32 %v3915, %v2507
          %v3917 = vmax.f32 %v3916, %v2511
          %v3918 = vmax.f32 %v3917, %v2517
          %v3919 = vmax.f32 %v3918, %v2521
          %v3920 = vmax.f32 %v3919, %v2527
          %v3921 = vmax.f32 %v3920, %v2531
          %v3922 = vmax.f32 %v3921, %v2537
          %v3923 = vmax.f32 %v3922, %v2541
          %v3924 = vmax.f32 %v3923, %v2547
          %v3925 = vmax.f32 %v3924, %v2551
          %v3926 = vmax.f32 %v3925, %v2557
          %v3927 = vmax.f32 %v3926, %v2561
          %v3928 = vmax.f32 %v3927, %v2567
          %v3929 = vmax.f32 %v3928, %v2571
          %v3930 = vmax.f32 %v3929, %v2577
          %v3931 = vmax.f32 %v3930, %v2581
          %v3932 = vmax.f32 %v3931, %v2587
          %v3933 = vmax.f32 %v3932, %v2591
          %v3934 = vmax.f32 %v3933, %v2597
          %v3935 = vmax.f32 %v3934, %v2601
          %v3936 = vmax.f32 %v3935, %v2607
          %v3937 = vmax.f32 %v3936, %v2611
          %v3938 = vmax.f32 %v3937, %v2617
          %v3939 = vmax.f32 %v3938, %v2621
          %v3940 = vmax.f32 %v3939, %v2627
          %v3941 = vmax.f32 %v3940, %v2631
          %v3942 = vmax.f32 %v3941, %v2637
          %v3943 = vmax.f32 %v3942, %v2641
          %v3944 = vmax.f32 %v3943, %v2647
          %v3945 = vmax.f32 %v3944, %v2651
          %v3946 = vrot.slane %v3945, 4
          %v3947 = vmax.f32 %v3945, %v3946
          %v3948 = vrot.slane %v3947, 2
          %v3949 = vmax.f32 %v3947, %v3948
          %v3950 = vrot.slane %v3949, 1
          %v3951 = vmax.f32 %v3949, %v3950
          %v3952 = vmax.f32 %v2848, %v2852
          %v3953 = vmax.f32 %v3952, %v2858
          %v3954 = vmax.f32 %v3953, %v2862
          %v3955 = vmax.f32 %v3954, %v2868
          %v3956 = vmax.f32 %v3955, %v2872
          %v3957 = vmax.f32 %v3956, %v2878
          %v3958 = vmax.f32 %v3957, %v2882
          %v3959 = vmax.f32 %v3958, %v2888
          %v3960 = vmax.f32 %v3959, %v2892
          %v3961 = vmax.f32 %v3960, %v2898
          %v3962 = vmax.f32 %v3961, %v2902
          %v3963 = vmax.f32 %v3962, %v2908
          %v3964 = vmax.f32 %v3963, %v2912
          %v3965 = vmax.f32 %v3964, %v2918
          %v3966 = vmax.f32 %v3965, %v2922
          %v3967 = vmax.f32 %v3966, %v2928
          %v3968 = vmax.f32 %v3967, %v2932
          %v3969 = vmax.f32 %v3968, %v2938
          %v3970 = vmax.f32 %v3969, %v2942
          %v3971 = vmax.f32 %v3970, %v2948
          %v3972 = vmax.f32 %v3971, %v2952
          %v3973 = vmax.f32 %v3972, %v2958
          %v3974 = vmax.f32 %v3973, %v2962
          %v3975 = vmax.f32 %v3974, %v2968
          %v3976 = vmax.f32 %v3975, %v2972
          %v3977 = vmax.f32 %v3976, %v2978
          %v3978 = vmax.f32 %v3977, %v2982
          %v3979 = vmax.f32 %v3978, %v2988
          %v3980 = vmax.f32 %v3979, %v2992
          %v3981 = vmax.f32 %v3980, %v2998
          %v3982 = vmax.f32 %v3981, %v3002
          %v3983 = vrot.slane %v3982, 4
          %v3984 = vmax.f32 %v3982, %v3983
          %v3985 = vrot.slane %v3984, 2
          %v3986 = vmax.f32 %v3984, %v3985
          %v3987 = vrot.slane %v3986, 1
          %v3988 = vmax.f32 %v3986, %v3987
          %v3989 = vmax.f32 %v2850, %v2854
          %v3990 = vmax.f32 %v3989, %v2860
          %v3991 = vmax.f32 %v3990, %v2864
          %v3992 = vmax.f32 %v3991, %v2870
          %v3993 = vmax.f32 %v3992, %v2874
          %v3994 = vmax.f32 %v3993, %v2880
          %v3995 = vmax.f32 %v3994, %v2884
          %v3996 = vmax.f32 %v3995, %v2890
          %v3997 = vmax.f32 %v3996, %v2894
          %v3998 = vmax.f32 %v3997, %v2900
          %v3999 = vmax.f32 %v3998, %v2904
          %v4000 = vmax.f32 %v3999, %v2910
          %v4001 = vmax.f32 %v4000, %v2914
          %v4002 = vmax.f32 %v4001, %v2920
          %v4003 = vmax.f32 %v4002, %v2924
          %v4004 = vmax.f32 %v4003, %v2930
          %v4005 = vmax.f32 %v4004, %v2934
          %v4006 = vmax.f32 %v4005, %v2940
          %v4007 = vmax.f32 %v4006, %v2944
          %v4008 = vmax.f32 %v4007, %v2950
          %v4009 = vmax.f32 %v4008, %v2954
          %v4010 = vmax.f32 %v4009, %v2960
          %v4011 = vmax.f32 %v4010, %v2964
          %v4012 = vmax.f32 %v4011, %v2970
          %v4013 = vmax.f32 %v4012, %v2974
          %v4014 = vmax.f32 %v4013, %v2980
          %v4015 = vmax.f32 %v4014, %v2984
          %v4016 = vmax.f32 %v4015, %v2990
          %v4017 = vmax.f32 %v4016, %v2994
          %v4018 = vmax.f32 %v4017, %v3000
          %v4019 = vmax.f32 %v4018, %v3004
          %v4020 = vrot.slane %v4019, 4
          %v4021 = vmax.f32 %v4019, %v4020
          %v4022 = vrot.slane %v4021, 2
          %v4023 = vmax.f32 %v4021, %v4022
          %v4024 = vrot.slane %v4023, 1
          %v4025 = vmax.f32 %v4023, %v4024
          %v4026 = vmax.f32 %v3201, %v3205
          %v4027 = vmax.f32 %v4026, %v3211
          %v4028 = vmax.f32 %v4027, %v3215
          %v4029 = vmax.f32 %v4028, %v3221
          %v4030 = vmax.f32 %v4029, %v3225
          %v4031 = vmax.f32 %v4030, %v3231
          %v4032 = vmax.f32 %v4031, %v3235
          %v4033 = vmax.f32 %v4032, %v3241
          %v4034 = vmax.f32 %v4033, %v3245
          %v4035 = vmax.f32 %v4034, %v3251
          %v4036 = vmax.f32 %v4035, %v3255
          %v4037 = vmax.f32 %v4036, %v3261
          %v4038 = vmax.f32 %v4037, %v3265
          %v4039 = vmax.f32 %v4038, %v3271
          %v4040 = vmax.f32 %v4039, %v3275
          %v4041 = vmax.f32 %v4040, %v3281
          %v4042 = vmax.f32 %v4041, %v3285
          %v4043 = vmax.f32 %v4042, %v3291
          %v4044 = vmax.f32 %v4043, %v3295
          %v4045 = vmax.f32 %v4044, %v3301
          %v4046 = vmax.f32 %v4045, %v3305
          %v4047 = vmax.f32 %v4046, %v3311
          %v4048 = vmax.f32 %v4047, %v3315
          %v4049 = vmax.f32 %v4048, %v3321
          %v4050 = vmax.f32 %v4049, %v3325
          %v4051 = vmax.f32 %v4050, %v3331
          %v4052 = vmax.f32 %v4051, %v3335
          %v4053 = vmax.f32 %v4052, %v3341
          %v4054 = vmax.f32 %v4053, %v3345
          %v4055 = vmax.f32 %v4054, %v3351
          %v4056 = vmax.f32 %v4055, %v3355
          %v4057 = vrot.slane %v4056, 4
          %v4058 = vmax.f32 %v4056, %v4057
          %v4059 = vrot.slane %v4058, 2
          %v4060 = vmax.f32 %v4058, %v4059
          %v4061 = vrot.slane %v4060, 1
          %v4062 = vmax.f32 %v4060, %v4061
          %v4063 = vmax.f32 %v3203, %v3207
          %v4064 = vmax.f32 %v4063, %v3213
          %v4065 = vmax.f32 %v4064, %v3217
          %v4066 = vmax.f32 %v4065, %v3223
          %v4067 = vmax.f32 %v4066, %v3227
          %v4068 = vmax.f32 %v4067, %v3233
          %v4069 = vmax.f32 %v4068, %v3237
          %v4070 = vmax.f32 %v4069, %v3243
          %v4071 = vmax.f32 %v4070, %v3247
          %v4072 = vmax.f32 %v4071, %v3253
          %v4073 = vmax.f32 %v4072, %v3257
          %v4074 = vmax.f32 %v4073, %v3263
          %v4075 = vmax.f32 %v4074, %v3267
          %v4076 = vmax.f32 %v4075, %v3273
          %v4077 = vmax.f32 %v4076, %v3277
          %v4078 = vmax.f32 %v4077, %v3283
          %v4079 = vmax.f32 %v4078, %v3287
          %v4080 = vmax.f32 %v4079, %v3293
          %v4081 = vmax.f32 %v4080, %v3297
          %v4082 = vmax.f32 %v4081, %v3303
          %v4083 = vmax.f32 %v4082, %v3307
          %v4084 = vmax.f32 %v4083, %v3313
          %v4085 = vmax.f32 %v4084, %v3317
          %v4086 = vmax.f32 %v4085, %v3323
          %v4087 = vmax.f32 %v4086, %v3327
          %v4088 = vmax.f32 %v4087, %v3333
          %v4089 = vmax.f32 %v4088, %v3337
          %v4090 = vmax.f32 %v4089, %v3343
          %v4091 = vmax.f32 %v4090, %v3347
          %v4092 = vmax.f32 %v4091, %v3353
          %v4093 = vmax.f32 %v4092, %v3357
          %v4094 = vrot.slane %v4093, 4
          %v4095 = vmax.f32 %v4093, %v4094
          %v4096 = vrot.slane %v4095, 2
          %v4097 = vmax.f32 %v4095, %v4096
          %v4098 = vrot.slane %v4097, 1
          %v4099 = vmax.f32 %v4097, %v4098
          %v4100 = vmax.f32 %v3554, %v3558
          %v4101 = vmax.f32 %v4100, %v3564
          %v4102 = vmax.f32 %v4101, %v3568
          %v4103 = vmax.f32 %v4102, %v3574
          %v4104 = vmax.f32 %v4103, %v3578
          %v4105 = vmax.f32 %v4104, %v3584
          %v4106 = vmax.f32 %v4105, %v3588
          %v4107 = vmax.f32 %v4106, %v3594
          %v4108 = vmax.f32 %v4107, %v3598
          %v4109 = vmax.f32 %v4108, %v3604
          %v4110 = vmax.f32 %v4109, %v3608
          %v4111 = vmax.f32 %v4110, %v3614
          %v4112 = vmax.f32 %v4111, %v3618
          %v4113 = vmax.f32 %v4112, %v3624
          %v4114 = vmax.f32 %v4113, %v3628
          %v4115 = vmax.f32 %v4114, %v3634
          %v4116 = vmax.f32 %v4115, %v3638
          %v4117 = vmax.f32 %v4116, %v3644
          %v4118 = vmax.f32 %v4117, %v3648
          %v4119 = vmax.f32 %v4118, %v3654
          %v4120 = vmax.f32 %v4119, %v3658
          %v4121 = vmax.f32 %v4120, %v3664
          %v4122 = vmax.f32 %v4121, %v3668
          %v4123 = vmax.f32 %v4122, %v3674
          %v4124 = vmax.f32 %v4123, %v3678
          %v4125 = vmax.f32 %v4124, %v3684
          %v4126 = vmax.f32 %v4125, %v3688
          %v4127 = vmax.f32 %v4126, %v3694
          %v4128 = vmax.f32 %v4127, %v3698
          %v4129 = vmax.f32 %v4128, %v3704
          %v4130 = vmax.f32 %v4129, %v3708
          %v4131 = vrot.slane %v4130, 4
          %v4132 = vmax.f32 %v4130, %v4131
          %v4133 = vrot.slane %v4132, 2
          %v4134 = vmax.f32 %v4132, %v4133
          %v4135 = vrot.slane %v4134, 1
          %v4136 = vmax.f32 %v4134, %v4135
          %v4137 = vmax.f32 %v3556, %v3560
          %v4138 = vmax.f32 %v4137, %v3566
          %v4139 = vmax.f32 %v4138, %v3570
          %v4140 = vmax.f32 %v4139, %v3576
          %v4141 = vmax.f32 %v4140, %v3580
          %v4142 = vmax.f32 %v4141, %v3586
          %v4143 = vmax.f32 %v4142, %v3590
          %v4144 = vmax.f32 %v4143, %v3596
          %v4145 = vmax.f32 %v4144, %v3600
          %v4146 = vmax.f32 %v4145, %v3606
          %v4147 = vmax.f32 %v4146, %v3610
          %v4148 = vmax.f32 %v4147, %v3616
          %v4149 = vmax.f32 %v4148, %v3620
          %v4150 = vmax.f32 %v4149, %v3626
          %v4151 = vmax.f32 %v4150, %v3630
          %v4152 = vmax.f32 %v4151, %v3636
          %v4153 = vmax.f32 %v4152, %v3640
          %v4154 = vmax.f32 %v4153, %v3646
          %v4155 = vmax.f32 %v4154, %v3650
          %v4156 = vmax.f32 %v4155, %v3656
          %v4157 = vmax.f32 %v4156, %v3660
          %v4158 = vmax.f32 %v4157, %v3666
          %v4159 = vmax.f32 %v4158, %v3670
          %v4160 = vmax.f32 %v4159, %v3676
          %v4161 = vmax.f32 %v4160, %v3680
          %v4162 = vmax.f32 %v4161, %v3686
          %v4163 = vmax.f32 %v4162, %v3690
          %v4164 = vmax.f32 %v4163, %v3696
          %v4165 = vmax.f32 %v4164, %v3700
          %v4166 = vmax.f32 %v4165, %v3706
          %v4167 = vmax.f32 %v4166, %v3710
          %v4168 = vrot.slane %v4167, 4
          %v4169 = vmax.f32 %v4167, %v4168
          %v4170 = vrot.slane %v4169, 2
          %v4171 = vmax.f32 %v4169, %v4170
          %v4172 = vrot.slane %v4171, 1
          %v4173 = vmax.f32 %v4171, %v4172
          %v4174 = vmax.f32 %v2655, %v2659
          %v4175 = vmax.f32 %v4174, %v2665
          %v4176 = vmax.f32 %v4175, %v2669
          %v4177 = vmax.f32 %v4176, %v2675
          %v4178 = vmax.f32 %v4177, %v2679
          %v4179 = vmax.f32 %v4178, %v2685
          %v4180 = vmax.f32 %v4179, %v2689
          %v4181 = vmax.f32 %v4180, %v2695
          %v4182 = vmax.f32 %v4181, %v2699
          %v4183 = vmax.f32 %v4182, %v2705
          %v4184 = vmax.f32 %v4183, %v2709
          %v4185 = vmax.f32 %v4184, %v2715
          %v4186 = vmax.f32 %v4185, %v2719
          %v4187 = vmax.f32 %v4186, %v2725
          %v4188 = vmax.f32 %v4187, %v2729
          %v4189 = vmax.f32 %v4188, %v2735
          %v4190 = vmax.f32 %v4189, %v2739
          %v4191 = vmax.f32 %v4190, %v2745
          %v4192 = vmax.f32 %v4191, %v2749
          %v4193 = vmax.f32 %v4192, %v2755
          %v4194 = vmax.f32 %v4193, %v2759
          %v4195 = vmax.f32 %v4194, %v2765
          %v4196 = vmax.f32 %v4195, %v2769
          %v4197 = vmax.f32 %v4196, %v2775
          %v4198 = vmax.f32 %v4197, %v2779
          %v4199 = vmax.f32 %v4198, %v2785
          %v4200 = vmax.f32 %v4199, %v2789
          %v4201 = vmax.f32 %v4200, %v2795
          %v4202 = vmax.f32 %v4201, %v2799
          %v4203 = vmax.f32 %v4202, %v2805
          %v4204 = vmax.f32 %v4203, %v2809
          %v4205 = vrot.slane %v4204, 4
          %v4206 = vmax.f32 %v4204, %v4205
          %v4207 = vrot.slane %v4206, 2
          %v4208 = vmax.f32 %v4206, %v4207
          %v4209 = vrot.slane %v4208, 1
          %v4210 = vmax.f32 %v4208, %v4209
          %v4211 = vmax.f32 %v2657, %v2661
          %v4212 = vmax.f32 %v4211, %v2667
          %v4213 = vmax.f32 %v4212, %v2671
          %v4214 = vmax.f32 %v4213, %v2677
          %v4215 = vmax.f32 %v4214, %v2681
          %v4216 = vmax.f32 %v4215, %v2687
          %v4217 = vmax.f32 %v4216, %v2691
          %v4218 = vmax.f32 %v4217, %v2697
          %v4219 = vmax.f32 %v4218, %v2701
          %v4220 = vmax.f32 %v4219, %v2707
          %v4221 = vmax.f32 %v4220, %v2711
          %v4222 = vmax.f32 %v4221, %v2717
          %v4223 = vmax.f32 %v4222, %v2721
          %v4224 = vmax.f32 %v4223, %v2727
          %v4225 = vmax.f32 %v4224, %v2731
          %v4226 = vmax.f32 %v4225, %v2737
          %v4227 = vmax.f32 %v4226, %v2741
          %v4228 = vmax.f32 %v4227, %v2747
          %v4229 = vmax.f32 %v4228, %v2751
          %v4230 = vmax.f32 %v4229, %v2757
          %v4231 = vmax.f32 %v4230, %v2761
          %v4232 = vmax.f32 %v4231, %v2767
          %v4233 = vmax.f32 %v4232, %v2771
          %v4234 = vmax.f32 %v4233, %v2777
          %v4235 = vmax.f32 %v4234, %v2781
          %v4236 = vmax.f32 %v4235, %v2787
          %v4237 = vmax.f32 %v4236, %v2791
          %v4238 = vmax.f32 %v4237, %v2797
          %v4239 = vmax.f32 %v4238, %v2801
          %v4240 = vmax.f32 %v4239, %v2807
          %v4241 = vmax.f32 %v4240, %v2811
          %v4242 = vrot.slane %v4241, 4
          %v4243 = vmax.f32 %v4241, %v4242
          %v4244 = vrot.slane %v4243, 2
          %v4245 = vmax.f32 %v4243, %v4244
          %v4246 = vrot.slane %v4245, 1
          %v4247 = vmax.f32 %v4245, %v4246
          %v4248 = vmax.f32 %v3008, %v3012
          %v4249 = vmax.f32 %v4248, %v3018
          %v4250 = vmax.f32 %v4249, %v3022
          %v4251 = vmax.f32 %v4250, %v3028
          %v4252 = vmax.f32 %v4251, %v3032
          %v4253 = vmax.f32 %v4252, %v3038
          %v4254 = vmax.f32 %v4253, %v3042
          %v4255 = vmax.f32 %v4254, %v3048
          %v4256 = vmax.f32 %v4255, %v3052
          %v4257 = vmax.f32 %v4256, %v3058
          %v4258 = vmax.f32 %v4257, %v3062
          %v4259 = vmax.f32 %v4258, %v3068
          %v4260 = vmax.f32 %v4259, %v3072
          %v4261 = vmax.f32 %v4260, %v3078
          %v4262 = vmax.f32 %v4261, %v3082
          %v4263 = vmax.f32 %v4262, %v3088
          %v4264 = vmax.f32 %v4263, %v3092
          %v4265 = vmax.f32 %v4264, %v3098
          %v4266 = vmax.f32 %v4265, %v3102
          %v4267 = vmax.f32 %v4266, %v3108
          %v4268 = vmax.f32 %v4267, %v3112
          %v4269 = vmax.f32 %v4268, %v3118
          %v4270 = vmax.f32 %v4269, %v3122
          %v4271 = vmax.f32 %v4270, %v3128
          %v4272 = vmax.f32 %v4271, %v3132
          %v4273 = vmax.f32 %v4272, %v3138
          %v4274 = vmax.f32 %v4273, %v3142
          %v4275 = vmax.f32 %v4274, %v3148
          %v4276 = vmax.f32 %v4275, %v3152
          %v4277 = vmax.f32 %v4276, %v3158
          %v4278 = vmax.f32 %v4277, %v3162
          %v4279 = vrot.slane %v4278, 4
          %v4280 = vmax.f32 %v4278, %v4279
          %v4281 = vrot.slane %v4280, 2
          %v4282 = vmax.f32 %v4280, %v4281
          %v4283 = vrot.slane %v4282, 1
          %v4284 = vmax.f32 %v4282, %v4283
          %v4285 = vmax.f32 %v3010, %v3014
          %v4286 = vmax.f32 %v4285, %v3020
          %v4287 = vmax.f32 %v4286, %v3024
          %v4288 = vmax.f32 %v4287, %v3030
          %v4289 = vmax.f32 %v4288, %v3034
          %v4290 = vmax.f32 %v4289, %v3040
          %v4291 = vmax.f32 %v4290, %v3044
          %v4292 = vmax.f32 %v4291, %v3050
          %v4293 = vmax.f32 %v4292, %v3054
          %v4294 = vmax.f32 %v4293, %v3060
          %v4295 = vmax.f32 %v4294, %v3064
          %v4296 = vmax.f32 %v4295, %v3070
          %v4297 = vmax.f32 %v4296, %v3074
          %v4298 = vmax.f32 %v4297, %v3080
          %v4299 = vmax.f32 %v4298, %v3084
          %v4300 = vmax.f32 %v4299, %v3090
          %v4301 = vmax.f32 %v4300, %v3094
          %v4302 = vmax.f32 %v4301, %v3100
          %v4303 = vmax.f32 %v4302, %v3104
          %v4304 = vmax.f32 %v4303, %v3110
          %v4305 = vmax.f32 %v4304, %v3114
          %v4306 = vmax.f32 %v4305, %v3120
          %v4307 = vmax.f32 %v4306, %v3124
          %v4308 = vmax.f32 %v4307, %v3130
          %v4309 = vmax.f32 %v4308, %v3134
          %v4310 = vmax.f32 %v4309, %v3140
          %v4311 = vmax.f32 %v4310, %v3144
          %v4312 = vmax.f32 %v4311, %v3150
          %v4313 = vmax.f32 %v4312, %v3154
          %v4314 = vmax.f32 %v4313, %v3160
          %v4315 = vmax.f32 %v4314, %v3164
          %v4316 = vrot.slane %v4315, 4
          %v4317 = vmax.f32 %v4315, %v4316
          %v4318 = vrot.slane %v4317, 2
          %v4319 = vmax.f32 %v4317, %v4318
          %v4320 = vrot.slane %v4319, 1
          %v4321 = vmax.f32 %v4319, %v4320
          %v4322 = vmax.f32 %v3361, %v3365
          %v4323 = vmax.f32 %v4322, %v3371
          %v4324 = vmax.f32 %v4323, %v3375
          %v4325 = vmax.f32 %v4324, %v3381
          %v4326 = vmax.f32 %v4325, %v3385
          %v4327 = vmax.f32 %v4326, %v3391
          %v4328 = vmax.f32 %v4327, %v3395
          %v4329 = vmax.f32 %v4328, %v3401
          %v4330 = vmax.f32 %v4329, %v3405
          %v4331 = vmax.f32 %v4330, %v3411
          %v4332 = vmax.f32 %v4331, %v3415
          %v4333 = vmax.f32 %v4332, %v3421
          %v4334 = vmax.f32 %v4333, %v3425
          %v4335 = vmax.f32 %v4334, %v3431
          %v4336 = vmax.f32 %v4335, %v3435
          %v4337 = vmax.f32 %v4336, %v3441
          %v4338 = vmax.f32 %v4337, %v3445
          %v4339 = vmax.f32 %v4338, %v3451
          %v4340 = vmax.f32 %v4339, %v3455
          %v4341 = vmax.f32 %v4340, %v3461
          %v4342 = vmax.f32 %v4341, %v3465
          %v4343 = vmax.f32 %v4342, %v3471
          %v4344 = vmax.f32 %v4343, %v3475
          %v4345 = vmax.f32 %v4344, %v3481
          %v4346 = vmax.f32 %v4345, %v3485
          %v4347 = vmax.f32 %v4346, %v3491
          %v4348 = vmax.f32 %v4347, %v3495
          %v4349 = vmax.f32 %v4348, %v3501
          %v4350 = vmax.f32 %v4349, %v3505
          %v4351 = vmax.f32 %v4350, %v3511
          %v4352 = vmax.f32 %v4351, %v3515
          %v4353 = vrot.slane %v4352, 4
          %v4354 = vmax.f32 %v4352, %v4353
          %v4355 = vrot.slane %v4354, 2
          %v4356 = vmax.f32 %v4354, %v4355
          %v4357 = vrot.slane %v4356, 1
          %v4358 = vmax.f32 %v4356, %v4357
          %v4359 = vmax.f32 %v3363, %v3367
          %v4360 = vmax.f32 %v4359, %v3373
          %v4361 = vmax.f32 %v4360, %v3377
          %v4362 = vmax.f32 %v4361, %v3383
          %v4363 = vmax.f32 %v4362, %v3387
          %v4364 = vmax.f32 %v4363, %v3393
          %v4365 = vmax.f32 %v4364, %v3397
          %v4366 = vmax.f32 %v4365, %v3403
          %v4367 = vmax.f32 %v4366, %v3407
          %v4368 = vmax.f32 %v4367, %v3413
          %v4369 = vmax.f32 %v4368, %v3417
          %v4370 = vmax.f32 %v4369, %v3423
          %v4371 = vmax.f32 %v4370, %v3427
          %v4372 = vmax.f32 %v4371, %v3433
          %v4373 = vmax.f32 %v4372, %v3437
          %v4374 = vmax.f32 %v4373, %v3443
          %v4375 = vmax.f32 %v4374, %v3447
          %v4376 = vmax.f32 %v4375, %v3453
          %v4377 = vmax.f32 %v4376, %v3457
          %v4378 = vmax.f32 %v4377, %v3463
          %v4379 = vmax.f32 %v4378, %v3467
          %v4380 = vmax.f32 %v4379, %v3473
          %v4381 = vmax.f32 %v4380, %v3477
          %v4382 = vmax.f32 %v4381, %v3483
          %v4383 = vmax.f32 %v4382, %v3487
          %v4384 = vmax.f32 %v4383, %v3493
          %v4385 = vmax.f32 %v4384, %v3497
          %v4386 = vmax.f32 %v4385, %v3503
          %v4387 = vmax.f32 %v4386, %v3507
          %v4388 = vmax.f32 %v4387, %v3513
          %v4389 = vmax.f32 %v4388, %v3517
          %v4390 = vrot.slane %v4389, 4
          %v4391 = vmax.f32 %v4389, %v4390
          %v4392 = vrot.slane %v4391, 2
          %v4393 = vmax.f32 %v4391, %v4392
          %v4394 = vrot.slane %v4393, 1
          %v4395 = vmax.f32 %v4393, %v4394
          %v4396 = vmax.f32 %v3714, %v3718
          %v4397 = vmax.f32 %v4396, %v3724
          %v4398 = vmax.f32 %v4397, %v3728
          %v4399 = vmax.f32 %v4398, %v3734
          %v4400 = vmax.f32 %v4399, %v3738
          %v4401 = vmax.f32 %v4400, %v3744
          %v4402 = vmax.f32 %v4401, %v3748
          %v4403 = vmax.f32 %v4402, %v3754
          %v4404 = vmax.f32 %v4403, %v3758
          %v4405 = vmax.f32 %v4404, %v3764
          %v4406 = vmax.f32 %v4405, %v3768
          %v4407 = vmax.f32 %v4406, %v3774
          %v4408 = vmax.f32 %v4407, %v3778
          %v4409 = vmax.f32 %v4408, %v3784
          %v4410 = vmax.f32 %v4409, %v3788
          %v4411 = vmax.f32 %v4410, %v3794
          %v4412 = vmax.f32 %v4411, %v3798
          %v4413 = vmax.f32 %v4412, %v3804
          %v4414 = vmax.f32 %v4413, %v3808
          %v4415 = vmax.f32 %v4414, %v3814
          %v4416 = vmax.f32 %v4415, %v3818
          %v4417 = vmax.f32 %v4416, %v3824
          %v4418 = vmax.f32 %v4417, %v3828
          %v4419 = vmax.f32 %v4418, %v3834
          %v4420 = vmax.f32 %v4419, %v3838
          %v4421 = vmax.f32 %v4420, %v3844
          %v4422 = vmax.f32 %v4421, %v3848
          %v4423 = vmax.f32 %v4422, %v3854
          %v4424 = vmax.f32 %v4423, %v3858
          %v4425 = vmax.f32 %v4424, %v3864
          %v4426 = vmax.f32 %v4425, %v3868
          %v4427 = vrot.slane %v4426, 4
          %v4428 = vmax.f32 %v4426, %v4427
          %v4429 = vrot.slane %v4428, 2
          %v4430 = vmax.f32 %v4428, %v4429
          %v4431 = vrot.slane %v4430, 1
          %v4432 = vmax.f32 %v4430, %v4431
          %v4433 = vmax.f32 %v3716, %v3720
          %v4434 = vmax.f32 %v4433, %v3726
          %v4435 = vmax.f32 %v4434, %v3730
          %v4436 = vmax.f32 %v4435, %v3736
          %v4437 = vmax.f32 %v4436, %v3740
          %v4438 = vmax.f32 %v4437, %v3746
          %v4439 = vmax.f32 %v4438, %v3750
          %v4440 = vmax.f32 %v4439, %v3756
          %v4441 = vmax.f32 %v4440, %v3760
          %v4442 = vmax.f32 %v4441, %v3766
          %v4443 = vmax.f32 %v4442, %v3770
          %v4444 = vmax.f32 %v4443, %v3776
          %v4445 = vmax.f32 %v4444, %v3780
          %v4446 = vmax.f32 %v4445, %v3786
          %v4447 = vmax.f32 %v4446, %v3790
          %v4448 = vmax.f32 %v4447, %v3796
          %v4449 = vmax.f32 %v4448, %v3800
          %v4450 = vmax.f32 %v4449, %v3806
          %v4451 = vmax.f32 %v4450, %v3810
          %v4452 = vmax.f32 %v4451, %v3816
          %v4453 = vmax.f32 %v4452, %v3820
          %v4454 = vmax.f32 %v4453, %v3826
          %v4455 = vmax.f32 %v4454, %v3830
          %v4456 = vmax.f32 %v4455, %v3836
          %v4457 = vmax.f32 %v4456, %v3840
          %v4458 = vmax.f32 %v4457, %v3846
          %v4459 = vmax.f32 %v4458, %v3850
          %v4460 = vmax.f32 %v4459, %v3856
          %v4461 = vmax.f32 %v4460, %v3860
          %v4462 = vmax.f32 %v4461, %v3866
          %v4463 = vmax.f32 %v4462, %v3870
          %v4464 = vrot.slane %v4463, 4
          %v4465 = vmax.f32 %v4463, %v4464
          %v4466 = vrot.slane %v4465, 2
          %v4467 = vmax.f32 %v4465, %v4466
          %v4468 = vrot.slane %v4467, 1
          %v4469 = vmax.f32 %v4467, %v4468
          %v4486 = vcombine.low %v3914, %v3951
          %v4487 = vcombine.low %v3988, %v4025
          %v4489 = vunpack.c.l.s4 1983009808
          %v4490 = vunpack.c.0.s8 %v4489
          %v4491 = vlaneseq
          %v4492 = vshrl.u32 %v4491, 7
          %v4493 = vsub.s32 %v4490, %v4492
          %v4494 = vrot.slane %v4486, %v4493
          %v4496 = vunpack.c.l.s4 1983009808
          %v4497 = vunpack.c.0.s8 %v4496
          %v4498 = vlaneseq
          %v4499 = vshrl.u32 %v4498, 7
          %v4500 = vsub.s32 %v4497, %v4499
          %v4501 = vrot.slane %v4487, %v4500
          %v4502 = vcombine.low %v4494, %v4501
          %v4503 = vcombine.low %v4062, %v4099
          %v4504 = vcombine.low %v4136, %v4173
          %v4506 = vunpack.c.l.s4 1983009808
          %v4507 = vunpack.c.0.s8 %v4506
          %v4508 = vlaneseq
          %v4509 = vshrl.u32 %v4508, 7
          %v4510 = vsub.s32 %v4507, %v4509
          %v4511 = vrot.slane %v4503, %v4510
          %v4513 = vunpack.c.l.s4 1983009808
          %v4514 = vunpack.c.0.s8 %v4513
          %v4515 = vlaneseq
          %v4516 = vshrl.u32 %v4515, 7
          %v4517 = vsub.s32 %v4514, %v4516
          %v4518 = vrot.slane %v4504, %v4517
          %v4519 = vcombine.low %v4511, %v4518
          %v4520 = vcombine.low %v4210, %v4247
          %v4521 = vcombine.low %v4284, %v4321
          %v4523 = vunpack.c.l.s4 1983009808
          %v4524 = vunpack.c.0.s8 %v4523
          %v4525 = vlaneseq
          %v4526 = vshrl.u32 %v4525, 7
          %v4527 = vsub.s32 %v4524, %v4526
          %v4528 = vrot.slane %v4520, %v4527
          %v4530 = vunpack.c.l.s4 1983009808
          %v4531 = vunpack.c.0.s8 %v4530
          %v4532 = vlaneseq
          %v4533 = vshrl.u32 %v4532, 7
          %v4534 = vsub.s32 %v4531, %v4533
          %v4535 = vrot.slane %v4521, %v4534
          %v4536 = vcombine.low %v4528, %v4535
          %v4537 = vcombine.low %v4358, %v4395
          %v4538 = vcombine.low %v4432, %v4469
          %v4540 = vunpack.c.l.s4 1983009808
          %v4541 = vunpack.c.0.s8 %v4540
          %v4542 = vlaneseq
          %v4543 = vshrl.u32 %v4542, 7
          %v4544 = vsub.s32 %v4541, %v4543
          %v4545 = vrot.slane %v4537, %v4544
          %v4547 = vunpack.c.l.s4 1983009808
          %v4548 = vunpack.c.0.s8 %v4547
          %v4549 = vlaneseq
          %v4550 = vshrl.u32 %v4549, 7
          %v4551 = vsub.s32 %v4548, %v4550
          %v4552 = vrot.slane %v4538, %v4551
          %v4553 = vcombine.low %v4545, %v4552
          %vm4554 = vcmask 1044484
          %v4555 = vsel %vm4554, %v4502, %v4502
          %vm4556 = vcmask 1046534
          %v4557 = vsel %vm4556, %v4502, %v4555
          %v4558 = vrot.slane %v4536, 7
          %vm4559 = vcmask 1041409
          %v4560 = vsel %vm4559, %v4558, %v4557
          %vm4561 = vcmask 1043459
          %v4562 = vsel %vm4561, %v4558, %v4560
          %vm4563 = vcmask 1045509
          %v4564 = vsel %vm4563, %v4558, %v4562
          %vm4565 = vcmask 1047559
          %v4566 = vsel %vm4565, %v4558, %v4564
          %v4567 = vsel %vm4554, %v4519, %v4519
          %v4568 = vsel %vm4556, %v4519, %v4567
          %v4569 = vrot.slane %v4553, 7
          %v4570 = vsel %vm4559, %v4569, %v4568
          %v4571 = vsel %vm4561, %v4569, %v4570
          %v4572 = vsel %vm4563, %v4569, %v4571
          %v4573 = vsel %vm4565, %v4569, %v4572
          %v4576 = vmax.f32 %v3876, %v4566
          %v4577 = vmax.f32 %v3877, %v4573
          %4578 = vst [vmem:[#allocation2] sm:$0xff] %v4576
          %4579 = vst [vmem:[#allocation2 + $0x8] sm:$0xff] %v4577
        $region130: #{tpu_custom_call.1} parent=109 // pred_fallthru
          _
        %p4580 = scmp.eq.s32.totalorder %s35, 1
        // Predicated region
        $region131: #{tpu_custom_call.1} parent=109 // pred_check
          %p4581 = pneg %p4580
        $region132: #{tpu_custom_call.1} parent=109 // pred_check_branch
          %4583 = sbr.rel (%p4581) target = $region134
        $region133: #{tpu_custom_call.1} parent=109 // pred_region
          %v4584 = vlaneseq
          %v4585 = vshrl.u32 %v4584, 7
          %v4586 = vadd.s32 %v4585, 8
          %v4587 = vadd.s32 %v4585, 16
          %v4588 = vadd.s32 %v4585, 24
          %v4589 = vadd.s32 %v4585, 32
          %v4590 = vadd.s32 %v4585, 40
          %v4591 = vadd.s32 %v4585, 48
          %v4592 = vadd.s32 %v4585, 56
          %v4593 = vadd.s32 %v4585, 64
          %v4594 = vadd.s32 %v4585, 72
          %v4595 = vadd.s32 %v4585, 80
          %v4596 = vadd.s32 %v4585, 88
          %v4597 = vadd.s32 %v4585, 96
          %v4598 = vadd.s32 %v4585, 104
          %v4599 = vadd.s32 %v4585, 112
          %v4600 = vadd.s32 %v4585, 120
          %v4601 = vadd.s32 %v4585, 128
          %v4602 = vadd.s32 %v4585, 136
          %v4603 = vadd.s32 %v4585, 144
          %v4604 = vadd.s32 %v4585, 152
          %v4605 = vadd.s32 %v4585, 160
          %v4606 = vadd.s32 %v4585, 168
          %v4607 = vadd.s32 %v4585, 176
          %v4608 = vadd.s32 %v4585, 184
          %v4609 = vadd.s32 %v4585, 192
          %v4610 = vadd.s32 %v4585, 200
          %v4611 = vadd.s32 %v4585, 208
          %v4612 = vadd.s32 %v4585, 216
          %v4613 = vadd.s32 %v4585, 224
          %v4614 = vadd.s32 %v4585, 232
          %v4615 = vadd.s32 %v4585, 240
          %v4616 = vadd.s32 %v4585, 248
          %s4617 = smul.u32 %s35, 256
          %v4618 = vstv %s4617
          %v4619 = vadd.s32 %v4618, %v4585
          %v4620 = vadd.s32 %v4618, %v4586
          %v4621 = vadd.s32 %v4618, %v4587
          %v4622 = vadd.s32 %v4618, %v4588
          %v4623 = vadd.s32 %v4618, %v4589
          %v4624 = vadd.s32 %v4618, %v4590
          %v4625 = vadd.s32 %v4618, %v4591
          %v4626 = vadd.s32 %v4618, %v4592
          %v4627 = vadd.s32 %v4618, %v4593
          %v4628 = vadd.s32 %v4618, %v4594
          %v4629 = vadd.s32 %v4618, %v4595
          %v4630 = vadd.s32 %v4618, %v4596
          %v4631 = vadd.s32 %v4618, %v4597
          %v4632 = vadd.s32 %v4618, %v4598
          %v4633 = vadd.s32 %v4618, %v4599
          %v4634 = vadd.s32 %v4618, %v4600
          %v4635 = vadd.s32 %v4618, %v4601
          %v4636 = vadd.s32 %v4618, %v4602
          %v4637 = vadd.s32 %v4618, %v4603
          %v4638 = vadd.s32 %v4618, %v4604
          %v4639 = vadd.s32 %v4618, %v4605
          %v4640 = vadd.s32 %v4618, %v4606
          %v4641 = vadd.s32 %v4618, %v4607
          %v4642 = vadd.s32 %v4618, %v4608
          %v4643 = vadd.s32 %v4618, %v4609
          %v4644 = vadd.s32 %v4618, %v4610
          %v4645 = vadd.s32 %v4618, %v4611
          %v4646 = vadd.s32 %v4618, %v4612
          %v4647 = vadd.s32 %v4618, %v4613
          %v4648 = vadd.s32 %v4618, %v4614
          %v4649 = vadd.s32 %v4618, %v4615
          %v4650 = vadd.s32 %v4618, %v4616
          %vm4651 = vcmp.lt.s32.totalorder %v4619, 300
          %vm4652 = vcmp.lt.s32.totalorder %v4620, 300
          %vm4653 = vcmp.lt.s32.totalorder %v4621, 300
          %vm4654 = vcmp.lt.s32.totalorder %v4622, 300
          %vm4655 = vcmp.lt.s32.totalorder %v4623, 300
          %vm4656 = vcmp.lt.s32.totalorder %v4624, 300
          %vm4657 = vcmp.lt.s32.totalorder %v4625, 300
          %vm4658 = vcmp.lt.s32.totalorder %v4626, 300
          %vm4659 = vcmp.lt.s32.totalorder %v4627, 300
          %vm4660 = vcmp.lt.s32.totalorder %v4628, 300
          %vm4661 = vcmp.lt.s32.totalorder %v4629, 300
          %vm4662 = vcmp.lt.s32.totalorder %v4630, 300
          %vm4663 = vcmp.lt.s32.totalorder %v4631, 300
          %vm4664 = vcmp.lt.s32.totalorder %v4632, 300
          %vm4665 = vcmp.lt.s32.totalorder %v4633, 300
          %vm4666 = vcmp.lt.s32.totalorder %v4634, 300
          %vm4667 = vcmp.lt.s32.totalorder %v4635, 300
          %vm4668 = vcmp.lt.s32.totalorder %v4636, 300
          %vm4669 = vcmp.lt.s32.totalorder %v4637, 300
          %vm4670 = vcmp.lt.s32.totalorder %v4638, 300
          %vm4671 = vcmp.lt.s32.totalorder %v4639, 300
          %vm4672 = vcmp.lt.s32.totalorder %v4640, 300
          %vm4673 = vcmp.lt.s32.totalorder %v4641, 300
          %vm4674 = vcmp.lt.s32.totalorder %v4642, 300
          %vm4675 = vcmp.lt.s32.totalorder %v4643, 300
          %vm4676 = vcmp.lt.s32.totalorder %v4644, 300
          %vm4677 = vcmp.lt.s32.totalorder %v4645, 300
          %vm4678 = vcmp.lt.s32.totalorder %v4646, 300
          %vm4679 = vcmp.lt.s32.totalorder %v4647, 300
          %vm4680 = vcmp.lt.s32.totalorder %v4648, 300
          %vm4681 = vcmp.lt.s32.totalorder %v4649, 300
          %vm4682 = vcmp.lt.s32.totalorder %v4650, 300
          %v4683 = vsel %vm4651, 1, 0
          %v4684 = vsel %vm4652, 1, 0
          %v4685 = vsel %vm4653, 1, 0
          %v4686 = vsel %vm4654, 1, 0
          %v4687 = vsel %vm4655, 1, 0
          %v4688 = vsel %vm4656, 1, 0
          %v4689 = vsel %vm4657, 1, 0
          %v4690 = vsel %vm4658, 1, 0
          %v4691 = vsel %vm4659, 1, 0
          %v4692 = vsel %vm4660, 1, 0
          %v4693 = vsel %vm4661, 1, 0
          %v4694 = vsel %vm4662, 1, 0
          %v4695 = vsel %vm4663, 1, 0
          %v4696 = vsel %vm4664, 1, 0
          %v4697 = vsel %vm4665, 1, 0
          %v4698 = vsel %vm4666, 1, 0
          %v4699 = vsel %vm4667, 1, 0
          %v4700 = vsel %vm4668, 1, 0
          %v4701 = vsel %vm4669, 1, 0
          %v4702 = vsel %vm4670, 1, 0
          %v4703 = vsel %vm4671, 1, 0
          %v4704 = vsel %vm4672, 1, 0
          %v4705 = vsel %vm4673, 1, 0
          %v4706 = vsel %vm4674, 1, 0
          %v4707 = vsel %vm4675, 1, 0
          %v4708 = vsel %vm4676, 1, 0
          %v4709 = vsel %vm4677, 1, 0
          %v4710 = vsel %vm4678, 1, 0
          %v4711 = vsel %vm4679, 1, 0
          %v4712 = vsel %vm4680, 1, 0
          %v4713 = vsel %vm4681, 1, 0
          %v4714 = vsel %vm4682, 1, 0
          %vm4715 = vcmp.eq.s32.totalorder %v4683, 1
          %vm4716 = vcmp.eq.s32.totalorder %v4684, 1
          %vm4717 = vcmp.eq.s32.totalorder %v4685, 1
          %vm4718 = vcmp.eq.s32.totalorder %v4686, 1
          %vm4719 = vcmp.eq.s32.totalorder %v4687, 1
          %vm4720 = vcmp.eq.s32.totalorder %v4688, 1
          %vm4721 = vcmp.eq.s32.totalorder %v4689, 1
          %vm4722 = vcmp.eq.s32.totalorder %v4690, 1
          %vm4723 = vcmp.eq.s32.totalorder %v4691, 1
          %vm4724 = vcmp.eq.s32.totalorder %v4692, 1
          %vm4725 = vcmp.eq.s32.totalorder %v4693, 1
          %vm4726 = vcmp.eq.s32.totalorder %v4694, 1
          %vm4727 = vcmp.eq.s32.totalorder %v4695, 1
          %vm4728 = vcmp.eq.s32.totalorder %v4696, 1
          %vm4729 = vcmp.eq.s32.totalorder %v4697, 1
          %vm4730 = vcmp.eq.s32.totalorder %v4698, 1
          %vm4731 = vcmp.eq.s32.totalorder %v4699, 1
          %vm4732 = vcmp.eq.s32.totalorder %v4700, 1
          %vm4733 = vcmp.eq.s32.totalorder %v4701, 1
          %vm4734 = vcmp.eq.s32.totalorder %v4702, 1
          %vm4735 = vcmp.eq.s32.totalorder %v4703, 1
          %vm4736 = vcmp.eq.s32.totalorder %v4704, 1
          %vm4737 = vcmp.eq.s32.totalorder %v4705, 1
          %vm4738 = vcmp.eq.s32.totalorder %v4706, 1
          %vm4739 = vcmp.eq.s32.totalorder %v4707, 1
          %vm4740 = vcmp.eq.s32.totalorder %v4708, 1
          %vm4741 = vcmp.eq.s32.totalorder %v4709, 1
          %vm4742 = vcmp.eq.s32.totalorder %v4710, 1
          %vm4743 = vcmp.eq.s32.totalorder %v4711, 1
          %vm4744 = vcmp.eq.s32.totalorder %v4712, 1
          %vm4745 = vcmp.eq.s32.totalorder %v4713, 1
          %vm4746 = vcmp.eq.s32.totalorder %v4714, 1
          %v4747 = vsel %vm4715, %v2495, -inf
          %v4748 = vsel %vm4715, %v2497, -inf
          %v4749 = vsel %vm4715, %v2848, -inf
          %v4750 = vsel %vm4715, %v2850, -inf
          %v4751 = vsel %vm4715, %v3201, -inf
          %v4752 = vsel %vm4715, %v3203, -inf
          %v4753 = vsel %vm4715, %v3554, -inf
          %v4754 = vsel %vm4715, %v3556, -inf
          %v4755 = vsel %vm4716, %v2499, -inf
          %v4756 = vsel %vm4716, %v2501, -inf
          %v4757 = vsel %vm4716, %v2852, -inf
          %v4758 = vsel %vm4716, %v2854, -inf
          %v4759 = vsel %vm4716, %v3205, -inf
          %v4760 = vsel %vm4716, %v3207, -inf
          %v4761 = vsel %vm4716, %v3558, -inf
          %v4762 = vsel %vm4716, %v3560, -inf
          %v4763 = vsel %vm4717, %v2505, -inf
          %v4764 = vsel %vm4717, %v2507, -inf
          %v4765 = vsel %vm4717, %v2858, -inf
          %v4766 = vsel %vm4717, %v2860, -inf
          %v4767 = vsel %vm4717, %v3211, -inf
          %v4768 = vsel %vm4717, %v3213, -inf
          %v4769 = vsel %vm4717, %v3564, -inf
          %v4770 = vsel %vm4717, %v3566, -inf
          %v4771 = vsel %vm4718, %v2509, -inf
          %v4772 = vsel %vm4718, %v2511, -inf
          %v4773 = vsel %vm4718, %v2862, -inf
          %v4774 = vsel %vm4718, %v2864, -inf
          %v4775 = vsel %vm4718, %v3215, -inf
          %v4776 = vsel %vm4718, %v3217, -inf
          %v4777 = vsel %vm4718, %v3568, -inf
          %v4778 = vsel %vm4718, %v3570, -inf
          %v4779 = vsel %vm4719, %v2515, -inf
          %v4780 = vsel %vm4719, %v2517, -inf
          %v4781 = vsel %vm4719, %v2868, -inf
          %v4782 = vsel %vm4719, %v2870, -inf
          %v4783 = vsel %vm4719, %v3221, -inf
          %v4784 = vsel %vm4719, %v3223, -inf
          %v4785 = vsel %vm4719, %v3574, -inf
          %v4786 = vsel %vm4719, %v3576, -inf
          %v4787 = vsel %vm4720, %v2519, -inf
          %v4788 = vsel %vm4720, %v2521, -inf
          %v4789 = vsel %vm4720, %v2872, -inf
          %v4790 = vsel %vm4720, %v2874, -inf
          %v4791 = vsel %vm4720, %v3225, -inf
          %v4792 = vsel %vm4720, %v3227, -inf
          %v4793 = vsel %vm4720, %v3578, -inf
          %v4794 = vsel %vm4720, %v3580, -inf
          %v4795 = vsel %vm4721, %v2525, -inf
          %v4796 = vsel %vm4721, %v2527, -inf
          %v4797 = vsel %vm4721, %v2878, -inf
          %v4798 = vsel %vm4721, %v2880, -inf
          %v4799 = vsel %vm4721, %v3231, -inf
          %v4800 = vsel %vm4721, %v3233, -inf
          %v4801 = vsel %vm4721, %v3584, -inf
          %v4802 = vsel %vm4721, %v3586, -inf
          %v4803 = vsel %vm4722, %v2529, -inf
          %v4804 = vsel %vm4722, %v2531, -inf
          %v4805 = vsel %vm4722, %v2882, -inf
          %v4806 = vsel %vm4722, %v2884, -inf
          %v4807 = vsel %vm4722, %v3235, -inf
          %v4808 = vsel %vm4722, %v3237, -inf
          %v4809 = vsel %vm4722, %v3588, -inf
          %v4810 = vsel %vm4722, %v3590, -inf
          %v4811 = vsel %vm4723, %v2535, -inf
          %v4812 = vsel %vm4723, %v2537, -inf
          %v4813 = vsel %vm4723, %v2888, -inf
          %v4814 = vsel %vm4723, %v2890, -inf
          %v4815 = vsel %vm4723, %v3241, -inf
          %v4816 = vsel %vm4723, %v3243, -inf
          %v4817 = vsel %vm4723, %v3594, -inf
          %v4818 = vsel %vm4723, %v3596, -inf
          %v4819 = vsel %vm4724, %v2539, -inf
          %v4820 = vsel %vm4724, %v2541, -inf
          %v4821 = vsel %vm4724, %v2892, -inf
          %v4822 = vsel %vm4724, %v2894, -inf
          %v4823 = vsel %vm4724, %v3245, -inf
          %v4824 = vsel %vm4724, %v3247, -inf
          %v4825 = vsel %vm4724, %v3598, -inf
          %v4826 = vsel %vm4724, %v3600, -inf
          %v4827 = vsel %vm4725, %v2545, -inf
          %v4828 = vsel %vm4725, %v2547, -inf
          %v4829 = vsel %vm4725, %v2898, -inf
          %v4830 = vsel %vm4725, %v2900, -inf
          %v4831 = vsel %vm4725, %v3251, -inf
          %v4832 = vsel %vm4725, %v3253, -inf
          %v4833 = vsel %vm4725, %v3604, -inf
          %v4834 = vsel %vm4725, %v3606, -inf
          %v4835 = vsel %vm4726, %v2549, -inf
          %v4836 = vsel %vm4726, %v2551, -inf
          %v4837 = vsel %vm4726, %v2902, -inf
          %v4838 = vsel %vm4726, %v2904, -inf
          %v4839 = vsel %vm4726, %v3255, -inf
          %v4840 = vsel %vm4726, %v3257, -inf
          %v4841 = vsel %vm4726, %v3608, -inf
          %v4842 = vsel %vm4726, %v3610, -inf
          %v4843 = vsel %vm4727, %v2555, -inf
          %v4844 = vsel %vm4727, %v2557, -inf
          %v4845 = vsel %vm4727, %v2908, -inf
          %v4846 = vsel %vm4727, %v2910, -inf
          %v4847 = vsel %vm4727, %v3261, -inf
          %v4848 = vsel %vm4727, %v3263, -inf
          %v4849 = vsel %vm4727, %v3614, -inf
          %v4850 = vsel %vm4727, %v3616, -inf
          %v4851 = vsel %vm4728, %v2559, -inf
          %v4852 = vsel %vm4728, %v2561, -inf
          %v4853 = vsel %vm4728, %v2912, -inf
          %v4854 = vsel %vm4728, %v2914, -inf
          %v4855 = vsel %vm4728, %v3265, -inf
          %v4856 = vsel %vm4728, %v3267, -inf
          %v4857 = vsel %vm4728, %v3618, -inf
          %v4858 = vsel %vm4728, %v3620, -inf
          %v4859 = vsel %vm4729, %v2565, -inf
          %v4860 = vsel %vm4729, %v2567, -inf
          %v4861 = vsel %vm4729, %v2918, -inf
          %v4862 = vsel %vm4729, %v2920, -inf
          %v4863 = vsel %vm4729, %v3271, -inf
          %v4864 = vsel %vm4729, %v3273, -inf
          %v4865 = vsel %vm4729, %v3624, -inf
          %v4866 = vsel %vm4729, %v3626, -inf
          %v4867 = vsel %vm4730, %v2569, -inf
          %v4868 = vsel %vm4730, %v2571, -inf
          %v4869 = vsel %vm4730, %v2922, -inf
          %v4870 = vsel %vm4730, %v2924, -inf
          %v4871 = vsel %vm4730, %v3275, -inf
          %v4872 = vsel %vm4730, %v3277, -inf
          %v4873 = vsel %vm4730, %v3628, -inf
          %v4874 = vsel %vm4730, %v3630, -inf
          %v4875 = vsel %vm4731, %v2575, -inf
          %v4876 = vsel %vm4731, %v2577, -inf
          %v4877 = vsel %vm4731, %v2928, -inf
          %v4878 = vsel %vm4731, %v2930, -inf
          %v4879 = vsel %vm4731, %v3281, -inf
          %v4880 = vsel %vm4731, %v3283, -inf
          %v4881 = vsel %vm4731, %v3634, -inf
          %v4882 = vsel %vm4731, %v3636, -inf
          %v4883 = vsel %vm4732, %v2579, -inf
          %v4884 = vsel %vm4732, %v2581, -inf
          %v4885 = vsel %vm4732, %v2932, -inf
          %v4886 = vsel %vm4732, %v2934, -inf
          %v4887 = vsel %vm4732, %v3285, -inf
          %v4888 = vsel %vm4732, %v3287, -inf
          %v4889 = vsel %vm4732, %v3638, -inf
          %v4890 = vsel %vm4732, %v3640, -inf
          %v4891 = vsel %vm4733, %v2585, -inf
          %v4892 = vsel %vm4733, %v2587, -inf
          %v4893 = vsel %vm4733, %v2938, -inf
          %v4894 = vsel %vm4733, %v2940, -inf
          %v4895 = vsel %vm4733, %v3291, -inf
          %v4896 = vsel %vm4733, %v3293, -inf
          %v4897 = vsel %vm4733, %v3644, -inf
          %v4898 = vsel %vm4733, %v3646, -inf
          %v4899 = vsel %vm4734, %v2589, -inf
          %v4900 = vsel %vm4734, %v2591, -inf
          %v4901 = vsel %vm4734, %v2942, -inf
          %v4902 = vsel %vm4734, %v2944, -inf
          %v4903 = vsel %vm4734, %v3295, -inf
          %v4904 = vsel %vm4734, %v3297, -inf
          %v4905 = vsel %vm4734, %v3648, -inf
          %v4906 = vsel %vm4734, %v3650, -inf
          %v4907 = vsel %vm4735, %v2595, -inf
          %v4908 = vsel %vm4735, %v2597, -inf
          %v4909 = vsel %vm4735, %v2948, -inf
          %v4910 = vsel %vm4735, %v2950, -inf
          %v4911 = vsel %vm4735, %v3301, -inf
          %v4912 = vsel %vm4735, %v3303, -inf
          %v4913 = vsel %vm4735, %v3654, -inf
          %v4914 = vsel %vm4735, %v3656, -inf
          %v4915 = vsel %vm4736, %v2599, -inf
          %v4916 = vsel %vm4736, %v2601, -inf
          %v4917 = vsel %vm4736, %v2952, -inf
          %v4918 = vsel %vm4736, %v2954, -inf
          %v4919 = vsel %vm4736, %v3305, -inf
          %v4920 = vsel %vm4736, %v3307, -inf
          %v4921 = vsel %vm4736, %v3658, -inf
          %v4922 = vsel %vm4736, %v3660, -inf
          %v4923 = vsel %vm4737, %v2605, -inf
          %v4924 = vsel %vm4737, %v2607, -inf
          %v4925 = vsel %vm4737, %v2958, -inf
          %v4926 = vsel %vm4737, %v2960, -inf
          %v4927 = vsel %vm4737, %v3311, -inf
          %v4928 = vsel %vm4737, %v3313, -inf
          %v4929 = vsel %vm4737, %v3664, -inf
          %v4930 = vsel %vm4737, %v3666, -inf
          %v4931 = vsel %vm4738, %v2609, -inf
          %v4932 = vsel %vm4738, %v2611, -inf
          %v4933 = vsel %vm4738, %v2962, -inf
          %v4934 = vsel %vm4738, %v2964, -inf
          %v4935 = vsel %vm4738, %v3315, -inf
          %v4936 = vsel %vm4738, %v3317, -inf
          %v4937 = vsel %vm4738, %v3668, -inf
          %v4938 = vsel %vm4738, %v3670, -inf
          %v4939 = vsel %vm4739, %v2615, -inf
          %v4940 = vsel %vm4739, %v2617, -inf
          %v4941 = vsel %vm4739, %v2968, -inf
          %v4942 = vsel %vm4739, %v2970, -inf
          %v4943 = vsel %vm4739, %v3321, -inf
          %v4944 = vsel %vm4739, %v3323, -inf
          %v4945 = vsel %vm4739, %v3674, -inf
          %v4946 = vsel %vm4739, %v3676, -inf
          %v4947 = vsel %vm4740, %v2619, -inf
          %v4948 = vsel %vm4740, %v2621, -inf
          %v4949 = vsel %vm4740, %v2972, -inf
          %v4950 = vsel %vm4740, %v2974, -inf
          %v4951 = vsel %vm4740, %v3325, -inf
          %v4952 = vsel %vm4740, %v3327, -inf
          %v4953 = vsel %vm4740, %v3678, -inf
          %v4954 = vsel %vm4740, %v3680, -inf
          %v4955 = vsel %vm4741, %v2625, -inf
          %v4956 = vsel %vm4741, %v2627, -inf
          %v4957 = vsel %vm4741, %v2978, -inf
          %v4958 = vsel %vm4741, %v2980, -inf
          %v4959 = vsel %vm4741, %v3331, -inf
          %v4960 = vsel %vm4741, %v3333, -inf
          %v4961 = vsel %vm4741, %v3684, -inf
          %v4962 = vsel %vm4741, %v3686, -inf
          %v4963 = vsel %vm4742, %v2629, -inf
          %v4964 = vsel %vm4742, %v2631, -inf
          %v4965 = vsel %vm4742, %v2982, -inf
          %v4966 = vsel %vm4742, %v2984, -inf
          %v4967 = vsel %vm4742, %v3335, -inf
          %v4968 = vsel %vm4742, %v3337, -inf
          %v4969 = vsel %vm4742, %v3688, -inf
          %v4970 = vsel %vm4742, %v3690, -inf
          %v4971 = vsel %vm4743, %v2635, -inf
          %v4972 = vsel %vm4743, %v2637, -inf
          %v4973 = vsel %vm4743, %v2988, -inf
          %v4974 = vsel %vm4743, %v2990, -inf
          %v4975 = vsel %vm4743, %v3341, -inf
          %v4976 = vsel %vm4743, %v3343, -inf
          %v4977 = vsel %vm4743, %v3694, -inf
          %v4978 = vsel %vm4743, %v3696, -inf
          %v4979 = vsel %vm4744, %v2639, -inf
          %v4980 = vsel %vm4744, %v2641, -inf
          %v4981 = vsel %vm4744, %v2992, -inf
          %v4982 = vsel %vm4744, %v2994, -inf
          %v4983 = vsel %vm4744, %v3345, -inf
          %v4984 = vsel %vm4744, %v3347, -inf
          %v4985 = vsel %vm4744, %v3698, -inf
          %v4986 = vsel %vm4744, %v3700, -inf
          %v4987 = vsel %vm4745, %v2645, -inf
          %v4988 = vsel %vm4745, %v2647, -inf
          %v4989 = vsel %vm4745, %v2998, -inf
          %v4990 = vsel %vm4745, %v3000, -inf
          %v4991 = vsel %vm4745, %v3351, -inf
          %v4992 = vsel %vm4745, %v3353, -inf
          %v4993 = vsel %vm4745, %v3704, -inf
          %v4994 = vsel %vm4745, %v3706, -inf
          %v4995 = vsel %vm4746, %v2649, -inf
          %v4996 = vsel %vm4746, %v2651, -inf
          %v4997 = vsel %vm4746, %v3002, -inf
          %v4998 = vsel %vm4746, %v3004, -inf
          %v4999 = vsel %vm4746, %v3355, -inf
          %v5000 = vsel %vm4746, %v3357, -inf
          %v5001 = vsel %vm4746, %v3708, -inf
          %v5002 = vsel %vm4746, %v3710, -inf
          %v5003 = vsel %vm4715, %v2655, -inf
          %v5004 = vsel %vm4715, %v2657, -inf
          %v5005 = vsel %vm4715, %v3008, -inf
          %v5006 = vsel %vm4715, %v3010, -inf
          %v5007 = vsel %vm4715, %v3361, -inf
          %v5008 = vsel %vm4715, %v3363, -inf
          %v5009 = vsel %vm4715, %v3714, -inf
          %v5010 = vsel %vm4715, %v3716, -inf
          %v5011 = vsel %vm4716, %v2659, -inf
          %v5012 = vsel %vm4716, %v2661, -inf
          %v5013 = vsel %vm4716, %v3012, -inf
          %v5014 = vsel %vm4716, %v3014, -inf
          %v5015 = vsel %vm4716, %v3365, -inf
          %v5016 = vsel %vm4716, %v3367, -inf
          %v5017 = vsel %vm4716, %v3718, -inf
          %v5018 = vsel %vm4716, %v3720, -inf
          %v5019 = vsel %vm4717, %v2665, -inf
          %v5020 = vsel %vm4717, %v2667, -inf
          %v5021 = vsel %vm4717, %v3018, -inf
          %v5022 = vsel %vm4717, %v3020, -inf
          %v5023 = vsel %vm4717, %v3371, -inf
          %v5024 = vsel %vm4717, %v3373, -inf
          %v5025 = vsel %vm4717, %v3724, -inf
          %v5026 = vsel %vm4717, %v3726, -inf
          %v5027 = vsel %vm4718, %v2669, -inf
          %v5028 = vsel %vm4718, %v2671, -inf
          %v5029 = vsel %vm4718, %v3022, -inf
          %v5030 = vsel %vm4718, %v3024, -inf
          %v5031 = vsel %vm4718, %v3375, -inf
          %v5032 = vsel %vm4718, %v3377, -inf
          %v5033 = vsel %vm4718, %v3728, -inf
          %v5034 = vsel %vm4718, %v3730, -inf
          %v5035 = vsel %vm4719, %v2675, -inf
          %v5036 = vsel %vm4719, %v2677, -inf
          %v5037 = vsel %vm4719, %v3028, -inf
          %v5038 = vsel %vm4719, %v3030, -inf
          %v5039 = vsel %vm4719, %v3381, -inf
          %v5040 = vsel %vm4719, %v3383, -inf
          %v5041 = vsel %vm4719, %v3734, -inf
          %v5042 = vsel %vm4719, %v3736, -inf
          %v5043 = vsel %vm4720, %v2679, -inf
          %v5044 = vsel %vm4720, %v2681, -inf
          %v5045 = vsel %vm4720, %v3032, -inf
          %v5046 = vsel %vm4720, %v3034, -inf
          %v5047 = vsel %vm4720, %v3385, -inf
          %v5048 = vsel %vm4720, %v3387, -inf
          %v5049 = vsel %vm4720, %v3738, -inf
          %v5050 = vsel %vm4720, %v3740, -inf
          %v5051 = vsel %vm4721, %v2685, -inf
          %v5052 = vsel %vm4721, %v2687, -inf
          %v5053 = vsel %vm4721, %v3038, -inf
          %v5054 = vsel %vm4721, %v3040, -inf
          %v5055 = vsel %vm4721, %v3391, -inf
          %v5056 = vsel %vm4721, %v3393, -inf
          %v5057 = vsel %vm4721, %v3744, -inf
          %v5058 = vsel %vm4721, %v3746, -inf
          %v5059 = vsel %vm4722, %v2689, -inf
          %v5060 = vsel %vm4722, %v2691, -inf
          %v5061 = vsel %vm4722, %v3042, -inf
          %v5062 = vsel %vm4722, %v3044, -inf
          %v5063 = vsel %vm4722, %v3395, -inf
          %v5064 = vsel %vm4722, %v3397, -inf
          %v5065 = vsel %vm4722, %v3748, -inf
          %v5066 = vsel %vm4722, %v3750, -inf
          %v5067 = vsel %vm4723, %v2695, -inf
          %v5068 = vsel %vm4723, %v2697, -inf
          %v5069 = vsel %vm4723, %v3048, -inf
          %v5070 = vsel %vm4723, %v3050, -inf
          %v5071 = vsel %vm4723, %v3401, -inf
          %v5072 = vsel %vm4723, %v3403, -inf
          %v5073 = vsel %vm4723, %v3754, -inf
          %v5074 = vsel %vm4723, %v3756, -inf
          %v5075 = vsel %vm4724, %v2699, -inf
          %v5076 = vsel %vm4724, %v2701, -inf
          %v5077 = vsel %vm4724, %v3052, -inf
          %v5078 = vsel %vm4724, %v3054, -inf
          %v5079 = vsel %vm4724, %v3405, -inf
          %v5080 = vsel %vm4724, %v3407, -inf
          %v5081 = vsel %vm4724, %v3758, -inf
          %v5082 = vsel %vm4724, %v3760, -inf
          %v5083 = vsel %vm4725, %v2705, -inf
          %v5084 = vsel %vm4725, %v2707, -inf
          %v5085 = vsel %vm4725, %v3058, -inf
          %v5086 = vsel %vm4725, %v3060, -inf
          %v5087 = vsel %vm4725, %v3411, -inf
          %v5088 = vsel %vm4725, %v3413, -inf
          %v5089 = vsel %vm4725, %v3764, -inf
          %v5090 = vsel %vm4725, %v3766, -inf
          %v5091 = vsel %vm4726, %v2709, -inf
          %v5092 = vsel %vm4726, %v2711, -inf
          %v5093 = vsel %vm4726, %v3062, -inf
          %v5094 = vsel %vm4726, %v3064, -inf
          %v5095 = vsel %vm4726, %v3415, -inf
          %v5096 = vsel %vm4726, %v3417, -inf
          %v5097 = vsel %vm4726, %v3768, -inf
          %v5098 = vsel %vm4726, %v3770, -inf
          %v5099 = vsel %vm4727, %v2715, -inf
          %v5100 = vsel %vm4727, %v2717, -inf
          %v5101 = vsel %vm4727, %v3068, -inf
          %v5102 = vsel %vm4727, %v3070, -inf
          %v5103 = vsel %vm4727, %v3421, -inf
          %v5104 = vsel %vm4727, %v3423, -inf
          %v5105 = vsel %vm4727, %v3774, -inf
          %v5106 = vsel %vm4727, %v3776, -inf
          %v5107 = vsel %vm4728, %v2719, -inf
          %v5108 = vsel %vm4728, %v2721, -inf
          %v5109 = vsel %vm4728, %v3072, -inf
          %v5110 = vsel %vm4728, %v3074, -inf
          %v5111 = vsel %vm4728, %v3425, -inf
          %v5112 = vsel %vm4728, %v3427, -inf
          %v5113 = vsel %vm4728, %v3778, -inf
          %v5114 = vsel %vm4728, %v3780, -inf
          %v5115 = vsel %vm4729, %v2725, -inf
          %v5116 = vsel %vm4729, %v2727, -inf
          %v5117 = vsel %vm4729, %v3078, -inf
          %v5118 = vsel %vm4729, %v3080, -inf
          %v5119 = vsel %vm4729, %v3431, -inf
          %v5120 = vsel %vm4729, %v3433, -inf
          %v5121 = vsel %vm4729, %v3784, -inf
          %v5122 = vsel %vm4729, %v3786, -inf
          %v5123 = vsel %vm4730, %v2729, -inf
          %v5124 = vsel %vm4730, %v2731, -inf
          %v5125 = vsel %vm4730, %v3082, -inf
          %v5126 = vsel %vm4730, %v3084, -inf
          %v5127 = vsel %vm4730, %v3435, -inf
          %v5128 = vsel %vm4730, %v3437, -inf
          %v5129 = vsel %vm4730, %v3788, -inf
          %v5130 = vsel %vm4730, %v3790, -inf
          %v5131 = vsel %vm4731, %v2735, -inf
          %v5132 = vsel %vm4731, %v2737, -inf
          %v5133 = vsel %vm4731, %v3088, -inf
          %v5134 = vsel %vm4731, %v3090, -inf
          %v5135 = vsel %vm4731, %v3441, -inf
          %v5136 = vsel %vm4731, %v3443, -inf
          %v5137 = vsel %vm4731, %v3794, -inf
          %v5138 = vsel %vm4731, %v3796, -inf
          %v5139 = vsel %vm4732, %v2739, -inf
          %v5140 = vsel %vm4732, %v2741, -inf
          %v5141 = vsel %vm4732, %v3092, -inf
          %v5142 = vsel %vm4732, %v3094, -inf
          %v5143 = vsel %vm4732, %v3445, -inf
          %v5144 = vsel %vm4732, %v3447, -inf
          %v5145 = vsel %vm4732, %v3798, -inf
          %v5146 = vsel %vm4732, %v3800, -inf
          %v5147 = vsel %vm4733, %v2745, -inf
          %v5148 = vsel %vm4733, %v2747, -inf
          %v5149 = vsel %vm4733, %v3098, -inf
          %v5150 = vsel %vm4733, %v3100, -inf
          %v5151 = vsel %vm4733, %v3451, -inf
          %v5152 = vsel %vm4733, %v3453, -inf
          %v5153 = vsel %vm4733, %v3804, -inf
          %v5154 = vsel %vm4733, %v3806, -inf
          %v5155 = vsel %vm4734, %v2749, -inf
          %v5156 = vsel %vm4734, %v2751, -inf
          %v5157 = vsel %vm4734, %v3102, -inf
          %v5158 = vsel %vm4734, %v3104, -inf
          %v5159 = vsel %vm4734, %v3455, -inf
          %v5160 = vsel %vm4734, %v3457, -inf
          %v5161 = vsel %vm4734, %v3808, -inf
          %v5162 = vsel %vm4734, %v3810, -inf
          %v5163 = vsel %vm4735, %v2755, -inf
          %v5164 = vsel %vm4735, %v2757, -inf
          %v5165 = vsel %vm4735, %v3108, -inf
          %v5166 = vsel %vm4735, %v3110, -inf
          %v5167 = vsel %vm4735, %v3461, -inf
          %v5168 = vsel %vm4735, %v3463, -inf
          %v5169 = vsel %vm4735, %v3814, -inf
          %v5170 = vsel %vm4735, %v3816, -inf
          %v5171 = vsel %vm4736, %v2759, -inf
          %v5172 = vsel %vm4736, %v2761, -inf
          %v5173 = vsel %vm4736, %v3112, -inf
          %v5174 = vsel %vm4736, %v3114, -inf
          %v5175 = vsel %vm4736, %v3465, -inf
          %v5176 = vsel %vm4736, %v3467, -inf
          %v5177 = vsel %vm4736, %v3818, -inf
          %v5178 = vsel %vm4736, %v3820, -inf
          %v5179 = vsel %vm4737, %v2765, -inf
          %v5180 = vsel %vm4737, %v2767, -inf
          %v5181 = vsel %vm4737, %v3118, -inf
          %v5182 = vsel %vm4737, %v3120, -inf
          %v5183 = vsel %vm4737, %v3471, -inf
          %v5184 = vsel %vm4737, %v3473, -inf
          %v5185 = vsel %vm4737, %v3824, -inf
          %v5186 = vsel %vm4737, %v3826, -inf
          %v5187 = vsel %vm4738, %v2769, -inf
          %v5188 = vsel %vm4738, %v2771, -inf
          %v5189 = vsel %vm4738, %v3122, -inf
          %v5190 = vsel %vm4738, %v3124, -inf
          %v5191 = vsel %vm4738, %v3475, -inf
          %v5192 = vsel %vm4738, %v3477, -inf
          %v5193 = vsel %vm4738, %v3828, -inf
          %v5194 = vsel %vm4738, %v3830, -inf
          %v5195 = vsel %vm4739, %v2775, -inf
          %v5196 = vsel %vm4739, %v2777, -inf
          %v5197 = vsel %vm4739, %v3128, -inf
          %v5198 = vsel %vm4739, %v3130, -inf
          %v5199 = vsel %vm4739, %v3481, -inf
          %v5200 = vsel %vm4739, %v3483, -inf
          %v5201 = vsel %vm4739, %v3834, -inf
          %v5202 = vsel %vm4739, %v3836, -inf
          %v5203 = vsel %vm4740, %v2779, -inf
          %v5204 = vsel %vm4740, %v2781, -inf
          %v5205 = vsel %vm4740, %v3132, -inf
          %v5206 = vsel %vm4740, %v3134, -inf
          %v5207 = vsel %vm4740, %v3485, -inf
          %v5208 = vsel %vm4740, %v3487, -inf
          %v5209 = vsel %vm4740, %v3838, -inf
          %v5210 = vsel %vm4740, %v3840, -inf
          %v5211 = vsel %vm4741, %v2785, -inf
          %v5212 = vsel %vm4741, %v2787, -inf
          %v5213 = vsel %vm4741, %v3138, -inf
          %v5214 = vsel %vm4741, %v3140, -inf
          %v5215 = vsel %vm4741, %v3491, -inf
          %v5216 = vsel %vm4741, %v3493, -inf
          %v5217 = vsel %vm4741, %v3844, -inf
          %v5218 = vsel %vm4741, %v3846, -inf
          %v5219 = vsel %vm4742, %v2789, -inf
          %v5220 = vsel %vm4742, %v2791, -inf
          %v5221 = vsel %vm4742, %v3142, -inf
          %v5222 = vsel %vm4742, %v3144, -inf
          %v5223 = vsel %vm4742, %v3495, -inf
          %v5224 = vsel %vm4742, %v3497, -inf
          %v5225 = vsel %vm4742, %v3848, -inf
          %v5226 = vsel %vm4742, %v3850, -inf
          %v5227 = vsel %vm4743, %v2795, -inf
          %v5228 = vsel %vm4743, %v2797, -inf
          %v5229 = vsel %vm4743, %v3148, -inf
          %v5230 = vsel %vm4743, %v3150, -inf
          %v5231 = vsel %vm4743, %v3501, -inf
          %v5232 = vsel %vm4743, %v3503, -inf
          %v5233 = vsel %vm4743, %v3854, -inf
          %v5234 = vsel %vm4743, %v3856, -inf
          %v5235 = vsel %vm4744, %v2799, -inf
          %v5236 = vsel %vm4744, %v2801, -inf
          %v5237 = vsel %vm4744, %v3152, -inf
          %v5238 = vsel %vm4744, %v3154, -inf
          %v5239 = vsel %vm4744, %v3505, -inf
          %v5240 = vsel %vm4744, %v3507, -inf
          %v5241 = vsel %vm4744, %v3858, -inf
          %v5242 = vsel %vm4744, %v3860, -inf
          %v5243 = vsel %vm4745, %v2805, -inf
          %v5244 = vsel %vm4745, %v2807, -inf
          %v5245 = vsel %vm4745, %v3158, -inf
          %v5246 = vsel %vm4745, %v3160, -inf
          %v5247 = vsel %vm4745, %v3511, -inf
          %v5248 = vsel %vm4745, %v3513, -inf
          %v5249 = vsel %vm4745, %v3864, -inf
          %v5250 = vsel %vm4745, %v3866, -inf
          %v5251 = vsel %vm4746, %v2809, -inf
          %v5252 = vsel %vm4746, %v2811, -inf
          %v5253 = vsel %vm4746, %v3162, -inf
          %v5254 = vsel %vm4746, %v3164, -inf
          %v5255 = vsel %vm4746, %v3515, -inf
          %v5256 = vsel %vm4746, %v3517, -inf
          %v5257 = vsel %vm4746, %v3868, -inf
          %v5258 = vsel %vm4746, %v3870, -inf
          %v5259 = vld [vmem:[#allocation2] sm:$0xff]
          %v5260 = vld [vmem:[#allocation2 + $0x8] sm:$0xff]
          %v5261 = vmax.f32 %v4747, %v4755
          %v5262 = vmax.f32 %v5261, %v4763
          %v5263 = vmax.f32 %v5262, %v4771
          %v5264 = vmax.f32 %v5263, %v4779
          %v5265 = vmax.f32 %v5264, %v4787
          %v5266 = vmax.f32 %v5265, %v4795
          %v5267 = vmax.f32 %v5266, %v4803
          %v5268 = vmax.f32 %v5267, %v4811
          %v5269 = vmax.f32 %v5268, %v4819
          %v5270 = vmax.f32 %v5269, %v4827
          %v5271 = vmax.f32 %v5270, %v4835
          %v5272 = vmax.f32 %v5271, %v4843
          %v5273 = vmax.f32 %v5272, %v4851
          %v5274 = vmax.f32 %v5273, %v4859
          %v5275 = vmax.f32 %v5274, %v4867
          %v5276 = vmax.f32 %v5275, %v4875
          %v5277 = vmax.f32 %v5276, %v4883
          %v5278 = vmax.f32 %v5277, %v4891
          %v5279 = vmax.f32 %v5278, %v4899
          %v5280 = vmax.f32 %v5279, %v4907
          %v5281 = vmax.f32 %v5280, %v4915
          %v5282 = vmax.f32 %v5281, %v4923
          %v5283 = vmax.f32 %v5282, %v4931
          %v5284 = vmax.f32 %v5283, %v4939
          %v5285 = vmax.f32 %v5284, %v4947
          %v5286 = vmax.f32 %v5285, %v4955
          %v5287 = vmax.f32 %v5286, %v4963
          %v5288 = vmax.f32 %v5287, %v4971
          %v5289 = vmax.f32 %v5288, %v4979
          %v5290 = vmax.f32 %v5289, %v4987
          %v5291 = vmax.f32 %v5290, %v4995
          %v5292 = vrot.slane %v5291, 4
          %v5293 = vmax.f32 %v5291, %v5292
          %v5294 = vrot.slane %v5293, 2
          %v5295 = vmax.f32 %v5293, %v5294
          %v5296 = vrot.slane %v5295, 1
          %v5297 = vmax.f32 %v5295, %v5296
          %v5298 = vmax.f32 %v4748, %v4756
          %v5299 = vmax.f32 %v5298, %v4764
          %v5300 = vmax.f32 %v5299, %v4772
          %v5301 = vmax.f32 %v5300, %v4780
          %v5302 = vmax.f32 %v5301, %v4788
          %v5303 = vmax.f32 %v5302, %v4796
          %v5304 = vmax.f32 %v5303, %v4804
          %v5305 = vmax.f32 %v5304, %v4812
          %v5306 = vmax.f32 %v5305, %v4820
          %v5307 = vmax.f32 %v5306, %v4828
          %v5308 = vmax.f32 %v5307, %v4836
          %v5309 = vmax.f32 %v5308, %v4844
          %v5310 = vmax.f32 %v5309, %v4852
          %v5311 = vmax.f32 %v5310, %v4860
          %v5312 = vmax.f32 %v5311, %v4868
          %v5313 = vmax.f32 %v5312, %v4876
          %v5314 = vmax.f32 %v5313, %v4884
          %v5315 = vmax.f32 %v5314, %v4892
          %v5316 = vmax.f32 %v5315, %v4900
          %v5317 = vmax.f32 %v5316, %v4908
          %v5318 = vmax.f32 %v5317, %v4916
          %v5319 = vmax.f32 %v5318, %v4924
          %v5320 = vmax.f32 %v5319, %v4932
          %v5321 = vmax.f32 %v5320, %v4940
          %v5322 = vmax.f32 %v5321, %v4948
          %v5323 = vmax.f32 %v5322, %v4956
          %v5324 = vmax.f32 %v5323, %v4964
          %v5325 = vmax.f32 %v5324, %v4972
          %v5326 = vmax.f32 %v5325, %v4980
          %v5327 = vmax.f32 %v5326, %v4988
          %v5328 = vmax.f32 %v5327, %v4996
          %v5329 = vrot.slane %v5328, 4
          %v5330 = vmax.f32 %v5328, %v5329
          %v5331 = vrot.slane %v5330, 2
          %v5332 = vmax.f32 %v5330, %v5331
          %v5333 = vrot.slane %v5332, 1
          %v5334 = vmax.f32 %v5332, %v5333
          %v5335 = vmax.f32 %v4749, %v4757
          %v5336 = vmax.f32 %v5335, %v4765
          %v5337 = vmax.f32 %v5336, %v4773
          %v5338 = vmax.f32 %v5337, %v4781
          %v5339 = vmax.f32 %v5338, %v4789
          %v5340 = vmax.f32 %v5339, %v4797
          %v5341 = vmax.f32 %v5340, %v4805
          %v5342 = vmax.f32 %v5341, %v4813
          %v5343 = vmax.f32 %v5342, %v4821
          %v5344 = vmax.f32 %v5343, %v4829
          %v5345 = vmax.f32 %v5344, %v4837
          %v5346 = vmax.f32 %v5345, %v4845
          %v5347 = vmax.f32 %v5346, %v4853
          %v5348 = vmax.f32 %v5347, %v4861
          %v5349 = vmax.f32 %v5348, %v4869
          %v5350 = vmax.f32 %v5349, %v4877
          %v5351 = vmax.f32 %v5350, %v4885
          %v5352 = vmax.f32 %v5351, %v4893
          %v5353 = vmax.f32 %v5352, %v4901
          %v5354 = vmax.f32 %v5353, %v4909
          %v5355 = vmax.f32 %v5354, %v4917
          %v5356 = vmax.f32 %v5355, %v4925
          %v5357 = vmax.f32 %v5356, %v4933
          %v5358 = vmax.f32 %v5357, %v4941
          %v5359 = vmax.f32 %v5358, %v4949
          %v5360 = vmax.f32 %v5359, %v4957
          %v5361 = vmax.f32 %v5360, %v4965
          %v5362 = vmax.f32 %v5361, %v4973
          %v5363 = vmax.f32 %v5362, %v4981
          %v5364 = vmax.f32 %v5363, %v4989
          %v5365 = vmax.f32 %v5364, %v4997
          %v5366 = vrot.slane %v5365, 4
          %v5367 = vmax.f32 %v5365, %v5366
          %v5368 = vrot.slane %v5367, 2
          %v5369 = vmax.f32 %v5367, %v5368
          %v5370 = vrot.slane %v5369, 1
          %v5371 = vmax.f32 %v5369, %v5370
          %v5372 = vmax.f32 %v4750, %v4758
          %v5373 = vmax.f32 %v5372, %v4766
          %v5374 = vmax.f32 %v5373, %v4774
          %v5375 = vmax.f32 %v5374, %v4782
          %v5376 = vmax.f32 %v5375, %v4790
          %v5377 = vmax.f32 %v5376, %v4798
          %v5378 = vmax.f32 %v5377, %v4806
          %v5379 = vmax.f32 %v5378, %v4814
          %v5380 = vmax.f32 %v5379, %v4822
          %v5381 = vmax.f32 %v5380, %v4830
          %v5382 = vmax.f32 %v5381, %v4838
          %v5383 = vmax.f32 %v5382, %v4846
          %v5384 = vmax.f32 %v5383, %v4854
          %v5385 = vmax.f32 %v5384, %v4862
          %v5386 = vmax.f32 %v5385, %v4870
          %v5387 = vmax.f32 %v5386, %v4878
          %v5388 = vmax.f32 %v5387, %v4886
          %v5389 = vmax.f32 %v5388, %v4894
          %v5390 = vmax.f32 %v5389, %v4902
          %v5391 = vmax.f32 %v5390, %v4910
          %v5392 = vmax.f32 %v5391, %v4918
          %v5393 = vmax.f32 %v5392, %v4926
          %v5394 = vmax.f32 %v5393, %v4934
          %v5395 = vmax.f32 %v5394, %v4942
          %v5396 = vmax.f32 %v5395, %v4950
          %v5397 = vmax.f32 %v5396, %v4958
          %v5398 = vmax.f32 %v5397, %v4966
          %v5399 = vmax.f32 %v5398, %v4974
          %v5400 = vmax.f32 %v5399, %v4982
          %v5401 = vmax.f32 %v5400, %v4990
          %v5402 = vmax.f32 %v5401, %v4998
          %v5403 = vrot.slane %v5402, 4
          %v5404 = vmax.f32 %v5402, %v5403
          %v5405 = vrot.slane %v5404, 2
          %v5406 = vmax.f32 %v5404, %v5405
          %v5407 = vrot.slane %v5406, 1
          %v5408 = vmax.f32 %v5406, %v5407
          %v5409 = vmax.f32 %v4751, %v4759
          %v5410 = vmax.f32 %v5409, %v4767
          %v5411 = vmax.f32 %v5410, %v4775
          %v5412 = vmax.f32 %v5411, %v4783
          %v5413 = vmax.f32 %v5412, %v4791
          %v5414 = vmax.f32 %v5413, %v4799
          %v5415 = vmax.f32 %v5414, %v4807
          %v5416 = vmax.f32 %v5415, %v4815
          %v5417 = vmax.f32 %v5416, %v4823
          %v5418 = vmax.f32 %v5417, %v4831
          %v5419 = vmax.f32 %v5418, %v4839
          %v5420 = vmax.f32 %v5419, %v4847
          %v5421 = vmax.f32 %v5420, %v4855
          %v5422 = vmax.f32 %v5421, %v4863
          %v5423 = vmax.f32 %v5422, %v4871
          %v5424 = vmax.f32 %v5423, %v4879
          %v5425 = vmax.f32 %v5424, %v4887
          %v5426 = vmax.f32 %v5425, %v4895
          %v5427 = vmax.f32 %v5426, %v4903
          %v5428 = vmax.f32 %v5427, %v4911
          %v5429 = vmax.f32 %v5428, %v4919
          %v5430 = vmax.f32 %v5429, %v4927
          %v5431 = vmax.f32 %v5430, %v4935
          %v5432 = vmax.f32 %v5431, %v4943
          %v5433 = vmax.f32 %v5432, %v4951
          %v5434 = vmax.f32 %v5433, %v4959
          %v5435 = vmax.f32 %v5434, %v4967
          %v5436 = vmax.f32 %v5435, %v4975
          %v5437 = vmax.f32 %v5436, %v4983
          %v5438 = vmax.f32 %v5437, %v4991
          %v5439 = vmax.f32 %v5438, %v4999
          %v5440 = vrot.slane %v5439, 4
          %v5441 = vmax.f32 %v5439, %v5440
          %v5442 = vrot.slane %v5441, 2
          %v5443 = vmax.f32 %v5441, %v5442
          %v5444 = vrot.slane %v5443, 1
          %v5445 = vmax.f32 %v5443, %v5444
          %v5446 = vmax.f32 %v4752, %v4760
          %v5447 = vmax.f32 %v5446, %v4768
          %v5448 = vmax.f32 %v5447, %v4776
          %v5449 = vmax.f32 %v5448, %v4784
          %v5450 = vmax.f32 %v5449, %v4792
          %v5451 = vmax.f32 %v5450, %v4800
          %v5452 = vmax.f32 %v5451, %v4808
          %v5453 = vmax.f32 %v5452, %v4816
          %v5454 = vmax.f32 %v5453, %v4824
          %v5455 = vmax.f32 %v5454, %v4832
          %v5456 = vmax.f32 %v5455, %v4840
          %v5457 = vmax.f32 %v5456, %v4848
          %v5458 = vmax.f32 %v5457, %v4856
          %v5459 = vmax.f32 %v5458, %v4864
          %v5460 = vmax.f32 %v5459, %v4872
          %v5461 = vmax.f32 %v5460, %v4880
          %v5462 = vmax.f32 %v5461, %v4888
          %v5463 = vmax.f32 %v5462, %v4896
          %v5464 = vmax.f32 %v5463, %v4904
          %v5465 = vmax.f32 %v5464, %v4912
          %v5466 = vmax.f32 %v5465, %v4920
          %v5467 = vmax.f32 %v5466, %v4928
          %v5468 = vmax.f32 %v5467, %v4936
          %v5469 = vmax.f32 %v5468, %v4944
          %v5470 = vmax.f32 %v5469, %v4952
          %v5471 = vmax.f32 %v5470, %v4960
          %v5472 = vmax.f32 %v5471, %v4968
          %v5473 = vmax.f32 %v5472, %v4976
          %v5474 = vmax.f32 %v5473, %v4984
          %v5475 = vmax.f32 %v5474, %v4992
          %v5476 = vmax.f32 %v5475, %v5000
          %v5477 = vrot.slane %v5476, 4
          %v5478 = vmax.f32 %v5476, %v5477
          %v5479 = vrot.slane %v5478, 2
          %v5480 = vmax.f32 %v5478, %v5479
          %v5481 = vrot.slane %v5480, 1
          %v5482 = vmax.f32 %v5480, %v5481
          %v5483 = vmax.f32 %v4753, %v4761
          %v5484 = vmax.f32 %v5483, %v4769
          %v5485 = vmax.f32 %v5484, %v4777
          %v5486 = vmax.f32 %v5485, %v4785
          %v5487 = vmax.f32 %v5486, %v4793
          %v5488 = vmax.f32 %v5487, %v4801
          %v5489 = vmax.f32 %v5488, %v4809
          %v5490 = vmax.f32 %v5489, %v4817
          %v5491 = vmax.f32 %v5490, %v4825
          %v5492 = vmax.f32 %v5491, %v4833
          %v5493 = vmax.f32 %v5492, %v4841
          %v5494 = vmax.f32 %v5493, %v4849
          %v5495 = vmax.f32 %v5494, %v4857
          %v5496 = vmax.f32 %v5495, %v4865
          %v5497 = vmax.f32 %v5496, %v4873
          %v5498 = vmax.f32 %v5497, %v4881
          %v5499 = vmax.f32 %v5498, %v4889
          %v5500 = vmax.f32 %v5499, %v4897
          %v5501 = vmax.f32 %v5500, %v4905
          %v5502 = vmax.f32 %v5501, %v4913
          %v5503 = vmax.f32 %v5502, %v4921
          %v5504 = vmax.f32 %v5503, %v4929
          %v5505 = vmax.f32 %v5504, %v4937
          %v5506 = vmax.f32 %v5505, %v4945
          %v5507 = vmax.f32 %v5506, %v4953
          %v5508 = vmax.f32 %v5507, %v4961
          %v5509 = vmax.f32 %v5508, %v4969
          %v5510 = vmax.f32 %v5509, %v4977
          %v5511 = vmax.f32 %v5510, %v4985
          %v5512 = vmax.f32 %v5511, %v4993
          %v5513 = vmax.f32 %v5512, %v5001
          %v5514 = vrot.slane %v5513, 4
          %v5515 = vmax.f32 %v5513, %v5514
          %v5516 = vrot.slane %v5515, 2
          %v5517 = vmax.f32 %v5515, %v5516
          %v5518 = vrot.slane %v5517, 1
          %v5519 = vmax.f32 %v5517, %v5518
          %v5520 = vmax.f32 %v4754, %v4762
          %v5521 = vmax.f32 %v5520, %v4770
          %v5522 = vmax.f32 %v5521, %v4778
          %v5523 = vmax.f32 %v5522, %v4786
          %v5524 = vmax.f32 %v5523, %v4794
          %v5525 = vmax.f32 %v5524, %v4802
          %v5526 = vmax.f32 %v5525, %v4810
          %v5527 = vmax.f32 %v5526, %v4818
          %v5528 = vmax.f32 %v5527, %v4826
          %v5529 = vmax.f32 %v5528, %v4834
          %v5530 = vmax.f32 %v5529, %v4842
          %v5531 = vmax.f32 %v5530, %v4850
          %v5532 = vmax.f32 %v5531, %v4858
          %v5533 = vmax.f32 %v5532, %v4866
          %v5534 = vmax.f32 %v5533, %v4874
          %v5535 = vmax.f32 %v5534, %v4882
          %v5536 = vmax.f32 %v5535, %v4890
          %v5537 = vmax.f32 %v5536, %v4898
          %v5538 = vmax.f32 %v5537, %v4906
          %v5539 = vmax.f32 %v5538, %v4914
          %v5540 = vmax.f32 %v5539, %v4922
          %v5541 = vmax.f32 %v5540, %v4930
          %v5542 = vmax.f32 %v5541, %v4938
          %v5543 = vmax.f32 %v5542, %v4946
          %v5544 = vmax.f32 %v5543, %v4954
          %v5545 = vmax.f32 %v5544, %v4962
          %v5546 = vmax.f32 %v5545, %v4970
          %v5547 = vmax.f32 %v5546, %v4978
          %v5548 = vmax.f32 %v5547, %v4986
          %v5549 = vmax.f32 %v5548, %v4994
          %v5550 = vmax.f32 %v5549, %v5002
          %v5551 = vrot.slane %v5550, 4
          %v5552 = vmax.f32 %v5550, %v5551
          %v5553 = vrot.slane %v5552, 2
          %v5554 = vmax.f32 %v5552, %v5553
          %v5555 = vrot.slane %v5554, 1
          %v5556 = vmax.f32 %v5554, %v5555
          %v5557 = vmax.f32 %v5003, %v5011
          %v5558 = vmax.f32 %v5557, %v5019
          %v5559 = vmax.f32 %v5558, %v5027
          %v5560 = vmax.f32 %v5559, %v5035
          %v5561 = vmax.f32 %v5560, %v5043
          %v5562 = vmax.f32 %v5561, %v5051
          %v5563 = vmax.f32 %v5562, %v5059
          %v5564 = vmax.f32 %v5563, %v5067
          %v5565 = vmax.f32 %v5564, %v5075
          %v5566 = vmax.f32 %v5565, %v5083
          %v5567 = vmax.f32 %v5566, %v5091
          %v5568 = vmax.f32 %v5567, %v5099
          %v5569 = vmax.f32 %v5568, %v5107
          %v5570 = vmax.f32 %v5569, %v5115
          %v5571 = vmax.f32 %v5570, %v5123
          %v5572 = vmax.f32 %v5571, %v5131
          %v5573 = vmax.f32 %v5572, %v5139
          %v5574 = vmax.f32 %v5573, %v5147
          %v5575 = vmax.f32 %v5574, %v5155
          %v5576 = vmax.f32 %v5575, %v5163
          %v5577 = vmax.f32 %v5576, %v5171
          %v5578 = vmax.f32 %v5577, %v5179
          %v5579 = vmax.f32 %v5578, %v5187
          %v5580 = vmax.f32 %v5579, %v5195
          %v5581 = vmax.f32 %v5580, %v5203
          %v5582 = vmax.f32 %v5581, %v5211
          %v5583 = vmax.f32 %v5582, %v5219
          %v5584 = vmax.f32 %v5583, %v5227
          %v5585 = vmax.f32 %v5584, %v5235
          %v5586 = vmax.f32 %v5585, %v5243
          %v5587 = vmax.f32 %v5586, %v5251
          %v5588 = vrot.slane %v5587, 4
          %v5589 = vmax.f32 %v5587, %v5588
          %v5590 = vrot.slane %v5589, 2
          %v5591 = vmax.f32 %v5589, %v5590
          %v5592 = vrot.slane %v5591, 1
          %v5593 = vmax.f32 %v5591, %v5592
          %v5594 = vmax.f32 %v5004, %v5012
          %v5595 = vmax.f32 %v5594, %v5020
          %v5596 = vmax.f32 %v5595, %v5028
          %v5597 = vmax.f32 %v5596, %v5036
          %v5598 = vmax.f32 %v5597, %v5044
          %v5599 = vmax.f32 %v5598, %v5052
          %v5600 = vmax.f32 %v5599, %v5060
          %v5601 = vmax.f32 %v5600, %v5068
          %v5602 = vmax.f32 %v5601, %v5076
          %v5603 = vmax.f32 %v5602, %v5084
          %v5604 = vmax.f32 %v5603, %v5092
          %v5605 = vmax.f32 %v5604, %v5100
          %v5606 = vmax.f32 %v5605, %v5108
          %v5607 = vmax.f32 %v5606, %v5116
          %v5608 = vmax.f32 %v5607, %v5124
          %v5609 = vmax.f32 %v5608, %v5132
          %v5610 = vmax.f32 %v5609, %v5140
          %v5611 = vmax.f32 %v5610, %v5148
          %v5612 = vmax.f32 %v5611, %v5156
          %v5613 = vmax.f32 %v5612, %v5164
          %v5614 = vmax.f32 %v5613, %v5172
          %v5615 = vmax.f32 %v5614, %v5180
          %v5616 = vmax.f32 %v5615, %v5188
          %v5617 = vmax.f32 %v5616, %v5196
          %v5618 = vmax.f32 %v5617, %v5204
          %v5619 = vmax.f32 %v5618, %v5212
          %v5620 = vmax.f32 %v5619, %v5220
          %v5621 = vmax.f32 %v5620, %v5228
          %v5622 = vmax.f32 %v5621, %v5236
          %v5623 = vmax.f32 %v5622, %v5244
          %v5624 = vmax.f32 %v5623, %v5252
          %v5625 = vrot.slane %v5624, 4
          %v5626 = vmax.f32 %v5624, %v5625
          %v5627 = vrot.slane %v5626, 2
          %v5628 = vmax.f32 %v5626, %v5627
          %v5629 = vrot.slane %v5628, 1
          %v5630 = vmax.f32 %v5628, %v5629
          %v5631 = vmax.f32 %v5005, %v5013
          %v5632 = vmax.f32 %v5631, %v5021
          %v5633 = vmax.f32 %v5632, %v5029
          %v5634 = vmax.f32 %v5633, %v5037
          %v5635 = vmax.f32 %v5634, %v5045
          %v5636 = vmax.f32 %v5635, %v5053
          %v5637 = vmax.f32 %v5636, %v5061
          %v5638 = vmax.f32 %v5637, %v5069
          %v5639 = vmax.f32 %v5638, %v5077
          %v5640 = vmax.f32 %v5639, %v5085
          %v5641 = vmax.f32 %v5640, %v5093
          %v5642 = vmax.f32 %v5641, %v5101
          %v5643 = vmax.f32 %v5642, %v5109
          %v5644 = vmax.f32 %v5643, %v5117
          %v5645 = vmax.f32 %v5644, %v5125
          %v5646 = vmax.f32 %v5645, %v5133
          %v5647 = vmax.f32 %v5646, %v5141
          %v5648 = vmax.f32 %v5647, %v5149
          %v5649 = vmax.f32 %v5648, %v5157
          %v5650 = vmax.f32 %v5649, %v5165
          %v5651 = vmax.f32 %v5650, %v5173
          %v5652 = vmax.f32 %v5651, %v5181
          %v5653 = vmax.f32 %v5652, %v5189
          %v5654 = vmax.f32 %v5653, %v5197
          %v5655 = vmax.f32 %v5654, %v5205
          %v5656 = vmax.f32 %v5655, %v5213
          %v5657 = vmax.f32 %v5656, %v5221
          %v5658 = vmax.f32 %v5657, %v5229
          %v5659 = vmax.f32 %v5658, %v5237
          %v5660 = vmax.f32 %v5659, %v5245
          %v5661 = vmax.f32 %v5660, %v5253
          %v5662 = vrot.slane %v5661, 4
          %v5663 = vmax.f32 %v5661, %v5662
          %v5664 = vrot.slane %v5663, 2
          %v5665 = vmax.f32 %v5663, %v5664
          %v5666 = vrot.slane %v5665, 1
          %v5667 = vmax.f32 %v5665, %v5666
          %v5668 = vmax.f32 %v5006, %v5014
          %v5669 = vmax.f32 %v5668, %v5022
          %v5670 = vmax.f32 %v5669, %v5030
          %v5671 = vmax.f32 %v5670, %v5038
          %v5672 = vmax.f32 %v5671, %v5046
          %v5673 = vmax.f32 %v5672, %v5054
          %v5674 = vmax.f32 %v5673, %v5062
          %v5675 = vmax.f32 %v5674, %v5070
          %v5676 = vmax.f32 %v5675, %v5078
          %v5677 = vmax.f32 %v5676, %v5086
          %v5678 = vmax.f32 %v5677, %v5094
          %v5679 = vmax.f32 %v5678, %v5102
          %v5680 = vmax.f32 %v5679, %v5110
          %v5681 = vmax.f32 %v5680, %v5118
          %v5682 = vmax.f32 %v5681, %v5126
          %v5683 = vmax.f32 %v5682, %v5134
          %v5684 = vmax.f32 %v5683, %v5142
          %v5685 = vmax.f32 %v5684, %v5150
          %v5686 = vmax.f32 %v5685, %v5158
          %v5687 = vmax.f32 %v5686, %v5166
          %v5688 = vmax.f32 %v5687, %v5174
          %v5689 = vmax.f32 %v5688, %v5182
          %v5690 = vmax.f32 %v5689, %v5190
          %v5691 = vmax.f32 %v5690, %v5198
          %v5692 = vmax.f32 %v5691, %v5206
          %v5693 = vmax.f32 %v5692, %v5214
          %v5694 = vmax.f32 %v5693, %v5222
          %v5695 = vmax.f32 %v5694, %v5230
          %v5696 = vmax.f32 %v5695, %v5238
          %v5697 = vmax.f32 %v5696, %v5246
          %v5698 = vmax.f32 %v5697, %v5254
          %v5699 = vrot.slane %v5698, 4
          %v5700 = vmax.f32 %v5698, %v5699
          %v5701 = vrot.slane %v5700, 2
          %v5702 = vmax.f32 %v5700, %v5701
          %v5703 = vrot.slane %v5702, 1
          %v5704 = vmax.f32 %v5702, %v5703
          %v5705 = vmax.f32 %v5007, %v5015
          %v5706 = vmax.f32 %v5705, %v5023
          %v5707 = vmax.f32 %v5706, %v5031
          %v5708 = vmax.f32 %v5707, %v5039
          %v5709 = vmax.f32 %v5708, %v5047
          %v5710 = vmax.f32 %v5709, %v5055
          %v5711 = vmax.f32 %v5710, %v5063
          %v5712 = vmax.f32 %v5711, %v5071
          %v5713 = vmax.f32 %v5712, %v5079
          %v5714 = vmax.f32 %v5713, %v5087
          %v5715 = vmax.f32 %v5714, %v5095
          %v5716 = vmax.f32 %v5715, %v5103
          %v5717 = vmax.f32 %v5716, %v5111
          %v5718 = vmax.f32 %v5717, %v5119
          %v5719 = vmax.f32 %v5718, %v5127
          %v5720 = vmax.f32 %v5719, %v5135
          %v5721 = vmax.f32 %v5720, %v5143
          %v5722 = vmax.f32 %v5721, %v5151
          %v5723 = vmax.f32 %v5722, %v5159
          %v5724 = vmax.f32 %v5723, %v5167
          %v5725 = vmax.f32 %v5724, %v5175
          %v5726 = vmax.f32 %v5725, %v5183
          %v5727 = vmax.f32 %v5726, %v5191
          %v5728 = vmax.f32 %v5727, %v5199
          %v5729 = vmax.f32 %v5728, %v5207
          %v5730 = vmax.f32 %v5729, %v5215
          %v5731 = vmax.f32 %v5730, %v5223
          %v5732 = vmax.f32 %v5731, %v5231
          %v5733 = vmax.f32 %v5732, %v5239
          %v5734 = vmax.f32 %v5733, %v5247
          %v5735 = vmax.f32 %v5734, %v5255
          %v5736 = vrot.slane %v5735, 4
          %v5737 = vmax.f32 %v5735, %v5736
          %v5738 = vrot.slane %v5737, 2
          %v5739 = vmax.f32 %v5737, %v5738
          %v5740 = vrot.slane %v5739, 1
          %v5741 = vmax.f32 %v5739, %v5740
          %v5742 = vmax.f32 %v5008, %v5016
          %v5743 = vmax.f32 %v5742, %v5024
          %v5744 = vmax.f32 %v5743, %v5032
          %v5745 = vmax.f32 %v5744, %v5040
          %v5746 = vmax.f32 %v5745, %v5048
          %v5747 = vmax.f32 %v5746, %v5056
          %v5748 = vmax.f32 %v5747, %v5064
          %v5749 = vmax.f32 %v5748, %v5072
          %v5750 = vmax.f32 %v5749, %v5080
          %v5751 = vmax.f32 %v5750, %v5088
          %v5752 = vmax.f32 %v5751, %v5096
          %v5753 = vmax.f32 %v5752, %v5104
          %v5754 = vmax.f32 %v5753, %v5112
          %v5755 = vmax.f32 %v5754, %v5120
          %v5756 = vmax.f32 %v5755, %v5128
          %v5757 = vmax.f32 %v5756, %v5136
          %v5758 = vmax.f32 %v5757, %v5144
          %v5759 = vmax.f32 %v5758, %v5152
          %v5760 = vmax.f32 %v5759, %v5160
          %v5761 = vmax.f32 %v5760, %v5168
          %v5762 = vmax.f32 %v5761, %v5176
          %v5763 = vmax.f32 %v5762, %v5184
          %v5764 = vmax.f32 %v5763, %v5192
          %v5765 = vmax.f32 %v5764, %v5200
          %v5766 = vmax.f32 %v5765, %v5208
          %v5767 = vmax.f32 %v5766, %v5216
          %v5768 = vmax.f32 %v5767, %v5224
          %v5769 = vmax.f32 %v5768, %v5232
          %v5770 = vmax.f32 %v5769, %v5240
          %v5771 = vmax.f32 %v5770, %v5248
          %v5772 = vmax.f32 %v5771, %v5256
          %v5773 = vrot.slane %v5772, 4
          %v5774 = vmax.f32 %v5772, %v5773
          %v5775 = vrot.slane %v5774, 2
          %v5776 = vmax.f32 %v5774, %v5775
          %v5777 = vrot.slane %v5776, 1
          %v5778 = vmax.f32 %v5776, %v5777
          %v5779 = vmax.f32 %v5009, %v5017
          %v5780 = vmax.f32 %v5779, %v5025
          %v5781 = vmax.f32 %v5780, %v5033
          %v5782 = vmax.f32 %v5781, %v5041
          %v5783 = vmax.f32 %v5782, %v5049
          %v5784 = vmax.f32 %v5783, %v5057
          %v5785 = vmax.f32 %v5784, %v5065
          %v5786 = vmax.f32 %v5785, %v5073
          %v5787 = vmax.f32 %v5786, %v5081
          %v5788 = vmax.f32 %v5787, %v5089
          %v5789 = vmax.f32 %v5788, %v5097
          %v5790 = vmax.f32 %v5789, %v5105
          %v5791 = vmax.f32 %v5790, %v5113
          %v5792 = vmax.f32 %v5791, %v5121
          %v5793 = vmax.f32 %v5792, %v5129
          %v5794 = vmax.f32 %v5793, %v5137
          %v5795 = vmax.f32 %v5794, %v5145
          %v5796 = vmax.f32 %v5795, %v5153
          %v5797 = vmax.f32 %v5796, %v5161
          %v5798 = vmax.f32 %v5797, %v5169
          %v5799 = vmax.f32 %v5798, %v5177
          %v5800 = vmax.f32 %v5799, %v5185
          %v5801 = vmax.f32 %v5800, %v5193
          %v5802 = vmax.f32 %v5801, %v5201
          %v5803 = vmax.f32 %v5802, %v5209
          %v5804 = vmax.f32 %v5803, %v5217
          %v5805 = vmax.f32 %v5804, %v5225
          %v5806 = vmax.f32 %v5805, %v5233
          %v5807 = vmax.f32 %v5806, %v5241
          %v5808 = vmax.f32 %v5807, %v5249
          %v5809 = vmax.f32 %v5808, %v5257
          %v5810 = vrot.slane %v5809, 4
          %v5811 = vmax.f32 %v5809, %v5810
          %v5812 = vrot.slane %v5811, 2
          %v5813 = vmax.f32 %v5811, %v5812
          %v5814 = vrot.slane %v5813, 1
          %v5815 = vmax.f32 %v5813, %v5814
          %v5816 = vmax.f32 %v5010, %v5018
          %v5817 = vmax.f32 %v5816, %v5026
          %v5818 = vmax.f32 %v5817, %v5034
          %v5819 = vmax.f32 %v5818, %v5042
          %v5820 = vmax.f32 %v5819, %v5050
          %v5821 = vmax.f32 %v5820, %v5058
          %v5822 = vmax.f32 %v5821, %v5066
          %v5823 = vmax.f32 %v5822, %v5074
          %v5824 = vmax.f32 %v5823, %v5082
          %v5825 = vmax.f32 %v5824, %v5090
          %v5826 = vmax.f32 %v5825, %v5098
          %v5827 = vmax.f32 %v5826, %v5106
          %v5828 = vmax.f32 %v5827, %v5114
          %v5829 = vmax.f32 %v5828, %v5122
          %v5830 = vmax.f32 %v5829, %v5130
          %v5831 = vmax.f32 %v5830, %v5138
          %v5832 = vmax.f32 %v5831, %v5146
          %v5833 = vmax.f32 %v5832, %v5154
          %v5834 = vmax.f32 %v5833, %v5162
          %v5835 = vmax.f32 %v5834, %v5170
          %v5836 = vmax.f32 %v5835, %v5178
          %v5837 = vmax.f32 %v5836, %v5186
          %v5838 = vmax.f32 %v5837, %v5194
          %v5839 = vmax.f32 %v5838, %v5202
          %v5840 = vmax.f32 %v5839, %v5210
          %v5841 = vmax.f32 %v5840, %v5218
          %v5842 = vmax.f32 %v5841, %v5226
          %v5843 = vmax.f32 %v5842, %v5234
          %v5844 = vmax.f32 %v5843, %v5242
          %v5845 = vmax.f32 %v5844, %v5250
          %v5846 = vmax.f32 %v5845, %v5258
          %v5847 = vrot.slane %v5846, 4
          %v5848 = vmax.f32 %v5846, %v5847
          %v5849 = vrot.slane %v5848, 2
          %v5850 = vmax.f32 %v5848, %v5849
          %v5851 = vrot.slane %v5850, 1
          %v5852 = vmax.f32 %v5850, %v5851
          %v5869 = vcombine.low %v5297, %v5334
          %v5870 = vcombine.low %v5371, %v5408
          %v5872 = vunpack.c.l.s4 1983009808
          %v5873 = vunpack.c.0.s8 %v5872
          %v5874 = vlaneseq
          %v5875 = vshrl.u32 %v5874, 7
          %v5876 = vsub.s32 %v5873, %v5875
          %v5877 = vrot.slane %v5869, %v5876
          %v5879 = vunpack.c.l.s4 1983009808
          %v5880 = vunpack.c.0.s8 %v5879
          %v5881 = vlaneseq
          %v5882 = vshrl.u32 %v5881, 7
          %v5883 = vsub.s32 %v5880, %v5882
          %v5884 = vrot.slane %v5870, %v5883
          %v5885 = vcombine.low %v5877, %v5884
          %v5886 = vcombine.low %v5445, %v5482
          %v5887 = vcombine.low %v5519, %v5556
          %v5889 = vunpack.c.l.s4 1983009808
          %v5890 = vunpack.c.0.s8 %v5889
          %v5891 = vlaneseq
          %v5892 = vshrl.u32 %v5891, 7
          %v5893 = vsub.s32 %v5890, %v5892
          %v5894 = vrot.slane %v5886, %v5893
          %v5896 = vunpack.c.l.s4 1983009808
          %v5897 = vunpack.c.0.s8 %v5896
          %v5898 = vlaneseq
          %v5899 = vshrl.u32 %v5898, 7
          %v5900 = vsub.s32 %v5897, %v5899
          %v5901 = vrot.slane %v5887, %v5900
          %v5902 = vcombine.low %v5894, %v5901
          %v5903 = vcombine.low %v5593, %v5630
          %v5904 = vcombine.low %v5667, %v5704
          %v5906 = vunpack.c.l.s4 1983009808
          %v5907 = vunpack.c.0.s8 %v5906
          %v5908 = vlaneseq
          %v5909 = vshrl.u32 %v5908, 7
          %v5910 = vsub.s32 %v5907, %v5909
          %v5911 = vrot.slane %v5903, %v5910
          %v5913 = vunpack.c.l.s4 1983009808
          %v5914 = vunpack.c.0.s8 %v5913
          %v5915 = vlaneseq
          %v5916 = vshrl.u32 %v5915, 7
          %v5917 = vsub.s32 %v5914, %v5916
          %v5918 = vrot.slane %v5904, %v5917
          %v5919 = vcombine.low %v5911, %v5918
          %v5920 = vcombine.low %v5741, %v5778
          %v5921 = vcombine.low %v5815, %v5852
          %v5923 = vunpack.c.l.s4 1983009808
          %v5924 = vunpack.c.0.s8 %v5923
          %v5925 = vlaneseq
          %v5926 = vshrl.u32 %v5925, 7
          %v5927 = vsub.s32 %v5924, %v5926
          %v5928 = vrot.slane %v5920, %v5927
          %v5930 = vunpack.c.l.s4 1983009808
          %v5931 = vunpack.c.0.s8 %v5930
          %v5932 = vlaneseq
          %v5933 = vshrl.u32 %v5932, 7
          %v5934 = vsub.s32 %v5931, %v5933
          %v5935 = vrot.slane %v5921, %v5934
          %v5936 = vcombine.low %v5928, %v5935
          %vm5937 = vcmask 1044484
          %v5938 = vsel %vm5937, %v5885, %v5885
          %vm5939 = vcmask 1046534
          %v5940 = vsel %vm5939, %v5885, %v5938
          %v5941 = vrot.slane %v5919, 7
          %vm5942 = vcmask 1041409
          %v5943 = vsel %vm5942, %v5941, %v5940
          %vm5944 = vcmask 1043459
          %v5945 = vsel %vm5944, %v5941, %v5943
          %vm5946 = vcmask 1045509
          %v5947 = vsel %vm5946, %v5941, %v5945
          %vm5948 = vcmask 1047559
          %v5949 = vsel %vm5948, %v5941, %v5947
          %v5950 = vsel %vm5937, %v5902, %v5902
          %v5951 = vsel %vm5939, %v5902, %v5950
          %v5952 = vrot.slane %v5936, 7
          %v5953 = vsel %vm5942, %v5952, %v5951
          %v5954 = vsel %vm5944, %v5952, %v5953
          %v5955 = vsel %vm5946, %v5952, %v5954
          %v5956 = vsel %vm5948, %v5952, %v5955
          %v5959 = vmax.f32 %v5259, %v5949
          %v5960 = vmax.f32 %v5260, %v5956
          %5961 = vst [vmem:[#allocation2] sm:$0xff] %v5959
          %5962 = vst [vmem:[#allocation2 + $0x8] sm:$0xff] %v5960
          %v5963 = vld [vmem:[#allocation2] sm:$0xff]
          %v5964 = vld [vmem:[#allocation2 + $0x8] sm:$0xff]
          %v5965 = vld [vmem:[%s6] sm:$0xff]
          %v5967 = vlaneseq
          %v5968 = vshrl.u32 %v5967, 7
          %v5969 = vsub.s32 0, %v5968
          %v5970 = vrot.slane %v5965, %v5969
          %v5971 = vlaneseq
          %v5972 = vshrl.u32 %v5971, 7
          %v5973 = vsub.s32 1, %v5972
          %v5974 = vrot.slane %v5965, %v5973
          %v5975 = vlaneseq
          %v5976 = vshrl.u32 %v5975, 7
          %v5977 = vsub.s32 2, %v5976
          %v5978 = vrot.slane %v5965, %v5977
          %v5979 = vlaneseq
          %v5980 = vshrl.u32 %v5979, 7
          %v5981 = vsub.s32 3, %v5980
          %v5982 = vrot.slane %v5965, %v5981
          %v5983 = vlaneseq
          %v5984 = vshrl.u32 %v5983, 7
          %v5985 = vsub.s32 4, %v5984
          %v5986 = vrot.slane %v5965, %v5985
          %v5987 = vlaneseq
          %v5988 = vshrl.u32 %v5987, 7
          %v5989 = vsub.s32 5, %v5988
          %v5990 = vrot.slane %v5965, %v5989
          %v5991 = vlaneseq
          %v5992 = vshrl.u32 %v5991, 7
          %v5993 = vsub.s32 6, %v5992
          %v5994 = vrot.slane %v5965, %v5993
          %v5995 = vlaneseq
          %v5996 = vshrl.u32 %v5995, 7
          %v5997 = vsub.s32 7, %v5996
          %v5998 = vrot.slane %v5965, %v5997
          %v5999 = vcombine.low %v5970, %v5974
          %v6000 = vcombine.low %v5978, %v5982
          %v6002 = vunpack.c.l.s4 1983009808
          %v6003 = vunpack.c.0.s8 %v6002
          %v6004 = vlaneseq
          %v6005 = vshrl.u32 %v6004, 7
          %v6006 = vsub.s32 %v6003, %v6005
          %v6007 = vrot.slane %v5999, %v6006
          %v6009 = vunpack.c.l.s4 1983009808
          %v6010 = vunpack.c.0.s8 %v6009
          %v6011 = vlaneseq
          %v6012 = vshrl.u32 %v6011, 7
          %v6013 = vsub.s32 %v6010, %v6012
          %v6014 = vrot.slane %v6000, %v6013
          %v6015 = vcombine.low %v6007, %v6014
          %v6016 = vcombine.low %v5986, %v5990
          %v6017 = vcombine.low %v5994, %v5998
          %v6019 = vunpack.c.l.s4 1983009808
          %v6020 = vunpack.c.0.s8 %v6019
          %v6021 = vlaneseq
          %v6022 = vshrl.u32 %v6021, 7
          %v6023 = vsub.s32 %v6020, %v6022
          %v6024 = vrot.slane %v6016, %v6023
          %v6026 = vunpack.c.l.s4 1983009808
          %v6027 = vunpack.c.0.s8 %v6026
          %v6028 = vlaneseq
          %v6029 = vshrl.u32 %v6028, 7
          %v6030 = vsub.s32 %v6027, %v6029
          %v6031 = vrot.slane %v6017, %v6030
          %v6032 = vcombine.low %v6024, %v6031
          %v6035 = vadd.f32 %v5963, %v6015
          %v6036 = vadd.f32 %v5964, %v6032
          %v6037 = vmax.f32 %v6035, 0.0
          %v6038 = vmax.f32 %v6036, 0.0
          %v6041 = vcombine.high %v6037, %v6037
          %v6043 = vunpack.c.l.s4 1983009808
          %v6044 = vunpack.c.0.s8 %v6043
          %v6045 = vlaneseq
          %v6046 = vshrl.u32 %v6045, 7
          %v6047 = vsub.s32 %v6044, %v6046
          %v6048 = vrot.slane %v6037, %v6047
          %v6050 = vunpack.c.l.s4 1983009808
          %v6051 = vunpack.c.0.s8 %v6050
          %v6052 = vlaneseq
          %v6053 = vshrl.u32 %v6052, 7
          %v6054 = vsub.s32 %v6051, %v6053
          %v6055 = vrot.slane %v6041, %v6054
          %v6056 = vcombine.high %v6048, %v6048
          %v6057 = vcombine.high %v6055, %v6055
          %v6058 = vcombine.high %v6038, %v6038
          %v6060 = vunpack.c.l.s4 1983009808
          %v6061 = vunpack.c.0.s8 %v6060
          %v6062 = vlaneseq
          %v6063 = vshrl.u32 %v6062, 7
          %v6064 = vsub.s32 %v6061, %v6063
          %v6065 = vrot.slane %v6038, %v6064
          %v6067 = vunpack.c.l.s4 1983009808
          %v6068 = vunpack.c.0.s8 %v6067
          %v6069 = vlaneseq
          %v6070 = vshrl.u32 %v6069, 7
          %v6071 = vsub.s32 %v6068, %v6070
          %v6072 = vrot.slane %v6058, %v6071
          %v6073 = vcombine.high %v6065, %v6065
          %v6074 = vcombine.high %v6072, %v6072
          %v6083 = vpack.c.bf16 %v6048, %v6048
          %v6084 = vpack.c.bf16 %v6056, %v6056
          %v6085 = vpack.c.bf16 %v6055, %v6055
          %v6086 = vpack.c.bf16 %v6057, %v6057
          %v6087 = vpack.c.bf16 %v6065, %v6065
          %v6088 = vpack.c.bf16 %v6073, %v6073
          %v6089 = vpack.c.bf16 %v6072, %v6072
          %v6090 = vpack.c.bf16 %v6074, %v6074
          %v6091 = vld [vmem:[%s7] sm:$0xff]
          %v6092 = vld [vmem:[%s7 + $0x8] sm:$0xff]
          %v6093 = vld [vmem:[%s7 + $0x10] sm:$0xff]
          %v6094 = vld [vmem:[%s7 + $0x18] sm:$0xff]
          %v6095 = vld [vmem:[%s7 + $0x20] sm:$0xff]
          %v6096 = vld [vmem:[%s7 + $0x28] sm:$0xff]
          %v6097 = vld [vmem:[%s7 + $0x30] sm:$0xff]
          %v6098 = vld [vmem:[%s7 + $0x38] sm:$0xff]
          %v6099 = vld [vmem:[%s7 + $0x40] sm:$0xff]
          %v6100 = vld [vmem:[%s7 + $0x48] sm:$0xff]
          %v6101 = vld [vmem:[%s7 + $0x50] sm:$0xff]
          %v6102 = vld [vmem:[%s7 + $0x58] sm:$0xff]
          %v6103 = vld [vmem:[%s7 + $0x60] sm:$0xff]
          %v6104 = vld [vmem:[%s7 + $0x68] sm:$0xff]
          %v6105 = vld [vmem:[%s7 + $0x70] sm:$0xff]
          %v6106 = vld [vmem:[%s7 + $0x78] sm:$0xff]
          %v6107 = vld [vmem:[%s7 + $0x80] sm:$0xff]
          %v6108 = vld [vmem:[%s7 + $0x88] sm:$0xff]
          %v6109 = vld [vmem:[%s7 + $0x90] sm:$0xff]
          %v6110 = vld [vmem:[%s7 + $0x98] sm:$0xff]
          %v6111 = vld [vmem:[%s7 + $0xa0] sm:$0xff]
          %v6112 = vld [vmem:[%s7 + $0xa8] sm:$0xff]
          %v6113 = vld [vmem:[%s7 + $0xb0] sm:$0xff]
          %v6114 = vld [vmem:[%s7 + $0xb8] sm:$0xff]
          %v6115 = vld [vmem:[%s7 + $0xc0] sm:$0xff]
          %v6116 = vld [vmem:[%s7 + $0xc8] sm:$0xff]
          %v6117 = vld [vmem:[%s7 + $0xd0] sm:$0xff]
          %v6118 = vld [vmem:[%s7 + $0xd8] sm:$0xff]
          %v6119 = vld [vmem:[%s7 + $0xe0] sm:$0xff]
          %v6120 = vld [vmem:[%s7 + $0xe8] sm:$0xff]
          %v6121 = vld [vmem:[%s7 + $0xf0] sm:$0xff]
          %v6122 = vld [vmem:[%s7 + $0xf8] sm:$0xff]
          %v6123 = vld [vmem:[%s7 + $0x100] sm:$0xff]
          %v6124 = vld [vmem:[%s7 + $0x108] sm:$0xff]
          %v6125 = vld [vmem:[%s7 + $0x110] sm:$0xff]
          %v6126 = vld [vmem:[%s7 + $0x118] sm:$0xff]
          %v6127 = vld [vmem:[%s7 + $0x120] sm:$0xff]
          %v6128 = vld [vmem:[%s7 + $0x128] sm:$0xff]
          %v6129 = vld [vmem:[%s7 + $0x130] sm:$0xff]
          %v6130 = vld [vmem:[%s7 + $0x138] sm:$0xff]
          %v6131 = vld [vmem:[%s7 + $0x140] sm:$0xff]
          %v6132 = vld [vmem:[%s7 + $0x148] sm:$0xff]
          %v6133 = vld [vmem:[%s7 + $0x150] sm:$0xff]
          %v6134 = vld [vmem:[%s7 + $0x158] sm:$0xff]
          %v6135 = vld [vmem:[%s7 + $0x160] sm:$0xff]
          %v6136 = vld [vmem:[%s7 + $0x168] sm:$0xff]
          %v6137 = vld [vmem:[%s7 + $0x170] sm:$0xff]
          %v6138 = vld [vmem:[%s7 + $0x178] sm:$0xff]
          %v6139 = vld [vmem:[%s7 + $0x180] sm:$0xff]
          %v6140 = vld [vmem:[%s7 + $0x188] sm:$0xff]
          %v6141 = vld [vmem:[%s7 + $0x190] sm:$0xff]
          %v6142 = vld [vmem:[%s7 + $0x198] sm:$0xff]
          %v6143 = vld [vmem:[%s7 + $0x1a0] sm:$0xff]
          %v6144 = vld [vmem:[%s7 + $0x1a8] sm:$0xff]
          %v6145 = vld [vmem:[%s7 + $0x1b0] sm:$0xff]
          %v6146 = vld [vmem:[%s7 + $0x1b8] sm:$0xff]
          %v6147 = vld [vmem:[%s7 + $0x1c0] sm:$0xff]
          %v6148 = vld [vmem:[%s7 + $0x1c8] sm:$0xff]
          %v6149 = vld [vmem:[%s7 + $0x1d0] sm:$0xff]
          %v6150 = vld [vmem:[%s7 + $0x1d8] sm:$0xff]
          %v6151 = vld [vmem:[%s7 + $0x1e0] sm:$0xff]
          %v6152 = vld [vmem:[%s7 + $0x1e8] sm:$0xff]
          %v6153 = vld [vmem:[%s7 + $0x1f0] sm:$0xff]
          %v6154 = vld [vmem:[%s7 + $0x1f8] sm:$0xff]
          %v6155 = vld [vmem:[%s7 + $0x200] sm:$0xff]
          %v6156 = vld [vmem:[%s7 + $0x208] sm:$0xff]
          %v6157 = vld [vmem:[%s7 + $0x210] sm:$0xff]
          %v6158 = vld [vmem:[%s7 + $0x218] sm:$0xff]
          %v6159 = vld [vmem:[%s7 + $0x220] sm:$0xff]
          %v6160 = vld [vmem:[%s7 + $0x228] sm:$0xff]
          %v6161 = vld [vmem:[%s7 + $0x230] sm:$0xff]
          %v6162 = vld [vmem:[%s7 + $0x238] sm:$0xff]
          %v6163 = vld [vmem:[%s7 + $0x240] sm:$0xff]
          %v6164 = vld [vmem:[%s7 + $0x248] sm:$0xff]
          %v6165 = vld [vmem:[%s7 + $0x250] sm:$0xff]
          %v6166 = vld [vmem:[%s7 + $0x258] sm:$0xff]
          %v6167 = vld [vmem:[%s7 + $0x260] sm:$0xff]
          %v6168 = vld [vmem:[%s7 + $0x268] sm:$0xff]
          %v6169 = vld [vmem:[%s7 + $0x270] sm:$0xff]
          %v6170 = vld [vmem:[%s7 + $0x278] sm:$0xff]
          %v6171 = vld [vmem:[%s7 + $0x280] sm:$0xff]
          %v6172 = vld [vmem:[%s7 + $0x288] sm:$0xff]
          %v6173 = vld [vmem:[%s7 + $0x290] sm:$0xff]
          %v6174 = vld [vmem:[%s7 + $0x298] sm:$0xff]
          %v6175 = vld [vmem:[%s7 + $0x2a0] sm:$0xff]
          %v6176 = vld [vmem:[%s7 + $0x2a8] sm:$0xff]
          %v6177 = vld [vmem:[%s7 + $0x2b0] sm:$0xff]
          %v6178 = vld [vmem:[%s7 + $0x2b8] sm:$0xff]
          %v6179 = vld [vmem:[%s7 + $0x2c0] sm:$0xff]
          %v6180 = vld [vmem:[%s7 + $0x2c8] sm:$0xff]
          %v6181 = vld [vmem:[%s7 + $0x2d0] sm:$0xff]
          %v6182 = vld [vmem:[%s7 + $0x2d8] sm:$0xff]
          %v6183 = vld [vmem:[%s7 + $0x2e0] sm:$0xff]
          %v6184 = vld [vmem:[%s7 + $0x2e8] sm:$0xff]
          %v6185 = vld [vmem:[%s7 + $0x2f0] sm:$0xff]
          %v6186 = vld [vmem:[%s7 + $0x2f8] sm:$0xff]
          %v6187 = vld [vmem:[%s7 + $0x300] sm:$0xff]
          %v6188 = vld [vmem:[%s7 + $0x308] sm:$0xff]
          %v6189 = vld [vmem:[%s7 + $0x310] sm:$0xff]
          %v6190 = vld [vmem:[%s7 + $0x318] sm:$0xff]
          %v6191 = vld [vmem:[%s7 + $0x320] sm:$0xff]
          %v6192 = vld [vmem:[%s7 + $0x328] sm:$0xff]
          %v6193 = vld [vmem:[%s7 + $0x330] sm:$0xff]
          %v6194 = vld [vmem:[%s7 + $0x338] sm:$0xff]
          %v6195 = vld [vmem:[%s7 + $0x340] sm:$0xff]
          %v6196 = vld [vmem:[%s7 + $0x348] sm:$0xff]
          %v6197 = vld [vmem:[%s7 + $0x350] sm:$0xff]
          %v6198 = vld [vmem:[%s7 + $0x358] sm:$0xff]
          %v6199 = vld [vmem:[%s7 + $0x360] sm:$0xff]
          %v6200 = vld [vmem:[%s7 + $0x368] sm:$0xff]
          %v6201 = vld [vmem:[%s7 + $0x370] sm:$0xff]
          %v6202 = vld [vmem:[%s7 + $0x378] sm:$0xff]
          %v6203 = vld [vmem:[%s7 + $0x380] sm:$0xff]
          %v6204 = vld [vmem:[%s7 + $0x388] sm:$0xff]
          %v6205 = vld [vmem:[%s7 + $0x390] sm:$0xff]
          %v6206 = vld [vmem:[%s7 + $0x398] sm:$0xff]
          %v6207 = vld [vmem:[%s7 + $0x3a0] sm:$0xff]
          %v6208 = vld [vmem:[%s7 + $0x3a8] sm:$0xff]
          %v6209 = vld [vmem:[%s7 + $0x3b0] sm:$0xff]
          %v6210 = vld [vmem:[%s7 + $0x3b8] sm:$0xff]
          %v6211 = vld [vmem:[%s7 + $0x3c0] sm:$0xff]
          %v6212 = vld [vmem:[%s7 + $0x3c8] sm:$0xff]
          %v6213 = vld [vmem:[%s7 + $0x3d0] sm:$0xff]
          %v6214 = vld [vmem:[%s7 + $0x3d8] sm:$0xff]
          %v6215 = vld [vmem:[%s7 + $0x3e0] sm:$0xff]
          %v6216 = vld [vmem:[%s7 + $0x3e8] sm:$0xff]
          %v6217 = vld [vmem:[%s7 + $0x3f0] sm:$0xff]
          %v6218 = vld [vmem:[%s7 + $0x3f8] sm:$0xff]
          %v6219 = vld [vmem:[%s7 + $0x400] sm:$0xff]
          %v6220 = vld [vmem:[%s7 + $0x408] sm:$0xff]
          %v6221 = vld [vmem:[%s7 + $0x410] sm:$0xff]
          %v6222 = vld [vmem:[%s7 + $0x418] sm:$0xff]
          %v6223 = vld [vmem:[%s7 + $0x420] sm:$0xff]
          %v6224 = vld [vmem:[%s7 + $0x428] sm:$0xff]
          %v6225 = vld [vmem:[%s7 + $0x430] sm:$0xff]
          %v6226 = vld [vmem:[%s7 + $0x438] sm:$0xff]
          %v6227 = vld [vmem:[%s7 + $0x440] sm:$0xff]
          %v6228 = vld [vmem:[%s7 + $0x448] sm:$0xff]
          %v6229 = vld [vmem:[%s7 + $0x450] sm:$0xff]
          %v6230 = vld [vmem:[%s7 + $0x458] sm:$0xff]
          %v6231 = vld [vmem:[%s7 + $0x460] sm:$0xff]
          %v6232 = vld [vmem:[%s7 + $0x468] sm:$0xff]
          %v6233 = vld [vmem:[%s7 + $0x470] sm:$0xff]
          %v6234 = vld [vmem:[%s7 + $0x478] sm:$0xff]
          %v6235 = vld [vmem:[%s7 + $0x480] sm:$0xff]
          %v6236 = vld [vmem:[%s7 + $0x488] sm:$0xff]
          %v6237 = vld [vmem:[%s7 + $0x490] sm:$0xff]
          %v6238 = vld [vmem:[%s7 + $0x498] sm:$0xff]
          %v6239 = vld [vmem:[%s7 + $0x4a0] sm:$0xff]
          %v6240 = vld [vmem:[%s7 + $0x4a8] sm:$0xff]
          %v6241 = vld [vmem:[%s7 + $0x4b0] sm:$0xff]
          %v6242 = vld [vmem:[%s7 + $0x4b8] sm:$0xff]
          %v6243 = vld [vmem:[%s7 + $0x4c0] sm:$0xff]
          %v6244 = vld [vmem:[%s7 + $0x4c8] sm:$0xff]
          %v6245 = vld [vmem:[%s7 + $0x4d0] sm:$0xff]
          %v6246 = vld [vmem:[%s7 + $0x4d8] sm:$0xff]
          %v6247 = vld [vmem:[%s7 + $0x4e0] sm:$0xff]
          %v6248 = vld [vmem:[%s7 + $0x4e8] sm:$0xff]
          %v6249 = vld [vmem:[%s7 + $0x4f0] sm:$0xff]
          %v6250 = vld [vmem:[%s7 + $0x4f8] sm:$0xff]
          %v6251 = vld [vmem:[%s7 + $0x500] sm:$0xff]
          %v6252 = vld [vmem:[%s7 + $0x508] sm:$0xff]
          %v6253 = vld [vmem:[%s7 + $0x510] sm:$0xff]
          %v6254 = vld [vmem:[%s7 + $0x518] sm:$0xff]
          %v6255 = vld [vmem:[%s7 + $0x520] sm:$0xff]
          %v6256 = vld [vmem:[%s7 + $0x528] sm:$0xff]
          %v6257 = vld [vmem:[%s7 + $0x530] sm:$0xff]
          %v6258 = vld [vmem:[%s7 + $0x538] sm:$0xff]
          %v6259 = vld [vmem:[%s7 + $0x540] sm:$0xff]
          %v6260 = vld [vmem:[%s7 + $0x548] sm:$0xff]
          %v6261 = vld [vmem:[%s7 + $0x550] sm:$0xff]
          %v6262 = vld [vmem:[%s7 + $0x558] sm:$0xff]
          %v6263 = vld [vmem:[%s7 + $0x560] sm:$0xff]
          %v6264 = vld [vmem:[%s7 + $0x568] sm:$0xff]
          %v6265 = vld [vmem:[%s7 + $0x570] sm:$0xff]
          %v6266 = vld [vmem:[%s7 + $0x578] sm:$0xff]
          %v6267 = vld [vmem:[%s7 + $0x580] sm:$0xff]
          %v6268 = vld [vmem:[%s7 + $0x588] sm:$0xff]
          %v6269 = vld [vmem:[%s7 + $0x590] sm:$0xff]
          %v6270 = vld [vmem:[%s7 + $0x598] sm:$0xff]
          %v6271 = vld [vmem:[%s7 + $0x5a0] sm:$0xff]
          %v6272 = vld [vmem:[%s7 + $0x5a8] sm:$0xff]
          %v6273 = vld [vmem:[%s7 + $0x5b0] sm:$0xff]
          %v6274 = vld [vmem:[%s7 + $0x5b8] sm:$0xff]
          %v6275 = vld [vmem:[%s7 + $0x5c0] sm:$0xff]
          %v6276 = vld [vmem:[%s7 + $0x5c8] sm:$0xff]
          %v6277 = vld [vmem:[%s7 + $0x5d0] sm:$0xff]
          %v6278 = vld [vmem:[%s7 + $0x5d8] sm:$0xff]
          %v6279 = vld [vmem:[%s7 + $0x5e0] sm:$0xff]
          %v6280 = vld [vmem:[%s7 + $0x5e8] sm:$0xff]
          %v6281 = vld [vmem:[%s7 + $0x5f0] sm:$0xff]
          %v6282 = vld [vmem:[%s7 + $0x5f8] sm:$0xff]
          %v6283 = vld [vmem:[%s7 + $0x600] sm:$0xff]
          %v6284 = vld [vmem:[%s7 + $0x608] sm:$0xff]
          %v6285 = vld [vmem:[%s7 + $0x610] sm:$0xff]
          %v6286 = vld [vmem:[%s7 + $0x618] sm:$0xff]
          %v6287 = vld [vmem:[%s7 + $0x620] sm:$0xff]
          %v6288 = vld [vmem:[%s7 + $0x628] sm:$0xff]
          %v6289 = vld [vmem:[%s7 + $0x630] sm:$0xff]
          %v6290 = vld [vmem:[%s7 + $0x638] sm:$0xff]
          %v6291 = vld [vmem:[%s7 + $0x640] sm:$0xff]
          %v6292 = vld [vmem:[%s7 + $0x648] sm:$0xff]
          %v6293 = vld [vmem:[%s7 + $0x650] sm:$0xff]
          %v6294 = vld [vmem:[%s7 + $0x658] sm:$0xff]
          %v6295 = vld [vmem:[%s7 + $0x660] sm:$0xff]
          %v6296 = vld [vmem:[%s7 + $0x668] sm:$0xff]
          %v6297 = vld [vmem:[%s7 + $0x670] sm:$0xff]
          %v6298 = vld [vmem:[%s7 + $0x678] sm:$0xff]
          %v6299 = vld [vmem:[%s7 + $0x680] sm:$0xff]
          %v6300 = vld [vmem:[%s7 + $0x688] sm:$0xff]
          %v6301 = vld [vmem:[%s7 + $0x690] sm:$0xff]
          %v6302 = vld [vmem:[%s7 + $0x698] sm:$0xff]
          %v6303 = vld [vmem:[%s7 + $0x6a0] sm:$0xff]
          %v6304 = vld [vmem:[%s7 + $0x6a8] sm:$0xff]
          %v6305 = vld [vmem:[%s7 + $0x6b0] sm:$0xff]
          %v6306 = vld [vmem:[%s7 + $0x6b8] sm:$0xff]
          %v6307 = vld [vmem:[%s7 + $0x6c0] sm:$0xff]
          %v6308 = vld [vmem:[%s7 + $0x6c8] sm:$0xff]
          %v6309 = vld [vmem:[%s7 + $0x6d0] sm:$0xff]
          %v6310 = vld [vmem:[%s7 + $0x6d8] sm:$0xff]
          %v6311 = vld [vmem:[%s7 + $0x6e0] sm:$0xff]
          %v6312 = vld [vmem:[%s7 + $0x6e8] sm:$0xff]
          %v6313 = vld [vmem:[%s7 + $0x6f0] sm:$0xff]
          %v6314 = vld [vmem:[%s7 + $0x6f8] sm:$0xff]
          %v6315 = vld [vmem:[%s7 + $0x700] sm:$0xff]
          %v6316 = vld [vmem:[%s7 + $0x708] sm:$0xff]
          %v6317 = vld [vmem:[%s7 + $0x710] sm:$0xff]
          %v6318 = vld [vmem:[%s7 + $0x718] sm:$0xff]
          %v6319 = vld [vmem:[%s7 + $0x720] sm:$0xff]
          %v6320 = vld [vmem:[%s7 + $0x728] sm:$0xff]
          %v6321 = vld [vmem:[%s7 + $0x730] sm:$0xff]
          %v6322 = vld [vmem:[%s7 + $0x738] sm:$0xff]
          %v6323 = vld [vmem:[%s7 + $0x740] sm:$0xff]
          %v6324 = vld [vmem:[%s7 + $0x748] sm:$0xff]
          %v6325 = vld [vmem:[%s7 + $0x750] sm:$0xff]
          %v6326 = vld [vmem:[%s7 + $0x758] sm:$0xff]
          %v6327 = vld [vmem:[%s7 + $0x760] sm:$0xff]
          %v6328 = vld [vmem:[%s7 + $0x768] sm:$0xff]
          %v6329 = vld [vmem:[%s7 + $0x770] sm:$0xff]
          %v6330 = vld [vmem:[%s7 + $0x778] sm:$0xff]
          %v6331 = vld [vmem:[%s7 + $0x780] sm:$0xff]
          %v6332 = vld [vmem:[%s7 + $0x788] sm:$0xff]
          %v6333 = vld [vmem:[%s7 + $0x790] sm:$0xff]
          %v6334 = vld [vmem:[%s7 + $0x798] sm:$0xff]
          %v6335 = vld [vmem:[%s7 + $0x7a0] sm:$0xff]
          %v6336 = vld [vmem:[%s7 + $0x7a8] sm:$0xff]
          %v6337 = vld [vmem:[%s7 + $0x7b0] sm:$0xff]
          %v6338 = vld [vmem:[%s7 + $0x7b8] sm:$0xff]
          %v6339 = vld [vmem:[%s7 + $0x7c0] sm:$0xff]
          %v6340 = vld [vmem:[%s7 + $0x7c8] sm:$0xff]
          %v6341 = vld [vmem:[%s7 + $0x7d0] sm:$0xff]
          %v6342 = vld [vmem:[%s7 + $0x7d8] sm:$0xff]
          %v6343 = vld [vmem:[%s7 + $0x7e0] sm:$0xff]
          %v6344 = vld [vmem:[%s7 + $0x7e8] sm:$0xff]
          %v6345 = vld [vmem:[%s7 + $0x7f0] sm:$0xff]
          %v6346 = vld [vmem:[%s7 + $0x7f8] sm:$0xff]
          %v6347 = vld [vmem:[%s8] sm:$0xf]
          %v6349 = vlaneseq
          %v6350 = vshrl.u32 %v6349, 7
          %v6351 = vsub.s32 0, %v6350
          %v6352 = vrot.slane %v6347, %v6351
          %v6353 = vlaneseq
          %v6354 = vshrl.u32 %v6353, 7
          %v6355 = vsub.s32 1, %v6354
          %v6356 = vrot.slane %v6347, %v6355
          %v6357 = vlaneseq
          %v6358 = vshrl.u32 %v6357, 7
          %v6359 = vsub.s32 2, %v6358
          %v6360 = vrot.slane %v6347, %v6359
          %v6361 = vlaneseq
          %v6362 = vshrl.u32 %v6361, 7
          %v6363 = vsub.s32 3, %v6362
          %v6364 = vrot.slane %v6347, %v6363
          %v6625 = vunpack.c.l.b16 %v6091
          %v6626 = vunpack.c.h.b16 %v6091
          %v6627 = vunpack.c.l.b16 %v6092
          %v6628 = vunpack.c.h.b16 %v6092
          %v6629 = vunpack.c.l.b16 %v6093
          %v6630 = vunpack.c.h.b16 %v6093
          %v6631 = vunpack.c.l.b16 %v6094
          %v6632 = vunpack.c.h.b16 %v6094
          %v6633 = vunpack.c.l.b16 %v6095
          %v6634 = vunpack.c.h.b16 %v6095
          %v6635 = vunpack.c.l.b16 %v6096
          %v6636 = vunpack.c.h.b16 %v6096
          %v6637 = vunpack.c.l.b16 %v6097
          %v6638 = vunpack.c.h.b16 %v6097
          %v6639 = vunpack.c.l.b16 %v6098
          %v6640 = vunpack.c.h.b16 %v6098
          %v6641 = vunpack.c.l.b16 %v6099
          %v6642 = vunpack.c.h.b16 %v6099
          %v6643 = vunpack.c.l.b16 %v6100
          %v6644 = vunpack.c.h.b16 %v6100
          %v6645 = vunpack.c.l.b16 %v6101
          %v6646 = vunpack.c.h.b16 %v6101
          %v6647 = vunpack.c.l.b16 %v6102
          %v6648 = vunpack.c.h.b16 %v6102
          %v6649 = vunpack.c.l.b16 %v6103
          %v6650 = vunpack.c.h.b16 %v6103
          %v6651 = vunpack.c.l.b16 %v6104
          %v6652 = vunpack.c.h.b16 %v6104
          %v6653 = vunpack.c.l.b16 %v6105
          %v6654 = vunpack.c.h.b16 %v6105
          %v6655 = vunpack.c.l.b16 %v6106
          %v6656 = vunpack.c.h.b16 %v6106
          %v6657 = vunpack.c.l.b16 %v6107
          %v6658 = vunpack.c.h.b16 %v6107
          %v6659 = vunpack.c.l.b16 %v6108
          %v6660 = vunpack.c.h.b16 %v6108
          %v6661 = vunpack.c.l.b16 %v6109
          %v6662 = vunpack.c.h.b16 %v6109
          %v6663 = vunpack.c.l.b16 %v6110
          %v6664 = vunpack.c.h.b16 %v6110
          %v6665 = vunpack.c.l.b16 %v6111
          %v6666 = vunpack.c.h.b16 %v6111
          %v6667 = vunpack.c.l.b16 %v6112
          %v6668 = vunpack.c.h.b16 %v6112
          %v6669 = vunpack.c.l.b16 %v6113
          %v6670 = vunpack.c.h.b16 %v6113
          %v6671 = vunpack.c.l.b16 %v6114
          %v6672 = vunpack.c.h.b16 %v6114
          %v6673 = vunpack.c.l.b16 %v6115
          %v6674 = vunpack.c.h.b16 %v6115
          %v6675 = vunpack.c.l.b16 %v6116
          %v6676 = vunpack.c.h.b16 %v6116
          %v6677 = vunpack.c.l.b16 %v6117
          %v6678 = vunpack.c.h.b16 %v6117
          %v6679 = vunpack.c.l.b16 %v6118
          %v6680 = vunpack.c.h.b16 %v6118
          %v6681 = vunpack.c.l.b16 %v6119
          %v6682 = vunpack.c.h.b16 %v6119
          %v6683 = vunpack.c.l.b16 %v6120
          %v6684 = vunpack.c.h.b16 %v6120
          %v6685 = vunpack.c.l.b16 %v6121
          %v6686 = vunpack.c.h.b16 %v6121
          %v6687 = vunpack.c.l.b16 %v6122
          %v6688 = vunpack.c.h.b16 %v6122
          %v6689 = vunpack.c.l.b16 %v6123
          %v6690 = vunpack.c.h.b16 %v6123
          %v6691 = vunpack.c.l.b16 %v6124
          %v6692 = vunpack.c.h.b16 %v6124
          %v6693 = vunpack.c.l.b16 %v6125
          %v6694 = vunpack.c.h.b16 %v6125
          %v6695 = vunpack.c.l.b16 %v6126
          %v6696 = vunpack.c.h.b16 %v6126
          %v6697 = vunpack.c.l.b16 %v6127
          %v6698 = vunpack.c.h.b16 %v6127
          %v6699 = vunpack.c.l.b16 %v6128
          %v6700 = vunpack.c.h.b16 %v6128
          %v6701 = vunpack.c.l.b16 %v6129
          %v6702 = vunpack.c.h.b16 %v6129
          %v6703 = vunpack.c.l.b16 %v6130
          %v6704 = vunpack.c.h.b16 %v6130
          %v6705 = vunpack.c.l.b16 %v6131
          %v6706 = vunpack.c.h.b16 %v6131
          %v6707 = vunpack.c.l.b16 %v6132
          %v6708 = vunpack.c.h.b16 %v6132
          %v6709 = vunpack.c.l.b16 %v6133
          %v6710 = vunpack.c.h.b16 %v6133
          %v6711 = vunpack.c.l.b16 %v6134
          %v6712 = vunpack.c.h.b16 %v6134
          %v6713 = vunpack.c.l.b16 %v6135
          %v6714 = vunpack.c.h.b16 %v6135
          %v6715 = vunpack.c.l.b16 %v6136
          %v6716 = vunpack.c.h.b16 %v6136
          %v6717 = vunpack.c.l.b16 %v6137
          %v6718 = vunpack.c.h.b16 %v6137
          %v6719 = vunpack.c.l.b16 %v6138
          %v6720 = vunpack.c.h.b16 %v6138
          %v6721 = vunpack.c.l.b16 %v6139
          %v6722 = vunpack.c.h.b16 %v6139
          %v6723 = vunpack.c.l.b16 %v6140
          %v6724 = vunpack.c.h.b16 %v6140
          %v6725 = vunpack.c.l.b16 %v6141
          %v6726 = vunpack.c.h.b16 %v6141
          %v6727 = vunpack.c.l.b16 %v6142
          %v6728 = vunpack.c.h.b16 %v6142
          %v6729 = vunpack.c.l.b16 %v6143
          %v6730 = vunpack.c.h.b16 %v6143
          %v6731 = vunpack.c.l.b16 %v6144
          %v6732 = vunpack.c.h.b16 %v6144
          %v6733 = vunpack.c.l.b16 %v6145
          %v6734 = vunpack.c.h.b16 %v6145
          %v6735 = vunpack.c.l.b16 %v6146
          %v6736 = vunpack.c.h.b16 %v6146
          %v6737 = vunpack.c.l.b16 %v6147
          %v6738 = vunpack.c.h.b16 %v6147
          %v6739 = vunpack.c.l.b16 %v6148
          %v6740 = vunpack.c.h.b16 %v6148
          %v6741 = vunpack.c.l.b16 %v6149
          %v6742 = vunpack.c.h.b16 %v6149
          %v6743 = vunpack.c.l.b16 %v6150
          %v6744 = vunpack.c.h.b16 %v6150
          %v6745 = vunpack.c.l.b16 %v6151
          %v6746 = vunpack.c.h.b16 %v6151
          %v6747 = vunpack.c.l.b16 %v6152
          %v6748 = vunpack.c.h.b16 %v6152
          %v6749 = vunpack.c.l.b16 %v6153
          %v6750 = vunpack.c.h.b16 %v6153
          %v6751 = vunpack.c.l.b16 %v6154
          %v6752 = vunpack.c.h.b16 %v6154
          %v6753 = vunpack.c.l.b16 %v6155
          %v6754 = vunpack.c.h.b16 %v6155
          %v6755 = vunpack.c.l.b16 %v6156
          %v6756 = vunpack.c.h.b16 %v6156
          %v6757 = vunpack.c.l.b16 %v6157
          %v6758 = vunpack.c.h.b16 %v6157
          %v6759 = vunpack.c.l.b16 %v6158
          %v6760 = vunpack.c.h.b16 %v6158
          %v6761 = vunpack.c.l.b16 %v6159
          %v6762 = vunpack.c.h.b16 %v6159
          %v6763 = vunpack.c.l.b16 %v6160
          %v6764 = vunpack.c.h.b16 %v6160
          %v6765 = vunpack.c.l.b16 %v6161
          %v6766 = vunpack.c.h.b16 %v6161
          %v6767 = vunpack.c.l.b16 %v6162
          %v6768 = vunpack.c.h.b16 %v6162
          %v6769 = vunpack.c.l.b16 %v6163
          %v6770 = vunpack.c.h.b16 %v6163
          %v6771 = vunpack.c.l.b16 %v6164
          %v6772 = vunpack.c.h.b16 %v6164
          %v6773 = vunpack.c.l.b16 %v6165
          %v6774 = vunpack.c.h.b16 %v6165
          %v6775 = vunpack.c.l.b16 %v6166
          %v6776 = vunpack.c.h.b16 %v6166
          %v6777 = vunpack.c.l.b16 %v6167
          %v6778 = vunpack.c.h.b16 %v6167
          %v6779 = vunpack.c.l.b16 %v6168
          %v6780 = vunpack.c.h.b16 %v6168
          %v6781 = vunpack.c.l.b16 %v6169
          %v6782 = vunpack.c.h.b16 %v6169
          %v6783 = vunpack.c.l.b16 %v6170
          %v6784 = vunpack.c.h.b16 %v6170
          %v6785 = vunpack.c.l.b16 %v6171
          %v6786 = vunpack.c.h.b16 %v6171
          %v6787 = vunpack.c.l.b16 %v6172
          %v6788 = vunpack.c.h.b16 %v6172
          %v6789 = vunpack.c.l.b16 %v6173
          %v6790 = vunpack.c.h.b16 %v6173
          %v6791 = vunpack.c.l.b16 %v6174
          %v6792 = vunpack.c.h.b16 %v6174
          %v6793 = vunpack.c.l.b16 %v6175
          %v6794 = vunpack.c.h.b16 %v6175
          %v6795 = vunpack.c.l.b16 %v6176
          %v6796 = vunpack.c.h.b16 %v6176
          %v6797 = vunpack.c.l.b16 %v6177
          %v6798 = vunpack.c.h.b16 %v6177
          %v6799 = vunpack.c.l.b16 %v6178
          %v6800 = vunpack.c.h.b16 %v6178
          %v6801 = vunpack.c.l.b16 %v6179
          %v6802 = vunpack.c.h.b16 %v6179
          %v6803 = vunpack.c.l.b16 %v6180
          %v6804 = vunpack.c.h.b16 %v6180
          %v6805 = vunpack.c.l.b16 %v6181
          %v6806 = vunpack.c.h.b16 %v6181
          %v6807 = vunpack.c.l.b16 %v6182
          %v6808 = vunpack.c.h.b16 %v6182
          %v6809 = vunpack.c.l.b16 %v6183
          %v6810 = vunpack.c.h.b16 %v6183
          %v6811 = vunpack.c.l.b16 %v6184
          %v6812 = vunpack.c.h.b16 %v6184
          %v6813 = vunpack.c.l.b16 %v6185
          %v6814 = vunpack.c.h.b16 %v6185
          %v6815 = vunpack.c.l.b16 %v6186
          %v6816 = vunpack.c.h.b16 %v6186
          %v6817 = vunpack.c.l.b16 %v6187
          %v6818 = vunpack.c.h.b16 %v6187
          %v6819 = vunpack.c.l.b16 %v6188
          %v6820 = vunpack.c.h.b16 %v6188
          %v6821 = vunpack.c.l.b16 %v6189
          %v6822 = vunpack.c.h.b16 %v6189
          %v6823 = vunpack.c.l.b16 %v6190
          %v6824 = vunpack.c.h.b16 %v6190
          %v6825 = vunpack.c.l.b16 %v6191
          %v6826 = vunpack.c.h.b16 %v6191
          %v6827 = vunpack.c.l.b16 %v6192
          %v6828 = vunpack.c.h.b16 %v6192
          %v6829 = vunpack.c.l.b16 %v6193
          %v6830 = vunpack.c.h.b16 %v6193
          %v6831 = vunpack.c.l.b16 %v6194
          %v6832 = vunpack.c.h.b16 %v6194
          %v6833 = vunpack.c.l.b16 %v6195
          %v6834 = vunpack.c.h.b16 %v6195
          %v6835 = vunpack.c.l.b16 %v6196
          %v6836 = vunpack.c.h.b16 %v6196
          %v6837 = vunpack.c.l.b16 %v6197
          %v6838 = vunpack.c.h.b16 %v6197
          %v6839 = vunpack.c.l.b16 %v6198
          %v6840 = vunpack.c.h.b16 %v6198
          %v6841 = vunpack.c.l.b16 %v6199
          %v6842 = vunpack.c.h.b16 %v6199
          %v6843 = vunpack.c.l.b16 %v6200
          %v6844 = vunpack.c.h.b16 %v6200
          %v6845 = vunpack.c.l.b16 %v6201
          %v6846 = vunpack.c.h.b16 %v6201
          %v6847 = vunpack.c.l.b16 %v6202
          %v6848 = vunpack.c.h.b16 %v6202
          %v6849 = vunpack.c.l.b16 %v6203
          %v6850 = vunpack.c.h.b16 %v6203
          %v6851 = vunpack.c.l.b16 %v6204
          %v6852 = vunpack.c.h.b16 %v6204
          %v6853 = vunpack.c.l.b16 %v6205
          %v6854 = vunpack.c.h.b16 %v6205
          %v6855 = vunpack.c.l.b16 %v6206
          %v6856 = vunpack.c.h.b16 %v6206
          %v6857 = vunpack.c.l.b16 %v6207
          %v6858 = vunpack.c.h.b16 %v6207
          %v6859 = vunpack.c.l.b16 %v6208
          %v6860 = vunpack.c.h.b16 %v6208
          %v6861 = vunpack.c.l.b16 %v6209
          %v6862 = vunpack.c.h.b16 %v6209
          %v6863 = vunpack.c.l.b16 %v6210
          %v6864 = vunpack.c.h.b16 %v6210
          %v6865 = vunpack.c.l.b16 %v6211
          %v6866 = vunpack.c.h.b16 %v6211
          %v6867 = vunpack.c.l.b16 %v6212
          %v6868 = vunpack.c.h.b16 %v6212
          %v6869 = vunpack.c.l.b16 %v6213
          %v6870 = vunpack.c.h.b16 %v6213
          %v6871 = vunpack.c.l.b16 %v6214
          %v6872 = vunpack.c.h.b16 %v6214
          %v6873 = vunpack.c.l.b16 %v6215
          %v6874 = vunpack.c.h.b16 %v6215
          %v6875 = vunpack.c.l.b16 %v6216
          %v6876 = vunpack.c.h.b16 %v6216
          %v6877 = vunpack.c.l.b16 %v6217
          %v6878 = vunpack.c.h.b16 %v6217
          %v6879 = vunpack.c.l.b16 %v6218
          %v6880 = vunpack.c.h.b16 %v6218
          %v6881 = vunpack.c.l.b16 %v6219
          %v6882 = vunpack.c.h.b16 %v6219
          %v6883 = vunpack.c.l.b16 %v6220
          %v6884 = vunpack.c.h.b16 %v6220
          %v6885 = vunpack.c.l.b16 %v6221
          %v6886 = vunpack.c.h.b16 %v6221
          %v6887 = vunpack.c.l.b16 %v6222
          %v6888 = vunpack.c.h.b16 %v6222
          %v6889 = vunpack.c.l.b16 %v6223
          %v6890 = vunpack.c.h.b16 %v6223
          %v6891 = vunpack.c.l.b16 %v6224
          %v6892 = vunpack.c.h.b16 %v6224
          %v6893 = vunpack.c.l.b16 %v6225
          %v6894 = vunpack.c.h.b16 %v6225
          %v6895 = vunpack.c.l.b16 %v6226
          %v6896 = vunpack.c.h.b16 %v6226
          %v6897 = vunpack.c.l.b16 %v6227
          %v6898 = vunpack.c.h.b16 %v6227
          %v6899 = vunpack.c.l.b16 %v6228
          %v6900 = vunpack.c.h.b16 %v6228
          %v6901 = vunpack.c.l.b16 %v6229
          %v6902 = vunpack.c.h.b16 %v6229
          %v6903 = vunpack.c.l.b16 %v6230
          %v6904 = vunpack.c.h.b16 %v6230
          %v6905 = vunpack.c.l.b16 %v6231
          %v6906 = vunpack.c.h.b16 %v6231
          %v6907 = vunpack.c.l.b16 %v6232
          %v6908 = vunpack.c.h.b16 %v6232
          %v6909 = vunpack.c.l.b16 %v6233
          %v6910 = vunpack.c.h.b16 %v6233
          %v6911 = vunpack.c.l.b16 %v6234
          %v6912 = vunpack.c.h.b16 %v6234
          %v6913 = vunpack.c.l.b16 %v6235
          %v6914 = vunpack.c.h.b16 %v6235
          %v6915 = vunpack.c.l.b16 %v6236
          %v6916 = vunpack.c.h.b16 %v6236
          %v6917 = vunpack.c.l.b16 %v6237
          %v6918 = vunpack.c.h.b16 %v6237
          %v6919 = vunpack.c.l.b16 %v6238
          %v6920 = vunpack.c.h.b16 %v6238
          %v6921 = vunpack.c.l.b16 %v6239
          %v6922 = vunpack.c.h.b16 %v6239
          %v6923 = vunpack.c.l.b16 %v6240
          %v6924 = vunpack.c.h.b16 %v6240
          %v6925 = vunpack.c.l.b16 %v6241
          %v6926 = vunpack.c.h.b16 %v6241
          %v6927 = vunpack.c.l.b16 %v6242
          %v6928 = vunpack.c.h.b16 %v6242
          %v6929 = vunpack.c.l.b16 %v6243
          %v6930 = vunpack.c.h.b16 %v6243
          %v6931 = vunpack.c.l.b16 %v6244
          %v6932 = vunpack.c.h.b16 %v6244
          %v6933 = vunpack.c.l.b16 %v6245
          %v6934 = vunpack.c.h.b16 %v6245
          %v6935 = vunpack.c.l.b16 %v6246
          %v6936 = vunpack.c.h.b16 %v6246
          %v6937 = vunpack.c.l.b16 %v6247
          %v6938 = vunpack.c.h.b16 %v6247
          %v6939 = vunpack.c.l.b16 %v6248
          %v6940 = vunpack.c.h.b16 %v6248
          %v6941 = vunpack.c.l.b16 %v6249
          %v6942 = vunpack.c.h.b16 %v6249
          %v6943 = vunpack.c.l.b16 %v6250
          %v6944 = vunpack.c.h.b16 %v6250
          %v6945 = vunpack.c.l.b16 %v6251
          %v6946 = vunpack.c.h.b16 %v6251
          %v6947 = vunpack.c.l.b16 %v6252
          %v6948 = vunpack.c.h.b16 %v6252
          %v6949 = vunpack.c.l.b16 %v6253
          %v6950 = vunpack.c.h.b16 %v6253
          %v6951 = vunpack.c.l.b16 %v6254
          %v6952 = vunpack.c.h.b16 %v6254
          %v6953 = vunpack.c.l.b16 %v6255
          %v6954 = vunpack.c.h.b16 %v6255
          %v6955 = vunpack.c.l.b16 %v6256
          %v6956 = vunpack.c.h.b16 %v6256
          %v6957 = vunpack.c.l.b16 %v6257
          %v6958 = vunpack.c.h.b16 %v6257
          %v6959 = vunpack.c.l.b16 %v6258
          %v6960 = vunpack.c.h.b16 %v6258
          %v6961 = vunpack.c.l.b16 %v6259
          %v6962 = vunpack.c.h.b16 %v6259
          %v6963 = vunpack.c.l.b16 %v6260
          %v6964 = vunpack.c.h.b16 %v6260
          %v6965 = vunpack.c.l.b16 %v6261
          %v6966 = vunpack.c.h.b16 %v6261
          %v6967 = vunpack.c.l.b16 %v6262
          %v6968 = vunpack.c.h.b16 %v6262
          %v6969 = vunpack.c.l.b16 %v6263
          %v6970 = vunpack.c.h.b16 %v6263
          %v6971 = vunpack.c.l.b16 %v6264
          %v6972 = vunpack.c.h.b16 %v6264
          %v6973 = vunpack.c.l.b16 %v6265
          %v6974 = vunpack.c.h.b16 %v6265
          %v6975 = vunpack.c.l.b16 %v6266
          %v6976 = vunpack.c.h.b16 %v6266
          %v6977 = vunpack.c.l.b16 %v6267
          %v6978 = vunpack.c.h.b16 %v6267
          %v6979 = vunpack.c.l.b16 %v6268
          %v6980 = vunpack.c.h.b16 %v6268
          %v6981 = vunpack.c.l.b16 %v6269
          %v6982 = vunpack.c.h.b16 %v6269
          %v6983 = vunpack.c.l.b16 %v6270
          %v6984 = vunpack.c.h.b16 %v6270
          %v6985 = vunpack.c.l.b16 %v6271
          %v6986 = vunpack.c.h.b16 %v6271
          %v6987 = vunpack.c.l.b16 %v6272
          %v6988 = vunpack.c.h.b16 %v6272
          %v6989 = vunpack.c.l.b16 %v6273
          %v6990 = vunpack.c.h.b16 %v6273
          %v6991 = vunpack.c.l.b16 %v6274
          %v6992 = vunpack.c.h.b16 %v6274
          %v6993 = vunpack.c.l.b16 %v6275
          %v6994 = vunpack.c.h.b16 %v6275
          %v6995 = vunpack.c.l.b16 %v6276
          %v6996 = vunpack.c.h.b16 %v6276
          %v6997 = vunpack.c.l.b16 %v6277
          %v6998 = vunpack.c.h.b16 %v6277
          %v6999 = vunpack.c.l.b16 %v6278
          %v7000 = vunpack.c.h.b16 %v6278
          %v7001 = vunpack.c.l.b16 %v6279
          %v7002 = vunpack.c.h.b16 %v6279
          %v7003 = vunpack.c.l.b16 %v6280
          %v7004 = vunpack.c.h.b16 %v6280
          %v7005 = vunpack.c.l.b16 %v6281
          %v7006 = vunpack.c.h.b16 %v6281
          %v7007 = vunpack.c.l.b16 %v6282
          %v7008 = vunpack.c.h.b16 %v6282
          %v7009 = vunpack.c.l.b16 %v6283
          %v7010 = vunpack.c.h.b16 %v6283
          %v7011 = vunpack.c.l.b16 %v6284
          %v7012 = vunpack.c.h.b16 %v6284
          %v7013 = vunpack.c.l.b16 %v6285
          %v7014 = vunpack.c.h.b16 %v6285
          %v7015 = vunpack.c.l.b16 %v6286
          %v7016 = vunpack.c.h.b16 %v6286
          %v7017 = vunpack.c.l.b16 %v6287
          %v7018 = vunpack.c.h.b16 %v6287
          %v7019 = vunpack.c.l.b16 %v6288
          %v7020 = vunpack.c.h.b16 %v6288
          %v7021 = vunpack.c.l.b16 %v6289
          %v7022 = vunpack.c.h.b16 %v6289
          %v7023 = vunpack.c.l.b16 %v6290
          %v7024 = vunpack.c.h.b16 %v6290
          %v7025 = vunpack.c.l.b16 %v6291
          %v7026 = vunpack.c.h.b16 %v6291
          %v7027 = vunpack.c.l.b16 %v6292
          %v7028 = vunpack.c.h.b16 %v6292
          %v7029 = vunpack.c.l.b16 %v6293
          %v7030 = vunpack.c.h.b16 %v6293
          %v7031 = vunpack.c.l.b16 %v6294
          %v7032 = vunpack.c.h.b16 %v6294
          %v7033 = vunpack.c.l.b16 %v6295
          %v7034 = vunpack.c.h.b16 %v6295
          %v7035 = vunpack.c.l.b16 %v6296
          %v7036 = vunpack.c.h.b16 %v6296
          %v7037 = vunpack.c.l.b16 %v6297
          %v7038 = vunpack.c.h.b16 %v6297
          %v7039 = vunpack.c.l.b16 %v6298
          %v7040 = vunpack.c.h.b16 %v6298
          %v7041 = vunpack.c.l.b16 %v6299
          %v7042 = vunpack.c.h.b16 %v6299
          %v7043 = vunpack.c.l.b16 %v6300
          %v7044 = vunpack.c.h.b16 %v6300
          %v7045 = vunpack.c.l.b16 %v6301
          %v7046 = vunpack.c.h.b16 %v6301
          %v7047 = vunpack.c.l.b16 %v6302
          %v7048 = vunpack.c.h.b16 %v6302
          %v7049 = vunpack.c.l.b16 %v6303
          %v7050 = vunpack.c.h.b16 %v6303
          %v7051 = vunpack.c.l.b16 %v6304
          %v7052 = vunpack.c.h.b16 %v6304
          %v7053 = vunpack.c.l.b16 %v6305
          %v7054 = vunpack.c.h.b16 %v6305
          %v7055 = vunpack.c.l.b16 %v6306
          %v7056 = vunpack.c.h.b16 %v6306
          %v7057 = vunpack.c.l.b16 %v6307
          %v7058 = vunpack.c.h.b16 %v6307
          %v7059 = vunpack.c.l.b16 %v6308
          %v7060 = vunpack.c.h.b16 %v6308
          %v7061 = vunpack.c.l.b16 %v6309
          %v7062 = vunpack.c.h.b16 %v6309
          %v7063 = vunpack.c.l.b16 %v6310
          %v7064 = vunpack.c.h.b16 %v6310
          %v7065 = vunpack.c.l.b16 %v6311
          %v7066 = vunpack.c.h.b16 %v6311
          %v7067 = vunpack.c.l.b16 %v6312
          %v7068 = vunpack.c.h.b16 %v6312
          %v7069 = vunpack.c.l.b16 %v6313
          %v7070 = vunpack.c.h.b16 %v6313
          %v7071 = vunpack.c.l.b16 %v6314
          %v7072 = vunpack.c.h.b16 %v6314
          %v7073 = vunpack.c.l.b16 %v6315
          %v7074 = vunpack.c.h.b16 %v6315
          %v7075 = vunpack.c.l.b16 %v6316
          %v7076 = vunpack.c.h.b16 %v6316
          %v7077 = vunpack.c.l.b16 %v6317
          %v7078 = vunpack.c.h.b16 %v6317
          %v7079 = vunpack.c.l.b16 %v6318
          %v7080 = vunpack.c.h.b16 %v6318
          %v7081 = vunpack.c.l.b16 %v6319
          %v7082 = vunpack.c.h.b16 %v6319
          %v7083 = vunpack.c.l.b16 %v6320
          %v7084 = vunpack.c.h.b16 %v6320
          %v7085 = vunpack.c.l.b16 %v6321
          %v7086 = vunpack.c.h.b16 %v6321
          %v7087 = vunpack.c.l.b16 %v6322
          %v7088 = vunpack.c.h.b16 %v6322
          %v7089 = vunpack.c.l.b16 %v6323
          %v7090 = vunpack.c.h.b16 %v6323
          %v7091 = vunpack.c.l.b16 %v6324
          %v7092 = vunpack.c.h.b16 %v6324
          %v7093 = vunpack.c.l.b16 %v6325
          %v7094 = vunpack.c.h.b16 %v6325
          %v7095 = vunpack.c.l.b16 %v6326
          %v7096 = vunpack.c.h.b16 %v6326
          %v7097 = vunpack.c.l.b16 %v6327
          %v7098 = vunpack.c.h.b16 %v6327
          %v7099 = vunpack.c.l.b16 %v6328
          %v7100 = vunpack.c.h.b16 %v6328
          %v7101 = vunpack.c.l.b16 %v6329
          %v7102 = vunpack.c.h.b16 %v6329
          %v7103 = vunpack.c.l.b16 %v6330
          %v7104 = vunpack.c.h.b16 %v6330
          %v7105 = vunpack.c.l.b16 %v6331
          %v7106 = vunpack.c.h.b16 %v6331
          %v7107 = vunpack.c.l.b16 %v6332
          %v7108 = vunpack.c.h.b16 %v6332
          %v7109 = vunpack.c.l.b16 %v6333
          %v7110 = vunpack.c.h.b16 %v6333
          %v7111 = vunpack.c.l.b16 %v6334
          %v7112 = vunpack.c.h.b16 %v6334
          %v7113 = vunpack.c.l.b16 %v6335
          %v7114 = vunpack.c.h.b16 %v6335
          %v7115 = vunpack.c.l.b16 %v6336
          %v7116 = vunpack.c.h.b16 %v6336
          %v7117 = vunpack.c.l.b16 %v6337
          %v7118 = vunpack.c.h.b16 %v6337
          %v7119 = vunpack.c.l.b16 %v6338
          %v7120 = vunpack.c.h.b16 %v6338
          %v7121 = vunpack.c.l.b16 %v6339
          %v7122 = vunpack.c.h.b16 %v6339
          %v7123 = vunpack.c.l.b16 %v6340
          %v7124 = vunpack.c.h.b16 %v6340
          %v7125 = vunpack.c.l.b16 %v6341
          %v7126 = vunpack.c.h.b16 %v6341
          %v7127 = vunpack.c.l.b16 %v6342
          %v7128 = vunpack.c.h.b16 %v6342
          %v7129 = vunpack.c.l.b16 %v6343
          %v7130 = vunpack.c.h.b16 %v6343
          %v7131 = vunpack.c.l.b16 %v6344
          %v7132 = vunpack.c.h.b16 %v6344
          %v7133 = vunpack.c.l.b16 %v6345
          %v7134 = vunpack.c.h.b16 %v6345
          %v7135 = vunpack.c.l.b16 %v6346
          %v7136 = vunpack.c.h.b16 %v6346
          %v7137 = vpack.c.b16 %v6629, %v6625
          %v7138 = vpack.c.b16 %v6630, %v6626
          %v7139 = vpack.c.b16 %v6631, %v6627
          %v7140 = vpack.c.b16 %v6632, %v6628
          %v7141 = vpack.c.b16 %v6637, %v6633
          %v7142 = vpack.c.b16 %v6638, %v6634
          %v7143 = vpack.c.b16 %v6639, %v6635
          %v7144 = vpack.c.b16 %v6640, %v6636
          %v7145 = vpack.c.b16 %v6645, %v6641
          %v7146 = vpack.c.b16 %v6646, %v6642
          %v7147 = vpack.c.b16 %v6647, %v6643
          %v7148 = vpack.c.b16 %v6648, %v6644
          %v7149 = vpack.c.b16 %v6653, %v6649
          %v7150 = vpack.c.b16 %v6654, %v6650
          %v7151 = vpack.c.b16 %v6655, %v6651
          %v7152 = vpack.c.b16 %v6656, %v6652
          %v7153 = vpack.c.b16 %v6661, %v6657
          %v7154 = vpack.c.b16 %v6662, %v6658
          %v7155 = vpack.c.b16 %v6663, %v6659
          %v7156 = vpack.c.b16 %v6664, %v6660
          %v7157 = vpack.c.b16 %v6669, %v6665
          %v7158 = vpack.c.b16 %v6670, %v6666
          %v7159 = vpack.c.b16 %v6671, %v6667
          %v7160 = vpack.c.b16 %v6672, %v6668
          %v7161 = vpack.c.b16 %v6677, %v6673
          %v7162 = vpack.c.b16 %v6678, %v6674
          %v7163 = vpack.c.b16 %v6679, %v6675
          %v7164 = vpack.c.b16 %v6680, %v6676
          %v7165 = vpack.c.b16 %v6685, %v6681
          %v7166 = vpack.c.b16 %v6686, %v6682
          %v7167 = vpack.c.b16 %v6687, %v6683
          %v7168 = vpack.c.b16 %v6688, %v6684
          %v7169 = vpack.c.b16 %v6693, %v6689
          %v7170 = vpack.c.b16 %v6694, %v6690
          %v7171 = vpack.c.b16 %v6695, %v6691
          %v7172 = vpack.c.b16 %v6696, %v6692
          %v7173 = vpack.c.b16 %v6701, %v6697
          %v7174 = vpack.c.b16 %v6702, %v6698
          %v7175 = vpack.c.b16 %v6703, %v6699
          %v7176 = vpack.c.b16 %v6704, %v6700
          %v7177 = vpack.c.b16 %v6709, %v6705
          %v7178 = vpack.c.b16 %v6710, %v6706
          %v7179 = vpack.c.b16 %v6711, %v6707
          %v7180 = vpack.c.b16 %v6712, %v6708
          %v7181 = vpack.c.b16 %v6717, %v6713
          %v7182 = vpack.c.b16 %v6718, %v6714
          %v7183 = vpack.c.b16 %v6719, %v6715
          %v7184 = vpack.c.b16 %v6720, %v6716
          %v7185 = vpack.c.b16 %v6725, %v6721
          %v7186 = vpack.c.b16 %v6726, %v6722
          %v7187 = vpack.c.b16 %v6727, %v6723
          %v7188 = vpack.c.b16 %v6728, %v6724
          %v7189 = vpack.c.b16 %v6733, %v6729
          %v7190 = vpack.c.b16 %v6734, %v6730
          %v7191 = vpack.c.b16 %v6735, %v6731
          %v7192 = vpack.c.b16 %v6736, %v6732
          %v7193 = vpack.c.b16 %v6741, %v6737
          %v7194 = vpack.c.b16 %v6742, %v6738
          %v7195 = vpack.c.b16 %v6743, %v6739
          %v7196 = vpack.c.b16 %v6744, %v6740
          %v7197 = vpack.c.b16 %v6749, %v6745
          %v7198 = vpack.c.b16 %v6750, %v6746
          %v7199 = vpack.c.b16 %v6751, %v6747
          %v7200 = vpack.c.b16 %v6752, %v6748
          %v7201 = vpack.c.b16 %v6757, %v6753
          %v7202 = vpack.c.b16 %v6758, %v6754
          %v7203 = vpack.c.b16 %v6759, %v6755
          %v7204 = vpack.c.b16 %v6760, %v6756
          %v7205 = vpack.c.b16 %v6765, %v6761
          %v7206 = vpack.c.b16 %v6766, %v6762
          %v7207 = vpack.c.b16 %v6767, %v6763
          %v7208 = vpack.c.b16 %v6768, %v6764
          %v7209 = vpack.c.b16 %v6773, %v6769
          %v7210 = vpack.c.b16 %v6774, %v6770
          %v7211 = vpack.c.b16 %v6775, %v6771
          %v7212 = vpack.c.b16 %v6776, %v6772
          %v7213 = vpack.c.b16 %v6781, %v6777
          %v7214 = vpack.c.b16 %v6782, %v6778
          %v7215 = vpack.c.b16 %v6783, %v6779
          %v7216 = vpack.c.b16 %v6784, %v6780
          %v7217 = vpack.c.b16 %v6789, %v6785
          %v7218 = vpack.c.b16 %v6790, %v6786
          %v7219 = vpack.c.b16 %v6791, %v6787
          %v7220 = vpack.c.b16 %v6792, %v6788
          %v7221 = vpack.c.b16 %v6797, %v6793
          %v7222 = vpack.c.b16 %v6798, %v6794
          %v7223 = vpack.c.b16 %v6799, %v6795
          %v7224 = vpack.c.b16 %v6800, %v6796
          %v7225 = vpack.c.b16 %v6805, %v6801
          %v7226 = vpack.c.b16 %v6806, %v6802
          %v7227 = vpack.c.b16 %v6807, %v6803
          %v7228 = vpack.c.b16 %v6808, %v6804
          %v7229 = vpack.c.b16 %v6813, %v6809
          %v7230 = vpack.c.b16 %v6814, %v6810
          %v7231 = vpack.c.b16 %v6815, %v6811
          %v7232 = vpack.c.b16 %v6816, %v6812
          %v7233 = vpack.c.b16 %v6821, %v6817
          %v7234 = vpack.c.b16 %v6822, %v6818
          %v7235 = vpack.c.b16 %v6823, %v6819
          %v7236 = vpack.c.b16 %v6824, %v6820
          %v7237 = vpack.c.b16 %v6829, %v6825
          %v7238 = vpack.c.b16 %v6830, %v6826
          %v7239 = vpack.c.b16 %v6831, %v6827
          %v7240 = vpack.c.b16 %v6832, %v6828
          %v7241 = vpack.c.b16 %v6837, %v6833
          %v7242 = vpack.c.b16 %v6838, %v6834
          %v7243 = vpack.c.b16 %v6839, %v6835
          %v7244 = vpack.c.b16 %v6840, %v6836
          %v7245 = vpack.c.b16 %v6845, %v6841
          %v7246 = vpack.c.b16 %v6846, %v6842
          %v7247 = vpack.c.b16 %v6847, %v6843
          %v7248 = vpack.c.b16 %v6848, %v6844
          %v7249 = vpack.c.b16 %v6853, %v6849
          %v7250 = vpack.c.b16 %v6854, %v6850
          %v7251 = vpack.c.b16 %v6855, %v6851
          %v7252 = vpack.c.b16 %v6856, %v6852
          %v7253 = vpack.c.b16 %v6861, %v6857
          %v7254 = vpack.c.b16 %v6862, %v6858
          %v7255 = vpack.c.b16 %v6863, %v6859
          %v7256 = vpack.c.b16 %v6864, %v6860
          %v7257 = vpack.c.b16 %v6869, %v6865
          %v7258 = vpack.c.b16 %v6870, %v6866
          %v7259 = vpack.c.b16 %v6871, %v6867
          %v7260 = vpack.c.b16 %v6872, %v6868
          %v7261 = vpack.c.b16 %v6877, %v6873
          %v7262 = vpack.c.b16 %v6878, %v6874
          %v7263 = vpack.c.b16 %v6879, %v6875
          %v7264 = vpack.c.b16 %v6880, %v6876
          %v7265 = vpack.c.b16 %v6885, %v6881
          %v7266 = vpack.c.b16 %v6886, %v6882
          %v7267 = vpack.c.b16 %v6887, %v6883
          %v7268 = vpack.c.b16 %v6888, %v6884
          %v7269 = vpack.c.b16 %v6893, %v6889
          %v7270 = vpack.c.b16 %v6894, %v6890
          %v7271 = vpack.c.b16 %v6895, %v6891
          %v7272 = vpack.c.b16 %v6896, %v6892
          %v7273 = vpack.c.b16 %v6901, %v6897
          %v7274 = vpack.c.b16 %v6902, %v6898
          %v7275 = vpack.c.b16 %v6903, %v6899
          %v7276 = vpack.c.b16 %v6904, %v6900
          %v7277 = vpack.c.b16 %v6909, %v6905
          %v7278 = vpack.c.b16 %v6910, %v6906
          %v7279 = vpack.c.b16 %v6911, %v6907
          %v7280 = vpack.c.b16 %v6912, %v6908
          %v7281 = vpack.c.b16 %v6917, %v6913
          %v7282 = vpack.c.b16 %v6918, %v6914
          %v7283 = vpack.c.b16 %v6919, %v6915
          %v7284 = vpack.c.b16 %v6920, %v6916
          %v7285 = vpack.c.b16 %v6925, %v6921
          %v7286 = vpack.c.b16 %v6926, %v6922
          %v7287 = vpack.c.b16 %v6927, %v6923
          %v7288 = vpack.c.b16 %v6928, %v6924
          %v7289 = vpack.c.b16 %v6933, %v6929
          %v7290 = vpack.c.b16 %v6934, %v6930
          %v7291 = vpack.c.b16 %v6935, %v6931
          %v7292 = vpack.c.b16 %v6936, %v6932
          %v7293 = vpack.c.b16 %v6941, %v6937
          %v7294 = vpack.c.b16 %v6942, %v6938
          %v7295 = vpack.c.b16 %v6943, %v6939
          %v7296 = vpack.c.b16 %v6944, %v6940
          %v7297 = vpack.c.b16 %v6949, %v6945
          %v7298 = vpack.c.b16 %v6950, %v6946
          %v7299 = vpack.c.b16 %v6951, %v6947
          %v7300 = vpack.c.b16 %v6952, %v6948
          %v7301 = vpack.c.b16 %v6957, %v6953
          %v7302 = vpack.c.b16 %v6958, %v6954
          %v7303 = vpack.c.b16 %v6959, %v6955
          %v7304 = vpack.c.b16 %v6960, %v6956
          %v7305 = vpack.c.b16 %v6965, %v6961
          %v7306 = vpack.c.b16 %v6966, %v6962
          %v7307 = vpack.c.b16 %v6967, %v6963
          %v7308 = vpack.c.b16 %v6968, %v6964
          %v7309 = vpack.c.b16 %v6973, %v6969
          %v7310 = vpack.c.b16 %v6974, %v6970
          %v7311 = vpack.c.b16 %v6975, %v6971
          %v7312 = vpack.c.b16 %v6976, %v6972
          %v7313 = vpack.c.b16 %v6981, %v6977
          %v7314 = vpack.c.b16 %v6982, %v6978
          %v7315 = vpack.c.b16 %v6983, %v6979
          %v7316 = vpack.c.b16 %v6984, %v6980
          %v7317 = vpack.c.b16 %v6989, %v6985
          %v7318 = vpack.c.b16 %v6990, %v6986
          %v7319 = vpack.c.b16 %v6991, %v6987
          %v7320 = vpack.c.b16 %v6992, %v6988
          %v7321 = vpack.c.b16 %v6997, %v6993
          %v7322 = vpack.c.b16 %v6998, %v6994
          %v7323 = vpack.c.b16 %v6999, %v6995
          %v7324 = vpack.c.b16 %v7000, %v6996
          %v7325 = vpack.c.b16 %v7005, %v7001
          %v7326 = vpack.c.b16 %v7006, %v7002
          %v7327 = vpack.c.b16 %v7007, %v7003
          %v7328 = vpack.c.b16 %v7008, %v7004
          %v7329 = vpack.c.b16 %v7013, %v7009
          %v7330 = vpack.c.b16 %v7014, %v7010
          %v7331 = vpack.c.b16 %v7015, %v7011
          %v7332 = vpack.c.b16 %v7016, %v7012
          %v7333 = vpack.c.b16 %v7021, %v7017
          %v7334 = vpack.c.b16 %v7022, %v7018
          %v7335 = vpack.c.b16 %v7023, %v7019
          %v7336 = vpack.c.b16 %v7024, %v7020
          %v7337 = vpack.c.b16 %v7029, %v7025
          %v7338 = vpack.c.b16 %v7030, %v7026
          %v7339 = vpack.c.b16 %v7031, %v7027
          %v7340 = vpack.c.b16 %v7032, %v7028
          %v7341 = vpack.c.b16 %v7037, %v7033
          %v7342 = vpack.c.b16 %v7038, %v7034
          %v7343 = vpack.c.b16 %v7039, %v7035
          %v7344 = vpack.c.b16 %v7040, %v7036
          %v7345 = vpack.c.b16 %v7045, %v7041
          %v7346 = vpack.c.b16 %v7046, %v7042
          %v7347 = vpack.c.b16 %v7047, %v7043
          %v7348 = vpack.c.b16 %v7048, %v7044
          %v7349 = vpack.c.b16 %v7053, %v7049
          %v7350 = vpack.c.b16 %v7054, %v7050
          %v7351 = vpack.c.b16 %v7055, %v7051
          %v7352 = vpack.c.b16 %v7056, %v7052
          %v7353 = vpack.c.b16 %v7061, %v7057
          %v7354 = vpack.c.b16 %v7062, %v7058
          %v7355 = vpack.c.b16 %v7063, %v7059
          %v7356 = vpack.c.b16 %v7064, %v7060
          %v7357 = vpack.c.b16 %v7069, %v7065
          %v7358 = vpack.c.b16 %v7070, %v7066
          %v7359 = vpack.c.b16 %v7071, %v7067
          %v7360 = vpack.c.b16 %v7072, %v7068
          %v7361 = vpack.c.b16 %v7077, %v7073
          %v7362 = vpack.c.b16 %v7078, %v7074
          %v7363 = vpack.c.b16 %v7079, %v7075
          %v7364 = vpack.c.b16 %v7080, %v7076
          %v7365 = vpack.c.b16 %v7085, %v7081
          %v7366 = vpack.c.b16 %v7086, %v7082
          %v7367 = vpack.c.b16 %v7087, %v7083
          %v7368 = vpack.c.b16 %v7088, %v7084
          %v7369 = vpack.c.b16 %v7093, %v7089
          %v7370 = vpack.c.b16 %v7094, %v7090
          %v7371 = vpack.c.b16 %v7095, %v7091
          %v7372 = vpack.c.b16 %v7096, %v7092
          %v7373 = vpack.c.b16 %v7101, %v7097
          %v7374 = vpack.c.b16 %v7102, %v7098
          %v7375 = vpack.c.b16 %v7103, %v7099
          %v7376 = vpack.c.b16 %v7104, %v7100
          %v7377 = vpack.c.b16 %v7109, %v7105
          %v7378 = vpack.c.b16 %v7110, %v7106
          %v7379 = vpack.c.b16 %v7111, %v7107
          %v7380 = vpack.c.b16 %v7112, %v7108
          %v7381 = vpack.c.b16 %v7117, %v7113
          %v7382 = vpack.c.b16 %v7118, %v7114
          %v7383 = vpack.c.b16 %v7119, %v7115
          %v7384 = vpack.c.b16 %v7120, %v7116
          %v7385 = vpack.c.b16 %v7125, %v7121
          %v7386 = vpack.c.b16 %v7126, %v7122
          %v7387 = vpack.c.b16 %v7127, %v7123
          %v7388 = vpack.c.b16 %v7128, %v7124
          %v7389 = vpack.c.b16 %v7133, %v7129
          %v7390 = vpack.c.b16 %v7134, %v7130
          %v7391 = vpack.c.b16 %v7135, %v7131
          %v7392 = vpack.c.b16 %v7136, %v7132
          %7649 = vmatprep.subr.bf16.mxu0 %v7138
          %7650 = vmatpush1.bf16.msra.mxu0 %v7137
          %7651 = vmatprep.subr.bf16.mxu0 %v7142
          %7652 = vmatpush1.bf16.msra.mxu0 %v7141
          %7653 = vmatprep.subr.bf16.mxu0 %v7146
          %7654 = vmatpush1.bf16.msra.mxu0 %v7145
          %7655 = vmatprep.subr.bf16.mxu0 %v7150
          %7656 = vmatpush1.bf16.msra.mxu0 %v7149
          %7657 = vmatprep.subr.bf16.mxu0 %v7154
          %7658 = vmatpush1.bf16.msra.mxu0 %v7153
          %7659 = vmatprep.subr.bf16.mxu0 %v7158
          %7660 = vmatpush1.bf16.msra.mxu0 %v7157
          %7661 = vmatprep.subr.bf16.mxu0 %v7162
          %7662 = vmatpush1.bf16.msra.mxu0 %v7161
          %7663 = vmatprep.subr.bf16.mxu0 %v7166
          %7664 = vmatpush1.bf16.msra.mxu0 %v7165
          %7665 = vmatprep.subr.bf16.mxu0 %v7170
          %7666 = vmatpush1.bf16.msra.mxu0 %v7169
          %7667 = vmatprep.subr.bf16.mxu0 %v7174
          %7668 = vmatpush1.bf16.msra.mxu0 %v7173
          %7669 = vmatprep.subr.bf16.mxu0 %v7178
          %7670 = vmatpush1.bf16.msra.mxu0 %v7177
          %7671 = vmatprep.subr.bf16.mxu0 %v7182
          %7672 = vmatpush1.bf16.msra.mxu0 %v7181
          %7673 = vmatprep.subr.bf16.mxu0 %v7186
          %7674 = vmatpush1.bf16.msra.mxu0 %v7185
          %7675 = vmatprep.subr.bf16.mxu0 %v7190
          %7676 = vmatpush1.bf16.msra.mxu0 %v7189
          %7677 = vmatprep.subr.bf16.mxu0 %v7194
          %7678 = vmatpush1.bf16.msra.mxu0 %v7193
          %7679 = vmatprep.subr.bf16.mxu0 %v7198
          %7680 = vmatpush1.bf16.msra.mxu0 %v7197
          %7681 = vmatprep.mubr.bf16.mxu0 %v6084
          %7682 = vmatmul.mubr.bf16.gmra.mrb[0].mxu0 %v6083
          %v7683 = vpop.f32.mrb[0].mxu0
          %v7684 = vadd.f32 %v6352, %v7683
          %v7685 = vpop.f32.mrb[0].mxu0
          %v7686 = vadd.f32 %v6356, %v7685
          %v7687 = vpop.f32.mrb[0].mxu0
          %v7688 = vpop.f32.mrb[0].mxu0
          %7689 = vdwg.mxu0
          %7690 = vmatprep.subr.bf16.mxu0 %v7202
          %7691 = vmatpush1.bf16.msra.mxu0 %v7201
          %7692 = vmatprep.subr.bf16.mxu0 %v7206
          %7693 = vmatpush1.bf16.msra.mxu0 %v7205
          %7694 = vmatprep.subr.bf16.mxu0 %v7210
          %7695 = vmatpush1.bf16.msra.mxu0 %v7209
          %7696 = vmatprep.subr.bf16.mxu0 %v7214
          %7697 = vmatpush1.bf16.msra.mxu0 %v7213
          %7698 = vmatprep.subr.bf16.mxu0 %v7218
          %7699 = vmatpush1.bf16.msra.mxu0 %v7217
          %7700 = vmatprep.subr.bf16.mxu0 %v7222
          %7701 = vmatpush1.bf16.msra.mxu0 %v7221
          %7702 = vmatprep.subr.bf16.mxu0 %v7226
          %7703 = vmatpush1.bf16.msra.mxu0 %v7225
          %7704 = vmatprep.subr.bf16.mxu0 %v7230
          %7705 = vmatpush1.bf16.msra.mxu0 %v7229
          %7706 = vmatprep.subr.bf16.mxu0 %v7234
          %7707 = vmatpush1.bf16.msra.mxu0 %v7233
          %7708 = vmatprep.subr.bf16.mxu0 %v7238
          %7709 = vmatpush1.bf16.msra.mxu0 %v7237
          %7710 = vmatprep.subr.bf16.mxu0 %v7242
          %7711 = vmatpush1.bf16.msra.mxu0 %v7241
          %7712 = vmatprep.subr.bf16.mxu0 %v7246
          %7713 = vmatpush1.bf16.msra.mxu0 %v7245
          %7714 = vmatprep.subr.bf16.mxu0 %v7250
          %7715 = vmatpush1.bf16.msra.mxu0 %v7249
          %7716 = vmatprep.subr.bf16.mxu0 %v7254
          %7717 = vmatpush1.bf16.msra.mxu0 %v7253
          %7718 = vmatprep.subr.bf16.mxu0 %v7258
          %7719 = vmatpush1.bf16.msra.mxu0 %v7257
          %7720 = vmatprep.subr.bf16.mxu0 %v7262
          %7721 = vmatpush1.bf16.msra.mxu0 %v7261
          %7722 = vmatprep.mubr.bf16.mxu0 %v6086
          %7723 = vmatmul.mubr.bf16.gmra.mrb[0].mxu0 %v6085
          %v7724 = vpop.f32.mrb[0].mxu0
          %v7725 = vadd.f32 %v7684, %v7724
          %v7726 = vpop.f32.mrb[0].mxu0
          %v7727 = vadd.f32 %v7686, %v7726
          %v7728 = vpop.f32.mrb[0].mxu0
          %v7729 = vpop.f32.mrb[0].mxu0
          %7730 = vdwg.mxu0
          %7731 = vmatprep.subr.bf16.mxu0 %v7266
          %7732 = vmatpush1.bf16.msra.mxu0 %v7265
          %7733 = vmatprep.subr.bf16.mxu0 %v7270
          %7734 = vmatpush1.bf16.msra.mxu0 %v7269
          %7735 = vmatprep.subr.bf16.mxu0 %v7274
          %7736 = vmatpush1.bf16.msra.mxu0 %v7273
          %7737 = vmatprep.subr.bf16.mxu0 %v7278
          %7738 = vmatpush1.bf16.msra.mxu0 %v7277
          %7739 = vmatprep.subr.bf16.mxu0 %v7282
          %7740 = vmatpush1.bf16.msra.mxu0 %v7281
          %7741 = vmatprep.subr.bf16.mxu0 %v7286
          %7742 = vmatpush1.bf16.msra.mxu0 %v7285
          %7743 = vmatprep.subr.bf16.mxu0 %v7290
          %7744 = vmatpush1.bf16.msra.mxu0 %v7289
          %7745 = vmatprep.subr.bf16.mxu0 %v7294
          %7746 = vmatpush1.bf16.msra.mxu0 %v7293
          %7747 = vmatprep.subr.bf16.mxu0 %v7298
          %7748 = vmatpush1.bf16.msra.mxu0 %v7297
          %7749 = vmatprep.subr.bf16.mxu0 %v7302
          %7750 = vmatpush1.bf16.msra.mxu0 %v7301
          %7751 = vmatprep.subr.bf16.mxu0 %v7306
          %7752 = vmatpush1.bf16.msra.mxu0 %v7305
          %7753 = vmatprep.subr.bf16.mxu0 %v7310
          %7754 = vmatpush1.bf16.msra.mxu0 %v7309
          %7755 = vmatprep.subr.bf16.mxu0 %v7314
          %7756 = vmatpush1.bf16.msra.mxu0 %v7313
          %7757 = vmatprep.subr.bf16.mxu0 %v7318
          %7758 = vmatpush1.bf16.msra.mxu0 %v7317
          %7759 = vmatprep.subr.bf16.mxu0 %v7322
          %7760 = vmatpush1.bf16.msra.mxu0 %v7321
          %7761 = vmatprep.subr.bf16.mxu0 %v7326
          %7762 = vmatpush1.bf16.msra.mxu0 %v7325
          %7763 = vmatprep.mubr.bf16.mxu0 %v6088
          %7764 = vmatmul.mubr.bf16.gmra.mrb[0].mxu0 %v6087
          %v7765 = vpop.f32.mrb[0].mxu0
          %v7766 = vadd.f32 %v7725, %v7765
          %v7767 = vpop.f32.mrb[0].mxu0
          %v7768 = vadd.f32 %v7727, %v7767
          %v7769 = vpop.f32.mrb[0].mxu0
          %v7770 = vpop.f32.mrb[0].mxu0
          %7771 = vdwg.mxu0
          %7772 = vmatprep.subr.bf16.mxu0 %v7330
          %7773 = vmatpush1.bf16.msra.mxu0 %v7329
          %7774 = vmatprep.subr.bf16.mxu0 %v7334
          %7775 = vmatpush1.bf16.msra.mxu0 %v7333
          %7776 = vmatprep.subr.bf16.mxu0 %v7338
          %7777 = vmatpush1.bf16.msra.mxu0 %v7337
          %7778 = vmatprep.subr.bf16.mxu0 %v7342
          %7779 = vmatpush1.bf16.msra.mxu0 %v7341
          %7780 = vmatprep.subr.bf16.mxu0 %v7346
          %7781 = vmatpush1.bf16.msra.mxu0 %v7345
          %7782 = vmatprep.subr.bf16.mxu0 %v7350
          %7783 = vmatpush1.bf16.msra.mxu0 %v7349
          %7784 = vmatprep.subr.bf16.mxu0 %v7354
          %7785 = vmatpush1.bf16.msra.mxu0 %v7353
          %7786 = vmatprep.subr.bf16.mxu0 %v7358
          %7787 = vmatpush1.bf16.msra.mxu0 %v7357
          %7788 = vmatprep.subr.bf16.mxu0 %v7362
          %7789 = vmatpush1.bf16.msra.mxu0 %v7361
          %7790 = vmatprep.subr.bf16.mxu0 %v7366
          %7791 = vmatpush1.bf16.msra.mxu0 %v7365
          %7792 = vmatprep.subr.bf16.mxu0 %v7370
          %7793 = vmatpush1.bf16.msra.mxu0 %v7369
          %7794 = vmatprep.subr.bf16.mxu0 %v7374
          %7795 = vmatpush1.bf16.msra.mxu0 %v7373
          %7796 = vmatprep.subr.bf16.mxu0 %v7378
          %7797 = vmatpush1.bf16.msra.mxu0 %v7377
          %7798 = vmatprep.subr.bf16.mxu0 %v7382
          %7799 = vmatpush1.bf16.msra.mxu0 %v7381
          %7800 = vmatprep.subr.bf16.mxu0 %v7386
          %7801 = vmatpush1.bf16.msra.mxu0 %v7385
          %7802 = vmatprep.subr.bf16.mxu0 %v7390
          %7803 = vmatpush1.bf16.msra.mxu0 %v7389
          %7804 = vmatprep.mubr.bf16.mxu0 %v6090
          %7805 = vmatmul.mubr.bf16.gmra.mrb[0].mxu0 %v6089
          %v7806 = vpop.f32.mrb[0].mxu0
          %v7807 = vadd.f32 %v7766, %v7806
          %v7808 = vpop.f32.mrb[0].mxu0
          %v7809 = vadd.f32 %v7768, %v7808
          %v7810 = vpop.f32.mrb[0].mxu0
          %v7811 = vpop.f32.mrb[0].mxu0
          %7812 = vdwg.mxu0
          %7813 = vmatprep.subr.bf16.mxu0 %v7140
          %7814 = vmatpush1.bf16.msra.mxu0 %v7139
          %7815 = vmatprep.subr.bf16.mxu0 %v7144
          %7816 = vmatpush1.bf16.msra.mxu0 %v7143
          %7817 = vmatprep.subr.bf16.mxu0 %v7148
          %7818 = vmatpush1.bf16.msra.mxu0 %v7147
          %7819 = vmatprep.subr.bf16.mxu0 %v7152
          %7820 = vmatpush1.bf16.msra.mxu0 %v7151
          %7821 = vmatprep.subr.bf16.mxu0 %v7156
          %7822 = vmatpush1.bf16.msra.mxu0 %v7155
          %7823 = vmatprep.subr.bf16.mxu0 %v7160
          %7824 = vmatpush1.bf16.msra.mxu0 %v7159
          %7825 = vmatprep.subr.bf16.mxu0 %v7164
          %7826 = vmatpush1.bf16.msra.mxu0 %v7163
          %7827 = vmatprep.subr.bf16.mxu0 %v7168
          %7828 = vmatpush1.bf16.msra.mxu0 %v7167
          %7829 = vmatprep.subr.bf16.mxu0 %v7172
          %7830 = vmatpush1.bf16.msra.mxu0 %v7171
          %7831 = vmatprep.subr.bf16.mxu0 %v7176
          %7832 = vmatpush1.bf16.msra.mxu0 %v7175
          %7833 = vmatprep.subr.bf16.mxu0 %v7180
          %7834 = vmatpush1.bf16.msra.mxu0 %v7179
          %7835 = vmatprep.subr.bf16.mxu0 %v7184
          %7836 = vmatpush1.bf16.msra.mxu0 %v7183
          %7837 = vmatprep.subr.bf16.mxu0 %v7188
          %7838 = vmatpush1.bf16.msra.mxu0 %v7187
          %7839 = vmatprep.subr.bf16.mxu0 %v7192
          %7840 = vmatpush1.bf16.msra.mxu0 %v7191
          %7841 = vmatprep.subr.bf16.mxu0 %v7196
          %7842 = vmatpush1.bf16.msra.mxu0 %v7195
          %7843 = vmatprep.subr.bf16.mxu0 %v7200
          %7844 = vmatpush1.bf16.msra.mxu0 %v7199
          %7845 = vmatprep.mubr.bf16.mxu0 %v6084
          %7846 = vmatmul.mubr.bf16.gmra.mrb[0].mxu0 %v6083
          %v7847 = vpop.f32.mrb[0].mxu0
          %v7848 = vadd.f32 %v6360, %v7847
          %v7849 = vpop.f32.mrb[0].mxu0
          %v7850 = vadd.f32 %v6364, %v7849
          %v7851 = vpop.f32.mrb[0].mxu0
          %v7852 = vpop.f32.mrb[0].mxu0
          %7853 = vdwg.mxu0
          %7854 = vmatprep.subr.bf16.mxu0 %v7204
          %7855 = vmatpush1.bf16.msra.mxu0 %v7203
          %7856 = vmatprep.subr.bf16.mxu0 %v7208
          %7857 = vmatpush1.bf16.msra.mxu0 %v7207
          %7858 = vmatprep.subr.bf16.mxu0 %v7212
          %7859 = vmatpush1.bf16.msra.mxu0 %v7211
          %7860 = vmatprep.subr.bf16.mxu0 %v7216
          %7861 = vmatpush1.bf16.msra.mxu0 %v7215
          %7862 = vmatprep.subr.bf16.mxu0 %v7220
          %7863 = vmatpush1.bf16.msra.mxu0 %v7219
          %7864 = vmatprep.subr.bf16.mxu0 %v7224
          %7865 = vmatpush1.bf16.msra.mxu0 %v7223
          %7866 = vmatprep.subr.bf16.mxu0 %v7228
          %7867 = vmatpush1.bf16.msra.mxu0 %v7227
          %7868 = vmatprep.subr.bf16.mxu0 %v7232
          %7869 = vmatpush1.bf16.msra.mxu0 %v7231
          %7870 = vmatprep.subr.bf16.mxu0 %v7236
          %7871 = vmatpush1.bf16.msra.mxu0 %v7235
          %7872 = vmatprep.subr.bf16.mxu0 %v7240
          %7873 = vmatpush1.bf16.msra.mxu0 %v7239
          %7874 = vmatprep.subr.bf16.mxu0 %v7244
          %7875 = vmatpush1.bf16.msra.mxu0 %v7243
          %7876 = vmatprep.subr.bf16.mxu0 %v7248
          %7877 = vmatpush1.bf16.msra.mxu0 %v7247
          %7878 = vmatprep.subr.bf16.mxu0 %v7252
          %7879 = vmatpush1.bf16.msra.mxu0 %v7251
          %7880 = vmatprep.subr.bf16.mxu0 %v7256
          %7881 = vmatpush1.bf16.msra.mxu0 %v7255
          %7882 = vmatprep.subr.bf16.mxu0 %v7260
          %7883 = vmatpush1.bf16.msra.mxu0 %v7259
          %7884 = vmatprep.subr.bf16.mxu0 %v7264
          %7885 = vmatpush1.bf16.msra.mxu0 %v7263
          %7886 = vmatprep.mubr.bf16.mxu0 %v6086
          %7887 = vmatmul.mubr.bf16.gmra.mrb[0].mxu0 %v6085
          %v7888 = vpop.f32.mrb[0].mxu0
          %v7889 = vadd.f32 %v7848, %v7888
          %v7890 = vpop.f32.mrb[0].mxu0
          %v7891 = vadd.f32 %v7850, %v7890
          %v7892 = vpop.f32.mrb[0].mxu0
          %v7893 = vpop.f32.mrb[0].mxu0
          %7894 = vdwg.mxu0
          %7895 = vmatprep.subr.bf16.mxu0 %v7268
          %7896 = vmatpush1.bf16.msra.mxu0 %v7267
          %7897 = vmatprep.subr.bf16.mxu0 %v7272
          %7898 = vmatpush1.bf16.msra.mxu0 %v7271
          %7899 = vmatprep.subr.bf16.mxu0 %v7276
          %7900 = vmatpush1.bf16.msra.mxu0 %v7275
          %7901 = vmatprep.subr.bf16.mxu0 %v7280
          %7902 = vmatpush1.bf16.msra.mxu0 %v7279
          %7903 = vmatprep.subr.bf16.mxu0 %v7284
          %7904 = vmatpush1.bf16.msra.mxu0 %v7283
          %7905 = vmatprep.subr.bf16.mxu0 %v7288
          %7906 = vmatpush1.bf16.msra.mxu0 %v7287
          %7907 = vmatprep.subr.bf16.mxu0 %v7292
          %7908 = vmatpush1.bf16.msra.mxu0 %v7291
          %7909 = vmatprep.subr.bf16.mxu0 %v7296
          %7910 = vmatpush1.bf16.msra.mxu0 %v7295
          %7911 = vmatprep.subr.bf16.mxu0 %v7300
          %7912 = vmatpush1.bf16.msra.mxu0 %v7299
          %7913 = vmatprep.subr.bf16.mxu0 %v7304
          %7914 = vmatpush1.bf16.msra.mxu0 %v7303
          %7915 = vmatprep.subr.bf16.mxu0 %v7308
          %7916 = vmatpush1.bf16.msra.mxu0 %v7307
          %7917 = vmatprep.subr.bf16.mxu0 %v7312
          %7918 = vmatpush1.bf16.msra.mxu0 %v7311
          %7919 = vmatprep.subr.bf16.mxu0 %v7316
          %7920 = vmatpush1.bf16.msra.mxu0 %v7315
          %7921 = vmatprep.subr.bf16.mxu0 %v7320
          %7922 = vmatpush1.bf16.msra.mxu0 %v7319
          %7923 = vmatprep.subr.bf16.mxu0 %v7324
          %7924 = vmatpush1.bf16.msra.mxu0 %v7323
          %7925 = vmatprep.subr.bf16.mxu0 %v7328
          %7926 = vmatpush1.bf16.msra.mxu0 %v7327
          %7927 = vmatprep.mubr.bf16.mxu0 %v6088
          %7928 = vmatmul.mubr.bf16.gmra.mrb[0].mxu0 %v6087
          %v7929 = vpop.f32.mrb[0].mxu0
          %v7930 = vadd.f32 %v7889, %v7929
          %v7931 = vpop.f32.mrb[0].mxu0
          %v7932 = vadd.f32 %v7891, %v7931
          %v7933 = vpop.f32.mrb[0].mxu0
          %v7934 = vpop.f32.mrb[0].mxu0
          %7935 = vdwg.mxu0
          %7936 = vmatprep.subr.bf16.mxu0 %v7332
          %7937 = vmatpush1.bf16.msra.mxu0 %v7331
          %7938 = vmatprep.subr.bf16.mxu0 %v7336
          %7939 = vmatpush1.bf16.msra.mxu0 %v7335
          %7940 = vmatprep.subr.bf16.mxu0 %v7340
          %7941 = vmatpush1.bf16.msra.mxu0 %v7339
          %7942 = vmatprep.subr.bf16.mxu0 %v7344
          %7943 = vmatpush1.bf16.msra.mxu0 %v7343
          %7944 = vmatprep.subr.bf16.mxu0 %v7348
          %7945 = vmatpush1.bf16.msra.mxu0 %v7347
          %7946 = vmatprep.subr.bf16.mxu0 %v7352
          %7947 = vmatpush1.bf16.msra.mxu0 %v7351
          %7948 = vmatprep.subr.bf16.mxu0 %v7356
          %7949 = vmatpush1.bf16.msra.mxu0 %v7355
          %7950 = vmatprep.subr.bf16.mxu0 %v7360
          %7951 = vmatpush1.bf16.msra.mxu0 %v7359
          %7952 = vmatprep.subr.bf16.mxu0 %v7364
          %7953 = vmatpush1.bf16.msra.mxu0 %v7363
          %7954 = vmatprep.subr.bf16.mxu0 %v7368
          %7955 = vmatpush1.bf16.msra.mxu0 %v7367
          %7956 = vmatprep.subr.bf16.mxu0 %v7372
          %7957 = vmatpush1.bf16.msra.mxu0 %v7371
          %7958 = vmatprep.subr.bf16.mxu0 %v7376
          %7959 = vmatpush1.bf16.msra.mxu0 %v7375
          %7960 = vmatprep.subr.bf16.mxu0 %v7380
          %7961 = vmatpush1.bf16.msra.mxu0 %v7379
          %7962 = vmatprep.subr.bf16.mxu0 %v7384
          %7963 = vmatpush1.bf16.msra.mxu0 %v7383
          %7964 = vmatprep.subr.bf16.mxu0 %v7388
          %7965 = vmatpush1.bf16.msra.mxu0 %v7387
          %7966 = vmatprep.subr.bf16.mxu0 %v7392
          %7967 = vmatpush1.bf16.msra.mxu0 %v7391
          %7968 = vmatprep.mubr.bf16.mxu0 %v6090
          %7969 = vmatmul.mubr.bf16.gmra.mrb[0].mxu0 %v6089
          %v7970 = vpop.f32.mrb[0].mxu0
          %v7971 = vadd.f32 %v7930, %v7970
          %v7972 = vpop.f32.mrb[0].mxu0
          %v7973 = vadd.f32 %v7932, %v7972
          %v7974 = vpop.f32.mrb[0].mxu0
          %v7975 = vpop.f32.mrb[0].mxu0
          %7976 = vdwg.mxu0
          %v7977 = vmax.f32 %v7807, 0.0
          %v7978 = vmax.f32 %v7809, 0.0
          %v7979 = vmax.f32 %v7971, 0.0
          %v7980 = vmax.f32 %v7973, 0.0
          %v7981 = vpack.c.bf16 %v7977, %v7977
          %v7982 = vpack.c.bf16 %v7978, %v7978
          %v7983 = vpack.c.bf16 %v7979, %v7979
          %v7984 = vpack.c.bf16 %v7980, %v7980
          %v7985 = vld [vmem:[#allocation7] sm:$0xff]
          %v7986 = vld [vmem:[#allocation7 + $0x8] sm:$0xff]
          %v7987 = vld [vmem:[#allocation7 + $0x10] sm:$0xff]
          %v7988 = vld [vmem:[#allocation7 + $0x18] sm:$0xff]
          %v7989 = vld [vmem:[#allocation7 + $0x20] sm:$0xff]
          %v7990 = vld [vmem:[#allocation7 + $0x28] sm:$0xff]
          %v7991 = vld [vmem:[#allocation7 + $0x30] sm:$0xff]
          %v7992 = vld [vmem:[#allocation7 + $0x38] sm:$0xff]
          %v7993 = vld [vmem:[#allocation7 + $0x40] sm:$0xff]
          %v7994 = vld [vmem:[#allocation7 + $0x48] sm:$0xff]
          %v7995 = vld [vmem:[#allocation7 + $0x50] sm:$0xff]
          %v7996 = vld [vmem:[#allocation7 + $0x58] sm:$0xff]
          %v7997 = vld [vmem:[#allocation7 + $0x60] sm:$0xff]
          %v7998 = vld [vmem:[#allocation7 + $0x68] sm:$0xff]
          %v7999 = vld [vmem:[#allocation7 + $0x70] sm:$0xff]
          %v8000 = vld [vmem:[#allocation7 + $0x78] sm:$0xff]
          %v8001 = vld [vmem:[#allocation7 + $0x80] sm:$0xff]
          %v8002 = vld [vmem:[#allocation7 + $0x88] sm:$0xff]
          %v8003 = vld [vmem:[#allocation7 + $0x90] sm:$0xff]
          %v8004 = vld [vmem:[#allocation7 + $0x98] sm:$0xff]
          %v8005 = vld [vmem:[#allocation7 + $0xa0] sm:$0xff]
          %v8006 = vld [vmem:[#allocation7 + $0xa8] sm:$0xff]
          %v8007 = vld [vmem:[#allocation7 + $0xb0] sm:$0xff]
          %v8008 = vld [vmem:[#allocation7 + $0xb8] sm:$0xff]
          %v8009 = vld [vmem:[#allocation7 + $0xc0] sm:$0xff]
          %v8010 = vld [vmem:[#allocation7 + $0xc8] sm:$0xff]
          %v8011 = vld [vmem:[#allocation7 + $0xd0] sm:$0xff]
          %v8012 = vld [vmem:[#allocation7 + $0xd8] sm:$0xff]
          %v8013 = vld [vmem:[#allocation7 + $0xe0] sm:$0xff]
          %v8014 = vld [vmem:[#allocation7 + $0xe8] sm:$0xff]
          %v8015 = vld [vmem:[#allocation7 + $0xf0] sm:$0xff]
          %v8016 = vld [vmem:[#allocation7 + $0xf8] sm:$0xff]
          %v8017 = vld [vmem:[#allocation7 + $0x100] sm:$0xff]
          %v8018 = vld [vmem:[#allocation7 + $0x108] sm:$0xff]
          %v8019 = vld [vmem:[#allocation7 + $0x110] sm:$0xff]
          %v8020 = vld [vmem:[#allocation7 + $0x118] sm:$0xff]
          %v8021 = vld [vmem:[#allocation7 + $0x120] sm:$0xff]
          %v8022 = vld [vmem:[#allocation7 + $0x128] sm:$0xff]
          %v8023 = vld [vmem:[#allocation7 + $0x130] sm:$0xff]
          %v8024 = vld [vmem:[#allocation7 + $0x138] sm:$0xff]
          %v8025 = vld [vmem:[#allocation7 + $0x140] sm:$0xff]
          %v8026 = vld [vmem:[#allocation7 + $0x148] sm:$0xff]
          %v8027 = vld [vmem:[#allocation7 + $0x150] sm:$0xff]
          %v8028 = vld [vmem:[#allocation7 + $0x158] sm:$0xff]
          %v8029 = vld [vmem:[#allocation7 + $0x160] sm:$0xff]
          %v8030 = vld [vmem:[#allocation7 + $0x168] sm:$0xff]
          %v8031 = vld [vmem:[#allocation7 + $0x170] sm:$0xff]
          %v8032 = vld [vmem:[#allocation7 + $0x178] sm:$0xff]
          %v8033 = vld [vmem:[#allocation7 + $0x180] sm:$0xff]
          %v8034 = vld [vmem:[#allocation7 + $0x188] sm:$0xff]
          %v8035 = vld [vmem:[#allocation7 + $0x190] sm:$0xff]
          %v8036 = vld [vmem:[#allocation7 + $0x198] sm:$0xff]
          %v8037 = vld [vmem:[#allocation7 + $0x1a0] sm:$0xff]
          %v8038 = vld [vmem:[#allocation7 + $0x1a8] sm:$0xff]
          %v8039 = vld [vmem:[#allocation7 + $0x1b0] sm:$0xff]
          %v8040 = vld [vmem:[#allocation7 + $0x1b8] sm:$0xff]
          %v8041 = vld [vmem:[#allocation7 + $0x1c0] sm:$0xff]
          %v8042 = vld [vmem:[#allocation7 + $0x1c8] sm:$0xff]
          %v8043 = vld [vmem:[#allocation7 + $0x1d0] sm:$0xff]
          %v8044 = vld [vmem:[#allocation7 + $0x1d8] sm:$0xff]
          %v8045 = vld [vmem:[#allocation7 + $0x1e0] sm:$0xff]
          %v8046 = vld [vmem:[#allocation7 + $0x1e8] sm:$0xff]
          %v8047 = vld [vmem:[#allocation7 + $0x1f0] sm:$0xff]
          %v8048 = vld [vmem:[#allocation7 + $0x1f8] sm:$0xff]
          %v8049 = vld [vmem:[%s10] sm:$0x3]
          %v8051 = vlaneseq
          %v8052 = vshrl.u32 %v8051, 7
          %v8053 = vsub.s32 0, %v8052
          %v8054 = vrot.slane %v8049, %v8053
          %v8055 = vlaneseq
          %v8056 = vshrl.u32 %v8055, 7
          %v8057 = vsub.s32 1, %v8056
          %v8058 = vrot.slane %v8049, %v8057
          %v8125 = vunpack.c.l.b16 %v7985
          %v8126 = vunpack.c.h.b16 %v7985
          %v8127 = vunpack.c.l.b16 %v7986
          %v8128 = vunpack.c.h.b16 %v7986
          %v8129 = vunpack.c.l.b16 %v7987
          %v8130 = vunpack.c.h.b16 %v7987
          %v8131 = vunpack.c.l.b16 %v7988
          %v8132 = vunpack.c.h.b16 %v7988
          %v8133 = vunpack.c.l.b16 %v7989
          %v8134 = vunpack.c.h.b16 %v7989
          %v8135 = vunpack.c.l.b16 %v7990
          %v8136 = vunpack.c.h.b16 %v7990
          %v8137 = vunpack.c.l.b16 %v7991
          %v8138 = vunpack.c.h.b16 %v7991
          %v8139 = vunpack.c.l.b16 %v7992
          %v8140 = vunpack.c.h.b16 %v7992
          %v8141 = vunpack.c.l.b16 %v7993
          %v8142 = vunpack.c.h.b16 %v7993
          %v8143 = vunpack.c.l.b16 %v7994
          %v8144 = vunpack.c.h.b16 %v7994
          %v8145 = vunpack.c.l.b16 %v7995
          %v8146 = vunpack.c.h.b16 %v7995
          %v8147 = vunpack.c.l.b16 %v7996
          %v8148 = vunpack.c.h.b16 %v7996
          %v8149 = vunpack.c.l.b16 %v7997
          %v8150 = vunpack.c.h.b16 %v7997
          %v8151 = vunpack.c.l.b16 %v7998
          %v8152 = vunpack.c.h.b16 %v7998
          %v8153 = vunpack.c.l.b16 %v7999
          %v8154 = vunpack.c.h.b16 %v7999
          %v8155 = vunpack.c.l.b16 %v8000
          %v8156 = vunpack.c.h.b16 %v8000
          %v8157 = vunpack.c.l.b16 %v8001
          %v8158 = vunpack.c.h.b16 %v8001
          %v8159 = vunpack.c.l.b16 %v8002
          %v8160 = vunpack.c.h.b16 %v8002
          %v8161 = vunpack.c.l.b16 %v8003
          %v8162 = vunpack.c.h.b16 %v8003
          %v8163 = vunpack.c.l.b16 %v8004
          %v8164 = vunpack.c.h.b16 %v8004
          %v8165 = vunpack.c.l.b16 %v8005
          %v8166 = vunpack.c.h.b16 %v8005
          %v8167 = vunpack.c.l.b16 %v8006
          %v8168 = vunpack.c.h.b16 %v8006
          %v8169 = vunpack.c.l.b16 %v8007
          %v8170 = vunpack.c.h.b16 %v8007
          %v8171 = vunpack.c.l.b16 %v8008
          %v8172 = vunpack.c.h.b16 %v8008
          %v8173 = vunpack.c.l.b16 %v8009
          %v8174 = vunpack.c.h.b16 %v8009
          %v8175 = vunpack.c.l.b16 %v8010
          %v8176 = vunpack.c.h.b16 %v8010
          %v8177 = vunpack.c.l.b16 %v8011
          %v8178 = vunpack.c.h.b16 %v8011
          %v8179 = vunpack.c.l.b16 %v8012
          %v8180 = vunpack.c.h.b16 %v8012
          %v8181 = vunpack.c.l.b16 %v8013
          %v8182 = vunpack.c.h.b16 %v8013
          %v8183 = vunpack.c.l.b16 %v8014
          %v8184 = vunpack.c.h.b16 %v8014
          %v8185 = vunpack.c.l.b16 %v8015
          %v8186 = vunpack.c.h.b16 %v8015
          %v8187 = vunpack.c.l.b16 %v8016
          %v8188 = vunpack.c.h.b16 %v8016
          %v8189 = vunpack.c.l.b16 %v8017
          %v8190 = vunpack.c.h.b16 %v8017
          %v8191 = vunpack.c.l.b16 %v8018
          %v8192 = vunpack.c.h.b16 %v8018
          %v8193 = vunpack.c.l.b16 %v8019
          %v8194 = vunpack.c.h.b16 %v8019
          %v8195 = vunpack.c.l.b16 %v8020
          %v8196 = vunpack.c.h.b16 %v8020
          %v8197 = vunpack.c.l.b16 %v8021
          %v8198 = vunpack.c.h.b16 %v8021
          %v8199 = vunpack.c.l.b16 %v8022
          %v8200 = vunpack.c.h.b16 %v8022
          %v8201 = vunpack.c.l.b16 %v8023
          %v8202 = vunpack.c.h.b16 %v8023
          %v8203 = vunpack.c.l.b16 %v8024
          %v8204 = vunpack.c.h.b16 %v8024
          %v8205 = vunpack.c.l.b16 %v8025
          %v8206 = vunpack.c.h.b16 %v8025
          %v8207 = vunpack.c.l.b16 %v8026
          %v8208 = vunpack.c.h.b16 %v8026
          %v8209 = vunpack.c.l.b16 %v8027
          %v8210 = vunpack.c.h.b16 %v8027
          %v8211 = vunpack.c.l.b16 %v8028
          %v8212 = vunpack.c.h.b16 %v8028
          %v8213 = vunpack.c.l.b16 %v8029
          %v8214 = vunpack.c.h.b16 %v8029
          %v8215 = vunpack.c.l.b16 %v8030
          %v8216 = vunpack.c.h.b16 %v8030
          %v8217 = vunpack.c.l.b16 %v8031
          %v8218 = vunpack.c.h.b16 %v8031
          %v8219 = vunpack.c.l.b16 %v8032
          %v8220 = vunpack.c.h.b16 %v8032
          %v8221 = vunpack.c.l.b16 %v8033
          %v8222 = vunpack.c.h.b16 %v8033
          %v8223 = vunpack.c.l.b16 %v8034
          %v8224 = vunpack.c.h.b16 %v8034
          %v8225 = vunpack.c.l.b16 %v8035
          %v8226 = vunpack.c.h.b16 %v8035
          %v8227 = vunpack.c.l.b16 %v8036
          %v8228 = vunpack.c.h.b16 %v8036
          %v8229 = vunpack.c.l.b16 %v8037
          %v8230 = vunpack.c.h.b16 %v8037
          %v8231 = vunpack.c.l.b16 %v8038
          %v8232 = vunpack.c.h.b16 %v8038
          %v8233 = vunpack.c.l.b16 %v8039
          %v8234 = vunpack.c.h.b16 %v8039
          %v8235 = vunpack.c.l.b16 %v8040
          %v8236 = vunpack.c.h.b16 %v8040
          %v8237 = vunpack.c.l.b16 %v8041
          %v8238 = vunpack.c.h.b16 %v8041
          %v8239 = vunpack.c.l.b16 %v8042
          %v8240 = vunpack.c.h.b16 %v8042
          %v8241 = vunpack.c.l.b16 %v8043
          %v8242 = vunpack.c.h.b16 %v8043
          %v8243 = vunpack.c.l.b16 %v8044
          %v8244 = vunpack.c.h.b16 %v8044
          %v8245 = vunpack.c.l.b16 %v8045
          %v8246 = vunpack.c.h.b16 %v8045
          %v8247 = vunpack.c.l.b16 %v8046
          %v8248 = vunpack.c.h.b16 %v8046
          %v8249 = vunpack.c.l.b16 %v8047
          %v8250 = vunpack.c.h.b16 %v8047
          %v8251 = vunpack.c.l.b16 %v8048
          %v8252 = vunpack.c.h.b16 %v8048
          %v8253 = vpack.c.b16 %v8127, %v8125
          %v8254 = vpack.c.b16 %v8128, %v8126
          %v8255 = vpack.c.b16 %v8131, %v8129
          %v8256 = vpack.c.b16 %v8132, %v8130
          %v8257 = vpack.c.b16 %v8135, %v8133
          %v8258 = vpack.c.b16 %v8136, %v8134
          %v8259 = vpack.c.b16 %v8139, %v8137
          %v8260 = vpack.c.b16 %v8140, %v8138
          %v8261 = vpack.c.b16 %v8143, %v8141
          %v8262 = vpack.c.b16 %v8144, %v8142
          %v8263 = vpack.c.b16 %v8147, %v8145
          %v8264 = vpack.c.b16 %v8148, %v8146
          %v8265 = vpack.c.b16 %v8151, %v8149
          %v8266 = vpack.c.b16 %v8152, %v8150
          %v8267 = vpack.c.b16 %v8155, %v8153
          %v8268 = vpack.c.b16 %v8156, %v8154
          %v8269 = vpack.c.b16 %v8159, %v8157
          %v8270 = vpack.c.b16 %v8160, %v8158
          %v8271 = vpack.c.b16 %v8163, %v8161
          %v8272 = vpack.c.b16 %v8164, %v8162
          %v8273 = vpack.c.b16 %v8167, %v8165
          %v8274 = vpack.c.b16 %v8168, %v8166
          %v8275 = vpack.c.b16 %v8171, %v8169
          %v8276 = vpack.c.b16 %v8172, %v8170
          %v8277 = vpack.c.b16 %v8175, %v8173
          %v8278 = vpack.c.b16 %v8176, %v8174
          %v8279 = vpack.c.b16 %v8179, %v8177
          %v8280 = vpack.c.b16 %v8180, %v8178
          %v8281 = vpack.c.b16 %v8183, %v8181
          %v8282 = vpack.c.b16 %v8184, %v8182
          %v8283 = vpack.c.b16 %v8187, %v8185
          %v8284 = vpack.c.b16 %v8188, %v8186
          %v8285 = vpack.c.b16 %v8191, %v8189
          %v8286 = vpack.c.b16 %v8192, %v8190
          %v8287 = vpack.c.b16 %v8195, %v8193
          %v8288 = vpack.c.b16 %v8196, %v8194
          %v8289 = vpack.c.b16 %v8199, %v8197
          %v8290 = vpack.c.b16 %v8200, %v8198
          %v8291 = vpack.c.b16 %v8203, %v8201
          %v8292 = vpack.c.b16 %v8204, %v8202
          %v8293 = vpack.c.b16 %v8207, %v8205
          %v8294 = vpack.c.b16 %v8208, %v8206
          %v8295 = vpack.c.b16 %v8211, %v8209
          %v8296 = vpack.c.b16 %v8212, %v8210
          %v8297 = vpack.c.b16 %v8215, %v8213
          %v8298 = vpack.c.b16 %v8216, %v8214
          %v8299 = vpack.c.b16 %v8219, %v8217
          %v8300 = vpack.c.b16 %v8220, %v8218
          %v8301 = vpack.c.b16 %v8223, %v8221
          %v8302 = vpack.c.b16 %v8224, %v8222
          %v8303 = vpack.c.b16 %v8227, %v8225
          %v8304 = vpack.c.b16 %v8228, %v8226
          %v8305 = vpack.c.b16 %v8231, %v8229
          %v8306 = vpack.c.b16 %v8232, %v8230
          %v8307 = vpack.c.b16 %v8235, %v8233
          %v8308 = vpack.c.b16 %v8236, %v8234
          %v8309 = vpack.c.b16 %v8239, %v8237
          %v8310 = vpack.c.b16 %v8240, %v8238
          %v8311 = vpack.c.b16 %v8243, %v8241
          %v8312 = vpack.c.b16 %v8244, %v8242
          %v8313 = vpack.c.b16 %v8247, %v8245
          %v8314 = vpack.c.b16 %v8248, %v8246
          %v8315 = vpack.c.b16 %v8251, %v8249
          %v8316 = vpack.c.b16 %v8252, %v8250
          %8381 = vmatprep.subr.bf16.mxu0 %v8254
          %8382 = vmatpush1.bf16.msra.mxu0 %v8253
          %8383 = vmatprep.subr.bf16.mxu0 %v8256
          %8384 = vmatpush1.bf16.msra.mxu0 %v8255
          %8385 = vmatprep.subr.bf16.mxu0 %v8258
          %8386 = vmatpush1.bf16.msra.mxu0 %v8257
          %8387 = vmatprep.subr.bf16.mxu0 %v8260
          %8388 = vmatpush1.bf16.msra.mxu0 %v8259
          %8389 = vmatprep.subr.bf16.mxu0 %v8262
          %8390 = vmatpush1.bf16.msra.mxu0 %v8261
          %8391 = vmatprep.subr.bf16.mxu0 %v8264
          %8392 = vmatpush1.bf16.msra.mxu0 %v8263
          %8393 = vmatprep.subr.bf16.mxu0 %v8266
          %8394 = vmatpush1.bf16.msra.mxu0 %v8265
          %8395 = vmatprep.subr.bf16.mxu0 %v8268
          %8396 = vmatpush1.bf16.msra.mxu0 %v8267
          %8397 = vmatprep.subr.bf16.mxu0 %v8270
          %8398 = vmatpush1.bf16.msra.mxu0 %v8269
          %8399 = vmatprep.subr.bf16.mxu0 %v8272
          %8400 = vmatpush1.bf16.msra.mxu0 %v8271
          %8401 = vmatprep.subr.bf16.mxu0 %v8274
          %8402 = vmatpush1.bf16.msra.mxu0 %v8273
          %8403 = vmatprep.subr.bf16.mxu0 %v8276
          %8404 = vmatpush1.bf16.msra.mxu0 %v8275
          %8405 = vmatprep.subr.bf16.mxu0 %v8278
          %8406 = vmatpush1.bf16.msra.mxu0 %v8277
          %8407 = vmatprep.subr.bf16.mxu0 %v8280
          %8408 = vmatpush1.bf16.msra.mxu0 %v8279
          %8409 = vmatprep.subr.bf16.mxu0 %v8282
          %8410 = vmatpush1.bf16.msra.mxu0 %v8281
          %8411 = vmatprep.subr.bf16.mxu0 %v8284
          %8412 = vmatpush1.bf16.msra.mxu0 %v8283
          %8413 = vmatprep.mubr.bf16.mxu0 %v7982
          %8414 = vmatmul.mubr.bf16.gmra.mrb[0].mxu0 %v7981
          %v8415 = vpop.f32.mrb[0].mxu0
          %v8416 = vadd.f32 %v8054, %v8415
          %v8417 = vpop.f32.mrb[0].mxu0
          %v8418 = vadd.f32 %v8058, %v8417
          %v8419 = vpop.f32.mrb[0].mxu0
          %v8420 = vpop.f32.mrb[0].mxu0
          %8421 = vdwg.mxu0
          %8422 = vmatprep.subr.bf16.mxu0 %v8286
          %8423 = vmatpush1.bf16.msra.mxu0 %v8285
          %8424 = vmatprep.subr.bf16.mxu0 %v8288
          %8425 = vmatpush1.bf16.msra.mxu0 %v8287
          %8426 = vmatprep.subr.bf16.mxu0 %v8290
          %8427 = vmatpush1.bf16.msra.mxu0 %v8289
          %8428 = vmatprep.subr.bf16.mxu0 %v8292
          %8429 = vmatpush1.bf16.msra.mxu0 %v8291
          %8430 = vmatprep.subr.bf16.mxu0 %v8294
          %8431 = vmatpush1.bf16.msra.mxu0 %v8293
          %8432 = vmatprep.subr.bf16.mxu0 %v8296
          %8433 = vmatpush1.bf16.msra.mxu0 %v8295
          %8434 = vmatprep.subr.bf16.mxu0 %v8298
          %8435 = vmatpush1.bf16.msra.mxu0 %v8297
          %8436 = vmatprep.subr.bf16.mxu0 %v8300
          %8437 = vmatpush1.bf16.msra.mxu0 %v8299
          %8438 = vmatprep.subr.bf16.mxu0 %v8302
          %8439 = vmatpush1.bf16.msra.mxu0 %v8301
          %8440 = vmatprep.subr.bf16.mxu0 %v8304
          %8441 = vmatpush1.bf16.msra.mxu0 %v8303
          %8442 = vmatprep.subr.bf16.mxu0 %v8306
          %8443 = vmatpush1.bf16.msra.mxu0 %v8305
          %8444 = vmatprep.subr.bf16.mxu0 %v8308
          %8445 = vmatpush1.bf16.msra.mxu0 %v8307
          %8446 = vmatprep.subr.bf16.mxu0 %v8310
          %8447 = vmatpush1.bf16.msra.mxu0 %v8309
          %8448 = vmatprep.subr.bf16.mxu0 %v8312
          %8449 = vmatpush1.bf16.msra.mxu0 %v8311
          %8450 = vmatprep.subr.bf16.mxu0 %v8314
          %8451 = vmatpush1.bf16.msra.mxu0 %v8313
          %8452 = vmatprep.subr.bf16.mxu0 %v8316
          %8453 = vmatpush1.bf16.msra.mxu0 %v8315
          %8454 = vmatprep.mubr.bf16.mxu0 %v7984
          %8455 = vmatmul.mubr.bf16.gmra.mrb[0].mxu0 %v7983
          %v8456 = vpop.f32.mrb[0].mxu0
          %v8457 = vadd.f32 %v8416, %v8456
          %v8458 = vpop.f32.mrb[0].mxu0
          %v8459 = vadd.f32 %v8418, %v8458
          %v8460 = vpop.f32.mrb[0].mxu0
          %v8461 = vpop.f32.mrb[0].mxu0
          %8462 = vdwg.mxu0
          %v8463 = vmax.f32 %v8457, 0.0
          %v8464 = vmax.f32 %v8459, 0.0
          %v8465 = vpack.c.bf16 %v8463, %v8463
          %v8466 = vpack.c.bf16 %v8464, %v8464
          %v8467 = vld [vmem:[%s11] sm:$0xf]
          %v8468 = vld [vmem:[%s11 + $0x4] sm:$0xf]
          %v8469 = vld [vmem:[%s11 + $0x8] sm:$0xf]
          %v8470 = vld [vmem:[%s11 + $0xc] sm:$0xf]
          %v8471 = vld [vmem:[%s11 + $0x10] sm:$0xf]
          %v8472 = vld [vmem:[%s11 + $0x14] sm:$0xf]
          %v8473 = vld [vmem:[%s11 + $0x18] sm:$0xf]
          %v8474 = vld [vmem:[%s11 + $0x1c] sm:$0xf]
          %v8475 = vld [vmem:[%s11 + $0x20] sm:$0xf]
          %v8476 = vld [vmem:[%s11 + $0x24] sm:$0xf]
          %v8477 = vld [vmem:[%s11 + $0x28] sm:$0xf]
          %v8478 = vld [vmem:[%s11 + $0x2c] sm:$0xf]
          %v8479 = vld [vmem:[%s11 + $0x30] sm:$0xf]
          %v8480 = vld [vmem:[%s11 + $0x34] sm:$0xf]
          %v8481 = vld [vmem:[%s11 + $0x38] sm:$0xf]
          %v8482 = vld [vmem:[%s11 + $0x3c] sm:$0xf]
          %v8483 = vld [vmem:[%s11 + $0x40] sm:$0xf]
          %v8484 = vld [vmem:[%s11 + $0x44] sm:$0xf]
          %v8485 = vld [vmem:[%s11 + $0x48] sm:$0xf]
          %v8486 = vld [vmem:[%s11 + $0x4c] sm:$0xf]
          %v8487 = vld [vmem:[%s11 + $0x50] sm:$0xf]
          %v8488 = vld [vmem:[%s11 + $0x54] sm:$0xf]
          %v8489 = vld [vmem:[%s11 + $0x58] sm:$0xf]
          %v8490 = vld [vmem:[%s11 + $0x5c] sm:$0xf]
          %v8491 = vld [vmem:[%s11 + $0x60] sm:$0xf]
          %v8492 = vld [vmem:[%s11 + $0x64] sm:$0xf]
          %v8493 = vld [vmem:[%s11 + $0x68] sm:$0xf]
          %v8494 = vld [vmem:[%s11 + $0x6c] sm:$0xf]
          %v8495 = vld [vmem:[%s11 + $0x70] sm:$0xf]
          %v8496 = vld [vmem:[%s11 + $0x74] sm:$0xf]
          %v8497 = vld [vmem:[%s11 + $0x78] sm:$0xf]
          %v8498 = vld [vmem:[%s11 + $0x7c] sm:$0xf]
          %v8499 = vld [vmem:[%s12] sm:$0x1]
          %v8501 = vlaneseq
          %v8502 = vshrl.u32 %v8501, 7
          %v8503 = vsub.s32 0, %v8502
          %v8504 = vrot.slane %v8499, %v8503
          %v8538 = vunpack.c.l.b16 %v8467
          %v8539 = vunpack.c.l.b16 %v8468
          %v8540 = vunpack.c.l.b16 %v8469
          %v8541 = vunpack.c.l.b16 %v8470
          %v8542 = vunpack.c.l.b16 %v8471
          %v8543 = vunpack.c.l.b16 %v8472
          %v8544 = vunpack.c.l.b16 %v8473
          %v8545 = vunpack.c.l.b16 %v8474
          %v8546 = vunpack.c.l.b16 %v8475
          %v8547 = vunpack.c.l.b16 %v8476
          %v8548 = vunpack.c.l.b16 %v8477
          %v8549 = vunpack.c.l.b16 %v8478
          %v8550 = vunpack.c.l.b16 %v8479
          %v8551 = vunpack.c.l.b16 %v8480
          %v8552 = vunpack.c.l.b16 %v8481
          %v8553 = vunpack.c.l.b16 %v8482
          %v8554 = vunpack.c.l.b16 %v8483
          %v8555 = vunpack.c.l.b16 %v8484
          %v8556 = vunpack.c.l.b16 %v8485
          %v8557 = vunpack.c.l.b16 %v8486
          %v8558 = vunpack.c.l.b16 %v8487
          %v8559 = vunpack.c.l.b16 %v8488
          %v8560 = vunpack.c.l.b16 %v8489
          %v8561 = vunpack.c.l.b16 %v8490
          %v8562 = vunpack.c.l.b16 %v8491
          %v8563 = vunpack.c.l.b16 %v8492
          %v8564 = vunpack.c.l.b16 %v8493
          %v8565 = vunpack.c.l.b16 %v8494
          %v8566 = vunpack.c.l.b16 %v8495
          %v8567 = vunpack.c.l.b16 %v8496
          %v8568 = vunpack.c.l.b16 %v8497
          %v8569 = vunpack.c.l.b16 %v8498
          %v8570 = vpack.c.b16 %v8539, %v8538
          %v8571 = vpack.c.b16 %v8541, %v8540
          %v8572 = vpack.c.b16 %v8543, %v8542
          %v8573 = vpack.c.b16 %v8545, %v8544
          %v8574 = vpack.c.b16 %v8547, %v8546
          %v8575 = vpack.c.b16 %v8549, %v8548
          %v8576 = vpack.c.b16 %v8551, %v8550
          %v8577 = vpack.c.b16 %v8553, %v8552
          %v8578 = vpack.c.b16 %v8555, %v8554
          %v8579 = vpack.c.b16 %v8557, %v8556
          %v8580 = vpack.c.b16 %v8559, %v8558
          %v8581 = vpack.c.b16 %v8561, %v8560
          %v8582 = vpack.c.b16 %v8563, %v8562
          %v8583 = vpack.c.b16 %v8565, %v8564
          %v8584 = vpack.c.b16 %v8567, %v8566
          %v8585 = vpack.c.b16 %v8569, %v8568
          %8602 = vmatprep.subr.bf16.mxu0 0
          %8603 = vmatpush1.bf16.msra.mxu0 %v8570
          %8604 = vmatprep.subr.bf16.mxu0 0
          %8605 = vmatpush1.bf16.msra.mxu0 %v8571
          %8606 = vmatprep.subr.bf16.mxu0 0
          %8607 = vmatpush1.bf16.msra.mxu0 %v8572
          %8608 = vmatprep.subr.bf16.mxu0 0
          %8609 = vmatpush1.bf16.msra.mxu0 %v8573
          %8610 = vmatprep.subr.bf16.mxu0 0
          %8611 = vmatpush1.bf16.msra.mxu0 %v8574
          %8612 = vmatprep.subr.bf16.mxu0 0
          %8613 = vmatpush1.bf16.msra.mxu0 %v8575
          %8614 = vmatprep.subr.bf16.mxu0 0
          %8615 = vmatpush1.bf16.msra.mxu0 %v8576
          %8616 = vmatprep.subr.bf16.mxu0 0
          %8617 = vmatpush1.bf16.msra.mxu0 %v8577
          %8618 = vmatprep.subr.bf16.mxu0 0
          %8619 = vmatpush1.bf16.msra.mxu0 %v8578
          %8620 = vmatprep.subr.bf16.mxu0 0
          %8621 = vmatpush1.bf16.msra.mxu0 %v8579
          %8622 = vmatprep.subr.bf16.mxu0 0
          %8623 = vmatpush1.bf16.msra.mxu0 %v8580
          %8624 = vmatprep.subr.bf16.mxu0 0
          %8625 = vmatpush1.bf16.msra.mxu0 %v8581
          %8626 = vmatprep.subr.bf16.mxu0 0
          %8627 = vmatpush1.bf16.msra.mxu0 %v8582
          %8628 = vmatprep.subr.bf16.mxu0 0
          %8629 = vmatpush1.bf16.msra.mxu0 %v8583
          %8630 = vmatprep.subr.bf16.mxu0 0
          %8631 = vmatpush1.bf16.msra.mxu0 %v8584
          %8632 = vmatprep.subr.bf16.mxu0 0
          %8633 = vmatpush1.bf16.msra.mxu0 %v8585
          %8634 = vmatprep.mubr.bf16.mxu0 %v8466
          %8635 = vmatmul.mubr.bf16.gmra.mrb[0].mxu0 %v8465
          %v8636 = vpop.f32.mrb[0].mxu0
          %v8637 = vadd.f32 %v8504, %v8636
          %v8638 = vpop.f32.mrb[0].mxu0
          %v8639 = vpop.f32.mrb[0].mxu0
          %v8640 = vpop.f32.mrb[0].mxu0
          %8641 = vdwg.mxu0
          %v8642 = vld [vmem:[%s13] sm:$0x1]
          %v8644 = vlaneseq
          %v8645 = vshrl.u32 %v8644, 7
          %v8646 = vsub.s32 0, %v8645
          %v8647 = vrot.slane %v8642, %v8646
          %v8649 = vadd.f32 %v8637, %v8647
          %vm8650 = vcmask 66560
          %8651 = vst.msk [vmem:[%s799] sm:$0x3] %vm8650, %v8649
        $region134: #{tpu_custom_call.1} parent=109 // pred_fallthru
          _
        %s8652 = sand.u32 %s351, 1
        %s8653 = scalar_lea.sflag [#allocation6], %s8652
        %s8654 = sand.u32 %s351, 1
        %s8655 = smul.addr %s8654, 2
        %s8656 = scalar_lea.vmem [#allocation9], %s8655
        // Predicated region
        $region135: #{tpu_custom_call.1} parent=109 // pred_check
          %p8657 = pneg %p361
        $region136: #{tpu_custom_call.1} parent=109 // pred_check_branch
          %8659 = sbr.rel (%p8657) target = $region138
        $region137: #{tpu_custom_call.1} parent=109 // pred_region
          %s8661 = ssub.s32 32, 32
          %8662 = vsyncadd %s8653, %s8661
          %s8663 = smul.addr %s34, 32
          %s8664 = scalar_lea.hbm %s14, %s8663
          %s8666 = sshll.u32 %s8656, 4
          %s8667 = int_to_ptr.vmem [resolvable:$true] %s8666
          %8669 = dma.vmem_to_hbm [thread:$0]  %s8667, 32, %s8664, %s8653
        $region138: #{tpu_custom_call.1} parent=109 // pred_fallthru
          _
      $region110: #{tpu_custom_call.1} parent=5 // pred_fallthru
        _
      %p8670 = scmp.le.s32.totalorder 2, %s25
      // Predicated region
      $region139: #{tpu_custom_call.1} parent=5 // pred_check
        %p8671 = pneg %p8670
      $region140: #{tpu_custom_call.1} parent=5 // pred_check_branch
        %8673 = sbr.rel (%p8671) target = $region142
      $region141: #{tpu_custom_call.1} parent=5 // pred_region
        %s8674 = ssub.s32 %s25, 2
        // Predicated region
        $region143: #{tpu_custom_call.1} parent=141 // pred_check
          %p8675 = pneg %p367
        $region144: #{tpu_custom_call.1} parent=141 // pred_check_branch
          %8677 = sbr.rel (%p8675) target = $region146
        $region145: #{tpu_custom_call.1} parent=141 // pred_region
          %s8678 = sand.u32 %s352, 1
          %s8679 = scalar_lea.sflag [#allocation6], %s8678
          %s8680 = sand.u32 %s352, 1
          %s8681 = smul.addr %s8680, 2
          %s8682 = scalar_lea.vmem [#allocation9], %s8681
          %8683 = dma.done %s8679, 32
        $region146: #{tpu_custom_call.1} parent=141 // pred_fallthru
          _
      $region142: #{tpu_custom_call.1} parent=5 // pred_fallthru
        _
    $region6: #{tpu_custom_call.1} parent=1 // loop_footer
      %s29 = sadd.s32 1, %s25
    $region7: #{tpu_custom_call.1} parent=1 // loop_footer_branch
      %24 = sbr.rel target = $region3
    $region8: #{tpu_custom_call.1} parent=1 // loop_exit
      _
    %8684 = vsyncpa [#allocation5], 1
    %s8685 = scalar_lea.sflag [#allocation5], 1
    %8686 = vsyncpa %s8685, 1
    %8687 = vsyncpa [#allocation8], 1
    %8688 = vsyncpa [#allocation6], 1
    %s8689 = scalar_lea.sflag [#allocation6], 1
    %8690 = vsyncpa %s8689, 1

</llo_original>
